<compile_context>
chip_gen: v7x
topology: tpu7x:2x2x1
jax: 0.10.0
libtpu: 0.0.40
codegen_flags: <defaults>
</compile_context>

<pallas_src>
import functools

import jax
import jax.numpy as jnp
from jax import lax
from jax.experimental import pallas as pl
from jax.experimental.pallas import tpu as pltpu


def _round_up(x, m):
    return (x + m - 1) // m * m


def _pick_k_tile(K):
    """K tile that divides the 128-padded K exactly (avoids zero-padding)."""
    Kp = _round_up(K, 128)
    for t in (512, 384, 256, 128):
        if Kp % t == 0:
            return t, Kp
    return 128, Kp  # unreachable (Kp is always a multiple of 128)


# --------------------------------------------------------------------------
# Pallas kernel 1: tiled GEMM with fused bias / residual-add / activation
# --------------------------------------------------------------------------
def _gemm_kernel(a_ref, b_ref, bias_ref, o_ref, acc_ref, *, act):
    @pl.when(pl.program_id(2) == 0)
    def _():
        acc_ref[...] = jnp.zeros_like(acc_ref)

    acc_ref[...] += jnp.dot(a_ref[...], b_ref[...],
                            preferred_element_type=jnp.float32)

    @pl.when(pl.program_id(2) == pl.num_programs(2) - 1)
    def _():
        out = acc_ref[...] + bias_ref[...]
        if act == "relu":
            out = jnp.maximum(out, 0.0)
        elif act == "tanh":
            out = jnp.tanh(out)
        o_ref[...] = out


def _gemm_res_kernel(a_ref, b_ref, bias_ref, res_ref, o_ref, acc_ref, *, act):
    @pl.when(pl.program_id(2) == 0)
    def _():
        acc_ref[...] = jnp.zeros_like(acc_ref)

    acc_ref[...] += jnp.dot(a_ref[...], b_ref[...],
                            preferred_element_type=jnp.float32)

    @pl.when(pl.program_id(2) == pl.num_programs(2) - 1)
    def _():
        out = acc_ref[...] + bias_ref[...] + res_ref[...]
        if act == "relu":
            out = jnp.maximum(out, 0.0)
        elif act == "tanh":
            out = jnp.tanh(out)
        o_ref[...] = out


def fused_gemm(a, w_bf16, bias=None, *, act="none", residual=None):
    """a: (M, K) f32/bf16, w_bf16: (K, N) bf16, bias: (N,) f32 -> (M, N) f32.

    Optional `residual` (M, N) is added in the epilogue before the activation.
    bf16 operands, f32 accumulation in a VMEM scratch accumulator.
    """
    M, K = a.shape
    Kw, N = w_bf16.shape
    assert K == Kw, (K, Kw)

    tm = min(256, _round_up(M, 16))
    Mp = _round_up(M, tm)
    tn = min(256, _round_up(N, 128))
    Np = _round_up(N, tn)
    tk, Kp = _pick_k_tile(K)

    a_p = jnp.pad(a.astype(jnp.bfloat16), ((0, Mp - M), (0, Kp - K)))
    w_p = jnp.pad(w_bf16, ((0, Kp - K), (0, Np - N)))
    if bias is None:
        bias_p = jnp.zeros((1, Np), jnp.float32)
    else:
        bias_p = jnp.pad(bias.astype(jnp.float32), (0, Np - N)).reshape(1, Np)

    in_specs = [
        pl.BlockSpec((tm, tk), lambda i, j, k: (i, k)),
        pl.BlockSpec((tk, tn), lambda i, j, k: (k, j)),
        pl.BlockSpec((1, tn), lambda i, j, k: (0, j)),
    ]
    args = [a_p, w_p, bias_p]
    if residual is not None:
        res_p = jnp.pad(residual.astype(jnp.float32),
                        ((0, Mp - M), (0, Np - N)))
        in_specs.append(pl.BlockSpec((tm, tn), lambda i, j, k: (i, j)))
        args.append(res_p)
        kernel = functools.partial(_gemm_res_kernel, act=act)
    else:
        kernel = functools.partial(_gemm_kernel, act=act)

    out = pl.pallas_call(
        kernel,
        out_shape=jax.ShapeDtypeStruct((Mp, Np), jnp.float32),
        grid=(Mp // tm, Np // tn, Kp // tk),
        in_specs=in_specs,
        out_specs=pl.BlockSpec((tm, tn), lambda i, j, k: (i, j)),
        scratch_shapes=[pltpu.VMEM((tm, tn), jnp.float32)],
        compiler_params=pltpu.CompilerParams(
            dimension_semantics=("parallel", "parallel", "arbitrary")),
    )(*args)
    return out[:M, :N]


# --------------------------------------------------------------------------
# Pallas kernel 2: vector quantizer (distances + argmin + gather + counts)
# --------------------------------------------------------------------------
def _vq_kernel(x_ref, e_ref, esq_ref, q_ref, cnt_ref, *, num_codes, rows_valid):
    i = pl.program_id(1)
    x = x_ref[...]                                  # (tm, Dp) f32
    e = e_ref[...]                                  # (Kp, Dp) f32, resident
    tm = x.shape[0]

    x2 = jnp.sum(x * x, axis=1, keepdims=True)      # (tm, 1)
    xe = lax.dot_general(x, e, (((1,), (1,)), ((), ())),
                         preferred_element_type=jnp.float32)       # (tm, Kp)
    d = x2 + esq_ref[...] - 2.0 * xe                # (tm, Kp)

    col = lax.broadcasted_iota(jnp.int32, d.shape, 1)
    d = jnp.where(col < num_codes, d, jnp.float32(1e30))   # mask padded codes
    # first-occurrence argmin (torch.argmin tie-breaking)
    dmin = jnp.min(d, axis=1, keepdims=True)
    idx = jnp.min(jnp.where(d == dmin, col, num_codes), axis=1, keepdims=True)
    onehot = (col == idx).astype(jnp.float32)       # (tm, Kp) — stays in VMEM

    # quantized rows = one-hot row selection of the codebook (exact)
    q_ref[...] = jnp.dot(onehot, e, preferred_element_type=jnp.float32)

    # per-person code usage counts (mask rows beyond the valid row count)
    row = lax.broadcasted_iota(jnp.int32, (tm, 1), 0) + i * tm
    valid = (row < rows_valid).astype(jnp.float32)
    counts = jnp.sum(onehot * valid, axis=0, keepdims=True)        # (1, Kp)

    @pl.when(i == 0)
    def _():
        cnt_ref[...] = jnp.zeros_like(cnt_ref)

    cnt_ref[...] += counts[None, :, :]              # broadcast over 8 rows


def vq_lookup(flat, codebook, num_persons):
    """flat: (P*M_per, D) rows in raw-NCHW order, codebook: (K, D).

    Returns quantized rows (P, M_per, D) and per-person code counts (P, K).
    """
    Mtot, D = flat.shape
    K, D2 = codebook.shape
    assert D == D2 and Mtot % num_persons == 0
    M_per = Mtot // num_persons

    Dp = _round_up(D, 128)
    Kp = _round_up(K, 128)
    tm = min(512, _round_up(M_per, 8))
    Mp_per = _round_up(M_per, tm)
    bpp = Mp_per // tm

    x3 = flat.reshape(num_persons, M_per, D).astype(jnp.float32)
    x3 = jnp.pad(x3, ((0, 0), (0, Mp_per - M_per), (0, Dp - D)))
    x2d = x3.reshape(num_persons * Mp_per, Dp)
    e_p = jnp.pad(codebook.astype(jnp.float32), ((0, Kp - K), (0, Dp - D)))
    e_sq = jnp.sum(e_p * e_p, axis=1).reshape(1, Kp)

    q, cnt = pl.pallas_call(
        functools.partial(_vq_kernel, num_codes=K, rows_valid=M_per),
        out_shape=(
            jax.ShapeDtypeStruct((num_persons * Mp_per, Dp), jnp.float32),
            jax.ShapeDtypeStruct((num_persons, 8, Kp), jnp.float32),
        ),
        grid=(num_persons, bpp),
        in_specs=[
            pl.BlockSpec((tm, Dp), lambda p, i: (p * bpp + i, 0)),
            pl.BlockSpec((Kp, Dp), lambda p, i: (0, 0)),
            pl.BlockSpec((1, Kp), lambda p, i: (0, 0)),
        ],
        out_specs=(
            pl.BlockSpec((tm, Dp), lambda p, i: (p * bpp + i, 0)),
            pl.BlockSpec((1, 8, Kp), lambda p, i: (p, 0, 0)),
        ),
        compiler_params=pltpu.CompilerParams(
            dimension_semantics=("parallel", "arbitrary")),
    )(x2d, e_p, e_sq)

    q = q.reshape(num_persons, Mp_per, Dp)[:, :M_per, :D]
    counts = cnt[:, 0, :K]
    return q, counts


# --------------------------------------------------------------------------
# Plain-JAX glue: NHWC conv wrapper, bilinear upsample, module forwards
# --------------------------------------------------------------------------
def conv2d_nhwc(x, w2d, bias, kh, kw, stride, padding, act="none", residual=None):
    """x: (B, H, W, Cin) NHWC; w2d: (kh*kw*Cin, Cout) bf16 GEMM layout."""
    B, H, W, C = x.shape
    sh, sw = stride
    ph, pw = padding
    Ho = (H + 2 * ph - kh) // sh + 1
    Wo = (W + 2 * pw - kw) // sw + 1
    if kh == 1 and kw == 1 and sh == 1 and sw == 1 and ph == 0 and pw == 0:
        col = x
    else:
        xp = jnp.pad(x, ((0, 0), (ph, ph), (pw, pw), (0, 0)))
        patches = []
        for di in range(kh):
            for dj in range(kw):
                patches.append(xp[:, di:di + (Ho - 1) * sh + 1:sh,
                                  dj:dj + (Wo - 1) * sw + 1:sw, :])
        col = jnp.concatenate(patches, axis=-1)        # (B, Ho, Wo, kh*kw*C)
    a = col.reshape(B * Ho * Wo, kh * kw * C)
    res2d = None if residual is None else residual.reshape(B * Ho * Wo, -1)
    n_out = w2d.shape[1]
    y = fused_gemm(a, w2d, bias, act=act, residual=res2d)
    return y.reshape(B, Ho, Wo, n_out)


def upsample_bilinear_x2_align_corners(x):
    """nn.Upsample(scale_factor=2, mode='bilinear', align_corners=True), NHWC."""
    B, H, W, C = x.shape
    Ho, Wo = 2 * H, 2 * W

    def coords(n_in, n_out):
        if n_out == 1 or n_in == 1:
            return jnp.zeros((n_out,), jnp.float32)
        return jnp.arange(n_out, dtype=jnp.float32) * (n_in - 1) / (n_out - 1)

    hy, wx = coords(H, Ho), coords(W, Wo)
    h0 = jnp.floor(hy).astype(jnp.int32)
    h1 = jnp.minimum(h0 + 1, H - 1)
    hf = hy - h0.astype(jnp.float32)
    w0 = jnp.floor(wx).astype(jnp.int32)
    w1 = jnp.minimum(w0 + 1, W - 1)
    wf = wx - w0.astype(jnp.float32)

    top = x[:, h0, :, :] * (1.0 - hf)[None, :, None, None] \
        + x[:, h1, :, :] * hf[None, :, None, None]
    out = top[:, :, w0, :] * (1.0 - wf)[None, None, :, None] \
        + top[:, :, w1, :] * wf[None, None, :, None]
    return out


def residual_stack_forward(layers, x):
    for lp in layers:
        h = conv2d_nhwc(x, lp["w1"], None, 3, 3, (1, 1), (1, 1), act="relu")
        # 1x1 conv with residual-add + ReLU fused into the GEMM epilogue
        x = conv2d_nhwc(h, lp["w2"], None, 1, 1, (1, 1), (0, 0),
                        act="relu", residual=x)
    return x  # trailing stack ReLU is a no-op after the per-layer ReLU


def encoder_forward(p, x):
    # x: (2B, T, 144) -> NHWC (2B, T, 24, 6)
    PB, T, _ = x.shape
    x = x.reshape(PB, T, 24, 6)
    x = conv2d_nhwc(x, p["conv1_w"], p["conv1_b"], 4, 4, (2, 2), (1, 1), act="relu")
    x = conv2d_nhwc(x, p["conv2_w"], p["conv2_b"], 4, 4, (2, 2), (1, 1), act="relu")
    x = conv2d_nhwc(x, p["conv3_w"], p["conv3_b"], 3, 3, (1, 1), (1, 1), act="none")
    return residual_stack_forward(p["res"], x)


def decoder_forward(p, x):
    # x: (2B, T/4, 6, embedding_dim) NHWC
    x = conv2d_nhwc(x, p["conv1_w"], p["conv1_b"], 3, 3, (1, 1), (1, 1), act="none")
    x = residual_stack_forward(p["res"], x)
    x = upsample_bilinear_x2_align_corners(x)
    x = conv2d_nhwc(x, p["up1_w"], p["up1_b"], 3, 3, (1, 1), (1, 1), act="none")
    x = upsample_bilinear_x2_align_corners(x)
    x = conv2d_nhwc(x, p["up2_w"], p["up2_b"], 3, 3, (1, 1), (1, 1), act="tanh")
    # NHWC output == the reference's permute(0, 2, 3, 1)
    PB, N, J, D6 = x.shape
    return x.reshape(PB, N, J * D6)[:, :, None, :]          # (2B, T, 1, 144)


def vq_forward(codebook, z_nhwc, commitment_cost):
    """z_nhwc: (2B, H, W, C=embedding_dim).  Reproduces the reference's
    raw-NCHW `view(-1, embedding_dim)` flatten before the lookup."""
    PB, H, W, C = z_nhwc.shape
    num_persons = 2
    z_nchw = jnp.transpose(z_nhwc, (0, 3, 1, 2))             # (2B, C, H, W)
    flat = z_nchw.reshape(-1, C)                             # raw NCHW flatten
    q3, counts = vq_lookup(flat, codebook, num_persons)      # (P, M, C), (P, K)
    M_per = q3.shape[1]
    q_flat = q3.reshape(-1, C)

    # forward loss value: (loss1 + loss2)/2 with loss_i = (1+cc)*mse_i,
    # equal element counts per person => same as (1+cc)*mse over both.
    mse = jnp.mean((q_flat - flat) ** 2)
    loss = (1.0 + commitment_cost) * mse

    avg = counts / jnp.float32(M_per)
    ppl = jnp.exp(-jnp.sum(avg * jnp.log(avg + 1e-10), axis=1))   # (P,)

    q_nchw = q_flat.reshape(PB, C, H, W)
    q_nhwc = jnp.transpose(q_nchw, (0, 2, 3, 1))
    # TODO(synk): straight-through estimator (inputs + sg(quantized - inputs))
    #             omitted — forward value is just `quantized`.
    return loss, q_nhwc, ppl[0], ppl[1]


def motion_vqvae_forward(params, x, commitment_cost=0.1):
    # x: (B, T, P=2, D=144).  Batch both persons through one pass.
    B = x.shape[0]
    xc = jnp.concatenate([x[:, :, 0, :], x[:, :, 1, :]], axis=0)  # (2B, T, 144)
    enc = encoder_forward(params["encoder"], xc)
    z = conv2d_nhwc(enc, params["pre_vq_w"], params["pre_vq_b"],
                    1, 1, (1, 1), (0, 0), act="none")
    loss, q_nhwc, ppl1, ppl2 = vq_forward(params["codebook"], z, commitment_cost)
    recon = decoder_forward(params["decoder"], q_nhwc)            # (2B, T, 1, 144)
    x_recon = jnp.concatenate([recon[:B], recon[B:]], axis=2)     # (B, T, 2, 144)
    return loss, x_recon, ppl1, ppl2


# --------------------------------------------------------------------------
# Deterministic parameter initialization (shapes from the nn.Module __init__)
# Conv weights pre-converted to im2col GEMM layout (kh*kw*Cin, Cout) in bf16.
# --------------------------------------------------------------------------
def init_params(key, num_hiddens, num_residual_layers, num_residual_hiddens,
                num_embeddings, embedding_dim):
    keys = iter(jax.random.split(key, 64))

    def conv_w(cout, cin, kh, kw):
        w4 = jax.random.normal(next(keys), (cout, cin, kh, kw), jnp.float32) * 0.05
        return jnp.transpose(w4, (2, 3, 1, 0)).reshape(kh * kw * cin, cout) \
                  .astype(jnp.bfloat16)

    def conv_b(c):
        return jax.random.normal(next(keys), (c,), jnp.float32) * 0.01

    nh = num_hiddens

    def res_layers(in_ch):
        return [{"w1": conv_w(num_residual_hiddens, in_ch, 3, 3),
                 "w2": conv_w(nh, num_residual_hiddens, 1, 1)}
                for _ in range(num_residual_layers)]

    encoder = {
        "conv1_w": conv_w(nh // 2, 6, 4, 4), "conv1_b": conv_b(nh // 2),
        "conv2_w": conv_w(nh, nh // 2, 4, 4), "conv2_b": conv_b(nh),
        "conv3_w": conv_w(nh, nh, 3, 3), "conv3_b": conv_b(nh),
        "res": res_layers(nh),
    }
    decoder = {
        "conv1_w": conv_w(nh, embedding_dim, 3, 3), "conv1_b": conv_b(nh),
        "res": res_layers(nh),
        "up1_w": conv_w(nh // 2, nh, 3, 3), "up1_b": conv_b(nh // 2),
        "up2_w": conv_w(6, nh // 2, 3, 3), "up2_b": conv_b(6),
    }
    codebook = jax.random.uniform(
        next(keys), (num_embeddings, embedding_dim), jnp.float32,
        minval=-1.0 / num_embeddings, maxval=1.0 / num_embeddings)
    return {
        "encoder": encoder,
        "pre_vq_w": conv_w(embedding_dim, nh, 1, 1),
        "pre_vq_b": conv_b(embedding_dim),
        "codebook": codebook,
        "decoder": decoder,
    }


if __name__ == "__main__":
    # small config consistent with the module defaults (scaled down)
    num_hiddens = 64
    num_residual_layers = 2
    num_residual_hiddens = 32
    num_embeddings = 256
    embedding_dim = 128
    commitment_cost = 0.1

    B, T, P, D = 2, 8, 2, 144  # D must be 24*6; T divisible by 4

    key = jax.random.PRNGKey(0)
    pkey, xkey = jax.random.split(key)
    params = init_params(pkey, num_hiddens, num_residual_layers,
                         num_residual_hiddens, num_embeddings, embedding_dim)
    x = jax.random.normal(xkey, (B, T, P, D), jnp.float32)

    fwd = jax.jit(functools.partial(motion_vqvae_forward,
                                    commitment_cost=commitment_cost))
    loss, x_recon, ppl1, ppl2 = fwd(params, x)
    jax.block_until_ready((loss, x_recon, ppl1, ppl2))

    assert x_recon.shape == (B, T, P, D), x_recon.shape
    assert bool(jnp.isfinite(loss)) and bool(jnp.isfinite(ppl1)) and bool(jnp.isfinite(ppl2))
    print("KERNEL_OK")
</pallas_src>

<mosaic_0001>
module attributes {stable_mosaic.version = 11 : i64} {
  func.func @_gemm_kernel(%arg0: i32, %arg1: i32, %arg2: i32, %arg3: memref<192x128xbf16, #tpu.memory_space<vmem>>, %arg4: memref<128x128xbf16, #tpu.memory_space<vmem>>, %arg5: memref<1x128xf32, #tpu.memory_space<vmem>>, %arg6: memref<192x128xf32, #tpu.memory_space<vmem>>, %arg7: memref<192x128xf32, #tpu.memory_space<vmem>>) attributes {dimension_semantics = [#tpu.dimension_semantics<parallel>, #tpu.dimension_semantics<parallel>, #tpu.dimension_semantics<arbitrary>], iteration_bounds = array<i64: 1, 1, 1>, scalar_prefetch = 0 : i64, scratch_operands = 1 : i64, tpu.core_type = #tpu.core_type<tc>, window_params = [{transform_indices = @transform_0, window_bounds = array<i64: 192, 128>}, {transform_indices = @transform_1, window_bounds = array<i64: 128, 128>}, {transform_indices = @transform_2, window_bounds = array<i64: 1, 128>}, {transform_indices = @transform_3, window_bounds = array<i64: 192, 128>}]} {
    %c0_i32 = arith.constant 0 : i32
    %0 = arith.cmpi eq, %arg2, %c0_i32 : i32
    %1 = arith.extui %0 : i1 to i32
    %c0_i32_0 = arith.constant 0 : i32
    %2 = arith.cmpi ne, %1, %c0_i32_0 : i32
    scf.if %2 {
      %cst_10 = arith.constant 0.000000e+00 : f32
      %12 = vector.broadcast %cst_10 : f32 to vector<192x128xf32>
      %c0_11 = arith.constant 0 : index
      %c0_12 = arith.constant 0 : index
      %13 = vector.load %arg7[%c0_11, %c0_12] : memref<192x128xf32, #tpu.memory_space<vmem>>, vector<192x128xf32>
      tpu.vector_store %arg7[%c0_11, %c0_12], %12 {strides = array<i32>} : memref<192x128xf32, #tpu.memory_space<vmem>>, vector<192x128xf32>,
    } else {
    }
    %c0 = arith.constant 0 : index
    %c0_1 = arith.constant 0 : index
    %3 = vector.load %arg7[%c0, %c0_1] : memref<192x128xf32, #tpu.memory_space<vmem>>, vector<192x128xf32>
    %c0_2 = arith.constant 0 : index
    %c0_3 = arith.constant 0 : index
    %4 = vector.load %arg3[%c0_2, %c0_3] : memref<192x128xbf16, #tpu.memory_space<vmem>>, vector<192x128xbf16>
    %c0_4 = arith.constant 0 : index
    %c0_5 = arith.constant 0 : index
    %5 = vector.load %arg4[%c0_4, %c0_5] : memref<128x128xbf16, #tpu.memory_space<vmem>>, vector<128x128xbf16>
    %cst = arith.constant dense<0.000000e+00> : vector<192x128xf32>
    %6 = tpu.matmul %4, %5, %cst {dimension_numbers = #tpu.dot_dimension_numbers<[1], [0], [0], [1], [0, 0, 1, 1], [], []>} : vector<192x128xbf16>, vector<128x128xbf16>, vector<192x128xf32> -> vector<192x128xf32>
    %7 = arith.addf %3, %6 : vector<192x128xf32>
    %c0_6 = arith.constant 0 : index
    %c0_7 = arith.constant 0 : index
    %8 = vector.load %arg7[%c0_6, %c0_7] : memref<192x128xf32, #tpu.memory_space<vmem>>, vector<192x128xf32>
    tpu.vector_store %arg7[%c0_6, %c0_7], %7 {strides = array<i32>} : memref<192x128xf32, #tpu.memory_space<vmem>>, vector<192x128xf32>,
    %c0_i32_8 = arith.constant 0 : i32
    %9 = arith.cmpi eq, %arg2, %c0_i32_8 : i32
    %10 = arith.extui %9 : i1 to i32
    %c0_i32_9 = arith.constant 0 : i32
    %11 = arith.cmpi ne, %10, %c0_i32_9 : i32
    scf.if %11 {
      %c0_10 = arith.constant 0 : index
      %c0_11 = arith.constant 0 : index
      %12 = vector.load %arg7[%c0_10, %c0_11] : memref<192x128xf32, #tpu.memory_space<vmem>>, vector<192x128xf32>
      %c0_12 = arith.constant 0 : index
      %c0_13 = arith.constant 0 : index
      %13 = vector.load %arg5[%c0_12, %c0_13] : memref<1x128xf32, #tpu.memory_space<vmem>>, vector<1x128xf32>
      %14 = vector.broadcast %13 : vector<1x128xf32> to vector<192x128xf32>
      %15 = arith.addf %12, %14 : vector<192x128xf32>
      %cst_14 = arith.constant 0.000000e+00 : f32
      %16 = vector.broadcast %cst_14 : f32 to vector<192x128xf32>
      %17 = arith.maximumf %15, %16 : vector<192x128xf32>
      %c0_15 = arith.constant 0 : index
      %c0_16 = arith.constant 0 : index
      %18 = vector.load %arg6[%c0_15, %c0_16] : memref<192x128xf32, #tpu.memory_space<vmem>>, vector<192x128xf32>
      tpu.vector_store %arg6[%c0_15, %c0_16], %17 {strides = array<i32>} : memref<192x128xf32, #tpu.memory_space<vmem>>, vector<192x128xf32>,
    } else {
    }
    return
  }
  func.func @transform_0(%arg0: i32, %arg1: i32, %arg2: i32) -> (i32, i32) {
    %c0_i32 = arith.constant 0 : i32
    return %arg0, %arg2 : i32, i32
  }
  func.func @transform_1(%arg0: i32, %arg1: i32, %arg2: i32) -> (i32, i32) {
    %c0_i32 = arith.constant 0 : i32
    return %arg2, %arg1 : i32, i32
  }
  func.func @transform_2(%arg0: i32, %arg1: i32, %arg2: i32) -> (i32, i32) {
    %c0_i32 = arith.constant 0 : i32
    %c0_i32_0 = arith.constant 0 : i32
    return %c0_i32, %arg1 : i32, i32
  }
  func.func @transform_3(%arg0: i32, %arg1: i32, %arg2: i32) -> (i32, i32) {
    %c0_i32 = arith.constant 0 : i32
    return %arg0, %arg1 : i32, i32
  }
}

module attributes {stable_mosaic.version = 11 : i64} {
  func.func @_gemm_kernel(%arg0: i32, %arg1: i32, %arg2: i32, %arg3: memref<48x512xbf16, #tpu.memory_space<vmem>>, %arg4: memref<512x128xbf16, #tpu.memory_space<vmem>>, %arg5: memref<1x128xf32, #tpu.memory_space<vmem>>, %arg6: memref<48x128xf32, #tpu.memory_space<vmem>>, %arg7: memref<48x128xf32, #tpu.memory_space<vmem>>) attributes {dimension_semantics = [#tpu.dimension_semantics<parallel>, #tpu.dimension_semantics<parallel>, #tpu.dimension_semantics<arbitrary>], iteration_bounds = array<i64: 1, 1, 1>, scalar_prefetch = 0 : i64, scratch_operands = 1 : i64, tpu.core_type = #tpu.core_type<tc>, window_params = [{transform_indices = @transform_0, window_bounds = array<i64: 48, 512>}, {transform_indices = @transform_1, window_bounds = array<i64: 512, 128>}, {transform_indices = @transform_2, window_bounds = array<i64: 1, 128>}, {transform_indices = @transform_3, window_bounds = array<i64: 48, 128>}]} {
    %c0_i32 = arith.constant 0 : i32
    %0 = arith.cmpi eq, %arg2, %c0_i32 : i32
    %1 = arith.extui %0 : i1 to i32
    %c0_i32_0 = arith.constant 0 : i32
    %2 = arith.cmpi ne, %1, %c0_i32_0 : i32
    scf.if %2 {
      %cst_10 = arith.constant 0.000000e+00 : f32
      %12 = vector.broadcast %cst_10 : f32 to vector<48x128xf32>
      %c0_11 = arith.constant 0 : index
      %c0_12 = arith.constant 0 : index
      %13 = vector.load %arg7[%c0_11, %c0_12] : memref<48x128xf32, #tpu.memory_space<vmem>>, vector<48x128xf32>
      tpu.vector_store %arg7[%c0_11, %c0_12], %12 {strides = array<i32>} : memref<48x128xf32, #tpu.memory_space<vmem>>, vector<48x128xf32>,
    } else {
    }
    %c0 = arith.constant 0 : index
    %c0_1 = arith.constant 0 : index
    %3 = vector.load %arg7[%c0, %c0_1] : memref<48x128xf32, #tpu.memory_space<vmem>>, vector<48x128xf32>
    %c0_2 = arith.constant 0 : index
    %c0_3 = arith.constant 0 : index
    %4 = vector.load %arg3[%c0_2, %c0_3] : memref<48x512xbf16, #tpu.memory_space<vmem>>, vector<48x512xbf16>
    %c0_4 = arith.constant 0 : index
    %c0_5 = arith.constant 0 : index
    %5 = vector.load %arg4[%c0_4, %c0_5] : memref<512x128xbf16, #tpu.memory_space<vmem>>, vector<512x128xbf16>
    %cst = arith.constant dense<0.000000e+00> : vector<48x128xf32>
    %6 = tpu.matmul %4, %5, %cst {dimension_numbers = #tpu.dot_dimension_numbers<[1], [0], [0], [1], [0, 0, 1, 1], [], []>} : vector<48x512xbf16>, vector<512x128xbf16>, vector<48x128xf32> -> vector<48x128xf32>
    %7 = arith.addf %3, %6 : vector<48x128xf32>
    %c0_6 = arith.constant 0 : index
    %c0_7 = arith.constant 0 : index
    %8 = vector.load %arg7[%c0_6, %c0_7] : memref<48x128xf32, #tpu.memory_space<vmem>>, vector<48x128xf32>
    tpu.vector_store %arg7[%c0_6, %c0_7], %7 {strides = array<i32>} : memref<48x128xf32, #tpu.memory_space<vmem>>, vector<48x128xf32>,
    %c0_i32_8 = arith.constant 0 : i32
    %9 = arith.cmpi eq, %arg2, %c0_i32_8 : i32
    %10 = arith.extui %9 : i1 to i32
    %c0_i32_9 = arith.constant 0 : i32
    %11 = arith.cmpi ne, %10, %c0_i32_9 : i32
    scf.if %11 {
      %c0_10 = arith.constant 0 : index
      %c0_11 = arith.constant 0 : index
      %12 = vector.load %arg7[%c0_10, %c0_11] : memref<48x128xf32, #tpu.memory_space<vmem>>, vector<48x128xf32>
      %c0_12 = arith.constant 0 : index
      %c0_13 = arith.constant 0 : index
      %13 = vector.load %arg5[%c0_12, %c0_13] : memref<1x128xf32, #tpu.memory_space<vmem>>, vector<1x128xf32>
      %14 = vector.broadcast %13 : vector<1x128xf32> to vector<48x128xf32>
      %15 = arith.addf %12, %14 : vector<48x128xf32>
      %cst_14 = arith.constant 0.000000e+00 : f32
      %16 = vector.broadcast %cst_14 : f32 to vector<48x128xf32>
      %17 = arith.maximumf %15, %16 : vector<48x128xf32>
      %c0_15 = arith.constant 0 : index
      %c0_16 = arith.constant 0 : index
      %18 = vector.load %arg6[%c0_15, %c0_16] : memref<48x128xf32, #tpu.memory_space<vmem>>, vector<48x128xf32>
      tpu.vector_store %arg6[%c0_15, %c0_16], %17 {strides = array<i32>} : memref<48x128xf32, #tpu.memory_space<vmem>>, vector<48x128xf32>,
    } else {
    }
    return
  }
  func.func @transform_0(%arg0: i32, %arg1: i32, %arg2: i32) -> (i32, i32) {
    %c0_i32 = arith.constant 0 : i32
    return %arg0, %arg2 : i32, i32
  }
  func.func @transform_1(%arg0: i32, %arg1: i32, %arg2: i32) -> (i32, i32) {
    %c0_i32 = arith.constant 0 : i32
    return %arg2, %arg1 : i32, i32
  }
  func.func @transform_2(%arg0: i32, %arg1: i32, %arg2: i32) -> (i32, i32) {
    %c0_i32 = arith.constant 0 : i32
    %c0_i32_0 = arith.constant 0 : i32
    return %c0_i32, %arg1 : i32, i32
  }
  func.func @transform_3(%arg0: i32, %arg1: i32, %arg2: i32) -> (i32, i32) {
    %c0_i32 = arith.constant 0 : i32
    return %arg0, %arg1 : i32, i32
  }
}

module attributes {stable_mosaic.version = 11 : i64} {
  func.func @_gemm_kernel(%arg0: i32, %arg1: i32, %arg2: i32, %arg3: memref<48x128xbf16, #tpu.memory_space<vmem>>, %arg4: memref<128x128xbf16, #tpu.memory_space<vmem>>, %arg5: memref<1x128xf32, #tpu.memory_space<vmem>>, %arg6: memref<48x128xf32, #tpu.memory_space<vmem>>, %arg7: memref<48x128xf32, #tpu.memory_space<vmem>>) attributes {dimension_semantics = [#tpu.dimension_semantics<parallel>, #tpu.dimension_semantics<parallel>, #tpu.dimension_semantics<arbitrary>], iteration_bounds = array<i64: 1, 1, 5>, scalar_prefetch = 0 : i64, scratch_operands = 1 : i64, tpu.core_type = #tpu.core_type<tc>, window_params = [{transform_indices = @transform_0, window_bounds = array<i64: 48, 128>}, {transform_indices = @transform_1, window_bounds = array<i64: 128, 128>}, {transform_indices = @transform_2, window_bounds = array<i64: 1, 128>}, {transform_indices = @transform_3, window_bounds = array<i64: 48, 128>}]} {
    %c0_i32 = arith.constant 0 : i32
    %0 = arith.cmpi eq, %arg2, %c0_i32 : i32
    %1 = arith.extui %0 : i1 to i32
    %c0_i32_0 = arith.constant 0 : i32
    %2 = arith.cmpi ne, %1, %c0_i32_0 : i32
    scf.if %2 {
      %cst_9 = arith.constant 0.000000e+00 : f32
      %12 = vector.broadcast %cst_9 : f32 to vector<48x128xf32>
      %c0_10 = arith.constant 0 : index
      %c0_11 = arith.constant 0 : index
      %13 = vector.load %arg7[%c0_10, %c0_11] : memref<48x128xf32, #tpu.memory_space<vmem>>, vector<48x128xf32>
      tpu.vector_store %arg7[%c0_10, %c0_11], %12 {strides = array<i32>} : memref<48x128xf32, #tpu.memory_space<vmem>>, vector<48x128xf32>,
    } else {
    }
    %c0 = arith.constant 0 : index
    %c0_1 = arith.constant 0 : index
    %3 = vector.load %arg7[%c0, %c0_1] : memref<48x128xf32, #tpu.memory_space<vmem>>, vector<48x128xf32>
    %c0_2 = arith.constant 0 : index
    %c0_3 = arith.constant 0 : index
    %4 = vector.load %arg3[%c0_2, %c0_3] : memref<48x128xbf16, #tpu.memory_space<vmem>>, vector<48x128xbf16>
    %c0_4 = arith.constant 0 : index
    %c0_5 = arith.constant 0 : index
    %5 = vector.load %arg4[%c0_4, %c0_5] : memref<128x128xbf16, #tpu.memory_space<vmem>>, vector<128x128xbf16>
    %cst = arith.constant dense<0.000000e+00> : vector<48x128xf32>
    %6 = tpu.matmul %4, %5, %cst {dimension_numbers = #tpu.dot_dimension_numbers<[1], [0], [0], [1], [0, 0, 1, 1], [], []>} : vector<48x128xbf16>, vector<128x128xbf16>, vector<48x128xf32> -> vector<48x128xf32>
    %7 = arith.addf %3, %6 : vector<48x128xf32>
    %c0_6 = arith.constant 0 : index
    %c0_7 = arith.constant 0 : index
    %8 = vector.load %arg7[%c0_6, %c0_7] : memref<48x128xf32, #tpu.memory_space<vmem>>, vector<48x128xf32>
    tpu.vector_store %arg7[%c0_6, %c0_7], %7 {strides = array<i32>} : memref<48x128xf32, #tpu.memory_space<vmem>>, vector<48x128xf32>,
    %c4_i32 = arith.constant 4 : i32
    %9 = arith.cmpi eq, %arg2, %c4_i32 : i32
    %10 = arith.extui %9 : i1 to i32
    %c0_i32_8 = arith.constant 0 : i32
    %11 = arith.cmpi ne, %10, %c0_i32_8 : i32
    scf.if %11 {
      %c0_9 = arith.constant 0 : index
      %c0_10 = arith.constant 0 : index
      %12 = vector.load %arg7[%c0_9, %c0_10] : memref<48x128xf32, #tpu.memory_space<vmem>>, vector<48x128xf32>
      %c0_11 = arith.constant 0 : index
      %c0_12 = arith.constant 0 : index
      %13 = vector.load %arg5[%c0_11, %c0_12] : memref<1x128xf32, #tpu.memory_space<vmem>>, vector<1x128xf32>
      %14 = vector.broadcast %13 : vector<1x128xf32> to vector<48x128xf32>
      %15 = arith.addf %12, %14 : vector<48x128xf32>
      %c0_13 = arith.constant 0 : index
      %c0_14 = arith.constant 0 : index
      %16 = vector.load %arg6[%c0_13, %c0_14] : memref<48x128xf32, #tpu.memory_space<vmem>>, vector<48x128xf32>
      tpu.vector_store %arg6[%c0_13, %c0_14], %15 {strides = array<i32>} : memref<48x128xf32, #tpu.memory_space<vmem>>, vector<48x128xf32>,
    } else {
    }
    return
  }
  func.func @transform_0(%arg0: i32, %arg1: i32, %arg2: i32) -> (i32, i32) {
    %c0_i32 = arith.constant 0 : i32
    return %arg0, %arg2 : i32, i32
  }
  func.func @transform_1(%arg0: i32, %arg1: i32, %arg2: i32) -> (i32, i32) {
    %c0_i32 = arith.constant 0 : i32
    return %arg2, %arg1 : i32, i32
  }
  func.func @transform_2(%arg0: i32, %arg1: i32, %arg2: i32) -> (i32, i32) {
    %c0_i32 = arith.constant 0 : i32
    %c0_i32_0 = arith.constant 0 : i32
    return %c0_i32, %arg1 : i32, i32
  }
  func.func @transform_3(%arg0: i32, %arg1: i32, %arg2: i32) -> (i32, i32) {
    %c0_i32 = arith.constant 0 : i32
    return %arg0, %arg1 : i32, i32
  }
}

module attributes {stable_mosaic.version = 11 : i64} {
  func.func @_gemm_kernel(%arg0: i32, %arg1: i32, %arg2: i32, %arg3: memref<48x128xbf16, #tpu.memory_space<vmem>>, %arg4: memref<128x128xbf16, #tpu.memory_space<vmem>>, %arg5: memref<1x128xf32, #tpu.memory_space<vmem>>, %arg6: memref<48x128xf32, #tpu.memory_space<vmem>>, %arg7: memref<48x128xf32, #tpu.memory_space<vmem>>) attributes {dimension_semantics = [#tpu.dimension_semantics<parallel>, #tpu.dimension_semantics<parallel>, #tpu.dimension_semantics<arbitrary>], iteration_bounds = array<i64: 1, 1, 5>, scalar_prefetch = 0 : i64, scratch_operands = 1 : i64, tpu.core_type = #tpu.core_type<tc>, window_params = [{transform_indices = @transform_0, window_bounds = array<i64: 48, 128>}, {transform_indices = @transform_1, window_bounds = array<i64: 128, 128>}, {transform_indices = @transform_2, window_bounds = array<i64: 1, 128>}, {transform_indices = @transform_3, window_bounds = array<i64: 48, 128>}]} {
    %c0_i32 = arith.constant 0 : i32
    %0 = arith.cmpi eq, %arg2, %c0_i32 : i32
    %1 = arith.extui %0 : i1 to i32
    %c0_i32_0 = arith.constant 0 : i32
    %2 = arith.cmpi ne, %1, %c0_i32_0 : i32
    scf.if %2 {
      %cst_9 = arith.constant 0.000000e+00 : f32
      %12 = vector.broadcast %cst_9 : f32 to vector<48x128xf32>
      %c0_10 = arith.constant 0 : index
      %c0_11 = arith.constant 0 : index
      %13 = vector.load %arg7[%c0_10, %c0_11] : memref<48x128xf32, #tpu.memory_space<vmem>>, vector<48x128xf32>
      tpu.vector_store %arg7[%c0_10, %c0_11], %12 {strides = array<i32>} : memref<48x128xf32, #tpu.memory_space<vmem>>, vector<48x128xf32>,
    } else {
    }
    %c0 = arith.constant 0 : index
    %c0_1 = arith.constant 0 : index
    %3 = vector.load %arg7[%c0, %c0_1] : memref<48x128xf32, #tpu.memory_space<vmem>>, vector<48x128xf32>
    %c0_2 = arith.constant 0 : index
    %c0_3 = arith.constant 0 : index
    %4 = vector.load %arg3[%c0_2, %c0_3] : memref<48x128xbf16, #tpu.memory_space<vmem>>, vector<48x128xbf16>
    %c0_4 = arith.constant 0 : index
    %c0_5 = arith.constant 0 : index
    %5 = vector.load %arg4[%c0_4, %c0_5] : memref<128x128xbf16, #tpu.memory_space<vmem>>, vector<128x128xbf16>
    %cst = arith.constant dense<0.000000e+00> : vector<48x128xf32>
    %6 = tpu.matmul %4, %5, %cst {dimension_numbers = #tpu.dot_dimension_numbers<[1], [0], [0], [1], [0, 0, 1, 1], [], []>} : vector<48x128xbf16>, vector<128x128xbf16>, vector<48x128xf32> -> vector<48x128xf32>
    %7 = arith.addf %3, %6 : vector<48x128xf32>
    %c0_6 = arith.constant 0 : index
    %c0_7 = arith.constant 0 : index
    %8 = vector.load %arg7[%c0_6, %c0_7] : memref<48x128xf32, #tpu.memory_space<vmem>>, vector<48x128xf32>
    tpu.vector_store %arg7[%c0_6, %c0_7], %7 {strides = array<i32>} : memref<48x128xf32, #tpu.memory_space<vmem>>, vector<48x128xf32>,
    %c4_i32 = arith.constant 4 : i32
    %9 = arith.cmpi eq, %arg2, %c4_i32 : i32
    %10 = arith.extui %9 : i1 to i32
    %c0_i32_8 = arith.constant 0 : i32
    %11 = arith.cmpi ne, %10, %c0_i32_8 : i32
    scf.if %11 {
      %c0_9 = arith.constant 0 : index
      %c0_10 = arith.constant 0 : index
      %12 = vector.load %arg7[%c0_9, %c0_10] : memref<48x128xf32, #tpu.memory_space<vmem>>, vector<48x128xf32>
      %c0_11 = arith.constant 0 : index
      %c0_12 = arith.constant 0 : index
      %13 = vector.load %arg5[%c0_11, %c0_12] : memref<1x128xf32, #tpu.memory_space<vmem>>, vector<1x128xf32>
      %14 = vector.broadcast %13 : vector<1x128xf32> to vector<48x128xf32>
      %15 = arith.addf %12, %14 : vector<48x128xf32>
      %cst_13 = arith.constant 0.000000e+00 : f32
      %16 = vector.broadcast %cst_13 : f32 to vector<48x128xf32>
      %17 = arith.maximumf %15, %16 : vector<48x128xf32>
      %c0_14 = arith.constant 0 : index
      %c0_15 = arith.constant 0 : index
      %18 = vector.load %arg6[%c0_14, %c0_15] : memref<48x128xf32, #tpu.memory_space<vmem>>, vector<48x128xf32>
      tpu.vector_store %arg6[%c0_14, %c0_15], %17 {strides = array<i32>} : memref<48x128xf32, #tpu.memory_space<vmem>>, vector<48x128xf32>,
    } else {
    }
    return
  }
  func.func @transform_0(%arg0: i32, %arg1: i32, %arg2: i32) -> (i32, i32) {
    %c0_i32 = arith.constant 0 : i32
    return %arg0, %arg2 : i32, i32
  }
  func.func @transform_1(%arg0: i32, %arg1: i32, %arg2: i32) -> (i32, i32) {
    %c0_i32 = arith.constant 0 : i32
    return %arg2, %arg1 : i32, i32
  }
  func.func @transform_2(%arg0: i32, %arg1: i32, %arg2: i32) -> (i32, i32) {
    %c0_i32 = arith.constant 0 : i32
    %c0_i32_0 = arith.constant 0 : i32
    return %c0_i32, %arg1 : i32, i32
  }
  func.func @transform_3(%arg0: i32, %arg1: i32, %arg2: i32) -> (i32, i32) {
    %c0_i32 = arith.constant 0 : i32
    return %arg0, %arg1 : i32, i32
  }
}

module attributes {stable_mosaic.version = 11 : i64} {
  func.func @_gemm_res_kernel(%arg0: i32, %arg1: i32, %arg2: i32, %arg3: memref<48x128xbf16, #tpu.memory_space<vmem>>, %arg4: memref<128x128xbf16, #tpu.memory_space<vmem>>, %arg5: memref<1x128xf32, #tpu.memory_space<vmem>>, %arg6: memref<48x128xf32, #tpu.memory_space<vmem>>, %arg7: memref<48x128xf32, #tpu.memory_space<vmem>>, %arg8: memref<48x128xf32, #tpu.memory_space<vmem>>) attributes {dimension_semantics = [#tpu.dimension_semantics<parallel>, #tpu.dimension_semantics<parallel>, #tpu.dimension_semantics<arbitrary>], iteration_bounds = array<i64: 1, 1, 1>, scalar_prefetch = 0 : i64, scratch_operands = 1 : i64, tpu.core_type = #tpu.core_type<tc>, window_params = [{transform_indices = @transform_0, window_bounds = array<i64: 48, 128>}, {transform_indices = @transform_1, window_bounds = array<i64: 128, 128>}, {transform_indices = @transform_2, window_bounds = array<i64: 1, 128>}, {transform_indices = @transform_3, window_bounds = array<i64: 48, 128>}, {transform_indices = @transform_4, window_bounds = array<i64: 48, 128>}]} {
    %c0_i32 = arith.constant 0 : i32
    %0 = arith.cmpi eq, %arg2, %c0_i32 : i32
    %1 = arith.extui %0 : i1 to i32
    %c0_i32_0 = arith.constant 0 : i32
    %2 = arith.cmpi ne, %1, %c0_i32_0 : i32
    scf.if %2 {
      %cst_10 = arith.constant 0.000000e+00 : f32
      %12 = vector.broadcast %cst_10 : f32 to vector<48x128xf32>
      %c0_11 = arith.constant 0 : index
      %c0_12 = arith.constant 0 : index
      %13 = vector.load %arg8[%c0_11, %c0_12] : memref<48x128xf32, #tpu.memory_space<vmem>>, vector<48x128xf32>
      tpu.vector_store %arg8[%c0_11, %c0_12], %12 {strides = array<i32>} : memref<48x128xf32, #tpu.memory_space<vmem>>, vector<48x128xf32>,
    } else {
    }
    %c0 = arith.constant 0 : index
    %c0_1 = arith.constant 0 : index
    %3 = vector.load %arg8[%c0, %c0_1] : memref<48x128xf32, #tpu.memory_space<vmem>>, vector<48x128xf32>
    %c0_2 = arith.constant 0 : index
    %c0_3 = arith.constant 0 : index
    %4 = vector.load %arg3[%c0_2, %c0_3] : memref<48x128xbf16, #tpu.memory_space<vmem>>, vector<48x128xbf16>
    %c0_4 = arith.constant 0 : index
    %c0_5 = arith.constant 0 : index
    %5 = vector.load %arg4[%c0_4, %c0_5] : memref<128x128xbf16, #tpu.memory_space<vmem>>, vector<128x128xbf16>
    %cst = arith.constant dense<0.000000e+00> : vector<48x128xf32>
    %6 = tpu.matmul %4, %5, %cst {dimension_numbers = #tpu.dot_dimension_numbers<[1], [0], [0], [1], [0, 0, 1, 1], [], []>} : vector<48x128xbf16>, vector<128x128xbf16>, vector<48x128xf32> -> vector<48x128xf32>
    %7 = arith.addf %3, %6 : vector<48x128xf32>
    %c0_6 = arith.constant 0 : index
    %c0_7 = arith.constant 0 : index
    %8 = vector.load %arg8[%c0_6, %c0_7] : memref<48x128xf32, #tpu.memory_space<vmem>>, vector<48x128xf32>
    tpu.vector_store %arg8[%c0_6, %c0_7], %7 {strides = array<i32>} : memref<48x128xf32, #tpu.memory_space<vmem>>, vector<48x128xf32>,
    %c0_i32_8 = arith.constant 0 : i32
    %9 = arith.cmpi eq, %arg2, %c0_i32_8 : i32
    %10 = arith.extui %9 : i1 to i32
    %c0_i32_9 = arith.constant 0 : i32
    %11 = arith.cmpi ne, %10, %c0_i32_9 : i32
    scf.if %11 {
      %c0_10 = arith.constant 0 : index
      %c0_11 = arith.constant 0 : index
      %12 = vector.load %arg8[%c0_10, %c0_11] : memref<48x128xf32, #tpu.memory_space<vmem>>, vector<48x128xf32>
      %c0_12 = arith.constant 0 : index
      %c0_13 = arith.constant 0 : index
      %13 = vector.load %arg5[%c0_12, %c0_13] : memref<1x128xf32, #tpu.memory_space<vmem>>, vector<1x128xf32>
      %14 = vector.broadcast %13 : vector<1x128xf32> to vector<48x128xf32>
      %15 = arith.addf %12, %14 : vector<48x128xf32>
      %c0_14 = arith.constant 0 : index
      %c0_15 = arith.constant 0 : index
      %16 = vector.load %arg6[%c0_14, %c0_15] : memref<48x128xf32, #tpu.memory_space<vmem>>, vector<48x128xf32>
      %17 = arith.addf %15, %16 : vector<48x128xf32>
      %cst_16 = arith.constant 0.000000e+00 : f32
      %18 = vector.broadcast %cst_16 : f32 to vector<48x128xf32>
      %19 = arith.maximumf %17, %18 : vector<48x128xf32>
      %c0_17 = arith.constant 0 : index
      %c0_18 = arith.constant 0 : index
      %20 = vector.load %arg7[%c0_17, %c0_18] : memref<48x128xf32, #tpu.memory_space<vmem>>, vector<48x128xf32>
      tpu.vector_store %arg7[%c0_17, %c0_18], %19 {strides = array<i32>} : memref<48x128xf32, #tpu.memory_space<vmem>>, vector<48x128xf32>,
    } else {
    }
    return
  }
  func.func @transform_0(%arg0: i32, %arg1: i32, %arg2: i32) -> (i32, i32) {
    %c0_i32 = arith.constant 0 : i32
    return %arg0, %arg2 : i32, i32
  }
  func.func @transform_1(%arg0: i32, %arg1: i32, %arg2: i32) -> (i32, i32) {
    %c0_i32 = arith.constant 0 : i32
    return %arg2, %arg1 : i32, i32
  }
  func.func @transform_2(%arg0: i32, %arg1: i32, %arg2: i32) -> (i32, i32) {
    %c0_i32 = arith.constant 0 : i32
    %c0_i32_0 = arith.constant 0 : i32
    return %c0_i32, %arg1 : i32, i32
  }
  func.func @transform_3(%arg0: i32, %arg1: i32, %arg2: i32) -> (i32, i32) {
    %c0_i32 = arith.constant 0 : i32
    return %arg0, %arg1 : i32, i32
  }
  func.func @transform_4(%arg0: i32, %arg1: i32, %arg2: i32) -> (i32, i32) {
    %c0_i32 = arith.constant 0 : i32
    return %arg0, %arg1 : i32, i32
  }
}

module attributes {stable_mosaic.version = 11 : i64} {
  func.func @_gemm_kernel(%arg0: i32, %arg1: i32, %arg2: i32, %arg3: memref<48x128xbf16, #tpu.memory_space<vmem>>, %arg4: memref<128x128xbf16, #tpu.memory_space<vmem>>, %arg5: memref<1x128xf32, #tpu.memory_space<vmem>>, %arg6: memref<48x128xf32, #tpu.memory_space<vmem>>, %arg7: memref<48x128xf32, #tpu.memory_space<vmem>>) attributes {dimension_semantics = [#tpu.dimension_semantics<parallel>, #tpu.dimension_semantics<parallel>, #tpu.dimension_semantics<arbitrary>], iteration_bounds = array<i64: 1, 1, 1>, scalar_prefetch = 0 : i64, scratch_operands = 1 : i64, tpu.core_type = #tpu.core_type<tc>, window_params = [{transform_indices = @transform_0, window_bounds = array<i64: 48, 128>}, {transform_indices = @transform_1, window_bounds = array<i64: 128, 128>}, {transform_indices = @transform_2, window_bounds = array<i64: 1, 128>}, {transform_indices = @transform_3, window_bounds = array<i64: 48, 128>}]} {
    %c0_i32 = arith.constant 0 : i32
    %0 = arith.cmpi eq, %arg2, %c0_i32 : i32
    %1 = arith.extui %0 : i1 to i32
    %c0_i32_0 = arith.constant 0 : i32
    %2 = arith.cmpi ne, %1, %c0_i32_0 : i32
    scf.if %2 {
      %cst_10 = arith.constant 0.000000e+00 : f32
      %12 = vector.broadcast %cst_10 : f32 to vector<48x128xf32>
      %c0_11 = arith.constant 0 : index
      %c0_12 = arith.constant 0 : index
      %13 = vector.load %arg7[%c0_11, %c0_12] : memref<48x128xf32, #tpu.memory_space<vmem>>, vector<48x128xf32>
      tpu.vector_store %arg7[%c0_11, %c0_12], %12 {strides = array<i32>} : memref<48x128xf32, #tpu.memory_space<vmem>>, vector<48x128xf32>,
    } else {
    }
    %c0 = arith.constant 0 : index
    %c0_1 = arith.constant 0 : index
    %3 = vector.load %arg7[%c0, %c0_1] : memref<48x128xf32, #tpu.memory_space<vmem>>, vector<48x128xf32>
    %c0_2 = arith.constant 0 : index
    %c0_3 = arith.constant 0 : index
    %4 = vector.load %arg3[%c0_2, %c0_3] : memref<48x128xbf16, #tpu.memory_space<vmem>>, vector<48x128xbf16>
    %c0_4 = arith.constant 0 : index
    %c0_5 = arith.constant 0 : index
    %5 = vector.load %arg4[%c0_4, %c0_5] : memref<128x128xbf16, #tpu.memory_space<vmem>>, vector<128x128xbf16>
    %cst = arith.constant dense<0.000000e+00> : vector<48x128xf32>
    %6 = tpu.matmul %4, %5, %cst {dimension_numbers = #tpu.dot_dimension_numbers<[1], [0], [0], [1], [0, 0, 1, 1], [], []>} : vector<48x128xbf16>, vector<128x128xbf16>, vector<48x128xf32> -> vector<48x128xf32>
    %7 = arith.addf %3, %6 : vector<48x128xf32>
    %c0_6 = arith.constant 0 : index
    %c0_7 = arith.constant 0 : index
    %8 = vector.load %arg7[%c0_6, %c0_7] : memref<48x128xf32, #tpu.memory_space<vmem>>, vector<48x128xf32>
    tpu.vector_store %arg7[%c0_6, %c0_7], %7 {strides = array<i32>} : memref<48x128xf32, #tpu.memory_space<vmem>>, vector<48x128xf32>,
    %c0_i32_8 = arith.constant 0 : i32
    %9 = arith.cmpi eq, %arg2, %c0_i32_8 : i32
    %10 = arith.extui %9 : i1 to i32
    %c0_i32_9 = arith.constant 0 : i32
    %11 = arith.cmpi ne, %10, %c0_i32_9 : i32
    scf.if %11 {
      %c0_10 = arith.constant 0 : index
      %c0_11 = arith.constant 0 : index
      %12 = vector.load %arg7[%c0_10, %c0_11] : memref<48x128xf32, #tpu.memory_space<vmem>>, vector<48x128xf32>
      %c0_12 = arith.constant 0 : index
      %c0_13 = arith.constant 0 : index
      %13 = vector.load %arg5[%c0_12, %c0_13] : memref<1x128xf32, #tpu.memory_space<vmem>>, vector<1x128xf32>
      %14 = vector.broadcast %13 : vector<1x128xf32> to vector<48x128xf32>
      %15 = arith.addf %12, %14 : vector<48x128xf32>
      %c0_14 = arith.constant 0 : index
      %c0_15 = arith.constant 0 : index
      %16 = vector.load %arg6[%c0_14, %c0_15] : memref<48x128xf32, #tpu.memory_space<vmem>>, vector<48x128xf32>
      tpu.vector_store %arg6[%c0_14, %c0_15], %15 {strides = array<i32>} : memref<48x128xf32, #tpu.memory_space<vmem>>, vector<48x128xf32>,
    } else {
    }
    return
  }
  func.func @transform_0(%arg0: i32, %arg1: i32, %arg2: i32) -> (i32, i32) {
    %c0_i32 = arith.constant 0 : i32
    return %arg0, %arg2 : i32, i32
  }
  func.func @transform_1(%arg0: i32, %arg1: i32, %arg2: i32) -> (i32, i32) {
    %c0_i32 = arith.constant 0 : i32
    return %arg2, %arg1 : i32, i32
  }
  func.func @transform_2(%arg0: i32, %arg1: i32, %arg2: i32) -> (i32, i32) {
    %c0_i32 = arith.constant 0 : i32
    %c0_i32_0 = arith.constant 0 : i32
    return %c0_i32, %arg1 : i32, i32
  }
  func.func @transform_3(%arg0: i32, %arg1: i32, %arg2: i32) -> (i32, i32) {
    %c0_i32 = arith.constant 0 : i32
    return %arg0, %arg1 : i32, i32
  }
}

module attributes {stable_mosaic.version = 11 : i64} {
  func.func @_vq_kernel(%arg0: i32, %arg1: i32, %arg2: memref<24x128xf32, #tpu.memory_space<vmem>>, %arg3: memref<256x128xf32, #tpu.memory_space<vmem>>, %arg4: memref<1x256xf32, #tpu.memory_space<vmem>>, %arg5: memref<24x128xf32, #tpu.memory_space<vmem>>, %arg6: memref<1x8x256xf32, #tpu.memory_space<vmem>>) attributes {dimension_semantics = [#tpu.dimension_semantics<parallel>, #tpu.dimension_semantics<arbitrary>], iteration_bounds = array<i64: 2, 1>, scalar_prefetch = 0 : i64, scratch_operands = 0 : i64, tpu.core_type = #tpu.core_type<tc>, window_params = [{transform_indices = @transform_0, window_bounds = array<i64: 24, 128>}, {pipeline_mode = #tpu.pipeline_mode<synchronous>, transform_indices = @transform_1, window_bounds = array<i64: 256, 128>}, {pipeline_mode = #tpu.pipeline_mode<synchronous>, transform_indices = @transform_2, window_bounds = array<i64: 1, 256>}, {transform_indices = @transform_3, window_bounds = array<i64: 24, 128>}, {transform_indices = @transform_4, window_bounds = array<i64: 1, 8, 256>}]} {
    %c0 = arith.constant 0 : index
    %c0_0 = arith.constant 0 : index
    %0 = vector.load %arg2[%c0, %c0_0] : memref<24x128xf32, #tpu.memory_space<vmem>>, vector<24x128xf32>
    %c0_1 = arith.constant 0 : index
    %c0_2 = arith.constant 0 : index
    %1 = vector.load %arg3[%c0_1, %c0_2] : memref<256x128xf32, #tpu.memory_space<vmem>>, vector<256x128xf32>
    %2 = arith.mulf %0, %0 : vector<24x128xf32>
    %cst = arith.constant dense<0.000000e+00> : vector<24xf32>
    %3 = vector.multi_reduction <add>, %2, %cst [1] : vector<24x128xf32> to vector<24xf32>
    %4 = vector.shape_cast %3 : vector<24xf32> to vector<24x1xf32>
    %cst_3 = arith.constant dense<0.000000e+00> : vector<24x256xf32>
    %5 = tpu.matmul %0, %1, %cst_3 {dimension_numbers = #tpu.dot_dimension_numbers<[1], [1], [0], [0], [0, 0, 1, 0], [], []>} : vector<24x128xf32>, vector<256x128xf32>, vector<24x256xf32> -> vector<24x256xf32>
    %c0_4 = arith.constant 0 : index
    %c0_5 = arith.constant 0 : index
    %6 = vector.load %arg4[%c0_4, %c0_5] : memref<1x256xf32, #tpu.memory_space<vmem>>, vector<1x256xf32>
    %7 = vector.broadcast %4 : vector<24x1xf32> to vector<24x256xf32>
    %8 = vector.broadcast %6 : vector<1x256xf32> to vector<24x256xf32>
    %9 = arith.addf %7, %8 : vector<24x256xf32>
    %cst_6 = arith.constant 2.000000e+00 : f32
    %10 = vector.broadcast %cst_6 : f32 to vector<24x256xf32>
    %11 = arith.mulf %10, %5 : vector<24x256xf32>
    %12 = arith.subf %9, %11 : vector<24x256xf32>
    %13 = tpu.iota {dimensions = array<i32: 1>} : vector<24x256xi32>
    %c256_i32 = arith.constant 256 : i32
    %14 = vector.broadcast %c256_i32 : i32 to vector<24x256xi32>
    %15 = arith.cmpi slt, %13, %14 : vector<24x256xi32>
    %cst_7 = arith.constant 1.000000e+30 : f32
    %16 = vector.broadcast %cst_7 : f32 to vector<24x256xf32>
    %17 = arith.select %15, %12, %16 : vector<24x256xi1>, vector<24x256xf32>
    %cst_8 = arith.constant dense<0x7F800000> : vector<24xf32>
    %18 = vector.multi_reduction <minimumf>, %17, %cst_8 [1] : vector<24x256xf32> to vector<24xf32>
    %19 = vector.shape_cast %18 : vector<24xf32> to vector<24x1xf32>
    %20 = vector.broadcast %19 : vector<24x1xf32> to vector<24x256xf32>
    %21 = arith.cmpf oeq, %17, %20 : vector<24x256xf32>
    %c256_i32_9 = arith.constant 256 : i32
    %22 = vector.broadcast %c256_i32_9 : i32 to vector<24x256xi32>
    %23 = arith.select %21, %13, %22 : vector<24x256xi1>, vector<24x256xi32>
    %cst_10 = arith.constant dense<2147483647> : vector<24xi32>
    %24 = vector.multi_reduction <minsi>, %23, %cst_10 [1] : vector<24x256xi32> to vector<24xi32>
    %25 = vector.shape_cast %24 : vector<24xi32> to vector<24x1xi32>
    %26 = vector.broadcast %25 : vector<24x1xi32> to vector<24x256xi32>
    %27 = arith.cmpi eq, %13, %26 : vector<24x256xi32>
    %28 = arith.extui %27 : vector<24x256xi1> to vector<24x256xi32>
    %29 = arith.sitofp %28 : vector<24x256xi32> to vector<24x256xf32>
    %cst_11 = arith.constant dense<0.000000e+00> : vector<24x128xf32>
    %30 = tpu.matmul %29, %1, %cst_11 {dimension_numbers = #tpu.dot_dimension_numbers<[1], [0], [0], [1], [0, 0, 1, 1], [], []>} : vector<24x256xf32>, vector<256x128xf32>, vector<24x128xf32> -> vector<24x128xf32>
    %c0_12 = arith.constant 0 : index
    %c0_13 = arith.constant 0 : index
    %31 = vector.load %arg5[%c0_12, %c0_13] : memref<24x128xf32, #tpu.memory_space<vmem>>, vector<24x128xf32>
    tpu.vector_store %arg5[%c0_12, %c0_13], %30 {strides = array<i32>} : memref<24x128xf32, #tpu.memory_space<vmem>>, vector<24x128xf32>,
    %32 = tpu.iota {dimensions = array<i32: 0>} : vector<24x1xi32>
    %c24_i32 = arith.constant 24 : i32
    %33 = arith.muli %arg1, %c24_i32 : i32
    %34 = vector.broadcast %33 : i32 to vector<24x1xi32>
    %35 = arith.addi %32, %34 : vector<24x1xi32>
    %c24_i32_14 = arith.constant 24 : i32
    %36 = vector.broadcast %c24_i32_14 : i32 to vector<24x1xi32>
    %37 = arith.cmpi slt, %35, %36 : vector<24x1xi32>
    %38 = arith.extui %37 : vector<24x1xi1> to vector<24x1xi32>
    %39 = arith.sitofp %38 : vector<24x1xi32> to vector<24x1xf32>
    %40 = vector.broadcast %39 : vector<24x1xf32> to vector<24x256xf32>
    %41 = arith.mulf %29, %40 : vector<24x256xf32>
    %cst_15 = arith.constant dense<0.000000e+00> : vector<256xf32>
    %42 = vector.multi_reduction <add>, %41, %cst_15 [0] : vector<24x256xf32> to vector<256xf32>
    %43 = vector.shape_cast %42 : vector<256xf32> to vector<1x256xf32>
    %c0_i32 = arith.constant 0 : i32
    %44 = arith.cmpi eq, %arg1, %c0_i32 : i32
    %45 = arith.extui %44 : i1 to i32
    %c0_i32_16 = arith.constant 0 : i32
    %46 = arith.cmpi ne, %45, %c0_i32_16 : i32
    scf.if %46 {
      %cst_23 = arith.constant 0.000000e+00 : f32
      %52 = vector.broadcast %cst_23 : f32 to vector<1x8x256xf32>
      %c0_24 = arith.constant 0 : index
      %c0_25 = arith.constant 0 : index
      %c0_26 = arith.constant 0 : index
      %53 = vector.load %arg6[%c0_24, %c0_25, %c0_26] : memref<1x8x256xf32, #tpu.memory_space<vmem>>, vector<1x8x256xf32>
      tpu.vector_store %arg6[%c0_24, %c0_25, %c0_26], %52 {strides = array<i32>} : memref<1x8x256xf32, #tpu.memory_space<vmem>>, vector<1x8x256xf32>,
    } else {
    }
    %c0_17 = arith.constant 0 : index
    %c0_18 = arith.constant 0 : index
    %c0_19 = arith.constant 0 : index
    %47 = vector.load %arg6[%c0_17, %c0_18, %c0_19] : memref<1x8x256xf32, #tpu.memory_space<vmem>>, vector<1x8x256xf32>
    %48 = vector.shape_cast %43 : vector<1x256xf32> to vector<1x1x256xf32>
    %49 = vector.broadcast %48 : vector<1x1x256xf32> to vector<1x8x256xf32>
    %50 = arith.addf %47, %49 : vector<1x8x256xf32>
    %c0_20 = arith.constant 0 : index
    %c0_21 = arith.constant 0 : index
    %c0_22 = arith.constant 0 : index
    %51 = vector.load %arg6[%c0_20, %c0_21, %c0_22] : memref<1x8x256xf32, #tpu.memory_space<vmem>>, vector<1x8x256xf32>
    tpu.vector_store %arg6[%c0_20, %c0_21, %c0_22], %50 {strides = array<i32>} : memref<1x8x256xf32, #tpu.memory_space<vmem>>, vector<1x8x256xf32>,
    return
  }
  func.func @transform_0(%arg0: i32, %arg1: i32) -> (i32, i32) {
    %c1_i32 = arith.constant 1 : i32
    %0 = arith.muli %arg0, %c1_i32 : i32
    %1 = arith.addi %0, %arg1 : i32
    %c0_i32 = arith.constant 0 : i32
    %c0_i32_0 = arith.constant 0 : i32
    return %1, %c0_i32 : i32, i32
  }
  func.func @transform_1(%arg0: i32, %arg1: i32) -> (i32, i32) {
    %c0_i32 = arith.constant 0 : i32
    %c0_i32_0 = arith.constant 0 : i32
    %c0_i32_1 = arith.constant 0 : i32
    return %c0_i32, %c0_i32_0 : i32, i32
  }
  func.func @transform_2(%arg0: i32, %arg1: i32) -> (i32, i32) {
    %c0_i32 = arith.constant 0 : i32
    %c0_i32_0 = arith.constant 0 : i32
    %c0_i32_1 = arith.constant 0 : i32
    return %c0_i32, %c0_i32_0 : i32, i32
  }
  func.func @transform_3(%arg0: i32, %arg1: i32) -> (i32, i32) {
    %c1_i32 = arith.constant 1 : i32
    %0 = arith.muli %arg0, %c1_i32 : i32
    %1 = arith.addi %0, %arg1 : i32
    %c0_i32 = arith.constant 0 : i32
    %c0_i32_0 = arith.constant 0 : i32
    return %1, %c0_i32 : i32, i32
  }
  func.func @transform_4(%arg0: i32, %arg1: i32) -> (i32, i32, i32) {
    %c0_i32 = arith.constant 0 : i32
    %c0_i32_0 = arith.constant 0 : i32
    %c0_i32_1 = arith.constant 0 : i32
    return %arg0, %c0_i32, %c0_i32_0 : i32, i32, i32
  }
}

module attributes {stable_mosaic.version = 11 : i64} {
  func.func @_gemm_kernel(%arg0: i32, %arg1: i32, %arg2: i32, %arg3: memref<48x384xbf16, #tpu.memory_space<vmem>>, %arg4: memref<384x128xbf16, #tpu.memory_space<vmem>>, %arg5: memref<1x128xf32, #tpu.memory_space<vmem>>, %arg6: memref<48x128xf32, #tpu.memory_space<vmem>>, %arg7: memref<48x128xf32, #tpu.memory_space<vmem>>) attributes {dimension_semantics = [#tpu.dimension_semantics<parallel>, #tpu.dimension_semantics<parallel>, #tpu.dimension_semantics<arbitrary>], iteration_bounds = array<i64: 1, 1, 3>, scalar_prefetch = 0 : i64, scratch_operands = 1 : i64, tpu.core_type = #tpu.core_type<tc>, window_params = [{transform_indices = @transform_0, window_bounds = array<i64: 48, 384>}, {transform_indices = @transform_1, window_bounds = array<i64: 384, 128>}, {transform_indices = @transform_2, window_bounds = array<i64: 1, 128>}, {transform_indices = @transform_3, window_bounds = array<i64: 48, 128>}]} {
    %c0_i32 = arith.constant 0 : i32
    %0 = arith.cmpi eq, %arg2, %c0_i32 : i32
    %1 = arith.extui %0 : i1 to i32
    %c0_i32_0 = arith.constant 0 : i32
    %2 = arith.cmpi ne, %1, %c0_i32_0 : i32
    scf.if %2 {
      %cst_9 = arith.constant 0.000000e+00 : f32
      %12 = vector.broadcast %cst_9 : f32 to vector<48x128xf32>
      %c0_10 = arith.constant 0 : index
      %c0_11 = arith.constant 0 : index
      %13 = vector.load %arg7[%c0_10, %c0_11] : memref<48x128xf32, #tpu.memory_space<vmem>>, vector<48x128xf32>
      tpu.vector_store %arg7[%c0_10, %c0_11], %12 {strides = array<i32>} : memref<48x128xf32, #tpu.memory_space<vmem>>, vector<48x128xf32>,
    } else {
    }
    %c0 = arith.constant 0 : index
    %c0_1 = arith.constant 0 : index
    %3 = vector.load %arg7[%c0, %c0_1] : memref<48x128xf32, #tpu.memory_space<vmem>>, vector<48x128xf32>
    %c0_2 = arith.constant 0 : index
    %c0_3 = arith.constant 0 : index
    %4 = vector.load %arg3[%c0_2, %c0_3] : memref<48x384xbf16, #tpu.memory_space<vmem>>, vector<48x384xbf16>
    %c0_4 = arith.constant 0 : index
    %c0_5 = arith.constant 0 : index
    %5 = vector.load %arg4[%c0_4, %c0_5] : memref<384x128xbf16, #tpu.memory_space<vmem>>, vector<384x128xbf16>
    %cst = arith.constant dense<0.000000e+00> : vector<48x128xf32>
    %6 = tpu.matmul %4, %5, %cst {dimension_numbers = #tpu.dot_dimension_numbers<[1], [0], [0], [1], [0, 0, 1, 1], [], []>} : vector<48x384xbf16>, vector<384x128xbf16>, vector<48x128xf32> -> vector<48x128xf32>
    %7 = arith.addf %3, %6 : vector<48x128xf32>
    %c0_6 = arith.constant 0 : index
    %c0_7 = arith.constant 0 : index
    %8 = vector.load %arg7[%c0_6, %c0_7] : memref<48x128xf32, #tpu.memory_space<vmem>>, vector<48x128xf32>
    tpu.vector_store %arg7[%c0_6, %c0_7], %7 {strides = array<i32>} : memref<48x128xf32, #tpu.memory_space<vmem>>, vector<48x128xf32>,
    %c2_i32 = arith.constant 2 : i32
    %9 = arith.cmpi eq, %arg2, %c2_i32 : i32
    %10 = arith.extui %9 : i1 to i32
    %c0_i32_8 = arith.constant 0 : i32
    %11 = arith.cmpi ne, %10, %c0_i32_8 : i32
    scf.if %11 {
      %c0_9 = arith.constant 0 : index
      %c0_10 = arith.constant 0 : index
      %12 = vector.load %arg7[%c0_9, %c0_10] : memref<48x128xf32, #tpu.memory_space<vmem>>, vector<48x128xf32>
      %c0_11 = arith.constant 0 : index
      %c0_12 = arith.constant 0 : index
      %13 = vector.load %arg5[%c0_11, %c0_12] : memref<1x128xf32, #tpu.memory_space<vmem>>, vector<1x128xf32>
      %14 = vector.broadcast %13 : vector<1x128xf32> to vector<48x128xf32>
      %15 = arith.addf %12, %14 : vector<48x128xf32>
      %c0_13 = arith.constant 0 : index
      %c0_14 = arith.constant 0 : index
      %16 = vector.load %arg6[%c0_13, %c0_14] : memref<48x128xf32, #tpu.memory_space<vmem>>, vector<48x128xf32>
      tpu.vector_store %arg6[%c0_13, %c0_14], %15 {strides = array<i32>} : memref<48x128xf32, #tpu.memory_space<vmem>>, vector<48x128xf32>,
    } else {
    }
    return
  }
  func.func @transform_0(%arg0: i32, %arg1: i32, %arg2: i32) -> (i32, i32) {
    %c0_i32 = arith.constant 0 : i32
    return %arg0, %arg2 : i32, i32
  }
  func.func @transform_1(%arg0: i32, %arg1: i32, %arg2: i32) -> (i32, i32) {
    %c0_i32 = arith.constant 0 : i32
    return %arg2, %arg1 : i32, i32
  }
  func.func @transform_2(%arg0: i32, %arg1: i32, %arg2: i32) -> (i32, i32) {
    %c0_i32 = arith.constant 0 : i32
    %c0_i32_0 = arith.constant 0 : i32
    return %c0_i32, %arg1 : i32, i32
  }
  func.func @transform_3(%arg0: i32, %arg1: i32, %arg2: i32) -> (i32, i32) {
    %c0_i32 = arith.constant 0 : i32
    return %arg0, %arg1 : i32, i32
  }
}

module attributes {stable_mosaic.version = 11 : i64} {
  func.func @_gemm_kernel(%arg0: i32, %arg1: i32, %arg2: i32, %arg3: memref<192x128xbf16, #tpu.memory_space<vmem>>, %arg4: memref<128x128xbf16, #tpu.memory_space<vmem>>, %arg5: memref<1x128xf32, #tpu.memory_space<vmem>>, %arg6: memref<192x128xf32, #tpu.memory_space<vmem>>, %arg7: memref<192x128xf32, #tpu.memory_space<vmem>>) attributes {dimension_semantics = [#tpu.dimension_semantics<parallel>, #tpu.dimension_semantics<parallel>, #tpu.dimension_semantics<arbitrary>], iteration_bounds = array<i64: 1, 1, 5>, scalar_prefetch = 0 : i64, scratch_operands = 1 : i64, tpu.core_type = #tpu.core_type<tc>, window_params = [{transform_indices = @transform_0, window_bounds = array<i64: 192, 128>}, {transform_indices = @transform_1, window_bounds = array<i64: 128, 128>}, {transform_indices = @transform_2, window_bounds = array<i64: 1, 128>}, {transform_indices = @transform_3, window_bounds = array<i64: 192, 128>}]} {
    %c0_i32 = arith.constant 0 : i32
    %0 = arith.cmpi eq, %arg2, %c0_i32 : i32
    %1 = arith.extui %0 : i1 to i32
    %c0_i32_0 = arith.constant 0 : i32
    %2 = arith.cmpi ne, %1, %c0_i32_0 : i32
    scf.if %2 {
      %cst_9 = arith.constant 0.000000e+00 : f32
      %12 = vector.broadcast %cst_9 : f32 to vector<192x128xf32>
      %c0_10 = arith.constant 0 : index
      %c0_11 = arith.constant 0 : index
      %13 = vector.load %arg7[%c0_10, %c0_11] : memref<192x128xf32, #tpu.memory_space<vmem>>, vector<192x128xf32>
      tpu.vector_store %arg7[%c0_10, %c0_11], %12 {strides = array<i32>} : memref<192x128xf32, #tpu.memory_space<vmem>>, vector<192x128xf32>,
    } else {
    }
    %c0 = arith.constant 0 : index
    %c0_1 = arith.constant 0 : index
    %3 = vector.load %arg7[%c0, %c0_1] : memref<192x128xf32, #tpu.memory_space<vmem>>, vector<192x128xf32>
    %c0_2 = arith.constant 0 : index
    %c0_3 = arith.constant 0 : index
    %4 = vector.load %arg3[%c0_2, %c0_3] : memref<192x128xbf16, #tpu.memory_space<vmem>>, vector<192x128xbf16>
    %c0_4 = arith.constant 0 : index
    %c0_5 = arith.constant 0 : index
    %5 = vector.load %arg4[%c0_4, %c0_5] : memref<128x128xbf16, #tpu.memory_space<vmem>>, vector<128x128xbf16>
    %cst = arith.constant dense<0.000000e+00> : vector<192x128xf32>
    %6 = tpu.matmul %4, %5, %cst {dimension_numbers = #tpu.dot_dimension_numbers<[1], [0], [0], [1], [0, 0, 1, 1], [], []>} : vector<192x128xbf16>, vector<128x128xbf16>, vector<192x128xf32> -> vector<192x128xf32>
    %7 = arith.addf %3, %6 : vector<192x128xf32>
    %c0_6 = arith.constant 0 : index
    %c0_7 = arith.constant 0 : index
    %8 = vector.load %arg7[%c0_6, %c0_7] : memref<192x128xf32, #tpu.memory_space<vmem>>, vector<192x128xf32>
    tpu.vector_store %arg7[%c0_6, %c0_7], %7 {strides = array<i32>} : memref<192x128xf32, #tpu.memory_space<vmem>>, vector<192x128xf32>,
    %c4_i32 = arith.constant 4 : i32
    %9 = arith.cmpi eq, %arg2, %c4_i32 : i32
    %10 = arith.extui %9 : i1 to i32
    %c0_i32_8 = arith.constant 0 : i32
    %11 = arith.cmpi ne, %10, %c0_i32_8 : i32
    scf.if %11 {
      %c0_9 = arith.constant 0 : index
      %c0_10 = arith.constant 0 : index
      %12 = vector.load %arg7[%c0_9, %c0_10] : memref<192x128xf32, #tpu.memory_space<vmem>>, vector<192x128xf32>
      %c0_11 = arith.constant 0 : index
      %c0_12 = arith.constant 0 : index
      %13 = vector.load %arg5[%c0_11, %c0_12] : memref<1x128xf32, #tpu.memory_space<vmem>>, vector<1x128xf32>
      %14 = vector.broadcast %13 : vector<1x128xf32> to vector<192x128xf32>
      %15 = arith.addf %12, %14 : vector<192x128xf32>
      %c0_13 = arith.constant 0 : index
      %c0_14 = arith.constant 0 : index
      %16 = vector.load %arg6[%c0_13, %c0_14] : memref<192x128xf32, #tpu.memory_space<vmem>>, vector<192x128xf32>
      tpu.vector_store %arg6[%c0_13, %c0_14], %15 {strides = array<i32>} : memref<192x128xf32, #tpu.memory_space<vmem>>, vector<192x128xf32>,
    } else {
    }
    return
  }
  func.func @transform_0(%arg0: i32, %arg1: i32, %arg2: i32) -> (i32, i32) {
    %c0_i32 = arith.constant 0 : i32
    return %arg0, %arg2 : i32, i32
  }
  func.func @transform_1(%arg0: i32, %arg1: i32, %arg2: i32) -> (i32, i32) {
    %c0_i32 = arith.constant 0 : i32
    return %arg2, %arg1 : i32, i32
  }
  func.func @transform_2(%arg0: i32, %arg1: i32, %arg2: i32) -> (i32, i32) {
    %c0_i32 = arith.constant 0 : i32
    %c0_i32_0 = arith.constant 0 : i32
    return %c0_i32, %arg1 : i32, i32
  }
  func.func @transform_3(%arg0: i32, %arg1: i32, %arg2: i32) -> (i32, i32) {
    %c0_i32 = arith.constant 0 : i32
    return %arg0, %arg1 : i32, i32
  }
}

module attributes {stable_mosaic.version = 11 : i64} {
  func.func @_gemm_kernel(%arg0: i32, %arg1: i32, %arg2: i32, %arg3: memref<256x384xbf16, #tpu.memory_space<vmem>>, %arg4: memref<384x128xbf16, #tpu.memory_space<vmem>>, %arg5: memref<1x128xf32, #tpu.memory_space<vmem>>, %arg6: memref<256x128xf32, #tpu.memory_space<vmem>>, %arg7: memref<256x128xf32, #tpu.memory_space<vmem>>) attributes {dimension_semantics = [#tpu.dimension_semantics<parallel>, #tpu.dimension_semantics<parallel>, #tpu.dimension_semantics<arbitrary>], iteration_bounds = array<i64: 3, 1, 1>, scalar_prefetch = 0 : i64, scratch_operands = 1 : i64, tpu.core_type = #tpu.core_type<tc>, window_params = [{transform_indices = @transform_0, window_bounds = array<i64: 256, 384>}, {transform_indices = @transform_1, window_bounds = array<i64: 384, 128>}, {transform_indices = @transform_2, window_bounds = array<i64: 1, 128>}, {transform_indices = @transform_3, window_bounds = array<i64: 256, 128>}]} {
    %c0_i32 = arith.constant 0 : i32
    %0 = arith.cmpi eq, %arg2, %c0_i32 : i32
    %1 = arith.extui %0 : i1 to i32
    %c0_i32_0 = arith.constant 0 : i32
    %2 = arith.cmpi ne, %1, %c0_i32_0 : i32
    scf.if %2 {
      %cst_10 = arith.constant 0.000000e+00 : f32
      %12 = vector.broadcast %cst_10 : f32 to vector<256x128xf32>
      %c0_11 = arith.constant 0 : index
      %c0_12 = arith.constant 0 : index
      %13 = vector.load %arg7[%c0_11, %c0_12] : memref<256x128xf32, #tpu.memory_space<vmem>>, vector<256x128xf32>
      tpu.vector_store %arg7[%c0_11, %c0_12], %12 {strides = array<i32>} : memref<256x128xf32, #tpu.memory_space<vmem>>, vector<256x128xf32>,
    } else {
    }
    %c0 = arith.constant 0 : index
    %c0_1 = arith.constant 0 : index
    %3 = vector.load %arg7[%c0, %c0_1] : memref<256x128xf32, #tpu.memory_space<vmem>>, vector<256x128xf32>
    %c0_2 = arith.constant 0 : index
    %c0_3 = arith.constant 0 : index
    %4 = vector.load %arg3[%c0_2, %c0_3] : memref<256x384xbf16, #tpu.memory_space<vmem>>, vector<256x384xbf16>
    %c0_4 = arith.constant 0 : index
    %c0_5 = arith.constant 0 : index
    %5 = vector.load %arg4[%c0_4, %c0_5] : memref<384x128xbf16, #tpu.memory_space<vmem>>, vector<384x128xbf16>
    %cst = arith.constant dense<0.000000e+00> : vector<256x128xf32>
    %6 = tpu.matmul %4, %5, %cst {dimension_numbers = #tpu.dot_dimension_numbers<[1], [0], [0], [1], [0, 0, 1, 1], [], []>} : vector<256x384xbf16>, vector<384x128xbf16>, vector<256x128xf32> -> vector<256x128xf32>
    %7 = arith.addf %3, %6 : vector<256x128xf32>
    %c0_6 = arith.constant 0 : index
    %c0_7 = arith.constant 0 : index
    %8 = vector.load %arg7[%c0_6, %c0_7] : memref<256x128xf32, #tpu.memory_space<vmem>>, vector<256x128xf32>
    tpu.vector_store %arg7[%c0_6, %c0_7], %7 {strides = array<i32>} : memref<256x128xf32, #tpu.memory_space<vmem>>, vector<256x128xf32>,
    %c0_i32_8 = arith.constant 0 : i32
    %9 = arith.cmpi eq, %arg2, %c0_i32_8 : i32
    %10 = arith.extui %9 : i1 to i32
    %c0_i32_9 = arith.constant 0 : i32
    %11 = arith.cmpi ne, %10, %c0_i32_9 : i32
    scf.if %11 {
      %c0_10 = arith.constant 0 : index
      %c0_11 = arith.constant 0 : index
      %12 = vector.load %arg7[%c0_10, %c0_11] : memref<256x128xf32, #tpu.memory_space<vmem>>, vector<256x128xf32>
      %c0_12 = arith.constant 0 : index
      %c0_13 = arith.constant 0 : index
      %13 = vector.load %arg5[%c0_12, %c0_13] : memref<1x128xf32, #tpu.memory_space<vmem>>, vector<1x128xf32>
      %14 = vector.broadcast %13 : vector<1x128xf32> to vector<256x128xf32>
      %15 = arith.addf %12, %14 : vector<256x128xf32>
      %16 = math.tanh %15 : vector<256x128xf32>
      %c0_14 = arith.constant 0 : index
      %c0_15 = arith.constant 0 : index
      %17 = vector.load %arg6[%c0_14, %c0_15] : memref<256x128xf32, #tpu.memory_space<vmem>>, vector<256x128xf32>
      tpu.vector_store %arg6[%c0_14, %c0_15], %16 {strides = array<i32>} : memref<256x128xf32, #tpu.memory_space<vmem>>, vector<256x128xf32>,
    } else {
    }
    return
  }
  func.func @transform_0(%arg0: i32, %arg1: i32, %arg2: i32) -> (i32, i32) {
    %c0_i32 = arith.constant 0 : i32
    return %arg0, %arg2 : i32, i32
  }
  func.func @transform_1(%arg0: i32, %arg1: i32, %arg2: i32) -> (i32, i32) {
    %c0_i32 = arith.constant 0 : i32
    return %arg2, %arg1 : i32, i32
  }
  func.func @transform_2(%arg0: i32, %arg1: i32, %arg2: i32) -> (i32, i32) {
    %c0_i32 = arith.constant 0 : i32
    %c0_i32_0 = arith.constant 0 : i32
    return %c0_i32, %arg1 : i32, i32
  }
  func.func @transform_3(%arg0: i32, %arg1: i32, %arg2: i32) -> (i32, i32) {
    %c0_i32 = arith.constant 0 : i32
    return %arg0, %arg1 : i32, i32
  }
}

</mosaic_0001>

<llo_original>
// kernel: motion_vqvae_forward.16
$region0: #{motion_vqvae_forward.16}
  #allocation0 [shape = 'u32[]', space=smem, size = 0x4, offset = 0x4, fixed_abs, tag = 'smem constant byte address 0x4 - core index']
  #allocation1 [shape = 'u32[144,128]{1,0:T(1,128)}', space=vmem, size = 0x12000, scoped, tag = 'internal scratch']
  #allocation2 [shape = 'f32[192,128]{1,0:T(8,128)}', space=vmem, size = 0x18000, scoped, tag = 'scratch operand']
  %s0 = inlined_call_operand.vmem [shape: bf16[192,128], index: 0, kind: input, shape index: {}]
  %s1 = inlined_call_operand.vmem [shape: bf16[128,128], index: 1, kind: input, shape index: {}]
  %s2 = inlined_call_operand.vmem [shape: f32[1,128], index: 2, kind: input, shape index: {}]
  %s3 = inlined_call_operand.vmem [shape: f32[192,128], index: 3, kind: output, shape index: {}]
  %s4 = sld [smem:[#allocation0]]
  $region30: #{motion_vqvae_forward.16} parent=0
    _
  %s6 = ssub.s32 1, %s4
  %s7 = scalar_select 0, %s6, %s4
  // Predicated region
  $region2: #{motion_vqvae_forward.16} parent=0 // pred_check
    _
  $region3: #{motion_vqvae_forward.16} parent=0 // pred_check_branch
    %9 = sbr.rel (0) target = $region5
  $region4: #{motion_vqvae_forward.16} parent=0 // pred_region
    _
  $region5: #{motion_vqvae_forward.16} parent=0 // pred_fallthru
    _
  // Predicated region
  $region6: #{motion_vqvae_forward.16} parent=0 // pred_check
    _
  $region7: #{motion_vqvae_forward.16} parent=0 // pred_check_branch
    %11 = sbr.rel (0) target = $region9
  $region8: #{motion_vqvae_forward.16} parent=0 // pred_region
    _
  $region9: #{motion_vqvae_forward.16} parent=0 // pred_fallthru
    _
  // Predicated region
  $region10: #{motion_vqvae_forward.16} parent=0 // pred_check
    _
  $region11: #{motion_vqvae_forward.16} parent=0 // pred_check_branch
    %13 = sbr.rel (0) target = $region13
  $region12: #{motion_vqvae_forward.16} parent=0 // pred_region
    _
  $region13: #{motion_vqvae_forward.16} parent=0 // pred_fallthru
    _
  %p15 = scmp.eq.s32.totalorder 0, 0
  // Predicated region
  $region14: #{motion_vqvae_forward.16} parent=0 // pred_check
    %p16 = pneg %p15
  $region15: #{motion_vqvae_forward.16} parent=0 // pred_check_branch
    %18 = sbr.rel (%p16) target = $region17
  $region16: #{motion_vqvae_forward.16} parent=0 // pred_region
    %19 = vst [vmem:[#allocation2] sm:$0xff] 0.0
    %20 = vst [vmem:[#allocation2 + $0x8] sm:$0xff] 0.0
    %21 = vst [vmem:[#allocation2 + $0x10] sm:$0xff] 0.0
    %22 = vst [vmem:[#allocation2 + $0x18] sm:$0xff] 0.0
    %23 = vst [vmem:[#allocation2 + $0x20] sm:$0xff] 0.0
    %24 = vst [vmem:[#allocation2 + $0x28] sm:$0xff] 0.0
    %25 = vst [vmem:[#allocation2 + $0x30] sm:$0xff] 0.0
    %26 = vst [vmem:[#allocation2 + $0x38] sm:$0xff] 0.0
    %27 = vst [vmem:[#allocation2 + $0x40] sm:$0xff] 0.0
    %28 = vst [vmem:[#allocation2 + $0x48] sm:$0xff] 0.0
    %29 = vst [vmem:[#allocation2 + $0x50] sm:$0xff] 0.0
    %30 = vst [vmem:[#allocation2 + $0x58] sm:$0xff] 0.0
    %31 = vst [vmem:[#allocation2 + $0x60] sm:$0xff] 0.0
    %32 = vst [vmem:[#allocation2 + $0x68] sm:$0xff] 0.0
    %33 = vst [vmem:[#allocation2 + $0x70] sm:$0xff] 0.0
    %34 = vst [vmem:[#allocation2 + $0x78] sm:$0xff] 0.0
    %35 = vst [vmem:[#allocation2 + $0x80] sm:$0xff] 0.0
    %36 = vst [vmem:[#allocation2 + $0x88] sm:$0xff] 0.0
    %37 = vst [vmem:[#allocation2 + $0x90] sm:$0xff] 0.0
    %38 = vst [vmem:[#allocation2 + $0x98] sm:$0xff] 0.0
    %39 = vst [vmem:[#allocation2 + $0xa0] sm:$0xff] 0.0
    %40 = vst [vmem:[#allocation2 + $0xa8] sm:$0xff] 0.0
    %41 = vst [vmem:[#allocation2 + $0xb0] sm:$0xff] 0.0
    %42 = vst [vmem:[#allocation2 + $0xb8] sm:$0xff] 0.0
  $region17: #{motion_vqvae_forward.16} parent=0 // pred_fallthru
    _
  %v43 = vld [vmem:[#allocation2] sm:$0xff]
  %v44 = vld [vmem:[#allocation2 + $0x8] sm:$0xff]
  %v45 = vld [vmem:[#allocation2 + $0x10] sm:$0xff]
  %v46 = vld [vmem:[#allocation2 + $0x18] sm:$0xff]
  %v47 = vld [vmem:[#allocation2 + $0x20] sm:$0xff]
  %v48 = vld [vmem:[#allocation2 + $0x28] sm:$0xff]
  %v49 = vld [vmem:[#allocation2 + $0x30] sm:$0xff]
  %v50 = vld [vmem:[#allocation2 + $0x38] sm:$0xff]
  %v51 = vld [vmem:[#allocation2 + $0x40] sm:$0xff]
  %v52 = vld [vmem:[#allocation2 + $0x48] sm:$0xff]
  %v53 = vld [vmem:[#allocation2 + $0x50] sm:$0xff]
  %v54 = vld [vmem:[#allocation2 + $0x58] sm:$0xff]
  %v55 = vld [vmem:[#allocation2 + $0x60] sm:$0xff]
  %v56 = vld [vmem:[#allocation2 + $0x68] sm:$0xff]
  %v57 = vld [vmem:[#allocation2 + $0x70] sm:$0xff]
  %v58 = vld [vmem:[#allocation2 + $0x78] sm:$0xff]
  %v59 = vld [vmem:[#allocation2 + $0x80] sm:$0xff]
  %v60 = vld [vmem:[#allocation2 + $0x88] sm:$0xff]
  %v61 = vld [vmem:[#allocation2 + $0x90] sm:$0xff]
  %v62 = vld [vmem:[#allocation2 + $0x98] sm:$0xff]
  %v63 = vld [vmem:[#allocation2 + $0xa0] sm:$0xff]
  %v64 = vld [vmem:[#allocation2 + $0xa8] sm:$0xff]
  %v65 = vld [vmem:[#allocation2 + $0xb0] sm:$0xff]
  %v66 = vld [vmem:[#allocation2 + $0xb8] sm:$0xff]
  %v67 = vld [vmem:[%s0] sm:$0xf]
  %v68 = vld [vmem:[%s0 + $0x4] sm:$0xf]
  %v69 = vld [vmem:[%s0 + $0x8] sm:$0xf]
  %v70 = vld [vmem:[%s0 + $0xc] sm:$0xf]
  %v71 = vld [vmem:[%s0 + $0x10] sm:$0xf]
  %v72 = vld [vmem:[%s0 + $0x14] sm:$0xf]
  %v73 = vld [vmem:[%s0 + $0x18] sm:$0xf]
  %v74 = vld [vmem:[%s0 + $0x1c] sm:$0xf]
  %v75 = vld [vmem:[%s0 + $0x20] sm:$0xf]
  %v76 = vld [vmem:[%s0 + $0x24] sm:$0xf]
  %v77 = vld [vmem:[%s0 + $0x28] sm:$0xf]
  %v78 = vld [vmem:[%s0 + $0x2c] sm:$0xf]
  %v79 = vld [vmem:[%s0 + $0x30] sm:$0xf]
  %v80 = vld [vmem:[%s0 + $0x34] sm:$0xf]
  %v81 = vld [vmem:[%s0 + $0x38] sm:$0xf]
  %v82 = vld [vmem:[%s0 + $0x3c] sm:$0xf]
  %v83 = vld [vmem:[%s0 + $0x40] sm:$0xf]
  %v84 = vld [vmem:[%s0 + $0x44] sm:$0xf]
  %v85 = vld [vmem:[%s0 + $0x48] sm:$0xf]
  %v86 = vld [vmem:[%s0 + $0x4c] sm:$0xf]
  %v87 = vld [vmem:[%s0 + $0x50] sm:$0xf]
  %v88 = vld [vmem:[%s0 + $0x54] sm:$0xf]
  %v89 = vld [vmem:[%s0 + $0x58] sm:$0xf]
  %v90 = vld [vmem:[%s0 + $0x5c] sm:$0xf]
  %v91 = vld [vmem:[%s1] sm:$0xf]
  %v92 = vld [vmem:[%s1 + $0x4] sm:$0xf]
  %v93 = vld [vmem:[%s1 + $0x8] sm:$0xf]
  %v94 = vld [vmem:[%s1 + $0xc] sm:$0xf]
  %v95 = vld [vmem:[%s1 + $0x10] sm:$0xf]
  %v96 = vld [vmem:[%s1 + $0x14] sm:$0xf]
  %v97 = vld [vmem:[%s1 + $0x18] sm:$0xf]
  %v98 = vld [vmem:[%s1 + $0x1c] sm:$0xf]
  %v99 = vld [vmem:[%s1 + $0x20] sm:$0xf]
  %v100 = vld [vmem:[%s1 + $0x24] sm:$0xf]
  %v101 = vld [vmem:[%s1 + $0x28] sm:$0xf]
  %v102 = vld [vmem:[%s1 + $0x2c] sm:$0xf]
  %v103 = vld [vmem:[%s1 + $0x30] sm:$0xf]
  %v104 = vld [vmem:[%s1 + $0x34] sm:$0xf]
  %v105 = vld [vmem:[%s1 + $0x38] sm:$0xf]
  %v106 = vld [vmem:[%s1 + $0x3c] sm:$0xf]
  %v131 = vunpack.c.l.b16 %v67
  %v132 = vunpack.c.l.b16 %v68
  %v133 = vunpack.c.l.b16 %v69
  %v134 = vunpack.c.l.b16 %v70
  %v135 = vunpack.c.l.b16 %v71
  %v136 = vunpack.c.l.b16 %v72
  %v137 = vunpack.c.l.b16 %v73
  %v138 = vunpack.c.l.b16 %v74
  %v139 = vunpack.c.l.b16 %v75
  %v140 = vunpack.c.l.b16 %v76
  %v141 = vunpack.c.l.b16 %v77
  %v142 = vunpack.c.l.b16 %v78
  %v143 = vunpack.c.l.b16 %v79
  %v144 = vunpack.c.l.b16 %v80
  %v145 = vunpack.c.l.b16 %v81
  %v146 = vunpack.c.l.b16 %v82
  %v147 = vunpack.c.l.b16 %v83
  %v148 = vunpack.c.l.b16 %v84
  %v149 = vunpack.c.l.b16 %v85
  %v150 = vunpack.c.l.b16 %v86
  %v151 = vunpack.c.l.b16 %v87
  %v152 = vunpack.c.l.b16 %v88
  %v153 = vunpack.c.l.b16 %v89
  %v154 = vunpack.c.l.b16 %v90
  %v155 = vpack.c.b16 %v132, %v131
  %v156 = vpack.c.b16 %v134, %v133
  %v157 = vpack.c.b16 %v136, %v135
  %v158 = vpack.c.b16 %v138, %v137
  %v159 = vpack.c.b16 %v140, %v139
  %v160 = vpack.c.b16 %v142, %v141
  %v161 = vpack.c.b16 %v144, %v143
  %v162 = vpack.c.b16 %v146, %v145
  %v163 = vpack.c.b16 %v148, %v147
  %v164 = vpack.c.b16 %v150, %v149
  %v165 = vpack.c.b16 %v152, %v151
  %v166 = vpack.c.b16 %v154, %v153
  %v195 = vunpack.c.l.b16 %v91
  %v196 = vunpack.c.l.b16 %v92
  %v197 = vunpack.c.l.b16 %v93
  %v198 = vunpack.c.l.b16 %v94
  %v199 = vunpack.c.l.b16 %v95
  %v200 = vunpack.c.l.b16 %v96
  %v201 = vunpack.c.l.b16 %v97
  %v202 = vunpack.c.l.b16 %v98
  %v203 = vunpack.c.l.b16 %v99
  %v204 = vunpack.c.l.b16 %v100
  %v205 = vunpack.c.l.b16 %v101
  %v206 = vunpack.c.l.b16 %v102
  %v207 = vunpack.c.l.b16 %v103
  %v208 = vunpack.c.l.b16 %v104
  %v209 = vunpack.c.l.b16 %v105
  %v210 = vunpack.c.l.b16 %v106
  %v211 = vpack.c.b16 %v196, %v195
  %v212 = vpack.c.b16 %v198, %v197
  %v213 = vpack.c.b16 %v200, %v199
  %v214 = vpack.c.b16 %v202, %v201
  %v215 = vpack.c.b16 %v204, %v203
  %v216 = vpack.c.b16 %v206, %v205
  %v217 = vpack.c.b16 %v208, %v207
  %v218 = vpack.c.b16 %v210, %v209
  %227 = vmatprep.subr.bf16.mxu0 0
  %228 = vmatpush1.bf16.msra.mxu0 %v211
  %229 = vmatprep.subr.bf16.mxu0 0
  %230 = vmatpush1.bf16.msra.mxu0 %v212
  %231 = vmatprep.subr.bf16.mxu0 0
  %232 = vmatpush1.bf16.msra.mxu0 %v213
  %233 = vmatprep.subr.bf16.mxu0 0
  %234 = vmatpush1.bf16.msra.mxu0 %v214
  %235 = vmatprep.subr.bf16.mxu0 0
  %236 = vmatpush1.bf16.msra.mxu0 %v215
  %237 = vmatprep.subr.bf16.mxu0 0
  %238 = vmatpush1.bf16.msra.mxu0 %v216
  %239 = vmatprep.subr.bf16.mxu0 0
  %240 = vmatpush1.bf16.msra.mxu0 %v217
  %241 = vmatprep.subr.bf16.mxu0 0
  %242 = vmatpush1.bf16.msra.mxu0 %v218
  %243 = vmatprep.subr.bf16.mxu0 0
  %244 = vmatpush1.bf16.msra.mxu0 0
  %245 = vmatprep.subr.bf16.mxu0 0
  %246 = vmatpush1.bf16.msra.mxu0 0
  %247 = vmatprep.subr.bf16.mxu0 0
  %248 = vmatpush1.bf16.msra.mxu0 0
  %249 = vmatprep.subr.bf16.mxu0 0
  %250 = vmatpush1.bf16.msra.mxu0 0
  %251 = vmatprep.subr.bf16.mxu0 0
  %252 = vmatpush1.bf16.msra.mxu0 0
  %253 = vmatprep.subr.bf16.mxu0 0
  %254 = vmatpush1.bf16.msra.mxu0 0
  %255 = vmatprep.subr.bf16.mxu0 0
  %256 = vmatpush1.bf16.msra.mxu0 0
  %257 = vmatprep.subr.bf16.mxu0 0
  %258 = vmatpush1.bf16.msra.mxu0 0
  %259 = vmatprep.mubr.bf16.mxu0 0
  %260 = vmatmul.mubr.bf16.gmra.mrb[0].mxu0 %v155
  %v261 = vpop.f32.mrb[0].mxu0
  %v262 = vadd.f32 0.0, %v261
  %v263 = vpop.f32.mrb[0].mxu0
  %v264 = vpop.f32.mrb[0].mxu0
  %v265 = vadd.f32 0.0, %v264
  %v266 = vpop.f32.mrb[0].mxu0
  %267 = vmatprep.mubr.bf16.mxu0 0
  %268 = vmatmul.mubr.bf16.gmra.mrb[0].mxu0 %v156
  %v269 = vpop.f32.mrb[0].mxu0
  %v270 = vadd.f32 0.0, %v269
  %v271 = vpop.f32.mrb[0].mxu0
  %v272 = vpop.f32.mrb[0].mxu0
  %v273 = vadd.f32 0.0, %v272
  %v274 = vpop.f32.mrb[0].mxu0
  %275 = vmatprep.mubr.bf16.mxu0 0
  %276 = vmatmul.mubr.bf16.gmra.mrb[0].mxu0 %v157
  %v277 = vpop.f32.mrb[0].mxu0
  %v278 = vadd.f32 0.0, %v277
  %v279 = vpop.f32.mrb[0].mxu0
  %v280 = vpop.f32.mrb[0].mxu0
  %v281 = vadd.f32 0.0, %v280
  %v282 = vpop.f32.mrb[0].mxu0
  %283 = vmatprep.mubr.bf16.mxu0 0
  %284 = vmatmul.mubr.bf16.gmra.mrb[0].mxu0 %v158
  %v285 = vpop.f32.mrb[0].mxu0
  %v286 = vadd.f32 0.0, %v285
  %v287 = vpop.f32.mrb[0].mxu0
  %v288 = vpop.f32.mrb[0].mxu0
  %v289 = vadd.f32 0.0, %v288
  %v290 = vpop.f32.mrb[0].mxu0
  %291 = vmatprep.mubr.bf16.mxu0 0
  %292 = vmatmul.mubr.bf16.gmra.mrb[0].mxu0 %v159
  %v293 = vpop.f32.mrb[0].mxu0
  %v294 = vadd.f32 0.0, %v293
  %v295 = vpop.f32.mrb[0].mxu0
  %v296 = vpop.f32.mrb[0].mxu0
  %v297 = vadd.f32 0.0, %v296
  %v298 = vpop.f32.mrb[0].mxu0
  %299 = vmatprep.mubr.bf16.mxu0 0
  %300 = vmatmul.mubr.bf16.gmra.mrb[0].mxu0 %v160
  %v301 = vpop.f32.mrb[0].mxu0
  %v302 = vadd.f32 0.0, %v301
  %v303 = vpop.f32.mrb[0].mxu0
  %v304 = vpop.f32.mrb[0].mxu0
  %v305 = vadd.f32 0.0, %v304
  %v306 = vpop.f32.mrb[0].mxu0
  %307 = vmatprep.mubr.bf16.mxu0 0
  %308 = vmatmul.mubr.bf16.gmra.mrb[0].mxu0 %v161
  %v309 = vpop.f32.mrb[0].mxu0
  %v310 = vadd.f32 0.0, %v309
  %v311 = vpop.f32.mrb[0].mxu0
  %v312 = vpop.f32.mrb[0].mxu0
  %v313 = vadd.f32 0.0, %v312
  %v314 = vpop.f32.mrb[0].mxu0
  %315 = vmatprep.mubr.bf16.mxu0 0
  %316 = vmatmul.mubr.bf16.gmra.mrb[0].mxu0 %v162
  %v317 = vpop.f32.mrb[0].mxu0
  %v318 = vadd.f32 0.0, %v317
  %v319 = vpop.f32.mrb[0].mxu0
  %v320 = vpop.f32.mrb[0].mxu0
  %v321 = vadd.f32 0.0, %v320
  %v322 = vpop.f32.mrb[0].mxu0
  %323 = vmatprep.mubr.bf16.mxu0 0
  %324 = vmatmul.mubr.bf16.gmra.mrb[0].mxu0 %v163
  %v325 = vpop.f32.mrb[0].mxu0
  %v326 = vadd.f32 0.0, %v325
  %v327 = vpop.f32.mrb[0].mxu0
  %v328 = vpop.f32.mrb[0].mxu0
  %v329 = vadd.f32 0.0, %v328
  %v330 = vpop.f32.mrb[0].mxu0
  %331 = vmatprep.mubr.bf16.mxu0 0
  %332 = vmatmul.mubr.bf16.gmra.mrb[0].mxu0 %v164
  %v333 = vpop.f32.mrb[0].mxu0
  %v334 = vadd.f32 0.0, %v333
  %v335 = vpop.f32.mrb[0].mxu0
  %v336 = vpop.f32.mrb[0].mxu0
  %v337 = vadd.f32 0.0, %v336
  %v338 = vpop.f32.mrb[0].mxu0
  %339 = vmatprep.mubr.bf16.mxu0 0
  %340 = vmatmul.mubr.bf16.gmra.mrb[0].mxu0 %v165
  %v341 = vpop.f32.mrb[0].mxu0
  %v342 = vadd.f32 0.0, %v341
  %v343 = vpop.f32.mrb[0].mxu0
  %v344 = vpop.f32.mrb[0].mxu0
  %v345 = vadd.f32 0.0, %v344
  %v346 = vpop.f32.mrb[0].mxu0
  %347 = vmatprep.mubr.bf16.mxu0 0
  %348 = vmatmul.mubr.bf16.gmra.mrb[0].mxu0 %v166
  %v349 = vpop.f32.mrb[0].mxu0
  %v350 = vadd.f32 0.0, %v349
  %v351 = vpop.f32.mrb[0].mxu0
  %v352 = vpop.f32.mrb[0].mxu0
  %v353 = vadd.f32 0.0, %v352
  %v354 = vpop.f32.mrb[0].mxu0
  %355 = vdwg.mxu0
  %v356 = vadd.f32 %v43, %v262
  %v357 = vadd.f32 %v44, %v265
  %v358 = vadd.f32 %v45, %v270
  %v359 = vadd.f32 %v46, %v273
  %v360 = vadd.f32 %v47, %v278
  %v361 = vadd.f32 %v48, %v281
  %v362 = vadd.f32 %v49, %v286
  %v363 = vadd.f32 %v50, %v289
  %v364 = vadd.f32 %v51, %v294
  %v365 = vadd.f32 %v52, %v297
  %v366 = vadd.f32 %v53, %v302
  %v367 = vadd.f32 %v54, %v305
  %v368 = vadd.f32 %v55, %v310
  %v369 = vadd.f32 %v56, %v313
  %v370 = vadd.f32 %v57, %v318
  %v371 = vadd.f32 %v58, %v321
  %v372 = vadd.f32 %v59, %v326
  %v373 = vadd.f32 %v60, %v329
  %v374 = vadd.f32 %v61, %v334
  %v375 = vadd.f32 %v62, %v337
  %v376 = vadd.f32 %v63, %v342
  %v377 = vadd.f32 %v64, %v345
  %v378 = vadd.f32 %v65, %v350
  %v379 = vadd.f32 %v66, %v353
  %380 = vst [vmem:[#allocation2] sm:$0xff] %v356
  %381 = vst [vmem:[#allocation2 + $0x8] sm:$0xff] %v357
  %382 = vst [vmem:[#allocation2 + $0x10] sm:$0xff] %v358
  %383 = vst [vmem:[#allocation2 + $0x18] sm:$0xff] %v359
  %384 = vst [vmem:[#allocation2 + $0x20] sm:$0xff] %v360
  %385 = vst [vmem:[#allocation2 + $0x28] sm:$0xff] %v361
  %386 = vst [vmem:[#allocation2 + $0x30] sm:$0xff] %v362
  %387 = vst [vmem:[#allocation2 + $0x38] sm:$0xff] %v363
  %388 = vst [vmem:[#allocation2 + $0x40] sm:$0xff] %v364
  %389 = vst [vmem:[#allocation2 + $0x48] sm:$0xff] %v365
  %390 = vst [vmem:[#allocation2 + $0x50] sm:$0xff] %v366
  %391 = vst [vmem:[#allocation2 + $0x58] sm:$0xff] %v367
  %392 = vst [vmem:[#allocation2 + $0x60] sm:$0xff] %v368
  %393 = vst [vmem:[#allocation2 + $0x68] sm:$0xff] %v369
  %394 = vst [vmem:[#allocation2 + $0x70] sm:$0xff] %v370
  %395 = vst [vmem:[#allocation2 + $0x78] sm:$0xff] %v371
  %396 = vst [vmem:[#allocation2 + $0x80] sm:$0xff] %v372
  %397 = vst [vmem:[#allocation2 + $0x88] sm:$0xff] %v373
  %398 = vst [vmem:[#allocation2 + $0x90] sm:$0xff] %v374
  %399 = vst [vmem:[#allocation2 + $0x98] sm:$0xff] %v375
  %400 = vst [vmem:[#allocation2 + $0xa0] sm:$0xff] %v376
  %401 = vst [vmem:[#allocation2 + $0xa8] sm:$0xff] %v377
  %402 = vst [vmem:[#allocation2 + $0xb0] sm:$0xff] %v378
  %403 = vst [vmem:[#allocation2 + $0xb8] sm:$0xff] %v379
  // Predicated region
  $region18: #{motion_vqvae_forward.16} parent=0 // pred_check
    %p404 = pneg %p15
  $region19: #{motion_vqvae_forward.16} parent=0 // pred_check_branch
    %406 = sbr.rel (%p404) target = $region21
  $region20: #{motion_vqvae_forward.16} parent=0 // pred_region
    %v407 = vld [vmem:[#allocation2] sm:$0xff]
    %v408 = vld [vmem:[#allocation2 + $0x8] sm:$0xff]
    %v409 = vld [vmem:[#allocation2 + $0x10] sm:$0xff]
    %v410 = vld [vmem:[#allocation2 + $0x18] sm:$0xff]
    %v411 = vld [vmem:[#allocation2 + $0x20] sm:$0xff]
    %v412 = vld [vmem:[#allocation2 + $0x28] sm:$0xff]
    %v413 = vld [vmem:[#allocation2 + $0x30] sm:$0xff]
    %v414 = vld [vmem:[#allocation2 + $0x38] sm:$0xff]
    %v415 = vld [vmem:[#allocation2 + $0x40] sm:$0xff]
    %v416 = vld [vmem:[#allocation2 + $0x48] sm:$0xff]
    %v417 = vld [vmem:[#allocation2 + $0x50] sm:$0xff]
    %v418 = vld [vmem:[#allocation2 + $0x58] sm:$0xff]
    %v419 = vld [vmem:[#allocation2 + $0x60] sm:$0xff]
    %v420 = vld [vmem:[#allocation2 + $0x68] sm:$0xff]
    %v421 = vld [vmem:[#allocation2 + $0x70] sm:$0xff]
    %v422 = vld [vmem:[#allocation2 + $0x78] sm:$0xff]
    %v423 = vld [vmem:[#allocation2 + $0x80] sm:$0xff]
    %v424 = vld [vmem:[#allocation2 + $0x88] sm:$0xff]
    %v425 = vld [vmem:[#allocation2 + $0x90] sm:$0xff]
    %v426 = vld [vmem:[#allocation2 + $0x98] sm:$0xff]
    %v427 = vld [vmem:[#allocation2 + $0xa0] sm:$0xff]
    %v428 = vld [vmem:[#allocation2 + $0xa8] sm:$0xff]
    %v429 = vld [vmem:[#allocation2 + $0xb0] sm:$0xff]
    %v430 = vld [vmem:[#allocation2 + $0xb8] sm:$0xff]
    %v431 = vld [vmem:[%s2] sm:$0x1]
    %v433 = vlaneseq
    %v434 = vshrl.u32 %v433, 7
    %v435 = vsub.s32 0, %v434
    %v436 = vrot.slane %v431, %v435
    %v438 = vadd.f32 %v407, %v436
    %v439 = vadd.f32 %v408, %v436
    %v440 = vadd.f32 %v409, %v436
    %v441 = vadd.f32 %v410, %v436
    %v442 = vadd.f32 %v411, %v436
    %v443 = vadd.f32 %v412, %v436
    %v444 = vadd.f32 %v413, %v436
    %v445 = vadd.f32 %v414, %v436
    %v446 = vadd.f32 %v415, %v436
    %v447 = vadd.f32 %v416, %v436
    %v448 = vadd.f32 %v417, %v436
    %v449 = vadd.f32 %v418, %v436
    %v450 = vadd.f32 %v419, %v436
    %v451 = vadd.f32 %v420, %v436
    %v452 = vadd.f32 %v421, %v436
    %v453 = vadd.f32 %v422, %v436
    %v454 = vadd.f32 %v423, %v436
    %v455 = vadd.f32 %v424, %v436
    %v456 = vadd.f32 %v425, %v436
    %v457 = vadd.f32 %v426, %v436
    %v458 = vadd.f32 %v427, %v436
    %v459 = vadd.f32 %v428, %v436
    %v460 = vadd.f32 %v429, %v436
    %v461 = vadd.f32 %v430, %v436
    %v462 = vmax.f32 %v438, 0.0
    %v463 = vmax.f32 %v439, 0.0
    %v464 = vmax.f32 %v440, 0.0
    %v465 = vmax.f32 %v441, 0.0
    %v466 = vmax.f32 %v442, 0.0
    %v467 = vmax.f32 %v443, 0.0
    %v468 = vmax.f32 %v444, 0.0
    %v469 = vmax.f32 %v445, 0.0
    %v470 = vmax.f32 %v446, 0.0
    %v471 = vmax.f32 %v447, 0.0
    %v472 = vmax.f32 %v448, 0.0
    %v473 = vmax.f32 %v449, 0.0
    %v474 = vmax.f32 %v450, 0.0
    %v475 = vmax.f32 %v451, 0.0
    %v476 = vmax.f32 %v452, 0.0
    %v477 = vmax.f32 %v453, 0.0
    %v478 = vmax.f32 %v454, 0.0
    %v479 = vmax.f32 %v455, 0.0
    %v480 = vmax.f32 %v456, 0.0
    %v481 = vmax.f32 %v457, 0.0
    %v482 = vmax.f32 %v458, 0.0
    %v483 = vmax.f32 %v459, 0.0
    %v484 = vmax.f32 %v460, 0.0
    %v485 = vmax.f32 %v461, 0.0
    %486 = vst [vmem:[%s3] sm:$0xff] %v462
    %487 = vst [vmem:[%s3 + $0x8] sm:$0xff] %v463
    %488 = vst [vmem:[%s3 + $0x10] sm:$0xff] %v464
    %489 = vst [vmem:[%s3 + $0x18] sm:$0xff] %v465
    %490 = vst [vmem:[%s3 + $0x20] sm:$0xff] %v466
    %491 = vst [vmem:[%s3 + $0x28] sm:$0xff] %v467
    %492 = vst [vmem:[%s3 + $0x30] sm:$0xff] %v468
    %493 = vst [vmem:[%s3 + $0x38] sm:$0xff] %v469
    %494 = vst [vmem:[%s3 + $0x40] sm:$0xff] %v470
    %495 = vst [vmem:[%s3 + $0x48] sm:$0xff] %v471
    %496 = vst [vmem:[%s3 + $0x50] sm:$0xff] %v472
    %497 = vst [vmem:[%s3 + $0x58] sm:$0xff] %v473
    %498 = vst [vmem:[%s3 + $0x60] sm:$0xff] %v474
    %499 = vst [vmem:[%s3 + $0x68] sm:$0xff] %v475
    %500 = vst [vmem:[%s3 + $0x70] sm:$0xff] %v476
    %501 = vst [vmem:[%s3 + $0x78] sm:$0xff] %v477
    %502 = vst [vmem:[%s3 + $0x80] sm:$0xff] %v478
    %503 = vst [vmem:[%s3 + $0x88] sm:$0xff] %v479
    %504 = vst [vmem:[%s3 + $0x90] sm:$0xff] %v480
    %505 = vst [vmem:[%s3 + $0x98] sm:$0xff] %v481
    %506 = vst [vmem:[%s3 + $0xa0] sm:$0xff] %v482
    %507 = vst [vmem:[%s3 + $0xa8] sm:$0xff] %v483
    %508 = vst [vmem:[%s3 + $0xb0] sm:$0xff] %v484
    %509 = vst [vmem:[%s3 + $0xb8] sm:$0xff] %v485
  $region21: #{motion_vqvae_forward.16} parent=0 // pred_fallthru
    _
  // Predicated region
  $region22: #{motion_vqvae_forward.16} parent=0 // pred_check
    _
  $region23: #{motion_vqvae_forward.16} parent=0 // pred_check_branch
    %511 = sbr.rel (0) target = $region25
  $region24: #{motion_vqvae_forward.16} parent=0 // pred_region
    _
  $region25: #{motion_vqvae_forward.16} parent=0 // pred_fallthru
    _
  // Predicated region
  $region26: #{motion_vqvae_forward.16} parent=0 // pred_check
    _
  $region27: #{motion_vqvae_forward.16} parent=0 // pred_check_branch
    %513 = sbr.rel (0) target = $region29
  $region28: #{motion_vqvae_forward.16} parent=0 // pred_region
    _
  $region29: #{motion_vqvae_forward.16} parent=0 // pred_fallthru
    _

// kernel: motion_vqvae_forward.17
$region0: #{motion_vqvae_forward.17}
  #allocation0 [shape = 'u32[]', space=smem, size = 0x4, offset = 0x4, fixed_abs, tag = 'smem constant byte address 0x4 - core index']
  #allocation1 [shape = 'u32[144,128]{1,0:T(1,128)}', space=vmem, size = 0x12000, scoped, tag = 'internal scratch']
  #allocation2 [shape = 'f32[48,128]{1,0:T(8,128)}', space=vmem, size = 0x6000, scoped, tag = 'scratch operand']
  %s0 = inlined_call_operand.vmem [shape: bf16[48,512], index: 0, kind: input, shape index: {}]
  %s1 = inlined_call_operand.vmem [shape: bf16[512,128], index: 1, kind: input, shape index: {}]
  %s2 = inlined_call_operand.vmem [shape: f32[1,128], index: 2, kind: input, shape index: {}]
  %s3 = inlined_call_operand.vmem [shape: f32[48,128], index: 3, kind: output, shape index: {}]
  %s4 = sld [smem:[#allocation0]]
  $region30: #{motion_vqvae_forward.17} parent=0
    _
  %s6 = ssub.s32 1, %s4
  %s7 = scalar_select 0, %s6, %s4
  // Predicated region
  $region2: #{motion_vqvae_forward.17} parent=0 // pred_check
    _
  $region3: #{motion_vqvae_forward.17} parent=0 // pred_check_branch
    %9 = sbr.rel (0) target = $region5
  $region4: #{motion_vqvae_forward.17} parent=0 // pred_region
    _
  $region5: #{motion_vqvae_forward.17} parent=0 // pred_fallthru
    _
  // Predicated region
  $region6: #{motion_vqvae_forward.17} parent=0 // pred_check
    _
  $region7: #{motion_vqvae_forward.17} parent=0 // pred_check_branch
    %11 = sbr.rel (0) target = $region9
  $region8: #{motion_vqvae_forward.17} parent=0 // pred_region
    _
  $region9: #{motion_vqvae_forward.17} parent=0 // pred_fallthru
    _
  // Predicated region
  $region10: #{motion_vqvae_forward.17} parent=0 // pred_check
    _
  $region11: #{motion_vqvae_forward.17} parent=0 // pred_check_branch
    %13 = sbr.rel (0) target = $region13
  $region12: #{motion_vqvae_forward.17} parent=0 // pred_region
    _
  $region13: #{motion_vqvae_forward.17} parent=0 // pred_fallthru
    _
  %p15 = scmp.eq.s32.totalorder 0, 0
  // Predicated region
  $region14: #{motion_vqvae_forward.17} parent=0 // pred_check
    %p16 = pneg %p15
  $region15: #{motion_vqvae_forward.17} parent=0 // pred_check_branch
    %18 = sbr.rel (%p16) target = $region17
  $region16: #{motion_vqvae_forward.17} parent=0 // pred_region
    %19 = vst [vmem:[#allocation2] sm:$0xff] 0.0
    %20 = vst [vmem:[#allocation2 + $0x8] sm:$0xff] 0.0
    %21 = vst [vmem:[#allocation2 + $0x10] sm:$0xff] 0.0
    %22 = vst [vmem:[#allocation2 + $0x18] sm:$0xff] 0.0
    %23 = vst [vmem:[#allocation2 + $0x20] sm:$0xff] 0.0
    %24 = vst [vmem:[#allocation2 + $0x28] sm:$0xff] 0.0
  $region17: #{motion_vqvae_forward.17} parent=0 // pred_fallthru
    _
  %v25 = vld [vmem:[#allocation2] sm:$0xff]
  %v26 = vld [vmem:[#allocation2 + $0x8] sm:$0xff]
  %v27 = vld [vmem:[#allocation2 + $0x10] sm:$0xff]
  %v28 = vld [vmem:[#allocation2 + $0x18] sm:$0xff]
  %v29 = vld [vmem:[#allocation2 + $0x20] sm:$0xff]
  %v30 = vld [vmem:[#allocation2 + $0x28] sm:$0xff]
  %v31 = vld [vmem:[%s0] sm:$0xff]
  %v32 = vld [vmem:[%s0 + $0x8] sm:$0xff]
  %v33 = vld [vmem:[%s0 + $0x10] sm:$0xff]
  %v34 = vld [vmem:[%s0 + $0x18] sm:$0xff]
  %v35 = vld [vmem:[%s0 + $0x20] sm:$0xff]
  %v36 = vld [vmem:[%s0 + $0x28] sm:$0xff]
  %v37 = vld [vmem:[%s0 + $0x30] sm:$0xff]
  %v38 = vld [vmem:[%s0 + $0x38] sm:$0xff]
  %v39 = vld [vmem:[%s0 + $0x40] sm:$0xff]
  %v40 = vld [vmem:[%s0 + $0x48] sm:$0xff]
  %v41 = vld [vmem:[%s0 + $0x50] sm:$0xff]
  %v42 = vld [vmem:[%s0 + $0x58] sm:$0xff]
  %v43 = vld [vmem:[%s1] sm:$0xf]
  %v44 = vld [vmem:[%s1 + $0x4] sm:$0xf]
  %v45 = vld [vmem:[%s1 + $0x8] sm:$0xf]
  %v46 = vld [vmem:[%s1 + $0xc] sm:$0xf]
  %v47 = vld [vmem:[%s1 + $0x10] sm:$0xf]
  %v48 = vld [vmem:[%s1 + $0x14] sm:$0xf]
  %v49 = vld [vmem:[%s1 + $0x18] sm:$0xf]
  %v50 = vld [vmem:[%s1 + $0x1c] sm:$0xf]
  %v51 = vld [vmem:[%s1 + $0x20] sm:$0xf]
  %v52 = vld [vmem:[%s1 + $0x24] sm:$0xf]
  %v53 = vld [vmem:[%s1 + $0x28] sm:$0xf]
  %v54 = vld [vmem:[%s1 + $0x2c] sm:$0xf]
  %v55 = vld [vmem:[%s1 + $0x30] sm:$0xf]
  %v56 = vld [vmem:[%s1 + $0x34] sm:$0xf]
  %v57 = vld [vmem:[%s1 + $0x38] sm:$0xf]
  %v58 = vld [vmem:[%s1 + $0x3c] sm:$0xf]
  %v59 = vld [vmem:[%s1 + $0x40] sm:$0xf]
  %v60 = vld [vmem:[%s1 + $0x44] sm:$0xf]
  %v61 = vld [vmem:[%s1 + $0x48] sm:$0xf]
  %v62 = vld [vmem:[%s1 + $0x4c] sm:$0xf]
  %v63 = vld [vmem:[%s1 + $0x50] sm:$0xf]
  %v64 = vld [vmem:[%s1 + $0x54] sm:$0xf]
  %v65 = vld [vmem:[%s1 + $0x58] sm:$0xf]
  %v66 = vld [vmem:[%s1 + $0x5c] sm:$0xf]
  %v67 = vld [vmem:[%s1 + $0x60] sm:$0xf]
  %v68 = vld [vmem:[%s1 + $0x64] sm:$0xf]
  %v69 = vld [vmem:[%s1 + $0x68] sm:$0xf]
  %v70 = vld [vmem:[%s1 + $0x6c] sm:$0xf]
  %v71 = vld [vmem:[%s1 + $0x70] sm:$0xf]
  %v72 = vld [vmem:[%s1 + $0x74] sm:$0xf]
  %v73 = vld [vmem:[%s1 + $0x78] sm:$0xf]
  %v74 = vld [vmem:[%s1 + $0x7c] sm:$0xf]
  %v75 = vld [vmem:[%s1 + $0x80] sm:$0xf]
  %v76 = vld [vmem:[%s1 + $0x84] sm:$0xf]
  %v77 = vld [vmem:[%s1 + $0x88] sm:$0xf]
  %v78 = vld [vmem:[%s1 + $0x8c] sm:$0xf]
  %v79 = vld [vmem:[%s1 + $0x90] sm:$0xf]
  %v80 = vld [vmem:[%s1 + $0x94] sm:$0xf]
  %v81 = vld [vmem:[%s1 + $0x98] sm:$0xf]
  %v82 = vld [vmem:[%s1 + $0x9c] sm:$0xf]
  %v83 = vld [vmem:[%s1 + $0xa0] sm:$0xf]
  %v84 = vld [vmem:[%s1 + $0xa4] sm:$0xf]
  %v85 = vld [vmem:[%s1 + $0xa8] sm:$0xf]
  %v86 = vld [vmem:[%s1 + $0xac] sm:$0xf]
  %v87 = vld [vmem:[%s1 + $0xb0] sm:$0xf]
  %v88 = vld [vmem:[%s1 + $0xb4] sm:$0xf]
  %v89 = vld [vmem:[%s1 + $0xb8] sm:$0xf]
  %v90 = vld [vmem:[%s1 + $0xbc] sm:$0xf]
  %v91 = vld [vmem:[%s1 + $0xc0] sm:$0xf]
  %v92 = vld [vmem:[%s1 + $0xc4] sm:$0xf]
  %v93 = vld [vmem:[%s1 + $0xc8] sm:$0xf]
  %v94 = vld [vmem:[%s1 + $0xcc] sm:$0xf]
  %v95 = vld [vmem:[%s1 + $0xd0] sm:$0xf]
  %v96 = vld [vmem:[%s1 + $0xd4] sm:$0xf]
  %v97 = vld [vmem:[%s1 + $0xd8] sm:$0xf]
  %v98 = vld [vmem:[%s1 + $0xdc] sm:$0xf]
  %v99 = vld [vmem:[%s1 + $0xe0] sm:$0xf]
  %v100 = vld [vmem:[%s1 + $0xe4] sm:$0xf]
  %v101 = vld [vmem:[%s1 + $0xe8] sm:$0xf]
  %v102 = vld [vmem:[%s1 + $0xec] sm:$0xf]
  %v103 = vld [vmem:[%s1 + $0xf0] sm:$0xf]
  %v104 = vld [vmem:[%s1 + $0xf4] sm:$0xf]
  %v105 = vld [vmem:[%s1 + $0xf8] sm:$0xf]
  %v106 = vld [vmem:[%s1 + $0xfc] sm:$0xf]
  %v119 = vunpack.c.l.b16 %v31
  %v120 = vunpack.c.h.b16 %v31
  %v121 = vunpack.c.l.b16 %v32
  %v122 = vunpack.c.h.b16 %v32
  %v123 = vunpack.c.l.b16 %v33
  %v124 = vunpack.c.h.b16 %v33
  %v125 = vunpack.c.l.b16 %v34
  %v126 = vunpack.c.h.b16 %v34
  %v127 = vunpack.c.l.b16 %v35
  %v128 = vunpack.c.h.b16 %v35
  %v129 = vunpack.c.l.b16 %v36
  %v130 = vunpack.c.h.b16 %v36
  %v131 = vunpack.c.l.b16 %v37
  %v132 = vunpack.c.h.b16 %v37
  %v133 = vunpack.c.l.b16 %v38
  %v134 = vunpack.c.h.b16 %v38
  %v135 = vunpack.c.l.b16 %v39
  %v136 = vunpack.c.h.b16 %v39
  %v137 = vunpack.c.l.b16 %v40
  %v138 = vunpack.c.h.b16 %v40
  %v139 = vunpack.c.l.b16 %v41
  %v140 = vunpack.c.h.b16 %v41
  %v141 = vunpack.c.l.b16 %v42
  %v142 = vunpack.c.h.b16 %v42
  %v143 = vpack.c.b16 %v123, %v119
  %v144 = vpack.c.b16 %v124, %v120
  %v145 = vpack.c.b16 %v125, %v121
  %v146 = vpack.c.b16 %v126, %v122
  %v147 = vpack.c.b16 %v131, %v127
  %v148 = vpack.c.b16 %v132, %v128
  %v149 = vpack.c.b16 %v133, %v129
  %v150 = vpack.c.b16 %v134, %v130
  %v151 = vpack.c.b16 %v139, %v135
  %v152 = vpack.c.b16 %v140, %v136
  %v153 = vpack.c.b16 %v141, %v137
  %v154 = vpack.c.b16 %v142, %v138
  %v231 = vunpack.c.l.b16 %v43
  %v232 = vunpack.c.l.b16 %v44
  %v233 = vunpack.c.l.b16 %v45
  %v234 = vunpack.c.l.b16 %v46
  %v235 = vunpack.c.l.b16 %v47
  %v236 = vunpack.c.l.b16 %v48
  %v237 = vunpack.c.l.b16 %v49
  %v238 = vunpack.c.l.b16 %v50
  %v239 = vunpack.c.l.b16 %v51
  %v240 = vunpack.c.l.b16 %v52
  %v241 = vunpack.c.l.b16 %v53
  %v242 = vunpack.c.l.b16 %v54
  %v243 = vunpack.c.l.b16 %v55
  %v244 = vunpack.c.l.b16 %v56
  %v245 = vunpack.c.l.b16 %v57
  %v246 = vunpack.c.l.b16 %v58
  %v247 = vunpack.c.l.b16 %v59
  %v248 = vunpack.c.l.b16 %v60
  %v249 = vunpack.c.l.b16 %v61
  %v250 = vunpack.c.l.b16 %v62
  %v251 = vunpack.c.l.b16 %v63
  %v252 = vunpack.c.l.b16 %v64
  %v253 = vunpack.c.l.b16 %v65
  %v254 = vunpack.c.l.b16 %v66
  %v255 = vunpack.c.l.b16 %v67
  %v256 = vunpack.c.l.b16 %v68
  %v257 = vunpack.c.l.b16 %v69
  %v258 = vunpack.c.l.b16 %v70
  %v259 = vunpack.c.l.b16 %v71
  %v260 = vunpack.c.l.b16 %v72
  %v261 = vunpack.c.l.b16 %v73
  %v262 = vunpack.c.l.b16 %v74
  %v263 = vunpack.c.l.b16 %v75
  %v264 = vunpack.c.l.b16 %v76
  %v265 = vunpack.c.l.b16 %v77
  %v266 = vunpack.c.l.b16 %v78
  %v267 = vunpack.c.l.b16 %v79
  %v268 = vunpack.c.l.b16 %v80
  %v269 = vunpack.c.l.b16 %v81
  %v270 = vunpack.c.l.b16 %v82
  %v271 = vunpack.c.l.b16 %v83
  %v272 = vunpack.c.l.b16 %v84
  %v273 = vunpack.c.l.b16 %v85
  %v274 = vunpack.c.l.b16 %v86
  %v275 = vunpack.c.l.b16 %v87
  %v276 = vunpack.c.l.b16 %v88
  %v277 = vunpack.c.l.b16 %v89
  %v278 = vunpack.c.l.b16 %v90
  %v279 = vunpack.c.l.b16 %v91
  %v280 = vunpack.c.l.b16 %v92
  %v281 = vunpack.c.l.b16 %v93
  %v282 = vunpack.c.l.b16 %v94
  %v283 = vunpack.c.l.b16 %v95
  %v284 = vunpack.c.l.b16 %v96
  %v285 = vunpack.c.l.b16 %v97
  %v286 = vunpack.c.l.b16 %v98
  %v287 = vunpack.c.l.b16 %v99
  %v288 = vunpack.c.l.b16 %v100
  %v289 = vunpack.c.l.b16 %v101
  %v290 = vunpack.c.l.b16 %v102
  %v291 = vunpack.c.l.b16 %v103
  %v292 = vunpack.c.l.b16 %v104
  %v293 = vunpack.c.l.b16 %v105
  %v294 = vunpack.c.l.b16 %v106
  %v295 = vpack.c.b16 %v232, %v231
  %v296 = vpack.c.b16 %v234, %v233
  %v297 = vpack.c.b16 %v236, %v235
  %v298 = vpack.c.b16 %v238, %v237
  %v299 = vpack.c.b16 %v240, %v239
  %v300 = vpack.c.b16 %v242, %v241
  %v301 = vpack.c.b16 %v244, %v243
  %v302 = vpack.c.b16 %v246, %v245
  %v303 = vpack.c.b16 %v248, %v247
  %v304 = vpack.c.b16 %v250, %v249
  %v305 = vpack.c.b16 %v252, %v251
  %v306 = vpack.c.b16 %v254, %v253
  %v307 = vpack.c.b16 %v256, %v255
  %v308 = vpack.c.b16 %v258, %v257
  %v309 = vpack.c.b16 %v260, %v259
  %v310 = vpack.c.b16 %v262, %v261
  %v311 = vpack.c.b16 %v264, %v263
  %v312 = vpack.c.b16 %v266, %v265
  %v313 = vpack.c.b16 %v268, %v267
  %v314 = vpack.c.b16 %v270, %v269
  %v315 = vpack.c.b16 %v272, %v271
  %v316 = vpack.c.b16 %v274, %v273
  %v317 = vpack.c.b16 %v276, %v275
  %v318 = vpack.c.b16 %v278, %v277
  %v319 = vpack.c.b16 %v280, %v279
  %v320 = vpack.c.b16 %v282, %v281
  %v321 = vpack.c.b16 %v284, %v283
  %v322 = vpack.c.b16 %v286, %v285
  %v323 = vpack.c.b16 %v288, %v287
  %v324 = vpack.c.b16 %v290, %v289
  %v325 = vpack.c.b16 %v292, %v291
  %v326 = vpack.c.b16 %v294, %v293
  %359 = vmatprep.subr.bf16.mxu0 0
  %360 = vmatpush1.bf16.msra.mxu0 %v295
  %361 = vmatprep.subr.bf16.mxu0 0
  %362 = vmatpush1.bf16.msra.mxu0 %v296
  %363 = vmatprep.subr.bf16.mxu0 0
  %364 = vmatpush1.bf16.msra.mxu0 %v297
  %365 = vmatprep.subr.bf16.mxu0 0
  %366 = vmatpush1.bf16.msra.mxu0 %v298
  %367 = vmatprep.subr.bf16.mxu0 0
  %368 = vmatpush1.bf16.msra.mxu0 %v299
  %369 = vmatprep.subr.bf16.mxu0 0
  %370 = vmatpush1.bf16.msra.mxu0 %v300
  %371 = vmatprep.subr.bf16.mxu0 0
  %372 = vmatpush1.bf16.msra.mxu0 %v301
  %373 = vmatprep.subr.bf16.mxu0 0
  %374 = vmatpush1.bf16.msra.mxu0 %v302
  %375 = vmatprep.subr.bf16.mxu0 0
  %376 = vmatpush1.bf16.msra.mxu0 %v303
  %377 = vmatprep.subr.bf16.mxu0 0
  %378 = vmatpush1.bf16.msra.mxu0 %v304
  %379 = vmatprep.subr.bf16.mxu0 0
  %380 = vmatpush1.bf16.msra.mxu0 %v305
  %381 = vmatprep.subr.bf16.mxu0 0
  %382 = vmatpush1.bf16.msra.mxu0 %v306
  %383 = vmatprep.subr.bf16.mxu0 0
  %384 = vmatpush1.bf16.msra.mxu0 %v307
  %385 = vmatprep.subr.bf16.mxu0 0
  %386 = vmatpush1.bf16.msra.mxu0 %v308
  %387 = vmatprep.subr.bf16.mxu0 0
  %388 = vmatpush1.bf16.msra.mxu0 %v309
  %389 = vmatprep.subr.bf16.mxu0 0
  %390 = vmatpush1.bf16.msra.mxu0 %v310
  %391 = vmatprep.mubr.bf16.mxu0 %v144
  %392 = vmatmul.mubr.bf16.gmra.mrb[0].mxu0 %v143
  %v393 = vpop.f32.mrb[0].mxu0
  %v394 = vadd.f32 0.0, %v393
  %v395 = vpop.f32.mrb[0].mxu0
  %v396 = vpop.f32.mrb[0].mxu0
  %v397 = vadd.f32 0.0, %v396
  %v398 = vpop.f32.mrb[0].mxu0
  %399 = vmatprep.mubr.bf16.mxu0 %v148
  %400 = vmatmul.mubr.bf16.gmra.mrb[0].mxu0 %v147
  %v401 = vpop.f32.mrb[0].mxu0
  %v402 = vadd.f32 0.0, %v401
  %v403 = vpop.f32.mrb[0].mxu0
  %v404 = vpop.f32.mrb[0].mxu0
  %v405 = vadd.f32 0.0, %v404
  %v406 = vpop.f32.mrb[0].mxu0
  %407 = vmatprep.mubr.bf16.mxu0 %v152
  %408 = vmatmul.mubr.bf16.gmra.mrb[0].mxu0 %v151
  %v409 = vpop.f32.mrb[0].mxu0
  %v410 = vadd.f32 0.0, %v409
  %v411 = vpop.f32.mrb[0].mxu0
  %v412 = vpop.f32.mrb[0].mxu0
  %v413 = vadd.f32 0.0, %v412
  %v414 = vpop.f32.mrb[0].mxu0
  %415 = vdwg.mxu0
  %416 = vmatprep.subr.bf16.mxu0 0
  %417 = vmatpush1.bf16.msra.mxu0 %v311
  %418 = vmatprep.subr.bf16.mxu0 0
  %419 = vmatpush1.bf16.msra.mxu0 %v312
  %420 = vmatprep.subr.bf16.mxu0 0
  %421 = vmatpush1.bf16.msra.mxu0 %v313
  %422 = vmatprep.subr.bf16.mxu0 0
  %423 = vmatpush1.bf16.msra.mxu0 %v314
  %424 = vmatprep.subr.bf16.mxu0 0
  %425 = vmatpush1.bf16.msra.mxu0 %v315
  %426 = vmatprep.subr.bf16.mxu0 0
  %427 = vmatpush1.bf16.msra.mxu0 %v316
  %428 = vmatprep.subr.bf16.mxu0 0
  %429 = vmatpush1.bf16.msra.mxu0 %v317
  %430 = vmatprep.subr.bf16.mxu0 0
  %431 = vmatpush1.bf16.msra.mxu0 %v318
  %432 = vmatprep.subr.bf16.mxu0 0
  %433 = vmatpush1.bf16.msra.mxu0 %v319
  %434 = vmatprep.subr.bf16.mxu0 0
  %435 = vmatpush1.bf16.msra.mxu0 %v320
  %436 = vmatprep.subr.bf16.mxu0 0
  %437 = vmatpush1.bf16.msra.mxu0 %v321
  %438 = vmatprep.subr.bf16.mxu0 0
  %439 = vmatpush1.bf16.msra.mxu0 %v322
  %440 = vmatprep.subr.bf16.mxu0 0
  %441 = vmatpush1.bf16.msra.mxu0 %v323
  %442 = vmatprep.subr.bf16.mxu0 0
  %443 = vmatpush1.bf16.msra.mxu0 %v324
  %444 = vmatprep.subr.bf16.mxu0 0
  %445 = vmatpush1.bf16.msra.mxu0 %v325
  %446 = vmatprep.subr.bf16.mxu0 0
  %447 = vmatpush1.bf16.msra.mxu0 %v326
  %448 = vmatprep.mubr.bf16.mxu0 %v146
  %449 = vmatmul.mubr.bf16.gmra.mrb[0].mxu0 %v145
  %v450 = vpop.f32.mrb[0].mxu0
  %v451 = vadd.f32 %v394, %v450
  %v452 = vpop.f32.mrb[0].mxu0
  %v453 = vpop.f32.mrb[0].mxu0
  %v454 = vadd.f32 %v397, %v453
  %v455 = vpop.f32.mrb[0].mxu0
  %456 = vmatprep.mubr.bf16.mxu0 %v150
  %457 = vmatmul.mubr.bf16.gmra.mrb[0].mxu0 %v149
  %v458 = vpop.f32.mrb[0].mxu0
  %v459 = vadd.f32 %v402, %v458
  %v460 = vpop.f32.mrb[0].mxu0
  %v461 = vpop.f32.mrb[0].mxu0
  %v462 = vadd.f32 %v405, %v461
  %v463 = vpop.f32.mrb[0].mxu0
  %464 = vmatprep.mubr.bf16.mxu0 %v154
  %465 = vmatmul.mubr.bf16.gmra.mrb[0].mxu0 %v153
  %v466 = vpop.f32.mrb[0].mxu0
  %v467 = vadd.f32 %v410, %v466
  %v468 = vpop.f32.mrb[0].mxu0
  %v469 = vpop.f32.mrb[0].mxu0
  %v470 = vadd.f32 %v413, %v469
  %v471 = vpop.f32.mrb[0].mxu0
  %472 = vdwg.mxu0
  %v473 = vadd.f32 %v25, %v451
  %v474 = vadd.f32 %v26, %v454
  %v475 = vadd.f32 %v27, %v459
  %v476 = vadd.f32 %v28, %v462
  %v477 = vadd.f32 %v29, %v467
  %v478 = vadd.f32 %v30, %v470
  %479 = vst [vmem:[#allocation2] sm:$0xff] %v473
  %480 = vst [vmem:[#allocation2 + $0x8] sm:$0xff] %v474
  %481 = vst [vmem:[#allocation2 + $0x10] sm:$0xff] %v475
  %482 = vst [vmem:[#allocation2 + $0x18] sm:$0xff] %v476
  %483 = vst [vmem:[#allocation2 + $0x20] sm:$0xff] %v477
  %484 = vst [vmem:[#allocation2 + $0x28] sm:$0xff] %v478
  // Predicated region
  $region18: #{motion_vqvae_forward.17} parent=0 // pred_check
    %p485 = pneg %p15
  $region19: #{motion_vqvae_forward.17} parent=0 // pred_check_branch
    %487 = sbr.rel (%p485) target = $region21
  $region20: #{motion_vqvae_forward.17} parent=0 // pred_region
    %v488 = vld [vmem:[#allocation2] sm:$0xff]
    %v489 = vld [vmem:[#allocation2 + $0x8] sm:$0xff]
    %v490 = vld [vmem:[#allocation2 + $0x10] sm:$0xff]
    %v491 = vld [vmem:[#allocation2 + $0x18] sm:$0xff]
    %v492 = vld [vmem:[#allocation2 + $0x20] sm:$0xff]
    %v493 = vld [vmem:[#allocation2 + $0x28] sm:$0xff]
    %v494 = vld [vmem:[%s2] sm:$0x1]
    %v496 = vlaneseq
    %v497 = vshrl.u32 %v496, 7
    %v498 = vsub.s32 0, %v497
    %v499 = vrot.slane %v494, %v498
    %v501 = vadd.f32 %v488, %v499
    %v502 = vadd.f32 %v489, %v499
    %v503 = vadd.f32 %v490, %v499
    %v504 = vadd.f32 %v491, %v499
    %v505 = vadd.f32 %v492, %v499
    %v506 = vadd.f32 %v493, %v499
    %v507 = vmax.f32 %v501, 0.0
    %v508 = vmax.f32 %v502, 0.0
    %v509 = vmax.f32 %v503, 0.0
    %v510 = vmax.f32 %v504, 0.0
    %v511 = vmax.f32 %v505, 0.0
    %v512 = vmax.f32 %v506, 0.0
    %513 = vst [vmem:[%s3] sm:$0xff] %v507
    %514 = vst [vmem:[%s3 + $0x8] sm:$0xff] %v508
    %515 = vst [vmem:[%s3 + $0x10] sm:$0xff] %v509
    %516 = vst [vmem:[%s3 + $0x18] sm:$0xff] %v510
    %517 = vst [vmem:[%s3 + $0x20] sm:$0xff] %v511
    %518 = vst [vmem:[%s3 + $0x28] sm:$0xff] %v512
  $region21: #{motion_vqvae_forward.17} parent=0 // pred_fallthru
    _
  // Predicated region
  $region22: #{motion_vqvae_forward.17} parent=0 // pred_check
    _
  $region23: #{motion_vqvae_forward.17} parent=0 // pred_check_branch
    %520 = sbr.rel (0) target = $region25
  $region24: #{motion_vqvae_forward.17} parent=0 // pred_region
    _
  $region25: #{motion_vqvae_forward.17} parent=0 // pred_fallthru
    _
  // Predicated region
  $region26: #{motion_vqvae_forward.17} parent=0 // pred_check
    _
  $region27: #{motion_vqvae_forward.17} parent=0 // pred_check_branch
    %522 = sbr.rel (0) target = $region29
  $region28: #{motion_vqvae_forward.17} parent=0 // pred_region
    _
  $region29: #{motion_vqvae_forward.17} parent=0 // pred_fallthru
    _

// kernel: motion_vqvae_forward.18
$region0: #{motion_vqvae_forward.18}
  #allocation0 [shape = 'u32[]', space=smem, size = 0x4, offset = 0x4, fixed_abs, tag = 'smem constant byte address 0x4 - core index']
  #allocation1 [shape = 'u32[144,128]{1,0:T(1,128)}', space=vmem, size = 0x12000, scoped, tag = 'internal scratch']
  #allocation2 [shape = 'f32[48,128]{1,0:T(8,128)}', space=vmem, size = 0x6000, scoped, tag = 'scratch operand']
  %s0 = inlined_call_operand.vmem [shape: bf16[48,640], index: 0, kind: input, shape index: {}]
  %s1 = inlined_call_operand.vmem [shape: bf16[640,128], index: 1, kind: input, shape index: {}]
  %s2 = inlined_call_operand.vmem [shape: f32[1,128], index: 2, kind: input, shape index: {}]
  %s3 = inlined_call_operand.vmem [shape: f32[48,128], index: 3, kind: output, shape index: {}]
  %s4 = sld [smem:[#allocation0]]
  $region94: #{motion_vqvae_forward.18} parent=0
    _
  %s6 = ssub.s32 1, %s4
  %s7 = scalar_select 0, %s6, %s4
  $region1: #{motion_vqvae_forward.18} parent=0
    #allocation3 [shape = 'u8[24576]{0}', space=vmem, size = 0x6000, scoped, tag = 'input window, operand 0']
    loop: start=0, step=1, limit=7
    $region2: #{motion_vqvae_forward.18} parent=1 // loop_pre_header
      _
    $region3: #{motion_vqvae_forward.18} parent=1 // loop_header
      %s9 = sphi 0, %s13
      %p10 = scmp.ge.s32.totalorder %s9, 7
      %s16 = sphi 0, %s35
      %s17 = sphi 0, %s31
      %s18 = sphi 0, %s27
      %s19 = sphi 0, %s16
      %s20 = sphi 0, %s17
      %s21 = sphi 0, %s18
      %s22 = sphi 0, %s19
      %s23 = sphi 0, %s20
      %s24 = sphi 0, %s21
      %s40 = sphi 0, %s42
      %s43 = sphi 0, %s40
      %s44 = sphi 0, %s43
      %s60 = sphi 0, %s44
      %s68 = sphi 0, %s70
      %s71 = sphi 0, %s68
      %s72 = sphi 0, %s71
      %s88 = sphi 0, %s72
      %s94 = sphi 0, %s96
      %s97 = sphi 0, %s94
      %s98 = sphi 0, %s97
      %s114 = sphi 0, %s98
      %s122 = sphi 0, %s124
      %s125 = sphi 0, %s122
      %s126 = sphi 0, %s125
      %s142 = sphi 0, %s126
    $region4: #{motion_vqvae_forward.18} parent=1 // loop_header_branch
      %12 = sbr.rel (%p10) target = $region8
    $region5: #{motion_vqvae_forward.18} parent=1 // loop_body
      %s14 = ssub.s32 %s9, 1
      %s15 = ssub.s32 %s9, 2
      %s25 = sadd.s32 1, %s18
      %p26 = scmp.ge.s32.totalorder %s25, 5
      %s27 = scalar_select %p26, 0, %s25
      %s28 = sadd.s32 1, %s17
      %s29 = scalar_select %p26, %s28, %s17
      %p30 = scmp.ge.s32.totalorder %s29, 1
      %s31 = scalar_select %p30, 0, %s29
      %s32 = sadd.s32 1, %s16
      %s33 = scalar_select %p30, %s32, %s16
      %p34 = scmp.ge.s32.totalorder %s33, 1
      %s35 = scalar_select %p34, 0, %s33
      %s36 = ssub.s32 %s16, %s35
      %s37 = ssub.s32 %s18, %s27
      %s38 = sor.u32 %s36, %s37
      %p39 = scmp.eq.s32.totalorder %s38, 0
      %s41 = sadd.s32 %s40, 1
      %s42 = scalar_select %p39, %s40, %s41
      %p45 = pneg %p39
      %p46 = scmp.eq.s32.totalorder %s9, 4
      %p47 = por %p45, %p46
      %p48 = scmp.ne.s32.totalorder %s40, %s43
      %p49 = scmp.eq.s32.totalorder %s9, 0
      %p50 = por %p48, %p49
      %p51 = scmp.ne.s32.totalorder %s40, %s43
      %p52 = scmp.eq.s32.totalorder %s14, 4
      %p53 = por %p51, %p52
      %p54 = scmp.ne.s32.totalorder %s43, %s44
      %p55 = scmp.eq.s32.totalorder %s14, 0
      %p56 = por %p54, %p55
      %p57 = scmp.ne.s32.totalorder %s43, %s44
      %p58 = scmp.eq.s32.totalorder %s15, 4
      %p59 = por %p57, %p58
      %p61 = scmp.ne.s32.totalorder %s44, %s60
      %p62 = scmp.eq.s32.totalorder %s15, 0
      %p63 = por %p61, %p62
      %s64 = ssub.s32 %s18, %s27
      %s65 = ssub.s32 %s17, %s31
      %s66 = sor.u32 %s64, %s65
      %p67 = scmp.eq.s32.totalorder %s66, 0
      %s69 = sadd.s32 %s68, 1
      %s70 = scalar_select %p67, %s68, %s69
      %p73 = pneg %p67
      %p74 = scmp.eq.s32.totalorder %s9, 4
      %p75 = por %p73, %p74
      %p76 = scmp.ne.s32.totalorder %s68, %s71
      %p77 = scmp.eq.s32.totalorder %s9, 0
      %p78 = por %p76, %p77
      %p79 = scmp.ne.s32.totalorder %s68, %s71
      %p80 = scmp.eq.s32.totalorder %s14, 4
      %p81 = por %p79, %p80
      %p82 = scmp.ne.s32.totalorder %s71, %s72
      %p83 = scmp.eq.s32.totalorder %s14, 0
      %p84 = por %p82, %p83
      %p85 = scmp.ne.s32.totalorder %s71, %s72
      %p86 = scmp.eq.s32.totalorder %s15, 4
      %p87 = por %p85, %p86
      %p89 = scmp.ne.s32.totalorder %s72, %s88
      %p90 = scmp.eq.s32.totalorder %s15, 0
      %p91 = por %p89, %p90
      %s92 = ssub.s32 %s17, %s31
      %p93 = scmp.eq.s32.totalorder %s92, 0
      %s95 = sadd.s32 %s94, 1
      %s96 = scalar_select %p93, %s94, %s95
      %p99 = pneg %p93
      %p100 = scmp.eq.s32.totalorder %s9, 4
      %p101 = por %p99, %p100
      %p102 = scmp.ne.s32.totalorder %s94, %s97
      %p103 = scmp.eq.s32.totalorder %s9, 0
      %p104 = por %p102, %p103
      %p105 = scmp.ne.s32.totalorder %s94, %s97
      %p106 = scmp.eq.s32.totalorder %s14, 4
      %p107 = por %p105, %p106
      %p108 = scmp.ne.s32.totalorder %s97, %s98
      %p109 = scmp.eq.s32.totalorder %s14, 0
      %p110 = por %p108, %p109
      %p111 = scmp.ne.s32.totalorder %s97, %s98
      %p112 = scmp.eq.s32.totalorder %s15, 4
      %p113 = por %p111, %p112
      %p115 = scmp.ne.s32.totalorder %s98, %s114
      %p116 = scmp.eq.s32.totalorder %s15, 0
      %p117 = por %p115, %p116
      %s118 = ssub.s32 %s16, %s35
      %s119 = ssub.s32 %s17, %s31
      %s120 = sor.u32 %s118, %s119
      %p121 = scmp.eq.s32.totalorder %s120, 0
      %s123 = sadd.s32 %s122, 1
      %s124 = scalar_select %p121, %s122, %s123
      %p127 = pneg %p121
      %p128 = scmp.eq.s32.totalorder %s9, 4
      %p129 = por %p127, %p128
      %p130 = scmp.ne.s32.totalorder %s122, %s125
      %p131 = scmp.eq.s32.totalorder %s9, 0
      %p132 = por %p130, %p131
      %p133 = scmp.ne.s32.totalorder %s122, %s125
      %p134 = scmp.eq.s32.totalorder %s14, 4
      %p135 = por %p133, %p134
      %p136 = scmp.ne.s32.totalorder %s125, %s126
      %p137 = scmp.eq.s32.totalorder %s14, 0
      %p138 = por %p136, %p137
      %p139 = scmp.ne.s32.totalorder %s125, %s126
      %p140 = scmp.eq.s32.totalorder %s15, 4
      %p141 = por %p139, %p140
      %p143 = scmp.ne.s32.totalorder %s126, %s142
      %p144 = scmp.eq.s32.totalorder %s15, 0
      %p145 = por %p143, %p144
      %p146 = scmp.le.s32.totalorder 1, %s9
      %p147 = scmp.lt.s32.totalorder %s9, 6
      %p148 = pnand %p146, %p147
      %p149 = pneg %p148
      // Predicated region
      $region9: #{motion_vqvae_forward.18} parent=5 // pred_check
        _
      $region10: #{motion_vqvae_forward.18} parent=5 // pred_check_branch
        %151 = sbr.rel (%p148) target = $region12
      $region11: #{motion_vqvae_forward.18} parent=5 // pred_region
        %s152 = ssub.s32 %s9, 1
        // Predicated region
        $region13: #{motion_vqvae_forward.18} parent=11 // pred_check
          %p153 = pneg %p110
        $region14: #{motion_vqvae_forward.18} parent=11 // pred_check_branch
          %155 = sbr.rel (%p153) target = $region16
        $region15: #{motion_vqvae_forward.18} parent=11 // pred_region
          %p156 = scmp.lt.s32.totalorder %s20, 0
          %s157 = scalar_select %p156, %s20, 0
          %s158 = scalar_lea.vmem %s2, %s157
        $region16: #{motion_vqvae_forward.18} parent=11 // pred_fallthru
          _
      $region12: #{motion_vqvae_forward.18} parent=5 // pred_fallthru
        _
      %p159 = scmp.lt.s32.totalorder %s9, 5
      // Predicated region
      $region17: #{motion_vqvae_forward.18} parent=5 // pred_check
        %p160 = pneg %p159
      $region18: #{motion_vqvae_forward.18} parent=5 // pred_check_branch
        %162 = sbr.rel (%p160) target = $region20
      $region19: #{motion_vqvae_forward.18} parent=5 // pred_region
        // Predicated region
        $region21: #{motion_vqvae_forward.18} parent=19 // pred_check
          %p163 = pneg %p50
        $region22: #{motion_vqvae_forward.18} parent=19 // pred_check_branch
          %165 = sbr.rel (%p163) target = $region24
        $region23: #{motion_vqvae_forward.18} parent=19 // pred_region
          %s166 = sand.u32 %s40, 1
          %s167 = sand.u32 %s40, 1
          %s168 = smul.addr %s167, 24
          %s169 = scalar_lea.vmem [#allocation3], %s168
          %s170 = smul.u32 6, %s16
          %s171 = smul.addr %s170, 5
          %s172 = sadd.s32 %s18, %s171
          %s173 = smul.addr %s172, 4
          %s174 = scalar_lea.vmem %s0, %s173
          // Predicated region
          $region25: #{motion_vqvae_forward.18} parent=23 // pred_check
            _
          $region26: #{motion_vqvae_forward.18} parent=23 // pred_check_branch
            %176 = sbr.rel (0) target = $region28
          $region27: #{motion_vqvae_forward.18} parent=23 // pred_region
            // Predicated region
            $region29: #{motion_vqvae_forward.18} parent=27 // pred_check
              _
            $region30: #{motion_vqvae_forward.18} parent=27 // pred_check_branch
              %178 = sbr.rel target = $region32
            $region31: #{motion_vqvae_forward.18} parent=27 // pred_region
              // Predicated region
              $region44: #{motion_vqvae_forward.18} parent=31 // pred_check
                _
              $region45: #{motion_vqvae_forward.18} parent=31 // pred_check_branch
                %203 = sbr.rel (0) target = $region47
              $region46: #{motion_vqvae_forward.18} parent=31 // pred_region
                loop: start=0, step=1, limit=1
                $region48: #{motion_vqvae_forward.18} parent=46 // loop_pre_header
                  _
                $region49: #{motion_vqvae_forward.18} parent=46 // loop_header
                  %s205 = sphi 0, %s209
                  %p206 = scmp.ge.s32.totalorder %s205, 1
                  %s210 = sphi %s174, %s174
                  %s211 = sphi %s169, %s169
                $region50: #{motion_vqvae_forward.18} parent=46 // loop_header_branch
                  %208 = sbr.rel (%p206) target = $region54
                $region51: #{motion_vqvae_forward.18} parent=46 // loop_body
                  _
                $region52: #{motion_vqvae_forward.18} parent=46 // loop_footer
                  %s209 = sadd.s32 1, %s205
                $region53: #{motion_vqvae_forward.18} parent=46 // loop_footer_branch
                  %204 = sbr.rel target = $region49
                $region54: #{motion_vqvae_forward.18} parent=46 // loop_exit
                  _
                loop: start=0, step=1, limit=1
                $region55: #{motion_vqvae_forward.18} parent=46 // loop_pre_header
                  _
                $region56: #{motion_vqvae_forward.18} parent=46 // loop_header
                  %s214 = sphi 0, %s218
                  %p215 = scmp.ge.s32.totalorder %s214, 1
                  %s219 = sphi %s174, %s174
                  %s220 = sphi %s169, %s169
                $region57: #{motion_vqvae_forward.18} parent=46 // loop_header_branch
                  %217 = sbr.rel (%p215) target = $region61
                $region58: #{motion_vqvae_forward.18} parent=46 // loop_body
                  %v221 = vld [vmem:[%s219] sm:$0xf]
                  %222 = vst [vmem:[%s220] sm:$0xf] %v221
                  %v223 = vld [vmem:[%s219 + $0x14] sm:$0xf]
                  %224 = vst [vmem:[%s220 + $0x4] sm:$0xf] %v223
                  %v225 = vld [vmem:[%s219 + $0x28] sm:$0xf]
                  %226 = vst [vmem:[%s220 + $0x8] sm:$0xf] %v225
                  %v227 = vld [vmem:[%s219 + $0x3c] sm:$0xf]
                  %228 = vst [vmem:[%s220 + $0xc] sm:$0xf] %v227
                  %v229 = vld [vmem:[%s219 + $0x50] sm:$0xf]
                  %230 = vst [vmem:[%s220 + $0x10] sm:$0xf] %v229
                  %v231 = vld [vmem:[%s219 + $0x64] sm:$0xf]
                  %232 = vst [vmem:[%s220 + $0x14] sm:$0xf] %v231
                $region59: #{motion_vqvae_forward.18} parent=46 // loop_footer
                  %s218 = sadd.s32 1, %s214
                $region60: #{motion_vqvae_forward.18} parent=46 // loop_footer_branch
                  %213 = sbr.rel target = $region56
                $region61: #{motion_vqvae_forward.18} parent=46 // loop_exit
                  _
              $region47: #{motion_vqvae_forward.18} parent=31 // pred_fallthru
                _
            $region32: #{motion_vqvae_forward.18} parent=27 // pred_fallthru
              _
            // Predicated region
            $region33: #{motion_vqvae_forward.18} parent=27 // pred_check
              _
            $region34: #{motion_vqvae_forward.18} parent=27 // pred_check_branch
              %180 = sbr.rel (0) target = $region36
            $region35: #{motion_vqvae_forward.18} parent=27 // pred_region
              loop: start=0, step=1, limit=1
              $region37: #{motion_vqvae_forward.18} parent=35 // loop_pre_header
                _
              $region38: #{motion_vqvae_forward.18} parent=35 // loop_header
                %s183 = sphi 0, %s187
                %p184 = scmp.ge.s32.totalorder %s183, 1
                %s188 = sphi %s174, %s174
                %s189 = sphi %s169, %s169
              $region39: #{motion_vqvae_forward.18} parent=35 // loop_header_branch
                %186 = sbr.rel (%p184) target = $region43
              $region40: #{motion_vqvae_forward.18} parent=35 // loop_body
                %v190 = vld [vmem:[%s188] sm:$0xf]
                %191 = vst [vmem:[%s189] sm:$0xf] %v190
                %v192 = vld [vmem:[%s188 + $0x14] sm:$0xf]
                %193 = vst [vmem:[%s189 + $0x4] sm:$0xf] %v192
                %v194 = vld [vmem:[%s188 + $0x28] sm:$0xf]
                %195 = vst [vmem:[%s189 + $0x8] sm:$0xf] %v194
                %v196 = vld [vmem:[%s188 + $0x3c] sm:$0xf]
                %197 = vst [vmem:[%s189 + $0xc] sm:$0xf] %v196
                %v198 = vld [vmem:[%s188 + $0x50] sm:$0xf]
                %199 = vst [vmem:[%s189 + $0x10] sm:$0xf] %v198
                %v200 = vld [vmem:[%s188 + $0x64] sm:$0xf]
                %201 = vst [vmem:[%s189 + $0x14] sm:$0xf] %v200
              $region41: #{motion_vqvae_forward.18} parent=35 // loop_footer
                %s187 = sadd.s32 1, %s183
              $region42: #{motion_vqvae_forward.18} parent=35 // loop_footer_branch
                %182 = sbr.rel target = $region38
              $region43: #{motion_vqvae_forward.18} parent=35 // loop_exit
                _
            $region36: #{motion_vqvae_forward.18} parent=27 // pred_fallthru
              _
          $region28: #{motion_vqvae_forward.18} parent=23 // pred_fallthru
            _
          %233 = vnop
        $region24: #{motion_vqvae_forward.18} parent=19 // pred_fallthru
          _
        // Predicated region
        $region62: #{motion_vqvae_forward.18} parent=19 // pred_check
          %p234 = pneg %p78
        $region63: #{motion_vqvae_forward.18} parent=19 // pred_check_branch
          %236 = sbr.rel (%p234) target = $region65
        $region64: #{motion_vqvae_forward.18} parent=19 // pred_region
          %s237 = smul.u32 16, %s18
          %p238 = scmp.lt.s32.totalorder %s237, 79
          %s239 = scalar_select %p238, %s237, 79
          %p240 = scmp.lt.s32.totalorder %s17, 0
          %s241 = scalar_select %p240, %s17, 0
          %s242 = sadd.s32 %s241, %s239
          %s243 = smul.addr %s242, 4
          %s244 = scalar_lea.vmem %s1, %s243
          %s245 = smul.u32 16, %s18
        $region65: #{motion_vqvae_forward.18} parent=19 // pred_fallthru
          _
      $region20: #{motion_vqvae_forward.18} parent=5 // pred_fallthru
        _
      %p246 = scmp.le.s32.totalorder 1, %s9
      %p247 = scmp.lt.s32.totalorder %s9, 6
      %p248 = pnand %p246, %p247
      %p249 = pneg %p248
      // Predicated region
      $region66: #{motion_vqvae_forward.18} parent=5 // pred_check
        _
      $region67: #{motion_vqvae_forward.18} parent=5 // pred_check_branch
        %251 = sbr.rel (%p248) target = $region69
      $region68: #{motion_vqvae_forward.18} parent=5 // pred_region
        %s252 = ssub.s32 %s9, 1
        %s253 = sand.u32 %s43, 1
        %s254 = sand.u32 %s43, 1
        %s255 = smul.addr %s254, 24
        %s256 = scalar_lea.vmem [#allocation3], %s255
        // Predicated region
        $region70: #{motion_vqvae_forward.18} parent=68 // pred_check
          %p257 = pneg %p56
        $region71: #{motion_vqvae_forward.18} parent=68 // pred_check_branch
          %259 = sbr.rel (%p257) target = $region73
        $region72: #{motion_vqvae_forward.18} parent=68 // pred_region
          _
        $region73: #{motion_vqvae_forward.18} parent=68 // pred_fallthru
          _
        %s260 = sand.u32 %s43, 1
        %s261 = sand.u32 %s43, 1
        %s262 = smul.addr %s261, 24
        %s263 = scalar_lea.vmem [#allocation3], %s262
        %p264 = pneg %p56
        %p265 = pneg %p53
        %s266 = smul.u32 16, %s21
        %p267 = scmp.lt.s32.totalorder %s266, 79
        %s268 = scalar_select %p267, %s266, 79
        %p269 = scmp.lt.s32.totalorder %s20, 0
        %s270 = scalar_select %p269, %s20, 0
        %s271 = sadd.s32 %s270, %s268
        %s272 = smul.addr %s271, 4
        %s273 = scalar_lea.vmem %s1, %s272
        %p274 = pneg %p84
        %p275 = pneg %p81
        %p276 = scmp.lt.s32.totalorder %s20, 0
        %s277 = scalar_select %p276, %s20, 0
        %s278 = scalar_lea.vmem %s2, %s277
        %p279 = pneg %p110
        %p280 = pneg %p107
        %p281 = pneg %p138
        %p282 = pneg %p135
        %s283 = smul.u32 6, %s19
        %p284 = scmp.lt.s32.totalorder %s283, 5
        %s285 = scalar_select %p284, %s283, 5
        %p286 = scmp.lt.s32.totalorder %s20, 0
        %s287 = scalar_select %p286, %s20, 0
        %s288 = sadd.s32 %s287, %s285
        %s289 = smul.addr %s288, 8
        %s290 = scalar_lea.vmem %s3, %s289
        %s291 = smul.u32 6, %s19
        %s292 = smul.u32 16, %s21
        %p293 = scmp.lt.s32.totalorder %s292, 79
        %s294 = scalar_select %p293, %s292, 79
        %p295 = scmp.lt.s32.totalorder %s20, 0
        %s296 = scalar_select %p295, %s20, 0
        %s297 = sadd.s32 %s296, %s294
        %s298 = smul.addr %s297, 4
        %s299 = scalar_lea.vmem %s1, %s298
        %s300 = smul.u32 16, %s21
        %p301 = scmp.lt.s32.totalorder %s20, 0
        %s302 = scalar_select %p301, %s20, 0
        %s303 = scalar_lea.vmem %s2, %s302
        %s304 = smul.u32 6, %s19
        %p305 = scmp.lt.s32.totalorder %s304, 5
        %s306 = scalar_select %p305, %s304, 5
        %p307 = scmp.lt.s32.totalorder %s20, 0
        %s308 = scalar_select %p307, %s20, 0
        %s309 = sadd.s32 %s308, %s306
        %s310 = smul.addr %s309, 8
        %s311 = scalar_lea.vmem %s3, %s310
        %s312 = smul.u32 6, %s19
        %p314 = scmp.eq.s32.totalorder %s21, 0
        // Predicated region
        $region74: #{motion_vqvae_forward.18} parent=68 // pred_check
          %p315 = pneg %p314
        $region75: #{motion_vqvae_forward.18} parent=68 // pred_check_branch
          %317 = sbr.rel (%p315) target = $region77
        $region76: #{motion_vqvae_forward.18} parent=68 // pred_region
          %318 = vst [vmem:[#allocation2] sm:$0xff] 0.0
          %319 = vst [vmem:[#allocation2 + $0x8] sm:$0xff] 0.0
          %320 = vst [vmem:[#allocation2 + $0x10] sm:$0xff] 0.0
          %321 = vst [vmem:[#allocation2 + $0x18] sm:$0xff] 0.0
          %322 = vst [vmem:[#allocation2 + $0x20] sm:$0xff] 0.0
          %323 = vst [vmem:[#allocation2 + $0x28] sm:$0xff] 0.0
        $region77: #{motion_vqvae_forward.18} parent=68 // pred_fallthru
          _
        %v324 = vld [vmem:[#allocation2] sm:$0xff]
        %v325 = vld [vmem:[#allocation2 + $0x8] sm:$0xff]
        %v326 = vld [vmem:[#allocation2 + $0x10] sm:$0xff]
        %v327 = vld [vmem:[#allocation2 + $0x18] sm:$0xff]
        %v328 = vld [vmem:[#allocation2 + $0x20] sm:$0xff]
        %v329 = vld [vmem:[#allocation2 + $0x28] sm:$0xff]
        %v330 = vld [vmem:[%s256] sm:$0xf]
        %v331 = vld [vmem:[%s256 + $0x4] sm:$0xf]
        %v332 = vld [vmem:[%s256 + $0x8] sm:$0xf]
        %v333 = vld [vmem:[%s256 + $0xc] sm:$0xf]
        %v334 = vld [vmem:[%s256 + $0x10] sm:$0xf]
        %v335 = vld [vmem:[%s256 + $0x14] sm:$0xf]
        %v336 = vld [vmem:[%s299] sm:$0xf]
        %v337 = vld [vmem:[%s299 + $0x4] sm:$0xf]
        %v338 = vld [vmem:[%s299 + $0x8] sm:$0xf]
        %v339 = vld [vmem:[%s299 + $0xc] sm:$0xf]
        %v340 = vld [vmem:[%s299 + $0x10] sm:$0xf]
        %v341 = vld [vmem:[%s299 + $0x14] sm:$0xf]
        %v342 = vld [vmem:[%s299 + $0x18] sm:$0xf]
        %v343 = vld [vmem:[%s299 + $0x1c] sm:$0xf]
        %v344 = vld [vmem:[%s299 + $0x20] sm:$0xf]
        %v345 = vld [vmem:[%s299 + $0x24] sm:$0xf]
        %v346 = vld [vmem:[%s299 + $0x28] sm:$0xf]
        %v347 = vld [vmem:[%s299 + $0x2c] sm:$0xf]
        %v348 = vld [vmem:[%s299 + $0x30] sm:$0xf]
        %v349 = vld [vmem:[%s299 + $0x34] sm:$0xf]
        %v350 = vld [vmem:[%s299 + $0x38] sm:$0xf]
        %v351 = vld [vmem:[%s299 + $0x3c] sm:$0xf]
        %v358 = vunpack.c.l.b16 %v330
        %v359 = vunpack.c.l.b16 %v331
        %v360 = vunpack.c.l.b16 %v332
        %v361 = vunpack.c.l.b16 %v333
        %v362 = vunpack.c.l.b16 %v334
        %v363 = vunpack.c.l.b16 %v335
        %v364 = vpack.c.b16 %v359, %v358
        %v365 = vpack.c.b16 %v361, %v360
        %v366 = vpack.c.b16 %v363, %v362
        %v386 = vunpack.c.l.b16 %v336
        %v387 = vunpack.c.l.b16 %v337
        %v388 = vunpack.c.l.b16 %v338
        %v389 = vunpack.c.l.b16 %v339
        %v390 = vunpack.c.l.b16 %v340
        %v391 = vunpack.c.l.b16 %v341
        %v392 = vunpack.c.l.b16 %v342
        %v393 = vunpack.c.l.b16 %v343
        %v394 = vunpack.c.l.b16 %v344
        %v395 = vunpack.c.l.b16 %v345
        %v396 = vunpack.c.l.b16 %v346
        %v397 = vunpack.c.l.b16 %v347
        %v398 = vunpack.c.l.b16 %v348
        %v399 = vunpack.c.l.b16 %v349
        %v400 = vunpack.c.l.b16 %v350
        %v401 = vunpack.c.l.b16 %v351
        %v402 = vpack.c.b16 %v387, %v386
        %v403 = vpack.c.b16 %v389, %v388
        %v404 = vpack.c.b16 %v391, %v390
        %v405 = vpack.c.b16 %v393, %v392
        %v406 = vpack.c.b16 %v395, %v394
        %v407 = vpack.c.b16 %v397, %v396
        %v408 = vpack.c.b16 %v399, %v398
        %v409 = vpack.c.b16 %v401, %v400
        %418 = vmatprep.subr.bf16.mxu0 0
        %419 = vmatpush1.bf16.msra.mxu0 %v402
        %420 = vmatprep.subr.bf16.mxu0 0
        %421 = vmatpush1.bf16.msra.mxu0 %v403
        %422 = vmatprep.subr.bf16.mxu0 0
        %423 = vmatpush1.bf16.msra.mxu0 %v404
        %424 = vmatprep.subr.bf16.mxu0 0
        %425 = vmatpush1.bf16.msra.mxu0 %v405
        %426 = vmatprep.subr.bf16.mxu0 0
        %427 = vmatpush1.bf16.msra.mxu0 %v406
        %428 = vmatprep.subr.bf16.mxu0 0
        %429 = vmatpush1.bf16.msra.mxu0 %v407
        %430 = vmatprep.subr.bf16.mxu0 0
        %431 = vmatpush1.bf16.msra.mxu0 %v408
        %432 = vmatprep.subr.bf16.mxu0 0
        %433 = vmatpush1.bf16.msra.mxu0 %v409
        %434 = vmatprep.subr.bf16.mxu0 0
        %435 = vmatpush1.bf16.msra.mxu0 0
        %436 = vmatprep.subr.bf16.mxu0 0
        %437 = vmatpush1.bf16.msra.mxu0 0
        %438 = vmatprep.subr.bf16.mxu0 0
        %439 = vmatpush1.bf16.msra.mxu0 0
        %440 = vmatprep.subr.bf16.mxu0 0
        %441 = vmatpush1.bf16.msra.mxu0 0
        %442 = vmatprep.subr.bf16.mxu0 0
        %443 = vmatpush1.bf16.msra.mxu0 0
        %444 = vmatprep.subr.bf16.mxu0 0
        %445 = vmatpush1.bf16.msra.mxu0 0
        %446 = vmatprep.subr.bf16.mxu0 0
        %447 = vmatpush1.bf16.msra.mxu0 0
        %448 = vmatprep.subr.bf16.mxu0 0
        %449 = vmatpush1.bf16.msra.mxu0 0
        %450 = vmatprep.mubr.bf16.mxu0 0
        %451 = vmatmul.mubr.bf16.gmra.mrb[0].mxu0 %v364
        %v452 = vpop.f32.mrb[0].mxu0
        %v453 = vadd.f32 0.0, %v452
        %v454 = vpop.f32.mrb[0].mxu0
        %v455 = vpop.f32.mrb[0].mxu0
        %v456 = vadd.f32 0.0, %v455
        %v457 = vpop.f32.mrb[0].mxu0
        %458 = vmatprep.mubr.bf16.mxu0 0
        %459 = vmatmul.mubr.bf16.gmra.mrb[0].mxu0 %v365
        %v460 = vpop.f32.mrb[0].mxu0
        %v461 = vadd.f32 0.0, %v460
        %v462 = vpop.f32.mrb[0].mxu0
        %v463 = vpop.f32.mrb[0].mxu0
        %v464 = vadd.f32 0.0, %v463
        %v465 = vpop.f32.mrb[0].mxu0
        %466 = vmatprep.mubr.bf16.mxu0 0
        %467 = vmatmul.mubr.bf16.gmra.mrb[0].mxu0 %v366
        %v468 = vpop.f32.mrb[0].mxu0
        %v469 = vadd.f32 0.0, %v468
        %v470 = vpop.f32.mrb[0].mxu0
        %v471 = vpop.f32.mrb[0].mxu0
        %v472 = vadd.f32 0.0, %v471
        %v473 = vpop.f32.mrb[0].mxu0
        %474 = vdwg.mxu0
        %v475 = vadd.f32 %v324, %v453
        %v476 = vadd.f32 %v325, %v456
        %v477 = vadd.f32 %v326, %v461
        %v478 = vadd.f32 %v327, %v464
        %v479 = vadd.f32 %v328, %v469
        %v480 = vadd.f32 %v329, %v472
        %481 = vst [vmem:[#allocation2] sm:$0xff] %v475
        %482 = vst [vmem:[#allocation2 + $0x8] sm:$0xff] %v476
        %483 = vst [vmem:[#allocation2 + $0x10] sm:$0xff] %v477
        %484 = vst [vmem:[#allocation2 + $0x18] sm:$0xff] %v478
        %485 = vst [vmem:[#allocation2 + $0x20] sm:$0xff] %v479
        %486 = vst [vmem:[#allocation2 + $0x28] sm:$0xff] %v480
        %p487 = scmp.eq.s32.totalorder %s21, 4
        // Predicated region
        $region78: #{motion_vqvae_forward.18} parent=68 // pred_check
          %p488 = pneg %p487
        $region79: #{motion_vqvae_forward.18} parent=68 // pred_check_branch
          %490 = sbr.rel (%p488) target = $region81
        $region80: #{motion_vqvae_forward.18} parent=68 // pred_region
          %v491 = vld [vmem:[#allocation2] sm:$0xff]
          %v492 = vld [vmem:[#allocation2 + $0x8] sm:$0xff]
          %v493 = vld [vmem:[#allocation2 + $0x10] sm:$0xff]
          %v494 = vld [vmem:[#allocation2 + $0x18] sm:$0xff]
          %v495 = vld [vmem:[#allocation2 + $0x20] sm:$0xff]
          %v496 = vld [vmem:[#allocation2 + $0x28] sm:$0xff]
          %v497 = vld [vmem:[%s303] sm:$0x1]
          %v499 = vlaneseq
          %v500 = vshrl.u32 %v499, 7
          %v501 = vsub.s32 0, %v500
          %v502 = vrot.slane %v497, %v501
          %v504 = vadd.f32 %v491, %v502
          %v505 = vadd.f32 %v492, %v502
          %v506 = vadd.f32 %v493, %v502
          %v507 = vadd.f32 %v494, %v502
          %v508 = vadd.f32 %v495, %v502
          %v509 = vadd.f32 %v496, %v502
          %510 = vst [vmem:[%s311] sm:$0xff] %v504
          %511 = vst [vmem:[%s311 + $0x8] sm:$0xff] %v505
          %512 = vst [vmem:[%s311 + $0x10] sm:$0xff] %v506
          %513 = vst [vmem:[%s311 + $0x18] sm:$0xff] %v507
          %514 = vst [vmem:[%s311 + $0x20] sm:$0xff] %v508
          %515 = vst [vmem:[%s311 + $0x28] sm:$0xff] %v509
        $region81: #{motion_vqvae_forward.18} parent=68 // pred_fallthru
          _
        %s516 = smul.u32 6, %s19
        %p517 = scmp.lt.s32.totalorder %s516, 5
        %s518 = scalar_select %p517, %s516, 5
        %p519 = scmp.lt.s32.totalorder %s20, 0
        %s520 = scalar_select %p519, %s20, 0
        %s521 = sadd.s32 %s520, %s518
        %s522 = smul.addr %s521, 8
        %s523 = scalar_lea.vmem %s3, %s522
        // Predicated region
        $region82: #{motion_vqvae_forward.18} parent=68 // pred_check
          %p524 = pneg %p135
        $region83: #{motion_vqvae_forward.18} parent=68 // pred_check_branch
          %526 = sbr.rel (%p524) target = $region85
        $region84: #{motion_vqvae_forward.18} parent=68 // pred_region
          %s527 = smul.u32 6, %s19
        $region85: #{motion_vqvae_forward.18} parent=68 // pred_fallthru
          _
        // Predicated region
        $region86: #{motion_vqvae_forward.18} parent=68 // pred_check
          %p528 = pneg %p135
        $region87: #{motion_vqvae_forward.18} parent=68 // pred_check_branch
          %530 = sbr.rel (%p528) target = $region89
        $region88: #{motion_vqvae_forward.18} parent=68 // pred_region
          %s531 = smul.u32 6, %s19
          %p532 = scmp.lt.s32.totalorder %s531, 5
          %s533 = scalar_select %p532, %s531, 5
          %p534 = scmp.lt.s32.totalorder %s20, 0
          %s535 = scalar_select %p534, %s20, 0
          %s536 = sadd.s32 %s535, %s533
          %s537 = smul.addr %s536, 8
          %s538 = scalar_lea.vmem %s3, %s537
        $region89: #{motion_vqvae_forward.18} parent=68 // pred_fallthru
          _
      $region69: #{motion_vqvae_forward.18} parent=5 // pred_fallthru
        _
      %p539 = scmp.le.s32.totalorder 2, %s9
      // Predicated region
      $region90: #{motion_vqvae_forward.18} parent=5 // pred_check
        %p540 = pneg %p539
      $region91: #{motion_vqvae_forward.18} parent=5 // pred_check_branch
        %542 = sbr.rel (%p540) target = $region93
      $region92: #{motion_vqvae_forward.18} parent=5 // pred_region
        %s543 = ssub.s32 %s9, 2
      $region93: #{motion_vqvae_forward.18} parent=5 // pred_fallthru
        _
    $region6: #{motion_vqvae_forward.18} parent=1 // loop_footer
      %s13 = sadd.s32 1, %s9
    $region7: #{motion_vqvae_forward.18} parent=1 // loop_footer_branch
      %8 = sbr.rel target = $region3
    $region8: #{motion_vqvae_forward.18} parent=1 // loop_exit
      _

// kernel: motion_vqvae_forward.19
$region0: #{motion_vqvae_forward.19}
  #allocation0 [shape = 'u32[]', space=smem, size = 0x4, offset = 0x4, fixed_abs, tag = 'smem constant byte address 0x4 - core index']
  #allocation1 [shape = 'u32[144,128]{1,0:T(1,128)}', space=vmem, size = 0x12000, scoped, tag = 'internal scratch']
  #allocation2 [shape = 'f32[48,128]{1,0:T(8,128)}', space=vmem, size = 0x6000, scoped, tag = 'scratch operand']
  %s0 = inlined_call_operand.vmem [shape: bf16[48,640], index: 0, kind: input, shape index: {}]
  %s1 = inlined_call_operand.vmem [shape: bf16[640,128], index: 1, kind: input, shape index: {}]
  %s2 = inlined_call_operand.vmem [shape: f32[1,128], index: 2, kind: input, shape index: {}]
  %s3 = inlined_call_operand.vmem [shape: f32[48,128], index: 3, kind: output, shape index: {}]
  %s4 = sld [smem:[#allocation0]]
  $region94: #{motion_vqvae_forward.19} parent=0
    _
  %s6 = ssub.s32 1, %s4
  %s7 = scalar_select 0, %s6, %s4
  $region1: #{motion_vqvae_forward.19} parent=0
    #allocation3 [shape = 'u8[24576]{0}', space=vmem, size = 0x6000, scoped, tag = 'input window, operand 0']
    loop: start=0, step=1, limit=7
    $region2: #{motion_vqvae_forward.19} parent=1 // loop_pre_header
      _
    $region3: #{motion_vqvae_forward.19} parent=1 // loop_header
      %s9 = sphi 0, %s13
      %p10 = scmp.ge.s32.totalorder %s9, 7
      %s16 = sphi 0, %s35
      %s17 = sphi 0, %s31
      %s18 = sphi 0, %s27
      %s19 = sphi 0, %s16
      %s20 = sphi 0, %s17
      %s21 = sphi 0, %s18
      %s22 = sphi 0, %s19
      %s23 = sphi 0, %s20
      %s24 = sphi 0, %s21
      %s40 = sphi 0, %s42
      %s43 = sphi 0, %s40
      %s44 = sphi 0, %s43
      %s60 = sphi 0, %s44
      %s68 = sphi 0, %s70
      %s71 = sphi 0, %s68
      %s72 = sphi 0, %s71
      %s88 = sphi 0, %s72
      %s94 = sphi 0, %s96
      %s97 = sphi 0, %s94
      %s98 = sphi 0, %s97
      %s114 = sphi 0, %s98
      %s122 = sphi 0, %s124
      %s125 = sphi 0, %s122
      %s126 = sphi 0, %s125
      %s142 = sphi 0, %s126
    $region4: #{motion_vqvae_forward.19} parent=1 // loop_header_branch
      %12 = sbr.rel (%p10) target = $region8
    $region5: #{motion_vqvae_forward.19} parent=1 // loop_body
      %s14 = ssub.s32 %s9, 1
      %s15 = ssub.s32 %s9, 2
      %s25 = sadd.s32 1, %s18
      %p26 = scmp.ge.s32.totalorder %s25, 5
      %s27 = scalar_select %p26, 0, %s25
      %s28 = sadd.s32 1, %s17
      %s29 = scalar_select %p26, %s28, %s17
      %p30 = scmp.ge.s32.totalorder %s29, 1
      %s31 = scalar_select %p30, 0, %s29
      %s32 = sadd.s32 1, %s16
      %s33 = scalar_select %p30, %s32, %s16
      %p34 = scmp.ge.s32.totalorder %s33, 1
      %s35 = scalar_select %p34, 0, %s33
      %s36 = ssub.s32 %s16, %s35
      %s37 = ssub.s32 %s18, %s27
      %s38 = sor.u32 %s36, %s37
      %p39 = scmp.eq.s32.totalorder %s38, 0
      %s41 = sadd.s32 %s40, 1
      %s42 = scalar_select %p39, %s40, %s41
      %p45 = pneg %p39
      %p46 = scmp.eq.s32.totalorder %s9, 4
      %p47 = por %p45, %p46
      %p48 = scmp.ne.s32.totalorder %s40, %s43
      %p49 = scmp.eq.s32.totalorder %s9, 0
      %p50 = por %p48, %p49
      %p51 = scmp.ne.s32.totalorder %s40, %s43
      %p52 = scmp.eq.s32.totalorder %s14, 4
      %p53 = por %p51, %p52
      %p54 = scmp.ne.s32.totalorder %s43, %s44
      %p55 = scmp.eq.s32.totalorder %s14, 0
      %p56 = por %p54, %p55
      %p57 = scmp.ne.s32.totalorder %s43, %s44
      %p58 = scmp.eq.s32.totalorder %s15, 4
      %p59 = por %p57, %p58
      %p61 = scmp.ne.s32.totalorder %s44, %s60
      %p62 = scmp.eq.s32.totalorder %s15, 0
      %p63 = por %p61, %p62
      %s64 = ssub.s32 %s18, %s27
      %s65 = ssub.s32 %s17, %s31
      %s66 = sor.u32 %s64, %s65
      %p67 = scmp.eq.s32.totalorder %s66, 0
      %s69 = sadd.s32 %s68, 1
      %s70 = scalar_select %p67, %s68, %s69
      %p73 = pneg %p67
      %p74 = scmp.eq.s32.totalorder %s9, 4
      %p75 = por %p73, %p74
      %p76 = scmp.ne.s32.totalorder %s68, %s71
      %p77 = scmp.eq.s32.totalorder %s9, 0
      %p78 = por %p76, %p77
      %p79 = scmp.ne.s32.totalorder %s68, %s71
      %p80 = scmp.eq.s32.totalorder %s14, 4
      %p81 = por %p79, %p80
      %p82 = scmp.ne.s32.totalorder %s71, %s72
      %p83 = scmp.eq.s32.totalorder %s14, 0
      %p84 = por %p82, %p83
      %p85 = scmp.ne.s32.totalorder %s71, %s72
      %p86 = scmp.eq.s32.totalorder %s15, 4
      %p87 = por %p85, %p86
      %p89 = scmp.ne.s32.totalorder %s72, %s88
      %p90 = scmp.eq.s32.totalorder %s15, 0
      %p91 = por %p89, %p90
      %s92 = ssub.s32 %s17, %s31
      %p93 = scmp.eq.s32.totalorder %s92, 0
      %s95 = sadd.s32 %s94, 1
      %s96 = scalar_select %p93, %s94, %s95
      %p99 = pneg %p93
      %p100 = scmp.eq.s32.totalorder %s9, 4
      %p101 = por %p99, %p100
      %p102 = scmp.ne.s32.totalorder %s94, %s97
      %p103 = scmp.eq.s32.totalorder %s9, 0
      %p104 = por %p102, %p103
      %p105 = scmp.ne.s32.totalorder %s94, %s97
      %p106 = scmp.eq.s32.totalorder %s14, 4
      %p107 = por %p105, %p106
      %p108 = scmp.ne.s32.totalorder %s97, %s98
      %p109 = scmp.eq.s32.totalorder %s14, 0
      %p110 = por %p108, %p109
      %p111 = scmp.ne.s32.totalorder %s97, %s98
      %p112 = scmp.eq.s32.totalorder %s15, 4
      %p113 = por %p111, %p112
      %p115 = scmp.ne.s32.totalorder %s98, %s114
      %p116 = scmp.eq.s32.totalorder %s15, 0
      %p117 = por %p115, %p116
      %s118 = ssub.s32 %s16, %s35
      %s119 = ssub.s32 %s17, %s31
      %s120 = sor.u32 %s118, %s119
      %p121 = scmp.eq.s32.totalorder %s120, 0
      %s123 = sadd.s32 %s122, 1
      %s124 = scalar_select %p121, %s122, %s123
      %p127 = pneg %p121
      %p128 = scmp.eq.s32.totalorder %s9, 4
      %p129 = por %p127, %p128
      %p130 = scmp.ne.s32.totalorder %s122, %s125
      %p131 = scmp.eq.s32.totalorder %s9, 0
      %p132 = por %p130, %p131
      %p133 = scmp.ne.s32.totalorder %s122, %s125
      %p134 = scmp.eq.s32.totalorder %s14, 4
      %p135 = por %p133, %p134
      %p136 = scmp.ne.s32.totalorder %s125, %s126
      %p137 = scmp.eq.s32.totalorder %s14, 0
      %p138 = por %p136, %p137
      %p139 = scmp.ne.s32.totalorder %s125, %s126
      %p140 = scmp.eq.s32.totalorder %s15, 4
      %p141 = por %p139, %p140
      %p143 = scmp.ne.s32.totalorder %s126, %s142
      %p144 = scmp.eq.s32.totalorder %s15, 0
      %p145 = por %p143, %p144
      %p146 = scmp.le.s32.totalorder 1, %s9
      %p147 = scmp.lt.s32.totalorder %s9, 6
      %p148 = pnand %p146, %p147
      %p149 = pneg %p148
      // Predicated region
      $region9: #{motion_vqvae_forward.19} parent=5 // pred_check
        _
      $region10: #{motion_vqvae_forward.19} parent=5 // pred_check_branch
        %151 = sbr.rel (%p148) target = $region12
      $region11: #{motion_vqvae_forward.19} parent=5 // pred_region
        %s152 = ssub.s32 %s9, 1
        // Predicated region
        $region13: #{motion_vqvae_forward.19} parent=11 // pred_check
          %p153 = pneg %p110
        $region14: #{motion_vqvae_forward.19} parent=11 // pred_check_branch
          %155 = sbr.rel (%p153) target = $region16
        $region15: #{motion_vqvae_forward.19} parent=11 // pred_region
          %p156 = scmp.lt.s32.totalorder %s20, 0
          %s157 = scalar_select %p156, %s20, 0
          %s158 = scalar_lea.vmem %s2, %s157
        $region16: #{motion_vqvae_forward.19} parent=11 // pred_fallthru
          _
      $region12: #{motion_vqvae_forward.19} parent=5 // pred_fallthru
        _
      %p159 = scmp.lt.s32.totalorder %s9, 5
      // Predicated region
      $region17: #{motion_vqvae_forward.19} parent=5 // pred_check
        %p160 = pneg %p159
      $region18: #{motion_vqvae_forward.19} parent=5 // pred_check_branch
        %162 = sbr.rel (%p160) target = $region20
      $region19: #{motion_vqvae_forward.19} parent=5 // pred_region
        // Predicated region
        $region21: #{motion_vqvae_forward.19} parent=19 // pred_check
          %p163 = pneg %p50
        $region22: #{motion_vqvae_forward.19} parent=19 // pred_check_branch
          %165 = sbr.rel (%p163) target = $region24
        $region23: #{motion_vqvae_forward.19} parent=19 // pred_region
          %s166 = sand.u32 %s40, 1
          %s167 = sand.u32 %s40, 1
          %s168 = smul.addr %s167, 24
          %s169 = scalar_lea.vmem [#allocation3], %s168
          %s170 = smul.u32 6, %s16
          %s171 = smul.addr %s170, 5
          %s172 = sadd.s32 %s18, %s171
          %s173 = smul.addr %s172, 4
          %s174 = scalar_lea.vmem %s0, %s173
          // Predicated region
          $region25: #{motion_vqvae_forward.19} parent=23 // pred_check
            _
          $region26: #{motion_vqvae_forward.19} parent=23 // pred_check_branch
            %176 = sbr.rel (0) target = $region28
          $region27: #{motion_vqvae_forward.19} parent=23 // pred_region
            // Predicated region
            $region29: #{motion_vqvae_forward.19} parent=27 // pred_check
              _
            $region30: #{motion_vqvae_forward.19} parent=27 // pred_check_branch
              %178 = sbr.rel target = $region32
            $region31: #{motion_vqvae_forward.19} parent=27 // pred_region
              // Predicated region
              $region44: #{motion_vqvae_forward.19} parent=31 // pred_check
                _
              $region45: #{motion_vqvae_forward.19} parent=31 // pred_check_branch
                %203 = sbr.rel (0) target = $region47
              $region46: #{motion_vqvae_forward.19} parent=31 // pred_region
                loop: start=0, step=1, limit=1
                $region48: #{motion_vqvae_forward.19} parent=46 // loop_pre_header
                  _
                $region49: #{motion_vqvae_forward.19} parent=46 // loop_header
                  %s205 = sphi 0, %s209
                  %p206 = scmp.ge.s32.totalorder %s205, 1
                  %s210 = sphi %s174, %s174
                  %s211 = sphi %s169, %s169
                $region50: #{motion_vqvae_forward.19} parent=46 // loop_header_branch
                  %208 = sbr.rel (%p206) target = $region54
                $region51: #{motion_vqvae_forward.19} parent=46 // loop_body
                  _
                $region52: #{motion_vqvae_forward.19} parent=46 // loop_footer
                  %s209 = sadd.s32 1, %s205
                $region53: #{motion_vqvae_forward.19} parent=46 // loop_footer_branch
                  %204 = sbr.rel target = $region49
                $region54: #{motion_vqvae_forward.19} parent=46 // loop_exit
                  _
                loop: start=0, step=1, limit=1
                $region55: #{motion_vqvae_forward.19} parent=46 // loop_pre_header
                  _
                $region56: #{motion_vqvae_forward.19} parent=46 // loop_header
                  %s214 = sphi 0, %s218
                  %p215 = scmp.ge.s32.totalorder %s214, 1
                  %s219 = sphi %s174, %s174
                  %s220 = sphi %s169, %s169
                $region57: #{motion_vqvae_forward.19} parent=46 // loop_header_branch
                  %217 = sbr.rel (%p215) target = $region61
                $region58: #{motion_vqvae_forward.19} parent=46 // loop_body
                  %v221 = vld [vmem:[%s219] sm:$0xf]
                  %222 = vst [vmem:[%s220] sm:$0xf] %v221
                  %v223 = vld [vmem:[%s219 + $0x14] sm:$0xf]
                  %224 = vst [vmem:[%s220 + $0x4] sm:$0xf] %v223
                  %v225 = vld [vmem:[%s219 + $0x28] sm:$0xf]
                  %226 = vst [vmem:[%s220 + $0x8] sm:$0xf] %v225
                  %v227 = vld [vmem:[%s219 + $0x3c] sm:$0xf]
                  %228 = vst [vmem:[%s220 + $0xc] sm:$0xf] %v227
                  %v229 = vld [vmem:[%s219 + $0x50] sm:$0xf]
                  %230 = vst [vmem:[%s220 + $0x10] sm:$0xf] %v229
                  %v231 = vld [vmem:[%s219 + $0x64] sm:$0xf]
                  %232 = vst [vmem:[%s220 + $0x14] sm:$0xf] %v231
                $region59: #{motion_vqvae_forward.19} parent=46 // loop_footer
                  %s218 = sadd.s32 1, %s214
                $region60: #{motion_vqvae_forward.19} parent=46 // loop_footer_branch
                  %213 = sbr.rel target = $region56
                $region61: #{motion_vqvae_forward.19} parent=46 // loop_exit
                  _
              $region47: #{motion_vqvae_forward.19} parent=31 // pred_fallthru
                _
            $region32: #{motion_vqvae_forward.19} parent=27 // pred_fallthru
              _
            // Predicated region
            $region33: #{motion_vqvae_forward.19} parent=27 // pred_check
              _
            $region34: #{motion_vqvae_forward.19} parent=27 // pred_check_branch
              %180 = sbr.rel (0) target = $region36
            $region35: #{motion_vqvae_forward.19} parent=27 // pred_region
              loop: start=0, step=1, limit=1
              $region37: #{motion_vqvae_forward.19} parent=35 // loop_pre_header
                _
              $region38: #{motion_vqvae_forward.19} parent=35 // loop_header
                %s183 = sphi 0, %s187
                %p184 = scmp.ge.s32.totalorder %s183, 1
                %s188 = sphi %s174, %s174
                %s189 = sphi %s169, %s169
              $region39: #{motion_vqvae_forward.19} parent=35 // loop_header_branch
                %186 = sbr.rel (%p184) target = $region43
              $region40: #{motion_vqvae_forward.19} parent=35 // loop_body
                %v190 = vld [vmem:[%s188] sm:$0xf]
                %191 = vst [vmem:[%s189] sm:$0xf] %v190
                %v192 = vld [vmem:[%s188 + $0x14] sm:$0xf]
                %193 = vst [vmem:[%s189 + $0x4] sm:$0xf] %v192
                %v194 = vld [vmem:[%s188 + $0x28] sm:$0xf]
                %195 = vst [vmem:[%s189 + $0x8] sm:$0xf] %v194
                %v196 = vld [vmem:[%s188 + $0x3c] sm:$0xf]
                %197 = vst [vmem:[%s189 + $0xc] sm:$0xf] %v196
                %v198 = vld [vmem:[%s188 + $0x50] sm:$0xf]
                %199 = vst [vmem:[%s189 + $0x10] sm:$0xf] %v198
                %v200 = vld [vmem:[%s188 + $0x64] sm:$0xf]
                %201 = vst [vmem:[%s189 + $0x14] sm:$0xf] %v200
              $region41: #{motion_vqvae_forward.19} parent=35 // loop_footer
                %s187 = sadd.s32 1, %s183
              $region42: #{motion_vqvae_forward.19} parent=35 // loop_footer_branch
                %182 = sbr.rel target = $region38
              $region43: #{motion_vqvae_forward.19} parent=35 // loop_exit
                _
            $region36: #{motion_vqvae_forward.19} parent=27 // pred_fallthru
              _
          $region28: #{motion_vqvae_forward.19} parent=23 // pred_fallthru
            _
          %233 = vnop
        $region24: #{motion_vqvae_forward.19} parent=19 // pred_fallthru
          _
        // Predicated region
        $region62: #{motion_vqvae_forward.19} parent=19 // pred_check
          %p234 = pneg %p78
        $region63: #{motion_vqvae_forward.19} parent=19 // pred_check_branch
          %236 = sbr.rel (%p234) target = $region65
        $region64: #{motion_vqvae_forward.19} parent=19 // pred_region
          %s237 = smul.u32 16, %s18
          %p238 = scmp.lt.s32.totalorder %s237, 79
          %s239 = scalar_select %p238, %s237, 79
          %p240 = scmp.lt.s32.totalorder %s17, 0
          %s241 = scalar_select %p240, %s17, 0
          %s242 = sadd.s32 %s241, %s239
          %s243 = smul.addr %s242, 4
          %s244 = scalar_lea.vmem %s1, %s243
          %s245 = smul.u32 16, %s18
        $region65: #{motion_vqvae_forward.19} parent=19 // pred_fallthru
          _
      $region20: #{motion_vqvae_forward.19} parent=5 // pred_fallthru
        _
      %p246 = scmp.le.s32.totalorder 1, %s9
      %p247 = scmp.lt.s32.totalorder %s9, 6
      %p248 = pnand %p246, %p247
      %p249 = pneg %p248
      // Predicated region
      $region66: #{motion_vqvae_forward.19} parent=5 // pred_check
        _
      $region67: #{motion_vqvae_forward.19} parent=5 // pred_check_branch
        %251 = sbr.rel (%p248) target = $region69
      $region68: #{motion_vqvae_forward.19} parent=5 // pred_region
        %s252 = ssub.s32 %s9, 1
        %s253 = sand.u32 %s43, 1
        %s254 = sand.u32 %s43, 1
        %s255 = smul.addr %s254, 24
        %s256 = scalar_lea.vmem [#allocation3], %s255
        // Predicated region
        $region70: #{motion_vqvae_forward.19} parent=68 // pred_check
          %p257 = pneg %p56
        $region71: #{motion_vqvae_forward.19} parent=68 // pred_check_branch
          %259 = sbr.rel (%p257) target = $region73
        $region72: #{motion_vqvae_forward.19} parent=68 // pred_region
          _
        $region73: #{motion_vqvae_forward.19} parent=68 // pred_fallthru
          _
        %s260 = sand.u32 %s43, 1
        %s261 = sand.u32 %s43, 1
        %s262 = smul.addr %s261, 24
        %s263 = scalar_lea.vmem [#allocation3], %s262
        %p264 = pneg %p56
        %p265 = pneg %p53
        %s266 = smul.u32 16, %s21
        %p267 = scmp.lt.s32.totalorder %s266, 79
        %s268 = scalar_select %p267, %s266, 79
        %p269 = scmp.lt.s32.totalorder %s20, 0
        %s270 = scalar_select %p269, %s20, 0
        %s271 = sadd.s32 %s270, %s268
        %s272 = smul.addr %s271, 4
        %s273 = scalar_lea.vmem %s1, %s272
        %p274 = pneg %p84
        %p275 = pneg %p81
        %p276 = scmp.lt.s32.totalorder %s20, 0
        %s277 = scalar_select %p276, %s20, 0
        %s278 = scalar_lea.vmem %s2, %s277
        %p279 = pneg %p110
        %p280 = pneg %p107
        %p281 = pneg %p138
        %p282 = pneg %p135
        %s283 = smul.u32 6, %s19
        %p284 = scmp.lt.s32.totalorder %s283, 5
        %s285 = scalar_select %p284, %s283, 5
        %p286 = scmp.lt.s32.totalorder %s20, 0
        %s287 = scalar_select %p286, %s20, 0
        %s288 = sadd.s32 %s287, %s285
        %s289 = smul.addr %s288, 8
        %s290 = scalar_lea.vmem %s3, %s289
        %s291 = smul.u32 6, %s19
        %s292 = smul.u32 16, %s21
        %p293 = scmp.lt.s32.totalorder %s292, 79
        %s294 = scalar_select %p293, %s292, 79
        %p295 = scmp.lt.s32.totalorder %s20, 0
        %s296 = scalar_select %p295, %s20, 0
        %s297 = sadd.s32 %s296, %s294
        %s298 = smul.addr %s297, 4
        %s299 = scalar_lea.vmem %s1, %s298
        %s300 = smul.u32 16, %s21
        %p301 = scmp.lt.s32.totalorder %s20, 0
        %s302 = scalar_select %p301, %s20, 0
        %s303 = scalar_lea.vmem %s2, %s302
        %s304 = smul.u32 6, %s19
        %p305 = scmp.lt.s32.totalorder %s304, 5
        %s306 = scalar_select %p305, %s304, 5
        %p307 = scmp.lt.s32.totalorder %s20, 0
        %s308 = scalar_select %p307, %s20, 0
        %s309 = sadd.s32 %s308, %s306
        %s310 = smul.addr %s309, 8
        %s311 = scalar_lea.vmem %s3, %s310
        %s312 = smul.u32 6, %s19
        %p314 = scmp.eq.s32.totalorder %s21, 0
        // Predicated region
        $region74: #{motion_vqvae_forward.19} parent=68 // pred_check
          %p315 = pneg %p314
        $region75: #{motion_vqvae_forward.19} parent=68 // pred_check_branch
          %317 = sbr.rel (%p315) target = $region77
        $region76: #{motion_vqvae_forward.19} parent=68 // pred_region
          %318 = vst [vmem:[#allocation2] sm:$0xff] 0.0
          %319 = vst [vmem:[#allocation2 + $0x8] sm:$0xff] 0.0
          %320 = vst [vmem:[#allocation2 + $0x10] sm:$0xff] 0.0
          %321 = vst [vmem:[#allocation2 + $0x18] sm:$0xff] 0.0
          %322 = vst [vmem:[#allocation2 + $0x20] sm:$0xff] 0.0
          %323 = vst [vmem:[#allocation2 + $0x28] sm:$0xff] 0.0
        $region77: #{motion_vqvae_forward.19} parent=68 // pred_fallthru
          _
        %v324 = vld [vmem:[#allocation2] sm:$0xff]
        %v325 = vld [vmem:[#allocation2 + $0x8] sm:$0xff]
        %v326 = vld [vmem:[#allocation2 + $0x10] sm:$0xff]
        %v327 = vld [vmem:[#allocation2 + $0x18] sm:$0xff]
        %v328 = vld [vmem:[#allocation2 + $0x20] sm:$0xff]
        %v329 = vld [vmem:[#allocation2 + $0x28] sm:$0xff]
        %v330 = vld [vmem:[%s256] sm:$0xf]
        %v331 = vld [vmem:[%s256 + $0x4] sm:$0xf]
        %v332 = vld [vmem:[%s256 + $0x8] sm:$0xf]
        %v333 = vld [vmem:[%s256 + $0xc] sm:$0xf]
        %v334 = vld [vmem:[%s256 + $0x10] sm:$0xf]
        %v335 = vld [vmem:[%s256 + $0x14] sm:$0xf]
        %v336 = vld [vmem:[%s299] sm:$0xf]
        %v337 = vld [vmem:[%s299 + $0x4] sm:$0xf]
        %v338 = vld [vmem:[%s299 + $0x8] sm:$0xf]
        %v339 = vld [vmem:[%s299 + $0xc] sm:$0xf]
        %v340 = vld [vmem:[%s299 + $0x10] sm:$0xf]
        %v341 = vld [vmem:[%s299 + $0x14] sm:$0xf]
        %v342 = vld [vmem:[%s299 + $0x18] sm:$0xf]
        %v343 = vld [vmem:[%s299 + $0x1c] sm:$0xf]
        %v344 = vld [vmem:[%s299 + $0x20] sm:$0xf]
        %v345 = vld [vmem:[%s299 + $0x24] sm:$0xf]
        %v346 = vld [vmem:[%s299 + $0x28] sm:$0xf]
        %v347 = vld [vmem:[%s299 + $0x2c] sm:$0xf]
        %v348 = vld [vmem:[%s299 + $0x30] sm:$0xf]
        %v349 = vld [vmem:[%s299 + $0x34] sm:$0xf]
        %v350 = vld [vmem:[%s299 + $0x38] sm:$0xf]
        %v351 = vld [vmem:[%s299 + $0x3c] sm:$0xf]
        %v358 = vunpack.c.l.b16 %v330
        %v359 = vunpack.c.l.b16 %v331
        %v360 = vunpack.c.l.b16 %v332
        %v361 = vunpack.c.l.b16 %v333
        %v362 = vunpack.c.l.b16 %v334
        %v363 = vunpack.c.l.b16 %v335
        %v364 = vpack.c.b16 %v359, %v358
        %v365 = vpack.c.b16 %v361, %v360
        %v366 = vpack.c.b16 %v363, %v362
        %v386 = vunpack.c.l.b16 %v336
        %v387 = vunpack.c.l.b16 %v337
        %v388 = vunpack.c.l.b16 %v338
        %v389 = vunpack.c.l.b16 %v339
        %v390 = vunpack.c.l.b16 %v340
        %v391 = vunpack.c.l.b16 %v341
        %v392 = vunpack.c.l.b16 %v342
        %v393 = vunpack.c.l.b16 %v343
        %v394 = vunpack.c.l.b16 %v344
        %v395 = vunpack.c.l.b16 %v345
        %v396 = vunpack.c.l.b16 %v346
        %v397 = vunpack.c.l.b16 %v347
        %v398 = vunpack.c.l.b16 %v348
        %v399 = vunpack.c.l.b16 %v349
        %v400 = vunpack.c.l.b16 %v350
        %v401 = vunpack.c.l.b16 %v351
        %v402 = vpack.c.b16 %v387, %v386
        %v403 = vpack.c.b16 %v389, %v388
        %v404 = vpack.c.b16 %v391, %v390
        %v405 = vpack.c.b16 %v393, %v392
        %v406 = vpack.c.b16 %v395, %v394
        %v407 = vpack.c.b16 %v397, %v396
        %v408 = vpack.c.b16 %v399, %v398
        %v409 = vpack.c.b16 %v401, %v400
        %418 = vmatprep.subr.bf16.mxu0 0
        %419 = vmatpush1.bf16.msra.mxu0 %v402
        %420 = vmatprep.subr.bf16.mxu0 0
        %421 = vmatpush1.bf16.msra.mxu0 %v403
        %422 = vmatprep.subr.bf16.mxu0 0
        %423 = vmatpush1.bf16.msra.mxu0 %v404
        %424 = vmatprep.subr.bf16.mxu0 0
        %425 = vmatpush1.bf16.msra.mxu0 %v405
        %426 = vmatprep.subr.bf16.mxu0 0
        %427 = vmatpush1.bf16.msra.mxu0 %v406
        %428 = vmatprep.subr.bf16.mxu0 0
        %429 = vmatpush1.bf16.msra.mxu0 %v407
        %430 = vmatprep.subr.bf16.mxu0 0
        %431 = vmatpush1.bf16.msra.mxu0 %v408
        %432 = vmatprep.subr.bf16.mxu0 0
        %433 = vmatpush1.bf16.msra.mxu0 %v409
        %434 = vmatprep.subr.bf16.mxu0 0
        %435 = vmatpush1.bf16.msra.mxu0 0
        %436 = vmatprep.subr.bf16.mxu0 0
        %437 = vmatpush1.bf16.msra.mxu0 0
        %438 = vmatprep.subr.bf16.mxu0 0
        %439 = vmatpush1.bf16.msra.mxu0 0
        %440 = vmatprep.subr.bf16.mxu0 0
        %441 = vmatpush1.bf16.msra.mxu0 0
        %442 = vmatprep.subr.bf16.mxu0 0
        %443 = vmatpush1.bf16.msra.mxu0 0
        %444 = vmatprep.subr.bf16.mxu0 0
        %445 = vmatpush1.bf16.msra.mxu0 0
        %446 = vmatprep.subr.bf16.mxu0 0
        %447 = vmatpush1.bf16.msra.mxu0 0
        %448 = vmatprep.subr.bf16.mxu0 0
        %449 = vmatpush1.bf16.msra.mxu0 0
        %450 = vmatprep.mubr.bf16.mxu0 0
        %451 = vmatmul.mubr.bf16.gmra.mrb[0].mxu0 %v364
        %v452 = vpop.f32.mrb[0].mxu0
        %v453 = vadd.f32 0.0, %v452
        %v454 = vpop.f32.mrb[0].mxu0
        %v455 = vpop.f32.mrb[0].mxu0
        %v456 = vadd.f32 0.0, %v455
        %v457 = vpop.f32.mrb[0].mxu0
        %458 = vmatprep.mubr.bf16.mxu0 0
        %459 = vmatmul.mubr.bf16.gmra.mrb[0].mxu0 %v365
        %v460 = vpop.f32.mrb[0].mxu0
        %v461 = vadd.f32 0.0, %v460
        %v462 = vpop.f32.mrb[0].mxu0
        %v463 = vpop.f32.mrb[0].mxu0
        %v464 = vadd.f32 0.0, %v463
        %v465 = vpop.f32.mrb[0].mxu0
        %466 = vmatprep.mubr.bf16.mxu0 0
        %467 = vmatmul.mubr.bf16.gmra.mrb[0].mxu0 %v366
        %v468 = vpop.f32.mrb[0].mxu0
        %v469 = vadd.f32 0.0, %v468
        %v470 = vpop.f32.mrb[0].mxu0
        %v471 = vpop.f32.mrb[0].mxu0
        %v472 = vadd.f32 0.0, %v471
        %v473 = vpop.f32.mrb[0].mxu0
        %474 = vdwg.mxu0
        %v475 = vadd.f32 %v324, %v453
        %v476 = vadd.f32 %v325, %v456
        %v477 = vadd.f32 %v326, %v461
        %v478 = vadd.f32 %v327, %v464
        %v479 = vadd.f32 %v328, %v469
        %v480 = vadd.f32 %v329, %v472
        %481 = vst [vmem:[#allocation2] sm:$0xff] %v475
        %482 = vst [vmem:[#allocation2 + $0x8] sm:$0xff] %v476
        %483 = vst [vmem:[#allocation2 + $0x10] sm:$0xff] %v477
        %484 = vst [vmem:[#allocation2 + $0x18] sm:$0xff] %v478
        %485 = vst [vmem:[#allocation2 + $0x20] sm:$0xff] %v479
        %486 = vst [vmem:[#allocation2 + $0x28] sm:$0xff] %v480
        %p487 = scmp.eq.s32.totalorder %s21, 4
        // Predicated region
        $region78: #{motion_vqvae_forward.19} parent=68 // pred_check
          %p488 = pneg %p487
        $region79: #{motion_vqvae_forward.19} parent=68 // pred_check_branch
          %490 = sbr.rel (%p488) target = $region81
        $region80: #{motion_vqvae_forward.19} parent=68 // pred_region
          %v491 = vld [vmem:[#allocation2] sm:$0xff]
          %v492 = vld [vmem:[#allocation2 + $0x8] sm:$0xff]
          %v493 = vld [vmem:[#allocation2 + $0x10] sm:$0xff]
          %v494 = vld [vmem:[#allocation2 + $0x18] sm:$0xff]
          %v495 = vld [vmem:[#allocation2 + $0x20] sm:$0xff]
          %v496 = vld [vmem:[#allocation2 + $0x28] sm:$0xff]
          %v497 = vld [vmem:[%s303] sm:$0x1]
          %v499 = vlaneseq
          %v500 = vshrl.u32 %v499, 7
          %v501 = vsub.s32 0, %v500
          %v502 = vrot.slane %v497, %v501
          %v504 = vadd.f32 %v491, %v502
          %v505 = vadd.f32 %v492, %v502
          %v506 = vadd.f32 %v493, %v502
          %v507 = vadd.f32 %v494, %v502
          %v508 = vadd.f32 %v495, %v502
          %v509 = vadd.f32 %v496, %v502
          %v510 = vmax.f32 %v504, 0.0
          %v511 = vmax.f32 %v505, 0.0
          %v512 = vmax.f32 %v506, 0.0
          %v513 = vmax.f32 %v507, 0.0
          %v514 = vmax.f32 %v508, 0.0
          %v515 = vmax.f32 %v509, 0.0
          %516 = vst [vmem:[%s311] sm:$0xff] %v510
          %517 = vst [vmem:[%s311 + $0x8] sm:$0xff] %v511
          %518 = vst [vmem:[%s311 + $0x10] sm:$0xff] %v512
          %519 = vst [vmem:[%s311 + $0x18] sm:$0xff] %v513
          %520 = vst [vmem:[%s311 + $0x20] sm:$0xff] %v514
          %521 = vst [vmem:[%s311 + $0x28] sm:$0xff] %v515
        $region81: #{motion_vqvae_forward.19} parent=68 // pred_fallthru
          _
        %s522 = smul.u32 6, %s19
        %p523 = scmp.lt.s32.totalorder %s522, 5
        %s524 = scalar_select %p523, %s522, 5
        %p525 = scmp.lt.s32.totalorder %s20, 0
        %s526 = scalar_select %p525, %s20, 0
        %s527 = sadd.s32 %s526, %s524
        %s528 = smul.addr %s527, 8
        %s529 = scalar_lea.vmem %s3, %s528
        // Predicated region
        $region82: #{motion_vqvae_forward.19} parent=68 // pred_check
          %p530 = pneg %p135
        $region83: #{motion_vqvae_forward.19} parent=68 // pred_check_branch
          %532 = sbr.rel (%p530) target = $region85
        $region84: #{motion_vqvae_forward.19} parent=68 // pred_region
          %s533 = smul.u32 6, %s19
        $region85: #{motion_vqvae_forward.19} parent=68 // pred_fallthru
          _
        // Predicated region
        $region86: #{motion_vqvae_forward.19} parent=68 // pred_check
          %p534 = pneg %p135
        $region87: #{motion_vqvae_forward.19} parent=68 // pred_check_branch
          %536 = sbr.rel (%p534) target = $region89
        $region88: #{motion_vqvae_forward.19} parent=68 // pred_region
          %s537 = smul.u32 6, %s19
          %p538 = scmp.lt.s32.totalorder %s537, 5
          %s539 = scalar_select %p538, %s537, 5
          %p540 = scmp.lt.s32.totalorder %s20, 0
          %s541 = scalar_select %p540, %s20, 0
          %s542 = sadd.s32 %s541, %s539
          %s543 = smul.addr %s542, 8
          %s544 = scalar_lea.vmem %s3, %s543
        $region89: #{motion_vqvae_forward.19} parent=68 // pred_fallthru
          _
      $region69: #{motion_vqvae_forward.19} parent=5 // pred_fallthru
        _
      %p545 = scmp.le.s32.totalorder 2, %s9
      // Predicated region
      $region90: #{motion_vqvae_forward.19} parent=5 // pred_check
        %p546 = pneg %p545
      $region91: #{motion_vqvae_forward.19} parent=5 // pred_check_branch
        %548 = sbr.rel (%p546) target = $region93
      $region92: #{motion_vqvae_forward.19} parent=5 // pred_region
        %s549 = ssub.s32 %s9, 2
      $region93: #{motion_vqvae_forward.19} parent=5 // pred_fallthru
        _
    $region6: #{motion_vqvae_forward.19} parent=1 // loop_footer
      %s13 = sadd.s32 1, %s9
    $region7: #{motion_vqvae_forward.19} parent=1 // loop_footer_branch
      %8 = sbr.rel target = $region3
    $region8: #{motion_vqvae_forward.19} parent=1 // loop_exit
      _

// kernel: motion_vqvae_forward.20
$region0: #{motion_vqvae_forward.20}
  #allocation0 [shape = 'u32[]', space=smem, size = 0x4, offset = 0x4, fixed_abs, tag = 'smem constant byte address 0x4 - core index']
  #allocation1 [shape = 'u32[144,128]{1,0:T(1,128)}', space=vmem, size = 0x12000, scoped, tag = 'internal scratch']
  #allocation2 [shape = 'f32[48,128]{1,0:T(8,128)}', space=vmem, size = 0x6000, scoped, tag = 'scratch operand']
  %s0 = inlined_call_operand.vmem [shape: bf16[48,128], index: 0, kind: input, shape index: {}]
  %s1 = inlined_call_operand.vmem [shape: bf16[128,128], index: 1, kind: input, shape index: {}]
  %s2 = inlined_call_operand.vmem [shape: f32[1,128], index: 2, kind: input, shape index: {}]
  %s3 = inlined_call_operand.vmem [shape: f32[48,128], index: 3, kind: input, shape index: {}]
  %s4 = inlined_call_operand.vmem [shape: f32[48,128], index: 4, kind: output, shape index: {}]
  %s5 = sld [smem:[#allocation0]]
  $region34: #{motion_vqvae_forward.20} parent=0
    _
  %s7 = ssub.s32 1, %s5
  %s8 = scalar_select 0, %s7, %s5
  // Predicated region
  $region2: #{motion_vqvae_forward.20} parent=0 // pred_check
    _
  $region3: #{motion_vqvae_forward.20} parent=0 // pred_check_branch
    %10 = sbr.rel (0) target = $region5
  $region4: #{motion_vqvae_forward.20} parent=0 // pred_region
    _
  $region5: #{motion_vqvae_forward.20} parent=0 // pred_fallthru
    _
  // Predicated region
  $region6: #{motion_vqvae_forward.20} parent=0 // pred_check
    _
  $region7: #{motion_vqvae_forward.20} parent=0 // pred_check_branch
    %12 = sbr.rel (0) target = $region9
  $region8: #{motion_vqvae_forward.20} parent=0 // pred_region
    _
  $region9: #{motion_vqvae_forward.20} parent=0 // pred_fallthru
    _
  // Predicated region
  $region10: #{motion_vqvae_forward.20} parent=0 // pred_check
    _
  $region11: #{motion_vqvae_forward.20} parent=0 // pred_check_branch
    %14 = sbr.rel (0) target = $region13
  $region12: #{motion_vqvae_forward.20} parent=0 // pred_region
    _
  $region13: #{motion_vqvae_forward.20} parent=0 // pred_fallthru
    _
  // Predicated region
  $region14: #{motion_vqvae_forward.20} parent=0 // pred_check
    _
  $region15: #{motion_vqvae_forward.20} parent=0 // pred_check_branch
    %16 = sbr.rel (0) target = $region17
  $region16: #{motion_vqvae_forward.20} parent=0 // pred_region
    _
  $region17: #{motion_vqvae_forward.20} parent=0 // pred_fallthru
    _
  %p18 = scmp.eq.s32.totalorder 0, 0
  // Predicated region
  $region18: #{motion_vqvae_forward.20} parent=0 // pred_check
    %p19 = pneg %p18
  $region19: #{motion_vqvae_forward.20} parent=0 // pred_check_branch
    %21 = sbr.rel (%p19) target = $region21
  $region20: #{motion_vqvae_forward.20} parent=0 // pred_region
    %22 = vst [vmem:[#allocation2] sm:$0xff] 0.0
    %23 = vst [vmem:[#allocation2 + $0x8] sm:$0xff] 0.0
    %24 = vst [vmem:[#allocation2 + $0x10] sm:$0xff] 0.0
    %25 = vst [vmem:[#allocation2 + $0x18] sm:$0xff] 0.0
    %26 = vst [vmem:[#allocation2 + $0x20] sm:$0xff] 0.0
    %27 = vst [vmem:[#allocation2 + $0x28] sm:$0xff] 0.0
  $region21: #{motion_vqvae_forward.20} parent=0 // pred_fallthru
    _
  %v28 = vld [vmem:[#allocation2] sm:$0xff]
  %v29 = vld [vmem:[#allocation2 + $0x8] sm:$0xff]
  %v30 = vld [vmem:[#allocation2 + $0x10] sm:$0xff]
  %v31 = vld [vmem:[#allocation2 + $0x18] sm:$0xff]
  %v32 = vld [vmem:[#allocation2 + $0x20] sm:$0xff]
  %v33 = vld [vmem:[#allocation2 + $0x28] sm:$0xff]
  %v34 = vld [vmem:[%s0] sm:$0xf]
  %v35 = vld [vmem:[%s0 + $0x4] sm:$0xf]
  %v36 = vld [vmem:[%s0 + $0x8] sm:$0xf]
  %v37 = vld [vmem:[%s0 + $0xc] sm:$0xf]
  %v38 = vld [vmem:[%s0 + $0x10] sm:$0xf]
  %v39 = vld [vmem:[%s0 + $0x14] sm:$0xf]
  %v40 = vld [vmem:[%s1] sm:$0xf]
  %v41 = vld [vmem:[%s1 + $0x4] sm:$0xf]
  %v42 = vld [vmem:[%s1 + $0x8] sm:$0xf]
  %v43 = vld [vmem:[%s1 + $0xc] sm:$0xf]
  %v44 = vld [vmem:[%s1 + $0x10] sm:$0xf]
  %v45 = vld [vmem:[%s1 + $0x14] sm:$0xf]
  %v46 = vld [vmem:[%s1 + $0x18] sm:$0xf]
  %v47 = vld [vmem:[%s1 + $0x1c] sm:$0xf]
  %v48 = vld [vmem:[%s1 + $0x20] sm:$0xf]
  %v49 = vld [vmem:[%s1 + $0x24] sm:$0xf]
  %v50 = vld [vmem:[%s1 + $0x28] sm:$0xf]
  %v51 = vld [vmem:[%s1 + $0x2c] sm:$0xf]
  %v52 = vld [vmem:[%s1 + $0x30] sm:$0xf]
  %v53 = vld [vmem:[%s1 + $0x34] sm:$0xf]
  %v54 = vld [vmem:[%s1 + $0x38] sm:$0xf]
  %v55 = vld [vmem:[%s1 + $0x3c] sm:$0xf]
  %v62 = vunpack.c.l.b16 %v34
  %v63 = vunpack.c.l.b16 %v35
  %v64 = vunpack.c.l.b16 %v36
  %v65 = vunpack.c.l.b16 %v37
  %v66 = vunpack.c.l.b16 %v38
  %v67 = vunpack.c.l.b16 %v39
  %v68 = vpack.c.b16 %v63, %v62
  %v69 = vpack.c.b16 %v65, %v64
  %v70 = vpack.c.b16 %v67, %v66
  %v90 = vunpack.c.l.b16 %v40
  %v91 = vunpack.c.l.b16 %v41
  %v92 = vunpack.c.l.b16 %v42
  %v93 = vunpack.c.l.b16 %v43
  %v94 = vunpack.c.l.b16 %v44
  %v95 = vunpack.c.l.b16 %v45
  %v96 = vunpack.c.l.b16 %v46
  %v97 = vunpack.c.l.b16 %v47
  %v98 = vunpack.c.l.b16 %v48
  %v99 = vunpack.c.l.b16 %v49
  %v100 = vunpack.c.l.b16 %v50
  %v101 = vunpack.c.l.b16 %v51
  %v102 = vunpack.c.l.b16 %v52
  %v103 = vunpack.c.l.b16 %v53
  %v104 = vunpack.c.l.b16 %v54
  %v105 = vunpack.c.l.b16 %v55
  %v106 = vpack.c.b16 %v91, %v90
  %v107 = vpack.c.b16 %v93, %v92
  %v108 = vpack.c.b16 %v95, %v94
  %v109 = vpack.c.b16 %v97, %v96
  %v110 = vpack.c.b16 %v99, %v98
  %v111 = vpack.c.b16 %v101, %v100
  %v112 = vpack.c.b16 %v103, %v102
  %v113 = vpack.c.b16 %v105, %v104
  %122 = vmatprep.subr.bf16.mxu0 0
  %123 = vmatpush1.bf16.msra.mxu0 %v106
  %124 = vmatprep.subr.bf16.mxu0 0
  %125 = vmatpush1.bf16.msra.mxu0 %v107
  %126 = vmatprep.subr.bf16.mxu0 0
  %127 = vmatpush1.bf16.msra.mxu0 %v108
  %128 = vmatprep.subr.bf16.mxu0 0
  %129 = vmatpush1.bf16.msra.mxu0 %v109
  %130 = vmatprep.subr.bf16.mxu0 0
  %131 = vmatpush1.bf16.msra.mxu0 %v110
  %132 = vmatprep.subr.bf16.mxu0 0
  %133 = vmatpush1.bf16.msra.mxu0 %v111
  %134 = vmatprep.subr.bf16.mxu0 0
  %135 = vmatpush1.bf16.msra.mxu0 %v112
  %136 = vmatprep.subr.bf16.mxu0 0
  %137 = vmatpush1.bf16.msra.mxu0 %v113
  %138 = vmatprep.subr.bf16.mxu0 0
  %139 = vmatpush1.bf16.msra.mxu0 0
  %140 = vmatprep.subr.bf16.mxu0 0
  %141 = vmatpush1.bf16.msra.mxu0 0
  %142 = vmatprep.subr.bf16.mxu0 0
  %143 = vmatpush1.bf16.msra.mxu0 0
  %144 = vmatprep.subr.bf16.mxu0 0
  %145 = vmatpush1.bf16.msra.mxu0 0
  %146 = vmatprep.subr.bf16.mxu0 0
  %147 = vmatpush1.bf16.msra.mxu0 0
  %148 = vmatprep.subr.bf16.mxu0 0
  %149 = vmatpush1.bf16.msra.mxu0 0
  %150 = vmatprep.subr.bf16.mxu0 0
  %151 = vmatpush1.bf16.msra.mxu0 0
  %152 = vmatprep.subr.bf16.mxu0 0
  %153 = vmatpush1.bf16.msra.mxu0 0
  %154 = vmatprep.mubr.bf16.mxu0 0
  %155 = vmatmul.mubr.bf16.gmra.mrb[0].mxu0 %v68
  %v156 = vpop.f32.mrb[0].mxu0
  %v157 = vadd.f32 0.0, %v156
  %v158 = vpop.f32.mrb[0].mxu0
  %v159 = vpop.f32.mrb[0].mxu0
  %v160 = vadd.f32 0.0, %v159
  %v161 = vpop.f32.mrb[0].mxu0
  %162 = vmatprep.mubr.bf16.mxu0 0
  %163 = vmatmul.mubr.bf16.gmra.mrb[0].mxu0 %v69
  %v164 = vpop.f32.mrb[0].mxu0
  %v165 = vadd.f32 0.0, %v164
  %v166 = vpop.f32.mrb[0].mxu0
  %v167 = vpop.f32.mrb[0].mxu0
  %v168 = vadd.f32 0.0, %v167
  %v169 = vpop.f32.mrb[0].mxu0
  %170 = vmatprep.mubr.bf16.mxu0 0
  %171 = vmatmul.mubr.bf16.gmra.mrb[0].mxu0 %v70
  %v172 = vpop.f32.mrb[0].mxu0
  %v173 = vadd.f32 0.0, %v172
  %v174 = vpop.f32.mrb[0].mxu0
  %v175 = vpop.f32.mrb[0].mxu0
  %v176 = vadd.f32 0.0, %v175
  %v177 = vpop.f32.mrb[0].mxu0
  %178 = vdwg.mxu0
  %v179 = vadd.f32 %v28, %v157
  %v180 = vadd.f32 %v29, %v160
  %v181 = vadd.f32 %v30, %v165
  %v182 = vadd.f32 %v31, %v168
  %v183 = vadd.f32 %v32, %v173
  %v184 = vadd.f32 %v33, %v176
  %185 = vst [vmem:[#allocation2] sm:$0xff] %v179
  %186 = vst [vmem:[#allocation2 + $0x8] sm:$0xff] %v180
  %187 = vst [vmem:[#allocation2 + $0x10] sm:$0xff] %v181
  %188 = vst [vmem:[#allocation2 + $0x18] sm:$0xff] %v182
  %189 = vst [vmem:[#allocation2 + $0x20] sm:$0xff] %v183
  %190 = vst [vmem:[#allocation2 + $0x28] sm:$0xff] %v184
  // Predicated region
  $region22: #{motion_vqvae_forward.20} parent=0 // pred_check
    %p191 = pneg %p18
  $region23: #{motion_vqvae_forward.20} parent=0 // pred_check_branch
    %193 = sbr.rel (%p191) target = $region25
  $region24: #{motion_vqvae_forward.20} parent=0 // pred_region
    %v194 = vld [vmem:[#allocation2] sm:$0xff]
    %v195 = vld [vmem:[#allocation2 + $0x8] sm:$0xff]
    %v196 = vld [vmem:[#allocation2 + $0x10] sm:$0xff]
    %v197 = vld [vmem:[#allocation2 + $0x18] sm:$0xff]
    %v198 = vld [vmem:[#allocation2 + $0x20] sm:$0xff]
    %v199 = vld [vmem:[#allocation2 + $0x28] sm:$0xff]
    %v200 = vld [vmem:[%s2] sm:$0x1]
    %v202 = vlaneseq
    %v203 = vshrl.u32 %v202, 7
    %v204 = vsub.s32 0, %v203
    %v205 = vrot.slane %v200, %v204
    %v207 = vadd.f32 %v194, %v205
    %v208 = vadd.f32 %v195, %v205
    %v209 = vadd.f32 %v196, %v205
    %v210 = vadd.f32 %v197, %v205
    %v211 = vadd.f32 %v198, %v205
    %v212 = vadd.f32 %v199, %v205
    %v213 = vld [vmem:[%s3] sm:$0xff]
    %v214 = vld [vmem:[%s3 + $0x8] sm:$0xff]
    %v215 = vld [vmem:[%s3 + $0x10] sm:$0xff]
    %v216 = vld [vmem:[%s3 + $0x18] sm:$0xff]
    %v217 = vld [vmem:[%s3 + $0x20] sm:$0xff]
    %v218 = vld [vmem:[%s3 + $0x28] sm:$0xff]
    %v219 = vadd.f32 %v207, %v213
    %v220 = vadd.f32 %v208, %v214
    %v221 = vadd.f32 %v209, %v215
    %v222 = vadd.f32 %v210, %v216
    %v223 = vadd.f32 %v211, %v217
    %v224 = vadd.f32 %v212, %v218
    %v225 = vmax.f32 %v219, 0.0
    %v226 = vmax.f32 %v220, 0.0
    %v227 = vmax.f32 %v221, 0.0
    %v228 = vmax.f32 %v222, 0.0
    %v229 = vmax.f32 %v223, 0.0
    %v230 = vmax.f32 %v224, 0.0
    %231 = vst [vmem:[%s4] sm:$0xff] %v225
    %232 = vst [vmem:[%s4 + $0x8] sm:$0xff] %v226
    %233 = vst [vmem:[%s4 + $0x10] sm:$0xff] %v227
    %234 = vst [vmem:[%s4 + $0x18] sm:$0xff] %v228
    %235 = vst [vmem:[%s4 + $0x20] sm:$0xff] %v229
    %236 = vst [vmem:[%s4 + $0x28] sm:$0xff] %v230
  $region25: #{motion_vqvae_forward.20} parent=0 // pred_fallthru
    _
  // Predicated region
  $region26: #{motion_vqvae_forward.20} parent=0 // pred_check
    _
  $region27: #{motion_vqvae_forward.20} parent=0 // pred_check_branch
    %238 = sbr.rel (0) target = $region29
  $region28: #{motion_vqvae_forward.20} parent=0 // pred_region
    _
  $region29: #{motion_vqvae_forward.20} parent=0 // pred_fallthru
    _
  // Predicated region
  $region30: #{motion_vqvae_forward.20} parent=0 // pred_check
    _
  $region31: #{motion_vqvae_forward.20} parent=0 // pred_check_branch
    %240 = sbr.rel (0) target = $region33
  $region32: #{motion_vqvae_forward.20} parent=0 // pred_region
    _
  $region33: #{motion_vqvae_forward.20} parent=0 // pred_fallthru
    _

// kernel: motion_vqvae_forward.23
$region0: #{motion_vqvae_forward.23}
  #allocation0 [shape = 'u32[]', space=smem, size = 0x4, offset = 0x4, fixed_abs, tag = 'smem constant byte address 0x4 - core index']
  #allocation1 [shape = 'u32[144,128]{1,0:T(1,128)}', space=vmem, size = 0x12000, scoped, tag = 'internal scratch']
  #allocation2 [shape = 'f32[48,128]{1,0:T(8,128)}', space=vmem, size = 0x6000, scoped, tag = 'scratch operand']
  %s0 = inlined_call_operand.vmem [shape: bf16[48,128], index: 0, kind: input, shape index: {}]
  %s1 = inlined_call_operand.vmem [shape: bf16[128,128], index: 1, kind: input, shape index: {}]
  %s2 = inlined_call_operand.vmem [shape: f32[1,128], index: 2, kind: input, shape index: {}]
  %s3 = inlined_call_operand.vmem [shape: f32[48,128], index: 3, kind: output, shape index: {}]
  %s4 = sld [smem:[#allocation0]]
  $region30: #{motion_vqvae_forward.23} parent=0
    _
  %s6 = ssub.s32 1, %s4
  %s7 = scalar_select 0, %s6, %s4
  // Predicated region
  $region2: #{motion_vqvae_forward.23} parent=0 // pred_check
    _
  $region3: #{motion_vqvae_forward.23} parent=0 // pred_check_branch
    %9 = sbr.rel (0) target = $region5
  $region4: #{motion_vqvae_forward.23} parent=0 // pred_region
    _
  $region5: #{motion_vqvae_forward.23} parent=0 // pred_fallthru
    _
  // Predicated region
  $region6: #{motion_vqvae_forward.23} parent=0 // pred_check
    _
  $region7: #{motion_vqvae_forward.23} parent=0 // pred_check_branch
    %11 = sbr.rel (0) target = $region9
  $region8: #{motion_vqvae_forward.23} parent=0 // pred_region
    _
  $region9: #{motion_vqvae_forward.23} parent=0 // pred_fallthru
    _
  // Predicated region
  $region10: #{motion_vqvae_forward.23} parent=0 // pred_check
    _
  $region11: #{motion_vqvae_forward.23} parent=0 // pred_check_branch
    %13 = sbr.rel (0) target = $region13
  $region12: #{motion_vqvae_forward.23} parent=0 // pred_region
    _
  $region13: #{motion_vqvae_forward.23} parent=0 // pred_fallthru
    _
  %p15 = scmp.eq.s32.totalorder 0, 0
  // Predicated region
  $region14: #{motion_vqvae_forward.23} parent=0 // pred_check
    %p16 = pneg %p15
  $region15: #{motion_vqvae_forward.23} parent=0 // pred_check_branch
    %18 = sbr.rel (%p16) target = $region17
  $region16: #{motion_vqvae_forward.23} parent=0 // pred_region
    %19 = vst [vmem:[#allocation2] sm:$0xff] 0.0
    %20 = vst [vmem:[#allocation2 + $0x8] sm:$0xff] 0.0
    %21 = vst [vmem:[#allocation2 + $0x10] sm:$0xff] 0.0
    %22 = vst [vmem:[#allocation2 + $0x18] sm:$0xff] 0.0
    %23 = vst [vmem:[#allocation2 + $0x20] sm:$0xff] 0.0
    %24 = vst [vmem:[#allocation2 + $0x28] sm:$0xff] 0.0
  $region17: #{motion_vqvae_forward.23} parent=0 // pred_fallthru
    _
  %v25 = vld [vmem:[#allocation2] sm:$0xff]
  %v26 = vld [vmem:[#allocation2 + $0x8] sm:$0xff]
  %v27 = vld [vmem:[#allocation2 + $0x10] sm:$0xff]
  %v28 = vld [vmem:[#allocation2 + $0x18] sm:$0xff]
  %v29 = vld [vmem:[#allocation2 + $0x20] sm:$0xff]
  %v30 = vld [vmem:[#allocation2 + $0x28] sm:$0xff]
  %v31 = vld [vmem:[%s0] sm:$0xf]
  %v32 = vld [vmem:[%s0 + $0x4] sm:$0xf]
  %v33 = vld [vmem:[%s0 + $0x8] sm:$0xf]
  %v34 = vld [vmem:[%s0 + $0xc] sm:$0xf]
  %v35 = vld [vmem:[%s0 + $0x10] sm:$0xf]
  %v36 = vld [vmem:[%s0 + $0x14] sm:$0xf]
  %v37 = vld [vmem:[%s1] sm:$0xf]
  %v38 = vld [vmem:[%s1 + $0x4] sm:$0xf]
  %v39 = vld [vmem:[%s1 + $0x8] sm:$0xf]
  %v40 = vld [vmem:[%s1 + $0xc] sm:$0xf]
  %v41 = vld [vmem:[%s1 + $0x10] sm:$0xf]
  %v42 = vld [vmem:[%s1 + $0x14] sm:$0xf]
  %v43 = vld [vmem:[%s1 + $0x18] sm:$0xf]
  %v44 = vld [vmem:[%s1 + $0x1c] sm:$0xf]
  %v45 = vld [vmem:[%s1 + $0x20] sm:$0xf]
  %v46 = vld [vmem:[%s1 + $0x24] sm:$0xf]
  %v47 = vld [vmem:[%s1 + $0x28] sm:$0xf]
  %v48 = vld [vmem:[%s1 + $0x2c] sm:$0xf]
  %v49 = vld [vmem:[%s1 + $0x30] sm:$0xf]
  %v50 = vld [vmem:[%s1 + $0x34] sm:$0xf]
  %v51 = vld [vmem:[%s1 + $0x38] sm:$0xf]
  %v52 = vld [vmem:[%s1 + $0x3c] sm:$0xf]
  %v59 = vunpack.c.l.b16 %v31
  %v60 = vunpack.c.l.b16 %v32
  %v61 = vunpack.c.l.b16 %v33
  %v62 = vunpack.c.l.b16 %v34
  %v63 = vunpack.c.l.b16 %v35
  %v64 = vunpack.c.l.b16 %v36
  %v65 = vpack.c.b16 %v60, %v59
  %v66 = vpack.c.b16 %v62, %v61
  %v67 = vpack.c.b16 %v64, %v63
  %v87 = vunpack.c.l.b16 %v37
  %v88 = vunpack.c.l.b16 %v38
  %v89 = vunpack.c.l.b16 %v39
  %v90 = vunpack.c.l.b16 %v40
  %v91 = vunpack.c.l.b16 %v41
  %v92 = vunpack.c.l.b16 %v42
  %v93 = vunpack.c.l.b16 %v43
  %v94 = vunpack.c.l.b16 %v44
  %v95 = vunpack.c.l.b16 %v45
  %v96 = vunpack.c.l.b16 %v46
  %v97 = vunpack.c.l.b16 %v47
  %v98 = vunpack.c.l.b16 %v48
  %v99 = vunpack.c.l.b16 %v49
  %v100 = vunpack.c.l.b16 %v50
  %v101 = vunpack.c.l.b16 %v51
  %v102 = vunpack.c.l.b16 %v52
  %v103 = vpack.c.b16 %v88, %v87
  %v104 = vpack.c.b16 %v90, %v89
  %v105 = vpack.c.b16 %v92, %v91
  %v106 = vpack.c.b16 %v94, %v93
  %v107 = vpack.c.b16 %v96, %v95
  %v108 = vpack.c.b16 %v98, %v97
  %v109 = vpack.c.b16 %v100, %v99
  %v110 = vpack.c.b16 %v102, %v101
  %119 = vmatprep.subr.bf16.mxu0 0
  %120 = vmatpush1.bf16.msra.mxu0 %v103
  %121 = vmatprep.subr.bf16.mxu0 0
  %122 = vmatpush1.bf16.msra.mxu0 %v104
  %123 = vmatprep.subr.bf16.mxu0 0
  %124 = vmatpush1.bf16.msra.mxu0 %v105
  %125 = vmatprep.subr.bf16.mxu0 0
  %126 = vmatpush1.bf16.msra.mxu0 %v106
  %127 = vmatprep.subr.bf16.mxu0 0
  %128 = vmatpush1.bf16.msra.mxu0 %v107
  %129 = vmatprep.subr.bf16.mxu0 0
  %130 = vmatpush1.bf16.msra.mxu0 %v108
  %131 = vmatprep.subr.bf16.mxu0 0
  %132 = vmatpush1.bf16.msra.mxu0 %v109
  %133 = vmatprep.subr.bf16.mxu0 0
  %134 = vmatpush1.bf16.msra.mxu0 %v110
  %135 = vmatprep.subr.bf16.mxu0 0
  %136 = vmatpush1.bf16.msra.mxu0 0
  %137 = vmatprep.subr.bf16.mxu0 0
  %138 = vmatpush1.bf16.msra.mxu0 0
  %139 = vmatprep.subr.bf16.mxu0 0
  %140 = vmatpush1.bf16.msra.mxu0 0
  %141 = vmatprep.subr.bf16.mxu0 0
  %142 = vmatpush1.bf16.msra.mxu0 0
  %143 = vmatprep.subr.bf16.mxu0 0
  %144 = vmatpush1.bf16.msra.mxu0 0
  %145 = vmatprep.subr.bf16.mxu0 0
  %146 = vmatpush1.bf16.msra.mxu0 0
  %147 = vmatprep.subr.bf16.mxu0 0
  %148 = vmatpush1.bf16.msra.mxu0 0
  %149 = vmatprep.subr.bf16.mxu0 0
  %150 = vmatpush1.bf16.msra.mxu0 0
  %151 = vmatprep.mubr.bf16.mxu0 0
  %152 = vmatmul.mubr.bf16.gmra.mrb[0].mxu0 %v65
  %v153 = vpop.f32.mrb[0].mxu0
  %v154 = vadd.f32 0.0, %v153
  %v155 = vpop.f32.mrb[0].mxu0
  %v156 = vpop.f32.mrb[0].mxu0
  %v157 = vadd.f32 0.0, %v156
  %v158 = vpop.f32.mrb[0].mxu0
  %159 = vmatprep.mubr.bf16.mxu0 0
  %160 = vmatmul.mubr.bf16.gmra.mrb[0].mxu0 %v66
  %v161 = vpop.f32.mrb[0].mxu0
  %v162 = vadd.f32 0.0, %v161
  %v163 = vpop.f32.mrb[0].mxu0
  %v164 = vpop.f32.mrb[0].mxu0
  %v165 = vadd.f32 0.0, %v164
  %v166 = vpop.f32.mrb[0].mxu0
  %167 = vmatprep.mubr.bf16.mxu0 0
  %168 = vmatmul.mubr.bf16.gmra.mrb[0].mxu0 %v67
  %v169 = vpop.f32.mrb[0].mxu0
  %v170 = vadd.f32 0.0, %v169
  %v171 = vpop.f32.mrb[0].mxu0
  %v172 = vpop.f32.mrb[0].mxu0
  %v173 = vadd.f32 0.0, %v172
  %v174 = vpop.f32.mrb[0].mxu0
  %175 = vdwg.mxu0
  %v176 = vadd.f32 %v25, %v154
  %v177 = vadd.f32 %v26, %v157
  %v178 = vadd.f32 %v27, %v162
  %v179 = vadd.f32 %v28, %v165
  %v180 = vadd.f32 %v29, %v170
  %v181 = vadd.f32 %v30, %v173
  %182 = vst [vmem:[#allocation2] sm:$0xff] %v176
  %183 = vst [vmem:[#allocation2 + $0x8] sm:$0xff] %v177
  %184 = vst [vmem:[#allocation2 + $0x10] sm:$0xff] %v178
  %185 = vst [vmem:[#allocation2 + $0x18] sm:$0xff] %v179
  %186 = vst [vmem:[#allocation2 + $0x20] sm:$0xff] %v180
  %187 = vst [vmem:[#allocation2 + $0x28] sm:$0xff] %v181
  // Predicated region
  $region18: #{motion_vqvae_forward.23} parent=0 // pred_check
    %p188 = pneg %p15
  $region19: #{motion_vqvae_forward.23} parent=0 // pred_check_branch
    %190 = sbr.rel (%p188) target = $region21
  $region20: #{motion_vqvae_forward.23} parent=0 // pred_region
    %v191 = vld [vmem:[#allocation2] sm:$0xff]
    %v192 = vld [vmem:[#allocation2 + $0x8] sm:$0xff]
    %v193 = vld [vmem:[#allocation2 + $0x10] sm:$0xff]
    %v194 = vld [vmem:[#allocation2 + $0x18] sm:$0xff]
    %v195 = vld [vmem:[#allocation2 + $0x20] sm:$0xff]
    %v196 = vld [vmem:[#allocation2 + $0x28] sm:$0xff]
    %v197 = vld [vmem:[%s2] sm:$0x1]
    %v199 = vlaneseq
    %v200 = vshrl.u32 %v199, 7
    %v201 = vsub.s32 0, %v200
    %v202 = vrot.slane %v197, %v201
    %v204 = vadd.f32 %v191, %v202
    %v205 = vadd.f32 %v192, %v202
    %v206 = vadd.f32 %v193, %v202
    %v207 = vadd.f32 %v194, %v202
    %v208 = vadd.f32 %v195, %v202
    %v209 = vadd.f32 %v196, %v202
    %210 = vst [vmem:[%s3] sm:$0xff] %v204
    %211 = vst [vmem:[%s3 + $0x8] sm:$0xff] %v205
    %212 = vst [vmem:[%s3 + $0x10] sm:$0xff] %v206
    %213 = vst [vmem:[%s3 + $0x18] sm:$0xff] %v207
    %214 = vst [vmem:[%s3 + $0x20] sm:$0xff] %v208
    %215 = vst [vmem:[%s3 + $0x28] sm:$0xff] %v209
  $region21: #{motion_vqvae_forward.23} parent=0 // pred_fallthru
    _
  // Predicated region
  $region22: #{motion_vqvae_forward.23} parent=0 // pred_check
    _
  $region23: #{motion_vqvae_forward.23} parent=0 // pred_check_branch
    %217 = sbr.rel (0) target = $region25
  $region24: #{motion_vqvae_forward.23} parent=0 // pred_region
    _
  $region25: #{motion_vqvae_forward.23} parent=0 // pred_fallthru
    _
  // Predicated region
  $region26: #{motion_vqvae_forward.23} parent=0 // pred_check
    _
  $region27: #{motion_vqvae_forward.23} parent=0 // pred_check_branch
    %219 = sbr.rel (0) target = $region29
  $region28: #{motion_vqvae_forward.23} parent=0 // pred_region
    _
  $region29: #{motion_vqvae_forward.23} parent=0 // pred_fallthru
    _

// kernel: motion_vqvae_forward.24
$region0: #{motion_vqvae_forward.24}
  #allocation0 [shape = 'u32[]', space=smem, size = 0x4, offset = 0x4, fixed_abs, tag = 'smem constant byte address 0x4 - core index']
  #allocation1 [shape = 'u32[144,128]{1,0:T(1,128)}', space=vmem, size = 0x12000, scoped, tag = 'internal scratch']
  %s0 = inlined_call_operand.vmem [shape: f32[48,128], index: 0, kind: input, shape index: {}]
  %s1 = inlined_call_operand.vmem [shape: f32[256,128], index: 1, kind: input, shape index: {}]
  %s2 = inlined_call_operand.vmem [shape: f32[1,256], index: 2, kind: input, shape index: {}]
  %s3 = inlined_call_operand.vmem [shape: f32[48,128], index: 3, kind: output, shape index: {0}]
  %s4 = inlined_call_operand.vmem [shape: f32[2,8,256], index: 4, kind: output, shape index: {1}]
  %5 = xla_tuple %s3, %s4
  %s6 = sld [smem:[#allocation0]]
  $region57: #{motion_vqvae_forward.24} parent=0
    _
  %s8 = ssub.s32 1, %s6
  %s9 = scalar_select 0, %s8, %s6
  loop: start=0, step=1, limit=4
  $region2: #{motion_vqvae_forward.24} parent=0 // loop_pre_header
    _
  $region3: #{motion_vqvae_forward.24} parent=0 // loop_header
    %s11 = sphi 0, %s15
    %p12 = scmp.ge.s32.totalorder %s11, 4
    %s18 = sphi 0, %s30
    %s19 = sphi 0, %s26
    %s20 = sphi 0, %s18
    %s21 = sphi 0, %s19
    %s22 = sphi 0, %s20
    %s23 = sphi 0, %s21
    %s35 = sphi 0, %s37
    %s38 = sphi 0, %s35
    %s39 = sphi 0, %s38
    %s55 = sphi 0, %s39
    %s59 = sphi 0, %s59
    %s61 = sphi 0, %s59
    %s62 = sphi 0, %s61
    %s76 = sphi 0, %s62
    %s80 = sphi 0, %s80
    %s82 = sphi 0, %s80
    %s83 = sphi 0, %s82
    %s97 = sphi 0, %s83
    %s105 = sphi 0, %s107
    %s108 = sphi 0, %s105
    %s109 = sphi 0, %s108
    %s125 = sphi 0, %s109
    %s131 = sphi 0, %s133
    %s134 = sphi 0, %s131
    %s135 = sphi 0, %s134
    %s151 = sphi 0, %s135
  $region4: #{motion_vqvae_forward.24} parent=0 // loop_header_branch
    %14 = sbr.rel (%p12) target = $region8
  $region5: #{motion_vqvae_forward.24} parent=0 // loop_body
    %s16 = ssub.s32 %s11, 1
    %s17 = ssub.s32 %s11, 2
    %s24 = sadd.s32 1, %s19
    %p25 = scmp.ge.s32.totalorder %s24, 1
    %s26 = scalar_select %p25, 0, %s24
    %s27 = sadd.s32 1, %s18
    %s28 = scalar_select %p25, %s27, %s18
    %p29 = scmp.ge.s32.totalorder %s28, 2
    %s30 = scalar_select %p29, 0, %s28
    %s31 = sadd.s32 %s18, %s19
    %s32 = sadd.s32 %s30, %s26
    %s33 = ssub.s32 %s31, %s32
    %p34 = scmp.eq.s32.totalorder %s33, 0
    %s36 = sadd.s32 %s35, 1
    %s37 = scalar_select %p34, %s35, %s36
    %p40 = pneg %p34
    %p41 = scmp.eq.s32.totalorder %s11, 1
    %p42 = por %p40, %p41
    %p43 = scmp.ne.s32.totalorder %s35, %s38
    %p44 = scmp.eq.s32.totalorder %s11, 0
    %p45 = por %p43, %p44
    %p46 = scmp.ne.s32.totalorder %s35, %s38
    %p47 = scmp.eq.s32.totalorder %s16, 1
    %p48 = por %p46, %p47
    %p49 = scmp.ne.s32.totalorder %s38, %s39
    %p50 = scmp.eq.s32.totalorder %s16, 0
    %p51 = por %p49, %p50
    %p52 = scmp.ne.s32.totalorder %s38, %s39
    %p53 = scmp.eq.s32.totalorder %s17, 1
    %p54 = por %p52, %p53
    %p56 = scmp.ne.s32.totalorder %s39, %s55
    %p57 = scmp.eq.s32.totalorder %s17, 0
    %p58 = por %p56, %p57
    %s60 = sadd.s32 %s59, 1
    %p63 = scmp.eq.s32.totalorder %s11, 1
    %p64 = scmp.ne.s32.totalorder %s59, %s61
    %p65 = scmp.eq.s32.totalorder %s11, 0
    %p66 = por %p64, %p65
    %p67 = scmp.ne.s32.totalorder %s59, %s61
    %p68 = scmp.eq.s32.totalorder %s16, 1
    %p69 = por %p67, %p68
    %p70 = scmp.ne.s32.totalorder %s61, %s62
    %p71 = scmp.eq.s32.totalorder %s16, 0
    %p72 = por %p70, %p71
    %p73 = scmp.ne.s32.totalorder %s61, %s62
    %p74 = scmp.eq.s32.totalorder %s17, 1
    %p75 = por %p73, %p74
    %p77 = scmp.ne.s32.totalorder %s62, %s76
    %p78 = scmp.eq.s32.totalorder %s17, 0
    %p79 = por %p77, %p78
    %s81 = sadd.s32 %s80, 1
    %p84 = scmp.eq.s32.totalorder %s11, 1
    %p85 = scmp.ne.s32.totalorder %s80, %s82
    %p86 = scmp.eq.s32.totalorder %s11, 0
    %p87 = por %p85, %p86
    %p88 = scmp.ne.s32.totalorder %s80, %s82
    %p89 = scmp.eq.s32.totalorder %s16, 1
    %p90 = por %p88, %p89
    %p91 = scmp.ne.s32.totalorder %s82, %s83
    %p92 = scmp.eq.s32.totalorder %s16, 0
    %p93 = por %p91, %p92
    %p94 = scmp.ne.s32.totalorder %s82, %s83
    %p95 = scmp.eq.s32.totalorder %s17, 1
    %p96 = por %p94, %p95
    %p98 = scmp.ne.s32.totalorder %s83, %s97
    %p99 = scmp.eq.s32.totalorder %s17, 0
    %p100 = por %p98, %p99
    %s101 = sadd.s32 %s18, %s19
    %s102 = sadd.s32 %s30, %s26
    %s103 = ssub.s32 %s101, %s102
    %p104 = scmp.eq.s32.totalorder %s103, 0
    %s106 = sadd.s32 %s105, 1
    %s107 = scalar_select %p104, %s105, %s106
    %p110 = pneg %p104
    %p111 = scmp.eq.s32.totalorder %s11, 1
    %p112 = por %p110, %p111
    %p113 = scmp.ne.s32.totalorder %s105, %s108
    %p114 = scmp.eq.s32.totalorder %s11, 0
    %p115 = por %p113, %p114
    %p116 = scmp.ne.s32.totalorder %s105, %s108
    %p117 = scmp.eq.s32.totalorder %s16, 1
    %p118 = por %p116, %p117
    %p119 = scmp.ne.s32.totalorder %s108, %s109
    %p120 = scmp.eq.s32.totalorder %s16, 0
    %p121 = por %p119, %p120
    %p122 = scmp.ne.s32.totalorder %s108, %s109
    %p123 = scmp.eq.s32.totalorder %s17, 1
    %p124 = por %p122, %p123
    %p126 = scmp.ne.s32.totalorder %s109, %s125
    %p127 = scmp.eq.s32.totalorder %s17, 0
    %p128 = por %p126, %p127
    %s129 = ssub.s32 %s18, %s30
    %p130 = scmp.eq.s32.totalorder %s129, 0
    %s132 = sadd.s32 %s131, 1
    %s133 = scalar_select %p130, %s131, %s132
    %p136 = pneg %p130
    %p137 = scmp.eq.s32.totalorder %s11, 1
    %p138 = por %p136, %p137
    %p139 = scmp.ne.s32.totalorder %s131, %s134
    %p140 = scmp.eq.s32.totalorder %s11, 0
    %p141 = por %p139, %p140
    %p142 = scmp.ne.s32.totalorder %s131, %s134
    %p143 = scmp.eq.s32.totalorder %s16, 1
    %p144 = por %p142, %p143
    %p145 = scmp.ne.s32.totalorder %s134, %s135
    %p146 = scmp.eq.s32.totalorder %s16, 0
    %p147 = por %p145, %p146
    %p148 = scmp.ne.s32.totalorder %s134, %s135
    %p149 = scmp.eq.s32.totalorder %s17, 1
    %p150 = por %p148, %p149
    %p152 = scmp.ne.s32.totalorder %s135, %s151
    %p153 = scmp.eq.s32.totalorder %s17, 0
    %p154 = por %p152, %p153
    %p155 = scmp.le.s32.totalorder 1, %s11
    %p156 = scmp.lt.s32.totalorder %s11, 3
    %p157 = pnand %p155, %p156
    %p158 = pneg %p157
    // Predicated region
    $region9: #{motion_vqvae_forward.24} parent=5 // pred_check
      _
    $region10: #{motion_vqvae_forward.24} parent=5 // pred_check_branch
      %160 = sbr.rel (%p157) target = $region12
    $region11: #{motion_vqvae_forward.24} parent=5 // pred_region
      %s161 = ssub.s32 %s11, 1
      // Predicated region
      $region13: #{motion_vqvae_forward.24} parent=11 // pred_check
        %p162 = pneg %p72
      $region14: #{motion_vqvae_forward.24} parent=11 // pred_check_branch
        %164 = sbr.rel (%p162) target = $region16
      $region15: #{motion_vqvae_forward.24} parent=11 // pred_region
        _
      $region16: #{motion_vqvae_forward.24} parent=11 // pred_fallthru
        _
      // Predicated region
      $region17: #{motion_vqvae_forward.24} parent=11 // pred_check
        %p165 = pneg %p93
      $region18: #{motion_vqvae_forward.24} parent=11 // pred_check_branch
        %167 = sbr.rel (%p165) target = $region20
      $region19: #{motion_vqvae_forward.24} parent=11 // pred_region
        _
      $region20: #{motion_vqvae_forward.24} parent=11 // pred_fallthru
        _
    $region12: #{motion_vqvae_forward.24} parent=5 // pred_fallthru
      _
    %p168 = scmp.lt.s32.totalorder %s11, 2
    // Predicated region
    $region21: #{motion_vqvae_forward.24} parent=5 // pred_check
      %p169 = pneg %p168
    $region22: #{motion_vqvae_forward.24} parent=5 // pred_check_branch
      %171 = sbr.rel (%p169) target = $region24
    $region23: #{motion_vqvae_forward.24} parent=5 // pred_region
      // Predicated region
      $region25: #{motion_vqvae_forward.24} parent=23 // pred_check
        %p172 = pneg %p45
      $region26: #{motion_vqvae_forward.24} parent=23 // pred_check_branch
        %174 = sbr.rel (%p172) target = $region28
      $region27: #{motion_vqvae_forward.24} parent=23 // pred_region
        %s175 = sadd.s32 %s18, %s19
        %s176 = smul.u32 3, %s175
        %p177 = scmp.lt.s32.totalorder %s176, 5
        %s178 = scalar_select %p177, %s176, 5
        %s179 = smul.addr %s178, 8
        %s180 = scalar_lea.vmem %s0, %s179
        %s181 = sadd.s32 %s18, %s19
        %s182 = smul.u32 3, %s181
      $region28: #{motion_vqvae_forward.24} parent=23 // pred_fallthru
        _
    $region24: #{motion_vqvae_forward.24} parent=5 // pred_fallthru
      _
    %p183 = scmp.le.s32.totalorder 1, %s11
    %p184 = scmp.lt.s32.totalorder %s11, 3
    %p185 = pnand %p183, %p184
    %p186 = pneg %p185
    // Predicated region
    $region29: #{motion_vqvae_forward.24} parent=5 // pred_check
      _
    $region30: #{motion_vqvae_forward.24} parent=5 // pred_check_branch
      %188 = sbr.rel (%p185) target = $region32
    $region31: #{motion_vqvae_forward.24} parent=5 // pred_region
      %s189 = ssub.s32 %s11, 1
      %s190 = sadd.s32 %s20, %s21
      %s191 = smul.u32 3, %s190
      %p192 = scmp.lt.s32.totalorder %s191, 5
      %s193 = scalar_select %p192, %s191, 5
      %s194 = smul.addr %s193, 8
      %s195 = scalar_lea.vmem %s0, %s194
      %p196 = pneg %p51
      %p197 = pneg %p48
      %p198 = pneg %p72
      %p199 = pneg %p69
      %p200 = pneg %p93
      %p201 = pneg %p90
      %p202 = pneg %p121
      %p203 = pneg %p118
      %s204 = sadd.s32 %s20, %s21
      %s205 = smul.u32 3, %s204
      %p206 = scmp.lt.s32.totalorder %s205, 5
      %s207 = scalar_select %p206, %s205, 5
      %s208 = smul.addr %s207, 8
      %s209 = scalar_lea.vmem %s3, %s208
      %p210 = pneg %p147
      %p211 = pneg %p144
      %p212 = scmp.lt.s32.totalorder %s20, 1
      %s213 = scalar_select %p212, %s20, 1
      %s214 = smul.addr %s213, 2
      %s215 = smul.addr %s214, 8
      %s216 = scalar_lea.vmem %s4, %s215
      %s217 = sadd.s32 %s20, %s21
      %s218 = smul.u32 3, %s217
      %p219 = scmp.lt.s32.totalorder %s218, 5
      %s220 = scalar_select %p219, %s218, 5
      %s221 = smul.addr %s220, 8
      %s222 = scalar_lea.vmem %s0, %s221
      %s223 = sadd.s32 %s20, %s21
      %s224 = smul.u32 3, %s223
      %s225 = sadd.s32 %s20, %s21
      %s226 = smul.u32 3, %s225
      %p227 = scmp.lt.s32.totalorder %s226, 5
      %s228 = scalar_select %p227, %s226, 5
      %s229 = smul.addr %s228, 8
      %s230 = scalar_lea.vmem %s3, %s229
      %s231 = sadd.s32 %s20, %s21
      %s232 = smul.u32 3, %s231
      %p233 = scmp.lt.s32.totalorder %s20, 1
      %s234 = scalar_select %p233, %s20, 1
      %s235 = smul.addr %s234, 2
      %s236 = smul.addr %s235, 8
      %s237 = scalar_lea.vmem %s4, %s236
      %v238 = vld [vmem:[%s222] sm:$0xff]
      %v239 = vld [vmem:[%s222 + $0x8] sm:$0xff]
      %v240 = vld [vmem:[%s222 + $0x10] sm:$0xff]
      %v241 = vld [vmem:[%s1] sm:$0xff]
      %v242 = vld [vmem:[%s1 + $0x8] sm:$0xff]
      %v243 = vld [vmem:[%s1 + $0x10] sm:$0xff]
      %v244 = vld [vmem:[%s1 + $0x18] sm:$0xff]
      %v245 = vld [vmem:[%s1 + $0x20] sm:$0xff]
      %v246 = vld [vmem:[%s1 + $0x28] sm:$0xff]
      %v247 = vld [vmem:[%s1 + $0x30] sm:$0xff]
      %v248 = vld [vmem:[%s1 + $0x38] sm:$0xff]
      %v249 = vld [vmem:[%s1 + $0x40] sm:$0xff]
      %v250 = vld [vmem:[%s1 + $0x48] sm:$0xff]
      %v251 = vld [vmem:[%s1 + $0x50] sm:$0xff]
      %v252 = vld [vmem:[%s1 + $0x58] sm:$0xff]
      %v253 = vld [vmem:[%s1 + $0x60] sm:$0xff]
      %v254 = vld [vmem:[%s1 + $0x68] sm:$0xff]
      %v255 = vld [vmem:[%s1 + $0x70] sm:$0xff]
      %v256 = vld [vmem:[%s1 + $0x78] sm:$0xff]
      %v257 = vld [vmem:[%s1 + $0x80] sm:$0xff]
      %v258 = vld [vmem:[%s1 + $0x88] sm:$0xff]
      %v259 = vld [vmem:[%s1 + $0x90] sm:$0xff]
      %v260 = vld [vmem:[%s1 + $0x98] sm:$0xff]
      %v261 = vld [vmem:[%s1 + $0xa0] sm:$0xff]
      %v262 = vld [vmem:[%s1 + $0xa8] sm:$0xff]
      %v263 = vld [vmem:[%s1 + $0xb0] sm:$0xff]
      %v264 = vld [vmem:[%s1 + $0xb8] sm:$0xff]
      %v265 = vld [vmem:[%s1 + $0xc0] sm:$0xff]
      %v266 = vld [vmem:[%s1 + $0xc8] sm:$0xff]
      %v267 = vld [vmem:[%s1 + $0xd0] sm:$0xff]
      %v268 = vld [vmem:[%s1 + $0xd8] sm:$0xff]
      %v269 = vld [vmem:[%s1 + $0xe0] sm:$0xff]
      %v270 = vld [vmem:[%s1 + $0xe8] sm:$0xff]
      %v271 = vld [vmem:[%s1 + $0xf0] sm:$0xff]
      %v272 = vld [vmem:[%s1 + $0xf8] sm:$0xff]
      %v273 = vmul.f32 %v238, %v238
      %v274 = vmul.f32 %v239, %v239
      %v275 = vmul.f32 %v240, %v240
      %276 = vadd.xlane.f32.xlu0 %v273
      %v277 = vpop.xlane.xlu0 %276
      %278 = vadd.xlane.f32.xlu0 %v274
      %v279 = vpop.xlane.xlu0 %278
      %280 = vadd.xlane.f32.xlu0 %v275
      %v281 = vpop.xlane.xlu0 %280
      %282 = vmatprep.subr.mxu0 0.0
      %283 = vmatpush1.xpose.msra.mxu0 %v241
      %284 = vmatprep.subr.mxu0 0.0
      %285 = vmatpush1.xpose.msra.mxu0 %v242
      %286 = vmatprep.subr.mxu0 0.0
      %287 = vmatpush1.xpose.msra.mxu0 %v243
      %288 = vmatprep.subr.mxu0 0.0
      %289 = vmatpush1.xpose.msra.mxu0 %v244
      %290 = vmatprep.subr.mxu0 0.0
      %291 = vmatpush1.xpose.msra.mxu0 %v245
      %292 = vmatprep.subr.mxu0 0.0
      %293 = vmatpush1.xpose.msra.mxu0 %v246
      %294 = vmatprep.subr.mxu0 0.0
      %295 = vmatpush1.xpose.msra.mxu0 %v247
      %296 = vmatprep.subr.mxu0 0.0
      %297 = vmatpush1.xpose.msra.mxu0 %v248
      %298 = vmatprep.subr.mxu0 0.0
      %299 = vmatpush1.xpose.msra.mxu0 %v249
      %300 = vmatprep.subr.mxu0 0.0
      %301 = vmatpush1.xpose.msra.mxu0 %v250
      %302 = vmatprep.subr.mxu0 0.0
      %303 = vmatpush1.xpose.msra.mxu0 %v251
      %304 = vmatprep.subr.mxu0 0.0
      %305 = vmatpush1.xpose.msra.mxu0 %v252
      %306 = vmatprep.subr.mxu0 0.0
      %307 = vmatpush1.xpose.msra.mxu0 %v253
      %308 = vmatprep.subr.mxu0 0.0
      %309 = vmatpush1.xpose.msra.mxu0 %v254
      %310 = vmatprep.subr.mxu0 0.0
      %311 = vmatpush1.xpose.msra.mxu0 %v255
      %312 = vmatprep.subr.mxu0 0.0
      %313 = vmatpush1.xpose.msra.mxu0 %v256
      %314 = vmatprep.subr.mxu0 0.0
      %315 = vmatpush1.xpose.msra.mxu0 %v257
      %316 = vmatprep.subr.mxu0 0.0
      %317 = vmatpush1.xpose.msra.mxu0 %v258
      %318 = vmatprep.subr.mxu0 0.0
      %319 = vmatpush1.xpose.msra.mxu0 %v259
      %320 = vmatprep.subr.mxu0 0.0
      %321 = vmatpush1.xpose.msra.mxu0 %v260
      %322 = vmatprep.subr.mxu0 0.0
      %323 = vmatpush1.xpose.msra.mxu0 %v261
      %324 = vmatprep.subr.mxu0 0.0
      %325 = vmatpush1.xpose.msra.mxu0 %v262
      %326 = vmatprep.subr.mxu0 0.0
      %327 = vmatpush1.xpose.msra.mxu0 %v263
      %328 = vmatprep.subr.mxu0 0.0
      %329 = vmatpush1.xpose.msra.mxu0 %v264
      %330 = vmatprep.subr.mxu0 0.0
      %331 = vmatpush1.xpose.msra.mxu0 %v265
      %332 = vmatprep.subr.mxu0 0.0
      %333 = vmatpush1.xpose.msra.mxu0 %v266
      %334 = vmatprep.subr.mxu0 0.0
      %335 = vmatpush1.xpose.msra.mxu0 %v267
      %336 = vmatprep.subr.mxu0 0.0
      %337 = vmatpush1.xpose.msra.mxu0 %v268
      %338 = vmatprep.subr.mxu0 0.0
      %339 = vmatpush1.xpose.msra.mxu0 %v269
      %340 = vmatprep.subr.mxu0 0.0
      %341 = vmatpush1.xpose.msra.mxu0 %v270
      %342 = vmatprep.subr.mxu0 0.0
      %343 = vmatpush1.xpose.msra.mxu0 %v271
      %344 = vmatprep.subr.mxu0 0.0
      %345 = vmatpush1.xpose.msra.mxu0 %v272
      %346 = vmatprep.mubr.f32.mxu0 0.0
      %347 = vmatmul.mubr.f32.gmra.mrb[0].mxu0 %v238
      %v348 = vpop.f32.mrb[0].mxu0
      %v349 = vadd.f32 0.0, %v348
      %v350 = vpop.f32.mrb[0].mxu0
      %v351 = vadd.f32 0.0, %v350
      %352 = vmatprep.mubr.f32.mxu0 0.0
      %353 = vmatmul.mubr.f32.gmra.mrb[0].mxu0 %v239
      %v354 = vpop.f32.mrb[0].mxu0
      %v355 = vadd.f32 0.0, %v354
      %v356 = vpop.f32.mrb[0].mxu0
      %v357 = vadd.f32 0.0, %v356
      %358 = vmatprep.mubr.f32.mxu0 0.0
      %359 = vmatmul.mubr.f32.gmra.mrb[0].mxu0 %v240
      %v360 = vpop.f32.mrb[0].mxu0
      %v361 = vadd.f32 0.0, %v360
      %v362 = vpop.f32.mrb[0].mxu0
      %v363 = vadd.f32 0.0, %v362
      %364 = vdwg.mxu0
      %v365 = vld [vmem:[%s2] sm:$0x3]
      %v367 = vlaneseq
      %v368 = vshrl.u32 %v367, 7
      %v369 = vsub.s32 0, %v368
      %v370 = vrot.slane %v365, %v369
      %v371 = vlaneseq
      %v372 = vshrl.u32 %v371, 7
      %v373 = vsub.s32 1, %v372
      %v374 = vrot.slane %v365, %v373
      %v377 = vadd.f32 %v277, %v370
      %v378 = vadd.f32 %v277, %v374
      %v379 = vadd.f32 %v279, %v370
      %v380 = vadd.f32 %v279, %v374
      %v381 = vadd.f32 %v281, %v370
      %v382 = vadd.f32 %v281, %v374
      %v383 = vmul.f32 %v349, 2.0
      %v384 = vmul.f32 %v351, 2.0
      %v385 = vmul.f32 %v355, 2.0
      %v386 = vmul.f32 %v357, 2.0
      %v387 = vmul.f32 %v361, 2.0
      %v388 = vmul.f32 %v363, 2.0
      %v389 = vsub.f32 %v377, %v383
      %v390 = vsub.f32 %v378, %v384
      %v391 = vsub.f32 %v379, %v385
      %v392 = vsub.f32 %v380, %v386
      %v393 = vsub.f32 %v381, %v387
      %v394 = vsub.f32 %v382, %v388
      %v395 = vlaneseq
      %v396 = vand.u32 %v395, 127
      %v397 = vadd.s32 %v396, 128
      %vm398 = vcmp.lt.s32.totalorder %v396, 256
      %vm399 = vcmp.lt.s32.totalorder %v397, 256
      %v400 = vsel %vm398, %v389, 1e+30
      %v401 = vsel %vm399, %v390, 1e+30
      %v402 = vsel %vm398, %v391, 1e+30
      %v403 = vsel %vm399, %v392, 1e+30
      %v404 = vsel %vm398, %v393, 1e+30
      %v405 = vsel %vm399, %v394, 1e+30
      %v406 = vmin.f32 %v400, %v401
      %407 = vmin.xlane.f32.xlu0 %v406
      %v408 = vpop.xlane.xlu0 %407
      %v409 = vmin.f32 %v402, %v403
      %410 = vmin.xlane.f32.xlu0 %v409
      %v411 = vpop.xlane.xlu0 %410
      %v412 = vmin.f32 %v404, %v405
      %413 = vmin.xlane.f32.xlu0 %v412
      %v414 = vpop.xlane.xlu0 %413
      %vm415 = vcmp.eq.f32.partialorder %v400, %v408
      %vm416 = vcmp.eq.f32.partialorder %v401, %v408
      %vm417 = vcmp.eq.f32.partialorder %v402, %v411
      %vm418 = vcmp.eq.f32.partialorder %v403, %v411
      %vm419 = vcmp.eq.f32.partialorder %v404, %v414
      %vm420 = vcmp.eq.f32.partialorder %v405, %v414
      %v421 = vsel %vm415, %v396, 256
      %v422 = vsel %vm416, %v397, 256
      %v423 = vsel %vm417, %v396, 256
      %v424 = vsel %vm418, %v397, 256
      %v425 = vsel %vm419, %v396, 256
      %v426 = vsel %vm420, %v397, 256
      %vm427 = vcmp.lt.s32.totalorder %v421, %v422
      %v428 = vsel %vm427, %v421, %v422
      %v429 = vand.u32 %v428, 65535
      %v430 = vshra.s32 %v428, 16
      %v431 = vcvt.s32.f32 %v429
      %v432 = vcvt.s32.f32 %v430
      %433 = vmin.xlane.f32.xlu0 %v432
      %v434 = vpop.xlane.xlu0 %433
      %vm435 = vcmp.eq.f32.partialorder %v432, %v434
      %v436 = vsel %vm435, %v431, inf
      %437 = vmin.xlane.f32.xlu0 %v436
      %v438 = vpop.xlane.xlu0 %437
      %v439 = vcvt.f32.s32 %v438
      %v440 = vcvt.f32.s32 %v434
      %v441 = vshll.u32 %v440, 16
      %v442 = vadd.s32 %v441, %v439
      %vm443 = vcmp.lt.s32.totalorder %v423, %v424
      %v444 = vsel %vm443, %v423, %v424
      %v445 = vand.u32 %v444, 65535
      %v446 = vshra.s32 %v444, 16
      %v447 = vcvt.s32.f32 %v445
      %v448 = vcvt.s32.f32 %v446
      %449 = vmin.xlane.f32.xlu0 %v448
      %v450 = vpop.xlane.xlu0 %449
      %vm451 = vcmp.eq.f32.partialorder %v448, %v450
      %v452 = vsel %vm451, %v447, inf
      %453 = vmin.xlane.f32.xlu0 %v452
      %v454 = vpop.xlane.xlu0 %453
      %v455 = vcvt.f32.s32 %v454
      %v456 = vcvt.f32.s32 %v450
      %v457 = vshll.u32 %v456, 16
      %v458 = vadd.s32 %v457, %v455
      %vm459 = vcmp.lt.s32.totalorder %v425, %v426
      %v460 = vsel %vm459, %v425, %v426
      %v461 = vand.u32 %v460, 65535
      %v462 = vshra.s32 %v460, 16
      %v463 = vcvt.s32.f32 %v461
      %v464 = vcvt.s32.f32 %v462
      %465 = vmin.xlane.f32.xlu0 %v464
      %v466 = vpop.xlane.xlu0 %465
      %vm467 = vcmp.eq.f32.partialorder %v464, %v466
      %v468 = vsel %vm467, %v463, inf
      %469 = vmin.xlane.f32.xlu0 %v468
      %v470 = vpop.xlane.xlu0 %469
      %v471 = vcvt.f32.s32 %v470
      %v472 = vcvt.f32.s32 %v466
      %v473 = vshll.u32 %v472, 16
      %v474 = vadd.s32 %v473, %v471
      %vm475 = vcmp.eq.s32.totalorder %v396, %v442
      %vm476 = vcmp.eq.s32.totalorder %v397, %v442
      %vm477 = vcmp.eq.s32.totalorder %v396, %v458
      %vm478 = vcmp.eq.s32.totalorder %v397, %v458
      %vm479 = vcmp.eq.s32.totalorder %v396, %v474
      %vm480 = vcmp.eq.s32.totalorder %v397, %v474
      %v481 = vsel %vm475, 1, 0
      %v482 = vsel %vm476, 1, 0
      %v483 = vsel %vm477, 1, 0
      %v484 = vsel %vm478, 1, 0
      %v485 = vsel %vm479, 1, 0
      %v486 = vsel %vm480, 1, 0
      %v487 = vcvt.s32.f32 %v481
      %v488 = vcvt.s32.f32 %v482
      %v489 = vcvt.s32.f32 %v483
      %v490 = vcvt.s32.f32 %v484
      %v491 = vcvt.s32.f32 %v485
      %v492 = vcvt.s32.f32 %v486
      %493 = vmatprep.subr.mxu0 0.0
      %494 = vmatpush1.msra.mxu0 %v241
      %495 = vmatprep.subr.mxu0 0.0
      %496 = vmatpush1.msra.mxu0 %v242
      %497 = vmatprep.subr.mxu0 0.0
      %498 = vmatpush1.msra.mxu0 %v243
      %499 = vmatprep.subr.mxu0 0.0
      %500 = vmatpush1.msra.mxu0 %v244
      %501 = vmatprep.subr.mxu0 0.0
      %502 = vmatpush1.msra.mxu0 %v245
      %503 = vmatprep.subr.mxu0 0.0
      %504 = vmatpush1.msra.mxu0 %v246
      %505 = vmatprep.subr.mxu0 0.0
      %506 = vmatpush1.msra.mxu0 %v247
      %507 = vmatprep.subr.mxu0 0.0
      %508 = vmatpush1.msra.mxu0 %v248
      %509 = vmatprep.subr.mxu0 0.0
      %510 = vmatpush1.msra.mxu0 %v249
      %511 = vmatprep.subr.mxu0 0.0
      %512 = vmatpush1.msra.mxu0 %v250
      %513 = vmatprep.subr.mxu0 0.0
      %514 = vmatpush1.msra.mxu0 %v251
      %515 = vmatprep.subr.mxu0 0.0
      %516 = vmatpush1.msra.mxu0 %v252
      %517 = vmatprep.subr.mxu0 0.0
      %518 = vmatpush1.msra.mxu0 %v253
      %519 = vmatprep.subr.mxu0 0.0
      %520 = vmatpush1.msra.mxu0 %v254
      %521 = vmatprep.subr.mxu0 0.0
      %522 = vmatpush1.msra.mxu0 %v255
      %523 = vmatprep.subr.mxu0 0.0
      %524 = vmatpush1.msra.mxu0 %v256
      %525 = vmatprep.subr.mxu0 0.0
      %526 = vmatpush1.msra.mxu0 %v257
      %527 = vmatprep.subr.mxu0 0.0
      %528 = vmatpush1.msra.mxu0 %v258
      %529 = vmatprep.subr.mxu0 0.0
      %530 = vmatpush1.msra.mxu0 %v259
      %531 = vmatprep.subr.mxu0 0.0
      %532 = vmatpush1.msra.mxu0 %v260
      %533 = vmatprep.subr.mxu0 0.0
      %534 = vmatpush1.msra.mxu0 %v261
      %535 = vmatprep.subr.mxu0 0.0
      %536 = vmatpush1.msra.mxu0 %v262
      %537 = vmatprep.subr.mxu0 0.0
      %538 = vmatpush1.msra.mxu0 %v263
      %539 = vmatprep.subr.mxu0 0.0
      %540 = vmatpush1.msra.mxu0 %v264
      %541 = vmatprep.subr.mxu0 0.0
      %542 = vmatpush1.msra.mxu0 %v265
      %543 = vmatprep.subr.mxu0 0.0
      %544 = vmatpush1.msra.mxu0 %v266
      %545 = vmatprep.subr.mxu0 0.0
      %546 = vmatpush1.msra.mxu0 %v267
      %547 = vmatprep.subr.mxu0 0.0
      %548 = vmatpush1.msra.mxu0 %v268
      %549 = vmatprep.subr.mxu0 0.0
      %550 = vmatpush1.msra.mxu0 %v269
      %551 = vmatprep.subr.mxu0 0.0
      %552 = vmatpush1.msra.mxu0 %v270
      %553 = vmatprep.subr.mxu0 0.0
      %554 = vmatpush1.msra.mxu0 %v271
      %555 = vmatprep.subr.mxu0 0.0
      %556 = vmatpush1.msra.mxu0 %v272
      %557 = vmatprep.mubr.f32.mxu0 %v488
      %558 = vmatmul.mubr.f32.gmra.mrb[0].mxu0 %v487
      %v559 = vpop.f32.mrb[0].mxu0
      %v560 = vadd.f32 0.0, %v559
      %v561 = vpop.f32.mrb[0].mxu0
      %562 = vmatprep.mubr.f32.mxu0 %v490
      %563 = vmatmul.mubr.f32.gmra.mrb[0].mxu0 %v489
      %v564 = vpop.f32.mrb[0].mxu0
      %v565 = vadd.f32 0.0, %v564
      %v566 = vpop.f32.mrb[0].mxu0
      %567 = vmatprep.mubr.f32.mxu0 %v492
      %568 = vmatmul.mubr.f32.gmra.mrb[0].mxu0 %v491
      %v569 = vpop.f32.mrb[0].mxu0
      %v570 = vadd.f32 0.0, %v569
      %v571 = vpop.f32.mrb[0].mxu0
      %572 = vdwg.mxu0
      %573 = vst [vmem:[%s230] sm:$0xff] %v560
      %574 = vst [vmem:[%s230 + $0x8] sm:$0xff] %v565
      %575 = vst [vmem:[%s230 + $0x10] sm:$0xff] %v570
      %v576 = vlaneseq
      %v577 = vshrl.u32 %v576, 7
      %v578 = vadd.s32 %v577, 8
      %v579 = vadd.s32 %v577, 16
      %s580 = smul.u32 %s21, 24
      %v581 = vstv %s580
      %v582 = vadd.s32 %v577, %v581
      %v583 = vadd.s32 %v578, %v581
      %v584 = vadd.s32 %v579, %v581
      %vm585 = vcmp.lt.s32.totalorder %v582, 24
      %vm586 = vcmp.lt.s32.totalorder %v583, 24
      %vm587 = vcmp.lt.s32.totalorder %v584, 24
      %v588 = vsel %vm585, 1, 0
      %v589 = vsel %vm586, 1, 0
      %v590 = vsel %vm587, 1, 0
      %v591 = vcvt.s32.f32 %v588
      %v592 = vcvt.s32.f32 %v589
      %v593 = vcvt.s32.f32 %v590
      %v594 = vmul.f32 %v487, %v591
      %v595 = vmul.f32 %v488, %v591
      %v596 = vmul.f32 %v489, %v592
      %v597 = vmul.f32 %v490, %v592
      %v598 = vmul.f32 %v491, %v593
      %v599 = vmul.f32 %v492, %v593
      %v600 = vadd.f32 %v594, %v596
      %v601 = vadd.f32 %v600, %v598
      %v602 = vrot.slane %v601, 4
      %v603 = vadd.f32 %v601, %v602
      %v604 = vrot.slane %v603, 2
      %v605 = vadd.f32 %v603, %v604
      %v606 = vrot.slane %v605, 1
      %v607 = vadd.f32 %v605, %v606
      %v608 = vadd.f32 %v595, %v597
      %v609 = vadd.f32 %v608, %v599
      %v610 = vrot.slane %v609, 4
      %v611 = vadd.f32 %v609, %v610
      %v612 = vrot.slane %v611, 2
      %v613 = vadd.f32 %v611, %v612
      %v614 = vrot.slane %v613, 1
      %v615 = vadd.f32 %v613, %v614
      %p616 = scmp.eq.s32.totalorder %s21, 0
      // Predicated region
      $region33: #{motion_vqvae_forward.24} parent=31 // pred_check
        %p617 = pneg %p616
      $region34: #{motion_vqvae_forward.24} parent=31 // pred_check_branch
        %619 = sbr.rel (%p617) target = $region36
      $region35: #{motion_vqvae_forward.24} parent=31 // pred_region
        %620 = vst [vmem:[%s237] sm:$0xff] 0.0
        %621 = vst [vmem:[%s237 + $0x8] sm:$0xff] 0.0
      $region36: #{motion_vqvae_forward.24} parent=31 // pred_fallthru
        _
      %v622 = vld [vmem:[%s237] sm:$0xff]
      %v623 = vld [vmem:[%s237 + $0x8] sm:$0xff]
      %v624 = vadd.f32 %v622, %v607
      %v625 = vadd.f32 %v623, %v615
      %626 = vst [vmem:[%s237] sm:$0xff] %v624
      %627 = vst [vmem:[%s237 + $0x8] sm:$0xff] %v625
      %s628 = sadd.s32 %s20, %s21
      %s629 = smul.u32 3, %s628
      %p630 = scmp.lt.s32.totalorder %s629, 5
      %s631 = scalar_select %p630, %s629, 5
      %s632 = smul.addr %s631, 8
      %s633 = scalar_lea.vmem %s3, %s632
      %p634 = scmp.lt.s32.totalorder %s20, 1
      %s635 = scalar_select %p634, %s20, 1
      %s636 = smul.addr %s635, 2
      %s637 = smul.addr %s636, 8
      %s638 = scalar_lea.vmem %s4, %s637
      // Predicated region
      $region37: #{motion_vqvae_forward.24} parent=31 // pred_check
        %p639 = pneg %p118
      $region38: #{motion_vqvae_forward.24} parent=31 // pred_check_branch
        %641 = sbr.rel (%p639) target = $region40
      $region39: #{motion_vqvae_forward.24} parent=31 // pred_region
        %s642 = sadd.s32 %s20, %s21
        %s643 = smul.u32 3, %s642
      $region40: #{motion_vqvae_forward.24} parent=31 // pred_fallthru
        _
      // Predicated region
      $region41: #{motion_vqvae_forward.24} parent=31 // pred_check
        %p644 = pneg %p144
      $region42: #{motion_vqvae_forward.24} parent=31 // pred_check_branch
        %646 = sbr.rel (%p644) target = $region44
      $region43: #{motion_vqvae_forward.24} parent=31 // pred_region
        _
      $region44: #{motion_vqvae_forward.24} parent=31 // pred_fallthru
        _
    $region32: #{motion_vqvae_forward.24} parent=5 // pred_fallthru
      _
    %p647 = scmp.le.s32.totalorder 2, %s11
    // Predicated region
    $region45: #{motion_vqvae_forward.24} parent=5 // pred_check
      %p648 = pneg %p647
    $region46: #{motion_vqvae_forward.24} parent=5 // pred_check_branch
      %650 = sbr.rel (%p648) target = $region48
    $region47: #{motion_vqvae_forward.24} parent=5 // pred_region
      %s651 = ssub.s32 %s11, 2
      // Predicated region
      $region49: #{motion_vqvae_forward.24} parent=47 // pred_check
        %p652 = pneg %p124
      $region50: #{motion_vqvae_forward.24} parent=47 // pred_check_branch
        %654 = sbr.rel (%p652) target = $region52
      $region51: #{motion_vqvae_forward.24} parent=47 // pred_region
        %s655 = sadd.s32 %s22, %s23
        %s656 = smul.u32 3, %s655
        %p657 = scmp.lt.s32.totalorder %s656, 5
        %s658 = scalar_select %p657, %s656, 5
        %s659 = smul.addr %s658, 8
        %s660 = scalar_lea.vmem %s3, %s659
      $region52: #{motion_vqvae_forward.24} parent=47 // pred_fallthru
        _
      // Predicated region
      $region53: #{motion_vqvae_forward.24} parent=47 // pred_check
        %p661 = pneg %p150
      $region54: #{motion_vqvae_forward.24} parent=47 // pred_check_branch
        %663 = sbr.rel (%p661) target = $region56
      $region55: #{motion_vqvae_forward.24} parent=47 // pred_region
        %p664 = scmp.lt.s32.totalorder %s22, 1
        %s665 = scalar_select %p664, %s22, 1
        %s666 = smul.addr %s665, 2
        %s667 = smul.addr %s666, 8
        %s668 = scalar_lea.vmem %s4, %s667
      $region56: #{motion_vqvae_forward.24} parent=47 // pred_fallthru
        _
    $region48: #{motion_vqvae_forward.24} parent=5 // pred_fallthru
      _
  $region6: #{motion_vqvae_forward.24} parent=0 // loop_footer
    %s15 = sadd.s32 1, %s11
  $region7: #{motion_vqvae_forward.24} parent=0 // loop_footer_branch
    %10 = sbr.rel target = $region3
  $region8: #{motion_vqvae_forward.24} parent=0 // loop_exit
    _

// kernel: motion_vqvae_forward.25
$region0: #{motion_vqvae_forward.25}
  #allocation0 [shape = 'u32[]', space=smem, size = 0x4, offset = 0x4, fixed_abs, tag = 'smem constant byte address 0x4 - core index']
  #allocation1 [shape = 'u32[144,128]{1,0:T(1,128)}', space=vmem, size = 0x12000, scoped, tag = 'internal scratch']
  #allocation2 [shape = 'f32[48,128]{1,0:T(8,128)}', space=vmem, size = 0x6000, scoped, tag = 'scratch operand']
  %s0 = inlined_call_operand.vmem [shape: bf16[48,1152], index: 0, kind: input, shape index: {}]
  %s1 = inlined_call_operand.vmem [shape: bf16[1152,128], index: 1, kind: input, shape index: {}]
  %s2 = inlined_call_operand.vmem [shape: f32[1,128], index: 2, kind: input, shape index: {}]
  %s3 = inlined_call_operand.vmem [shape: f32[48,128], index: 3, kind: output, shape index: {}]
  %s4 = sld [smem:[#allocation0]]
  $region79: #{motion_vqvae_forward.25} parent=0
    _
  %s6 = ssub.s32 1, %s4
  %s7 = scalar_select 0, %s6, %s4
  $region1: #{motion_vqvae_forward.25} parent=0
    #allocation3 [shape = 'u8[73728]{0}', space=vmem, size = 0x12000, scoped, tag = 'input window, operand 0']
    loop: start=0, step=1, limit=5
    $region2: #{motion_vqvae_forward.25} parent=1 // loop_pre_header
      _
    $region3: #{motion_vqvae_forward.25} parent=1 // loop_header
      %s9 = sphi 0, %s13
      %p10 = scmp.ge.s32.totalorder %s9, 5
      %s16 = sphi 0, %s35
      %s17 = sphi 0, %s31
      %s18 = sphi 0, %s27
      %s19 = sphi 0, %s16
      %s20 = sphi 0, %s17
      %s21 = sphi 0, %s18
      %s22 = sphi 0, %s19
      %s23 = sphi 0, %s20
      %s24 = sphi 0, %s21
      %s40 = sphi 0, %s42
      %s43 = sphi 0, %s40
      %s44 = sphi 0, %s43
      %s60 = sphi 0, %s44
      %s68 = sphi 0, %s70
      %s71 = sphi 0, %s68
      %s72 = sphi 0, %s71
      %s88 = sphi 0, %s72
      %s94 = sphi 0, %s96
      %s97 = sphi 0, %s94
      %s98 = sphi 0, %s97
      %s114 = sphi 0, %s98
      %s122 = sphi 0, %s124
      %s125 = sphi 0, %s122
      %s126 = sphi 0, %s125
      %s142 = sphi 0, %s126
    $region4: #{motion_vqvae_forward.25} parent=1 // loop_header_branch
      %12 = sbr.rel (%p10) target = $region8
    $region5: #{motion_vqvae_forward.25} parent=1 // loop_body
      %s14 = ssub.s32 %s9, 1
      %s15 = ssub.s32 %s9, 2
      %s25 = sadd.s32 1, %s18
      %p26 = scmp.ge.s32.totalorder %s25, 3
      %s27 = scalar_select %p26, 0, %s25
      %s28 = sadd.s32 1, %s17
      %s29 = scalar_select %p26, %s28, %s17
      %p30 = scmp.ge.s32.totalorder %s29, 1
      %s31 = scalar_select %p30, 0, %s29
      %s32 = sadd.s32 1, %s16
      %s33 = scalar_select %p30, %s32, %s16
      %p34 = scmp.ge.s32.totalorder %s33, 1
      %s35 = scalar_select %p34, 0, %s33
      %s36 = ssub.s32 %s16, %s35
      %s37 = ssub.s32 %s18, %s27
      %s38 = sor.u32 %s36, %s37
      %p39 = scmp.eq.s32.totalorder %s38, 0
      %s41 = sadd.s32 %s40, 1
      %s42 = scalar_select %p39, %s40, %s41
      %p45 = pneg %p39
      %p46 = scmp.eq.s32.totalorder %s9, 2
      %p47 = por %p45, %p46
      %p48 = scmp.ne.s32.totalorder %s40, %s43
      %p49 = scmp.eq.s32.totalorder %s9, 0
      %p50 = por %p48, %p49
      %p51 = scmp.ne.s32.totalorder %s40, %s43
      %p52 = scmp.eq.s32.totalorder %s14, 2
      %p53 = por %p51, %p52
      %p54 = scmp.ne.s32.totalorder %s43, %s44
      %p55 = scmp.eq.s32.totalorder %s14, 0
      %p56 = por %p54, %p55
      %p57 = scmp.ne.s32.totalorder %s43, %s44
      %p58 = scmp.eq.s32.totalorder %s15, 2
      %p59 = por %p57, %p58
      %p61 = scmp.ne.s32.totalorder %s44, %s60
      %p62 = scmp.eq.s32.totalorder %s15, 0
      %p63 = por %p61, %p62
      %s64 = ssub.s32 %s18, %s27
      %s65 = ssub.s32 %s17, %s31
      %s66 = sor.u32 %s64, %s65
      %p67 = scmp.eq.s32.totalorder %s66, 0
      %s69 = sadd.s32 %s68, 1
      %s70 = scalar_select %p67, %s68, %s69
      %p73 = pneg %p67
      %p74 = scmp.eq.s32.totalorder %s9, 2
      %p75 = por %p73, %p74
      %p76 = scmp.ne.s32.totalorder %s68, %s71
      %p77 = scmp.eq.s32.totalorder %s9, 0
      %p78 = por %p76, %p77
      %p79 = scmp.ne.s32.totalorder %s68, %s71
      %p80 = scmp.eq.s32.totalorder %s14, 2
      %p81 = por %p79, %p80
      %p82 = scmp.ne.s32.totalorder %s71, %s72
      %p83 = scmp.eq.s32.totalorder %s14, 0
      %p84 = por %p82, %p83
      %p85 = scmp.ne.s32.totalorder %s71, %s72
      %p86 = scmp.eq.s32.totalorder %s15, 2
      %p87 = por %p85, %p86
      %p89 = scmp.ne.s32.totalorder %s72, %s88
      %p90 = scmp.eq.s32.totalorder %s15, 0
      %p91 = por %p89, %p90
      %s92 = ssub.s32 %s17, %s31
      %p93 = scmp.eq.s32.totalorder %s92, 0
      %s95 = sadd.s32 %s94, 1
      %s96 = scalar_select %p93, %s94, %s95
      %p99 = pneg %p93
      %p100 = scmp.eq.s32.totalorder %s9, 2
      %p101 = por %p99, %p100
      %p102 = scmp.ne.s32.totalorder %s94, %s97
      %p103 = scmp.eq.s32.totalorder %s9, 0
      %p104 = por %p102, %p103
      %p105 = scmp.ne.s32.totalorder %s94, %s97
      %p106 = scmp.eq.s32.totalorder %s14, 2
      %p107 = por %p105, %p106
      %p108 = scmp.ne.s32.totalorder %s97, %s98
      %p109 = scmp.eq.s32.totalorder %s14, 0
      %p110 = por %p108, %p109
      %p111 = scmp.ne.s32.totalorder %s97, %s98
      %p112 = scmp.eq.s32.totalorder %s15, 2
      %p113 = por %p111, %p112
      %p115 = scmp.ne.s32.totalorder %s98, %s114
      %p116 = scmp.eq.s32.totalorder %s15, 0
      %p117 = por %p115, %p116
      %s118 = ssub.s32 %s16, %s35
      %s119 = ssub.s32 %s17, %s31
      %s120 = sor.u32 %s118, %s119
      %p121 = scmp.eq.s32.totalorder %s120, 0
      %s123 = sadd.s32 %s122, 1
      %s124 = scalar_select %p121, %s122, %s123
      %p127 = pneg %p121
      %p128 = scmp.eq.s32.totalorder %s9, 2
      %p129 = por %p127, %p128
      %p130 = scmp.ne.s32.totalorder %s122, %s125
      %p131 = scmp.eq.s32.totalorder %s9, 0
      %p132 = por %p130, %p131
      %p133 = scmp.ne.s32.totalorder %s122, %s125
      %p134 = scmp.eq.s32.totalorder %s14, 2
      %p135 = por %p133, %p134
      %p136 = scmp.ne.s32.totalorder %s125, %s126
      %p137 = scmp.eq.s32.totalorder %s14, 0
      %p138 = por %p136, %p137
      %p139 = scmp.ne.s32.totalorder %s125, %s126
      %p140 = scmp.eq.s32.totalorder %s15, 2
      %p141 = por %p139, %p140
      %p143 = scmp.ne.s32.totalorder %s126, %s142
      %p144 = scmp.eq.s32.totalorder %s15, 0
      %p145 = por %p143, %p144
      %p146 = scmp.le.s32.totalorder 1, %s9
      %p147 = scmp.lt.s32.totalorder %s9, 4
      %p148 = pnand %p146, %p147
      %p149 = pneg %p148
      // Predicated region
      $region9: #{motion_vqvae_forward.25} parent=5 // pred_check
        _
      $region10: #{motion_vqvae_forward.25} parent=5 // pred_check_branch
        %151 = sbr.rel (%p148) target = $region12
      $region11: #{motion_vqvae_forward.25} parent=5 // pred_region
        %s152 = ssub.s32 %s9, 1
        // Predicated region
        $region13: #{motion_vqvae_forward.25} parent=11 // pred_check
          %p153 = pneg %p110
        $region14: #{motion_vqvae_forward.25} parent=11 // pred_check_branch
          %155 = sbr.rel (%p153) target = $region16
        $region15: #{motion_vqvae_forward.25} parent=11 // pred_region
          %p156 = scmp.lt.s32.totalorder %s20, 0
          %s157 = scalar_select %p156, %s20, 0
          %s158 = scalar_lea.vmem %s2, %s157
        $region16: #{motion_vqvae_forward.25} parent=11 // pred_fallthru
          _
      $region12: #{motion_vqvae_forward.25} parent=5 // pred_fallthru
        _
      %p159 = scmp.lt.s32.totalorder %s9, 3
      // Predicated region
      $region17: #{motion_vqvae_forward.25} parent=5 // pred_check
        %p160 = pneg %p159
      $region18: #{motion_vqvae_forward.25} parent=5 // pred_check_branch
        %162 = sbr.rel (%p160) target = $region20
      $region19: #{motion_vqvae_forward.25} parent=5 // pred_region
        // Predicated region
        $region21: #{motion_vqvae_forward.25} parent=19 // pred_check
          %p163 = pneg %p50
        $region22: #{motion_vqvae_forward.25} parent=19 // pred_check_branch
          %165 = sbr.rel (%p163) target = $region24
        $region23: #{motion_vqvae_forward.25} parent=19 // pred_region
          %s166 = sand.u32 %s40, 1
          %s167 = sand.u32 %s40, 1
          %s168 = smul.addr %s167, 72
          %s169 = scalar_lea.vmem [#allocation3], %s168
          %s170 = smul.u32 6, %s16
          %s171 = smul.u32 3, %s18
          %s172 = smul.addr %s170, 9
          %s173 = sadd.s32 %s171, %s172
          %s174 = smul.addr %s173, 4
          %s175 = scalar_lea.vmem %s0, %s174
          // Predicated region
          $region25: #{motion_vqvae_forward.25} parent=23 // pred_check
            _
          $region26: #{motion_vqvae_forward.25} parent=23 // pred_check_branch
            %177 = sbr.rel (0) target = $region28
          $region27: #{motion_vqvae_forward.25} parent=23 // pred_region
            // Predicated region
            $region29: #{motion_vqvae_forward.25} parent=27 // pred_check
              _
            $region30: #{motion_vqvae_forward.25} parent=27 // pred_check_branch
              %179 = sbr.rel (0) target = $region32
            $region31: #{motion_vqvae_forward.25} parent=27 // pred_region
              %s180 = scalar_lea.vmem %s175, 8
              %s181 = scalar_lea.vmem %s169, 8 [#allocation3]
              loop: start=0, step=1, limit=1
              $region33: #{motion_vqvae_forward.25} parent=31 // loop_pre_header
                _
              $region34: #{motion_vqvae_forward.25} parent=31 // loop_header
                %s183 = sphi 0, %s187
                %p184 = scmp.ge.s32.totalorder %s183, 1
                %s188 = sphi %s175, %s175
                %s189 = sphi %s169, %s169
              $region35: #{motion_vqvae_forward.25} parent=31 // loop_header_branch
                %186 = sbr.rel (%p184) target = $region39
              $region36: #{motion_vqvae_forward.25} parent=31 // loop_body
                %v190 = vld [vmem:[%s188] sm:$0xff]
                %191 = vst [vmem:[%s189] sm:$0xff] %v190
                %v192 = vld [vmem:[%s188 + $0x24] sm:$0xff]
                %193 = vst [vmem:[%s189 + $0xc] sm:$0xff] %v192
                %v194 = vld [vmem:[%s188 + $0x48] sm:$0xff]
                %195 = vst [vmem:[%s189 + $0x18] sm:$0xff] %v194
                %v196 = vld [vmem:[%s188 + $0x6c] sm:$0xff]
                %197 = vst [vmem:[%s189 + $0x24] sm:$0xff] %v196
                %v198 = vld [vmem:[%s188 + $0x90] sm:$0xff]
                %199 = vst [vmem:[%s189 + $0x30] sm:$0xff] %v198
                %v200 = vld [vmem:[%s188 + $0xb4] sm:$0xff]
                %201 = vst [vmem:[%s189 + $0x3c] sm:$0xff] %v200
              $region37: #{motion_vqvae_forward.25} parent=31 // loop_footer
                %s187 = sadd.s32 1, %s183
              $region38: #{motion_vqvae_forward.25} parent=31 // loop_footer_branch
                %182 = sbr.rel target = $region34
              $region39: #{motion_vqvae_forward.25} parent=31 // loop_exit
                _
              loop: start=0, step=1, limit=1
              $region40: #{motion_vqvae_forward.25} parent=31 // loop_pre_header
                _
              $region41: #{motion_vqvae_forward.25} parent=31 // loop_header
                %s204 = sphi 0, %s208
                %p205 = scmp.ge.s32.totalorder %s204, 1
                %s209 = sphi %s180, %s180
                %s210 = sphi %s181, %s181
              $region42: #{motion_vqvae_forward.25} parent=31 // loop_header_branch
                %207 = sbr.rel (%p205) target = $region46
              $region43: #{motion_vqvae_forward.25} parent=31 // loop_body
                %v211 = vld [vmem:[%s209] sm:$0xf]
                %212 = vst [vmem:[%s210] sm:$0xf] %v211
                %v213 = vld [vmem:[%s209 + $0x24] sm:$0xf]
                %214 = vst [vmem:[%s210 + $0xc] sm:$0xf] %v213
                %v215 = vld [vmem:[%s209 + $0x48] sm:$0xf]
                %216 = vst [vmem:[%s210 + $0x18] sm:$0xf] %v215
                %v217 = vld [vmem:[%s209 + $0x6c] sm:$0xf]
                %218 = vst [vmem:[%s210 + $0x24] sm:$0xf] %v217
                %v219 = vld [vmem:[%s209 + $0x90] sm:$0xf]
                %220 = vst [vmem:[%s210 + $0x30] sm:$0xf] %v219
                %v221 = vld [vmem:[%s209 + $0xb4] sm:$0xf]
                %222 = vst [vmem:[%s210 + $0x3c] sm:$0xf] %v221
              $region44: #{motion_vqvae_forward.25} parent=31 // loop_footer
                %s208 = sadd.s32 1, %s204
              $region45: #{motion_vqvae_forward.25} parent=31 // loop_footer_branch
                %203 = sbr.rel target = $region41
              $region46: #{motion_vqvae_forward.25} parent=31 // loop_exit
                _
            $region32: #{motion_vqvae_forward.25} parent=27 // pred_fallthru
              _
          $region28: #{motion_vqvae_forward.25} parent=23 // pred_fallthru
            _
          %223 = vnop
        $region24: #{motion_vqvae_forward.25} parent=19 // pred_fallthru
          _
        // Predicated region
        $region47: #{motion_vqvae_forward.25} parent=19 // pred_check
          %p224 = pneg %p78
        $region48: #{motion_vqvae_forward.25} parent=19 // pred_check_branch
          %226 = sbr.rel (%p224) target = $region50
        $region49: #{motion_vqvae_forward.25} parent=19 // pred_region
          %s227 = smul.u32 48, %s18
          %p228 = scmp.lt.s32.totalorder %s227, 143
          %s229 = scalar_select %p228, %s227, 143
          %p230 = scmp.lt.s32.totalorder %s17, 0
          %s231 = scalar_select %p230, %s17, 0
          %s232 = sadd.s32 %s231, %s229
          %s233 = smul.addr %s232, 4
          %s234 = scalar_lea.vmem %s1, %s233
          %s235 = smul.u32 48, %s18
        $region50: #{motion_vqvae_forward.25} parent=19 // pred_fallthru
          _
      $region20: #{motion_vqvae_forward.25} parent=5 // pred_fallthru
        _
      %p236 = scmp.le.s32.totalorder 1, %s9
      %p237 = scmp.lt.s32.totalorder %s9, 4
      %p238 = pnand %p236, %p237
      %p239 = pneg %p238
      // Predicated region
      $region51: #{motion_vqvae_forward.25} parent=5 // pred_check
        _
      $region52: #{motion_vqvae_forward.25} parent=5 // pred_check_branch
        %241 = sbr.rel (%p238) target = $region54
      $region53: #{motion_vqvae_forward.25} parent=5 // pred_region
        %s242 = ssub.s32 %s9, 1
        %s243 = sand.u32 %s43, 1
        %s244 = sand.u32 %s43, 1
        %s245 = smul.addr %s244, 72
        %s246 = scalar_lea.vmem [#allocation3], %s245
        // Predicated region
        $region55: #{motion_vqvae_forward.25} parent=53 // pred_check
          %p247 = pneg %p56
        $region56: #{motion_vqvae_forward.25} parent=53 // pred_check_branch
          %249 = sbr.rel (%p247) target = $region58
        $region57: #{motion_vqvae_forward.25} parent=53 // pred_region
          _
        $region58: #{motion_vqvae_forward.25} parent=53 // pred_fallthru
          _
        %s250 = sand.u32 %s43, 1
        %s251 = sand.u32 %s43, 1
        %s252 = smul.addr %s251, 72
        %s253 = scalar_lea.vmem [#allocation3], %s252
        %p254 = pneg %p56
        %p255 = pneg %p53
        %s256 = smul.u32 48, %s21
        %p257 = scmp.lt.s32.totalorder %s256, 143
        %s258 = scalar_select %p257, %s256, 143
        %p259 = scmp.lt.s32.totalorder %s20, 0
        %s260 = scalar_select %p259, %s20, 0
        %s261 = sadd.s32 %s260, %s258
        %s262 = smul.addr %s261, 4
        %s263 = scalar_lea.vmem %s1, %s262
        %p264 = pneg %p84
        %p265 = pneg %p81
        %p266 = scmp.lt.s32.totalorder %s20, 0
        %s267 = scalar_select %p266, %s20, 0
        %s268 = scalar_lea.vmem %s2, %s267
        %p269 = pneg %p110
        %p270 = pneg %p107
        %p271 = pneg %p138
        %p272 = pneg %p135
        %s273 = smul.u32 6, %s19
        %p274 = scmp.lt.s32.totalorder %s273, 5
        %s275 = scalar_select %p274, %s273, 5
        %p276 = scmp.lt.s32.totalorder %s20, 0
        %s277 = scalar_select %p276, %s20, 0
        %s278 = sadd.s32 %s277, %s275
        %s279 = smul.addr %s278, 8
        %s280 = scalar_lea.vmem %s3, %s279
        %s281 = smul.u32 6, %s19
        %s282 = smul.u32 3, %s21
        %s283 = smul.u32 48, %s21
        %p284 = scmp.lt.s32.totalorder %s283, 143
        %s285 = scalar_select %p284, %s283, 143
        %p286 = scmp.lt.s32.totalorder %s20, 0
        %s287 = scalar_select %p286, %s20, 0
        %s288 = sadd.s32 %s287, %s285
        %s289 = smul.addr %s288, 4
        %s290 = scalar_lea.vmem %s1, %s289
        %s291 = smul.u32 48, %s21
        %p292 = scmp.lt.s32.totalorder %s20, 0
        %s293 = scalar_select %p292, %s20, 0
        %s294 = scalar_lea.vmem %s2, %s293
        %s295 = smul.u32 6, %s19
        %p296 = scmp.lt.s32.totalorder %s295, 5
        %s297 = scalar_select %p296, %s295, 5
        %p298 = scmp.lt.s32.totalorder %s20, 0
        %s299 = scalar_select %p298, %s20, 0
        %s300 = sadd.s32 %s299, %s297
        %s301 = smul.addr %s300, 8
        %s302 = scalar_lea.vmem %s3, %s301
        %s303 = smul.u32 6, %s19
        %p305 = scmp.eq.s32.totalorder %s21, 0
        // Predicated region
        $region59: #{motion_vqvae_forward.25} parent=53 // pred_check
          %p306 = pneg %p305
        $region60: #{motion_vqvae_forward.25} parent=53 // pred_check_branch
          %308 = sbr.rel (%p306) target = $region62
        $region61: #{motion_vqvae_forward.25} parent=53 // pred_region
          %309 = vst [vmem:[#allocation2] sm:$0xff] 0.0
          %310 = vst [vmem:[#allocation2 + $0x8] sm:$0xff] 0.0
          %311 = vst [vmem:[#allocation2 + $0x10] sm:$0xff] 0.0
          %312 = vst [vmem:[#allocation2 + $0x18] sm:$0xff] 0.0
          %313 = vst [vmem:[#allocation2 + $0x20] sm:$0xff] 0.0
          %314 = vst [vmem:[#allocation2 + $0x28] sm:$0xff] 0.0
        $region62: #{motion_vqvae_forward.25} parent=53 // pred_fallthru
          _
        %v315 = vld [vmem:[#allocation2] sm:$0xff]
        %v316 = vld [vmem:[#allocation2 + $0x8] sm:$0xff]
        %v317 = vld [vmem:[#allocation2 + $0x10] sm:$0xff]
        %v318 = vld [vmem:[#allocation2 + $0x18] sm:$0xff]
        %v319 = vld [vmem:[#allocation2 + $0x20] sm:$0xff]
        %v320 = vld [vmem:[#allocation2 + $0x28] sm:$0xff]
        %v321 = vld [vmem:[%s246] sm:$0xff]
        %v322 = vld [vmem:[%s246 + $0x8] sm:$0xf]
        %v323 = vld [vmem:[%s246 + $0xc] sm:$0xff]
        %v324 = vld [vmem:[%s246 + $0x14] sm:$0xf]
        %v325 = vld [vmem:[%s246 + $0x18] sm:$0xff]
        %v326 = vld [vmem:[%s246 + $0x20] sm:$0xf]
        %v327 = vld [vmem:[%s246 + $0x24] sm:$0xff]
        %v328 = vld [vmem:[%s246 + $0x2c] sm:$0xf]
        %v329 = vld [vmem:[%s246 + $0x30] sm:$0xff]
        %v330 = vld [vmem:[%s246 + $0x38] sm:$0xf]
        %v331 = vld [vmem:[%s246 + $0x3c] sm:$0xff]
        %v332 = vld [vmem:[%s246 + $0x44] sm:$0xf]
        %v333 = vld [vmem:[%s290] sm:$0xf]
        %v334 = vld [vmem:[%s290 + $0x4] sm:$0xf]
        %v335 = vld [vmem:[%s290 + $0x8] sm:$0xf]
        %v336 = vld [vmem:[%s290 + $0xc] sm:$0xf]
        %v337 = vld [vmem:[%s290 + $0x10] sm:$0xf]
        %v338 = vld [vmem:[%s290 + $0x14] sm:$0xf]
        %v339 = vld [vmem:[%s290 + $0x18] sm:$0xf]
        %v340 = vld [vmem:[%s290 + $0x1c] sm:$0xf]
        %v341 = vld [vmem:[%s290 + $0x20] sm:$0xf]
        %v342 = vld [vmem:[%s290 + $0x24] sm:$0xf]
        %v343 = vld [vmem:[%s290 + $0x28] sm:$0xf]
        %v344 = vld [vmem:[%s290 + $0x2c] sm:$0xf]
        %v345 = vld [vmem:[%s290 + $0x30] sm:$0xf]
        %v346 = vld [vmem:[%s290 + $0x34] sm:$0xf]
        %v347 = vld [vmem:[%s290 + $0x38] sm:$0xf]
        %v348 = vld [vmem:[%s290 + $0x3c] sm:$0xf]
        %v349 = vld [vmem:[%s290 + $0x40] sm:$0xf]
        %v350 = vld [vmem:[%s290 + $0x44] sm:$0xf]
        %v351 = vld [vmem:[%s290 + $0x48] sm:$0xf]
        %v352 = vld [vmem:[%s290 + $0x4c] sm:$0xf]
        %v353 = vld [vmem:[%s290 + $0x50] sm:$0xf]
        %v354 = vld [vmem:[%s290 + $0x54] sm:$0xf]
        %v355 = vld [vmem:[%s290 + $0x58] sm:$0xf]
        %v356 = vld [vmem:[%s290 + $0x5c] sm:$0xf]
        %v357 = vld [vmem:[%s290 + $0x60] sm:$0xf]
        %v358 = vld [vmem:[%s290 + $0x64] sm:$0xf]
        %v359 = vld [vmem:[%s290 + $0x68] sm:$0xf]
        %v360 = vld [vmem:[%s290 + $0x6c] sm:$0xf]
        %v361 = vld [vmem:[%s290 + $0x70] sm:$0xf]
        %v362 = vld [vmem:[%s290 + $0x74] sm:$0xf]
        %v363 = vld [vmem:[%s290 + $0x78] sm:$0xf]
        %v364 = vld [vmem:[%s290 + $0x7c] sm:$0xf]
        %v365 = vld [vmem:[%s290 + $0x80] sm:$0xf]
        %v366 = vld [vmem:[%s290 + $0x84] sm:$0xf]
        %v367 = vld [vmem:[%s290 + $0x88] sm:$0xf]
        %v368 = vld [vmem:[%s290 + $0x8c] sm:$0xf]
        %v369 = vld [vmem:[%s290 + $0x90] sm:$0xf]
        %v370 = vld [vmem:[%s290 + $0x94] sm:$0xf]
        %v371 = vld [vmem:[%s290 + $0x98] sm:$0xf]
        %v372 = vld [vmem:[%s290 + $0x9c] sm:$0xf]
        %v373 = vld [vmem:[%s290 + $0xa0] sm:$0xf]
        %v374 = vld [vmem:[%s290 + $0xa4] sm:$0xf]
        %v375 = vld [vmem:[%s290 + $0xa8] sm:$0xf]
        %v376 = vld [vmem:[%s290 + $0xac] sm:$0xf]
        %v377 = vld [vmem:[%s290 + $0xb0] sm:$0xf]
        %v378 = vld [vmem:[%s290 + $0xb4] sm:$0xf]
        %v379 = vld [vmem:[%s290 + $0xb8] sm:$0xf]
        %v380 = vld [vmem:[%s290 + $0xbc] sm:$0xf]
        %v393 = vunpack.c.l.b16 %v321
        %v394 = vunpack.c.h.b16 %v321
        %v395 = vunpack.c.l.b16 %v322
        %v396 = vunpack.c.l.b16 %v323
        %v397 = vunpack.c.h.b16 %v323
        %v398 = vunpack.c.l.b16 %v324
        %v399 = vunpack.c.l.b16 %v325
        %v400 = vunpack.c.h.b16 %v325
        %v401 = vunpack.c.l.b16 %v326
        %v402 = vunpack.c.l.b16 %v327
        %v403 = vunpack.c.h.b16 %v327
        %v404 = vunpack.c.l.b16 %v328
        %v405 = vunpack.c.l.b16 %v329
        %v406 = vunpack.c.h.b16 %v329
        %v407 = vunpack.c.l.b16 %v330
        %v408 = vunpack.c.l.b16 %v331
        %v409 = vunpack.c.h.b16 %v331
        %v410 = vunpack.c.l.b16 %v332
        %v411 = vpack.c.b16 %v396, %v393
        %v412 = vpack.c.b16 %v397, %v394
        %v413 = vpack.c.b16 %v398, %v395
        %v414 = vpack.c.b16 %v402, %v399
        %v415 = vpack.c.b16 %v403, %v400
        %v416 = vpack.c.b16 %v404, %v401
        %v417 = vpack.c.b16 %v408, %v405
        %v418 = vpack.c.b16 %v409, %v406
        %v419 = vpack.c.b16 %v410, %v407
        %v477 = vunpack.c.l.b16 %v333
        %v478 = vunpack.c.l.b16 %v334
        %v479 = vunpack.c.l.b16 %v335
        %v480 = vunpack.c.l.b16 %v336
        %v481 = vunpack.c.l.b16 %v337
        %v482 = vunpack.c.l.b16 %v338
        %v483 = vunpack.c.l.b16 %v339
        %v484 = vunpack.c.l.b16 %v340
        %v485 = vunpack.c.l.b16 %v341
        %v486 = vunpack.c.l.b16 %v342
        %v487 = vunpack.c.l.b16 %v343
        %v488 = vunpack.c.l.b16 %v344
        %v489 = vunpack.c.l.b16 %v345
        %v490 = vunpack.c.l.b16 %v346
        %v491 = vunpack.c.l.b16 %v347
        %v492 = vunpack.c.l.b16 %v348
        %v493 = vunpack.c.l.b16 %v349
        %v494 = vunpack.c.l.b16 %v350
        %v495 = vunpack.c.l.b16 %v351
        %v496 = vunpack.c.l.b16 %v352
        %v497 = vunpack.c.l.b16 %v353
        %v498 = vunpack.c.l.b16 %v354
        %v499 = vunpack.c.l.b16 %v355
        %v500 = vunpack.c.l.b16 %v356
        %v501 = vunpack.c.l.b16 %v357
        %v502 = vunpack.c.l.b16 %v358
        %v503 = vunpack.c.l.b16 %v359
        %v504 = vunpack.c.l.b16 %v360
        %v505 = vunpack.c.l.b16 %v361
        %v506 = vunpack.c.l.b16 %v362
        %v507 = vunpack.c.l.b16 %v363
        %v508 = vunpack.c.l.b16 %v364
        %v509 = vunpack.c.l.b16 %v365
        %v510 = vunpack.c.l.b16 %v366
        %v511 = vunpack.c.l.b16 %v367
        %v512 = vunpack.c.l.b16 %v368
        %v513 = vunpack.c.l.b16 %v369
        %v514 = vunpack.c.l.b16 %v370
        %v515 = vunpack.c.l.b16 %v371
        %v516 = vunpack.c.l.b16 %v372
        %v517 = vunpack.c.l.b16 %v373
        %v518 = vunpack.c.l.b16 %v374
        %v519 = vunpack.c.l.b16 %v375
        %v520 = vunpack.c.l.b16 %v376
        %v521 = vunpack.c.l.b16 %v377
        %v522 = vunpack.c.l.b16 %v378
        %v523 = vunpack.c.l.b16 %v379
        %v524 = vunpack.c.l.b16 %v380
        %v525 = vpack.c.b16 %v478, %v477
        %v526 = vpack.c.b16 %v480, %v479
        %v527 = vpack.c.b16 %v482, %v481
        %v528 = vpack.c.b16 %v484, %v483
        %v529 = vpack.c.b16 %v486, %v485
        %v530 = vpack.c.b16 %v488, %v487
        %v531 = vpack.c.b16 %v490, %v489
        %v532 = vpack.c.b16 %v492, %v491
        %v533 = vpack.c.b16 %v494, %v493
        %v534 = vpack.c.b16 %v496, %v495
        %v535 = vpack.c.b16 %v498, %v497
        %v536 = vpack.c.b16 %v500, %v499
        %v537 = vpack.c.b16 %v502, %v501
        %v538 = vpack.c.b16 %v504, %v503
        %v539 = vpack.c.b16 %v506, %v505
        %v540 = vpack.c.b16 %v508, %v507
        %v541 = vpack.c.b16 %v510, %v509
        %v542 = vpack.c.b16 %v512, %v511
        %v543 = vpack.c.b16 %v514, %v513
        %v544 = vpack.c.b16 %v516, %v515
        %v545 = vpack.c.b16 %v518, %v517
        %v546 = vpack.c.b16 %v520, %v519
        %v547 = vpack.c.b16 %v522, %v521
        %v548 = vpack.c.b16 %v524, %v523
        %573 = vmatprep.subr.bf16.mxu0 0
        %574 = vmatpush1.bf16.msra.mxu0 %v525
        %575 = vmatprep.subr.bf16.mxu0 0
        %576 = vmatpush1.bf16.msra.mxu0 %v526
        %577 = vmatprep.subr.bf16.mxu0 0
        %578 = vmatpush1.bf16.msra.mxu0 %v527
        %579 = vmatprep.subr.bf16.mxu0 0
        %580 = vmatpush1.bf16.msra.mxu0 %v528
        %581 = vmatprep.subr.bf16.mxu0 0
        %582 = vmatpush1.bf16.msra.mxu0 %v529
        %583 = vmatprep.subr.bf16.mxu0 0
        %584 = vmatpush1.bf16.msra.mxu0 %v530
        %585 = vmatprep.subr.bf16.mxu0 0
        %586 = vmatpush1.bf16.msra.mxu0 %v531
        %587 = vmatprep.subr.bf16.mxu0 0
        %588 = vmatpush1.bf16.msra.mxu0 %v532
        %589 = vmatprep.subr.bf16.mxu0 0
        %590 = vmatpush1.bf16.msra.mxu0 %v533
        %591 = vmatprep.subr.bf16.mxu0 0
        %592 = vmatpush1.bf16.msra.mxu0 %v534
        %593 = vmatprep.subr.bf16.mxu0 0
        %594 = vmatpush1.bf16.msra.mxu0 %v535
        %595 = vmatprep.subr.bf16.mxu0 0
        %596 = vmatpush1.bf16.msra.mxu0 %v536
        %597 = vmatprep.subr.bf16.mxu0 0
        %598 = vmatpush1.bf16.msra.mxu0 %v537
        %599 = vmatprep.subr.bf16.mxu0 0
        %600 = vmatpush1.bf16.msra.mxu0 %v538
        %601 = vmatprep.subr.bf16.mxu0 0
        %602 = vmatpush1.bf16.msra.mxu0 %v539
        %603 = vmatprep.subr.bf16.mxu0 0
        %604 = vmatpush1.bf16.msra.mxu0 %v540
        %605 = vmatprep.mubr.bf16.mxu0 %v412
        %606 = vmatmul.mubr.bf16.gmra.mrb[0].mxu0 %v411
        %v607 = vpop.f32.mrb[0].mxu0
        %v608 = vadd.f32 0.0, %v607
        %v609 = vpop.f32.mrb[0].mxu0
        %v610 = vpop.f32.mrb[0].mxu0
        %v611 = vadd.f32 0.0, %v610
        %v612 = vpop.f32.mrb[0].mxu0
        %613 = vmatprep.mubr.bf16.mxu0 %v415
        %614 = vmatmul.mubr.bf16.gmra.mrb[0].mxu0 %v414
        %v615 = vpop.f32.mrb[0].mxu0
        %v616 = vadd.f32 0.0, %v615
        %v617 = vpop.f32.mrb[0].mxu0
        %v618 = vpop.f32.mrb[0].mxu0
        %v619 = vadd.f32 0.0, %v618
        %v620 = vpop.f32.mrb[0].mxu0
        %621 = vmatprep.mubr.bf16.mxu0 %v418
        %622 = vmatmul.mubr.bf16.gmra.mrb[0].mxu0 %v417
        %v623 = vpop.f32.mrb[0].mxu0
        %v624 = vadd.f32 0.0, %v623
        %v625 = vpop.f32.mrb[0].mxu0
        %v626 = vpop.f32.mrb[0].mxu0
        %v627 = vadd.f32 0.0, %v626
        %v628 = vpop.f32.mrb[0].mxu0
        %629 = vdwg.mxu0
        %630 = vmatprep.subr.bf16.mxu0 0
        %631 = vmatpush1.bf16.msra.mxu0 %v541
        %632 = vmatprep.subr.bf16.mxu0 0
        %633 = vmatpush1.bf16.msra.mxu0 %v542
        %634 = vmatprep.subr.bf16.mxu0 0
        %635 = vmatpush1.bf16.msra.mxu0 %v543
        %636 = vmatprep.subr.bf16.mxu0 0
        %637 = vmatpush1.bf16.msra.mxu0 %v544
        %638 = vmatprep.subr.bf16.mxu0 0
        %639 = vmatpush1.bf16.msra.mxu0 %v545
        %640 = vmatprep.subr.bf16.mxu0 0
        %641 = vmatpush1.bf16.msra.mxu0 %v546
        %642 = vmatprep.subr.bf16.mxu0 0
        %643 = vmatpush1.bf16.msra.mxu0 %v547
        %644 = vmatprep.subr.bf16.mxu0 0
        %645 = vmatpush1.bf16.msra.mxu0 %v548
        %646 = vmatprep.subr.bf16.mxu0 0
        %647 = vmatpush1.bf16.msra.mxu0 0
        %648 = vmatprep.subr.bf16.mxu0 0
        %649 = vmatpush1.bf16.msra.mxu0 0
        %650 = vmatprep.subr.bf16.mxu0 0
        %651 = vmatpush1.bf16.msra.mxu0 0
        %652 = vmatprep.subr.bf16.mxu0 0
        %653 = vmatpush1.bf16.msra.mxu0 0
        %654 = vmatprep.subr.bf16.mxu0 0
        %655 = vmatpush1.bf16.msra.mxu0 0
        %656 = vmatprep.subr.bf16.mxu0 0
        %657 = vmatpush1.bf16.msra.mxu0 0
        %658 = vmatprep.subr.bf16.mxu0 0
        %659 = vmatpush1.bf16.msra.mxu0 0
        %660 = vmatprep.subr.bf16.mxu0 0
        %661 = vmatpush1.bf16.msra.mxu0 0
        %662 = vmatprep.mubr.bf16.mxu0 0
        %663 = vmatmul.mubr.bf16.gmra.mrb[0].mxu0 %v413
        %v664 = vpop.f32.mrb[0].mxu0
        %v665 = vadd.f32 %v608, %v664
        %v666 = vpop.f32.mrb[0].mxu0
        %v667 = vpop.f32.mrb[0].mxu0
        %v668 = vadd.f32 %v611, %v667
        %v669 = vpop.f32.mrb[0].mxu0
        %670 = vmatprep.mubr.bf16.mxu0 0
        %671 = vmatmul.mubr.bf16.gmra.mrb[0].mxu0 %v416
        %v672 = vpop.f32.mrb[0].mxu0
        %v673 = vadd.f32 %v616, %v672
        %v674 = vpop.f32.mrb[0].mxu0
        %v675 = vpop.f32.mrb[0].mxu0
        %v676 = vadd.f32 %v619, %v675
        %v677 = vpop.f32.mrb[0].mxu0
        %678 = vmatprep.mubr.bf16.mxu0 0
        %679 = vmatmul.mubr.bf16.gmra.mrb[0].mxu0 %v419
        %v680 = vpop.f32.mrb[0].mxu0
        %v681 = vadd.f32 %v624, %v680
        %v682 = vpop.f32.mrb[0].mxu0
        %v683 = vpop.f32.mrb[0].mxu0
        %v684 = vadd.f32 %v627, %v683
        %v685 = vpop.f32.mrb[0].mxu0
        %686 = vdwg.mxu0
        %v687 = vadd.f32 %v315, %v665
        %v688 = vadd.f32 %v316, %v668
        %v689 = vadd.f32 %v317, %v673
        %v690 = vadd.f32 %v318, %v676
        %v691 = vadd.f32 %v319, %v681
        %v692 = vadd.f32 %v320, %v684
        %693 = vst [vmem:[#allocation2] sm:$0xff] %v687
        %694 = vst [vmem:[#allocation2 + $0x8] sm:$0xff] %v688
        %695 = vst [vmem:[#allocation2 + $0x10] sm:$0xff] %v689
        %696 = vst [vmem:[#allocation2 + $0x18] sm:$0xff] %v690
        %697 = vst [vmem:[#allocation2 + $0x20] sm:$0xff] %v691
        %698 = vst [vmem:[#allocation2 + $0x28] sm:$0xff] %v692
        %p699 = scmp.eq.s32.totalorder %s21, 2
        // Predicated region
        $region63: #{motion_vqvae_forward.25} parent=53 // pred_check
          %p700 = pneg %p699
        $region64: #{motion_vqvae_forward.25} parent=53 // pred_check_branch
          %702 = sbr.rel (%p700) target = $region66
        $region65: #{motion_vqvae_forward.25} parent=53 // pred_region
          %v703 = vld [vmem:[#allocation2] sm:$0xff]
          %v704 = vld [vmem:[#allocation2 + $0x8] sm:$0xff]
          %v705 = vld [vmem:[#allocation2 + $0x10] sm:$0xff]
          %v706 = vld [vmem:[#allocation2 + $0x18] sm:$0xff]
          %v707 = vld [vmem:[#allocation2 + $0x20] sm:$0xff]
          %v708 = vld [vmem:[#allocation2 + $0x28] sm:$0xff]
          %v709 = vld [vmem:[%s294] sm:$0x1]
          %v711 = vlaneseq
          %v712 = vshrl.u32 %v711, 7
          %v713 = vsub.s32 0, %v712
          %v714 = vrot.slane %v709, %v713
          %v716 = vadd.f32 %v703, %v714
          %v717 = vadd.f32 %v704, %v714
          %v718 = vadd.f32 %v705, %v714
          %v719 = vadd.f32 %v706, %v714
          %v720 = vadd.f32 %v707, %v714
          %v721 = vadd.f32 %v708, %v714
          %722 = vst [vmem:[%s302] sm:$0xff] %v716
          %723 = vst [vmem:[%s302 + $0x8] sm:$0xff] %v717
          %724 = vst [vmem:[%s302 + $0x10] sm:$0xff] %v718
          %725 = vst [vmem:[%s302 + $0x18] sm:$0xff] %v719
          %726 = vst [vmem:[%s302 + $0x20] sm:$0xff] %v720
          %727 = vst [vmem:[%s302 + $0x28] sm:$0xff] %v721
        $region66: #{motion_vqvae_forward.25} parent=53 // pred_fallthru
          _
        %s728 = smul.u32 6, %s19
        %p729 = scmp.lt.s32.totalorder %s728, 5
        %s730 = scalar_select %p729, %s728, 5
        %p731 = scmp.lt.s32.totalorder %s20, 0
        %s732 = scalar_select %p731, %s20, 0
        %s733 = sadd.s32 %s732, %s730
        %s734 = smul.addr %s733, 8
        %s735 = scalar_lea.vmem %s3, %s734
        // Predicated region
        $region67: #{motion_vqvae_forward.25} parent=53 // pred_check
          %p736 = pneg %p135
        $region68: #{motion_vqvae_forward.25} parent=53 // pred_check_branch
          %738 = sbr.rel (%p736) target = $region70
        $region69: #{motion_vqvae_forward.25} parent=53 // pred_region
          %s739 = smul.u32 6, %s19
        $region70: #{motion_vqvae_forward.25} parent=53 // pred_fallthru
          _
        // Predicated region
        $region71: #{motion_vqvae_forward.25} parent=53 // pred_check
          %p740 = pneg %p135
        $region72: #{motion_vqvae_forward.25} parent=53 // pred_check_branch
          %742 = sbr.rel (%p740) target = $region74
        $region73: #{motion_vqvae_forward.25} parent=53 // pred_region
          %s743 = smul.u32 6, %s19
          %p744 = scmp.lt.s32.totalorder %s743, 5
          %s745 = scalar_select %p744, %s743, 5
          %p746 = scmp.lt.s32.totalorder %s20, 0
          %s747 = scalar_select %p746, %s20, 0
          %s748 = sadd.s32 %s747, %s745
          %s749 = smul.addr %s748, 8
          %s750 = scalar_lea.vmem %s3, %s749
        $region74: #{motion_vqvae_forward.25} parent=53 // pred_fallthru
          _
      $region54: #{motion_vqvae_forward.25} parent=5 // pred_fallthru
        _
      %p751 = scmp.le.s32.totalorder 2, %s9
      // Predicated region
      $region75: #{motion_vqvae_forward.25} parent=5 // pred_check
        %p752 = pneg %p751
      $region76: #{motion_vqvae_forward.25} parent=5 // pred_check_branch
        %754 = sbr.rel (%p752) target = $region78
      $region77: #{motion_vqvae_forward.25} parent=5 // pred_region
        %s755 = ssub.s32 %s9, 2
      $region78: #{motion_vqvae_forward.25} parent=5 // pred_fallthru
        _
    $region6: #{motion_vqvae_forward.25} parent=1 // loop_footer
      %s13 = sadd.s32 1, %s9
    $region7: #{motion_vqvae_forward.25} parent=1 // loop_footer_branch
      %8 = sbr.rel target = $region3
    $region8: #{motion_vqvae_forward.25} parent=1 // loop_exit
      _

// kernel: motion_vqvae_forward.30
$region0: #{motion_vqvae_forward.30}
  #allocation0 [shape = 'u32[]', space=smem, size = 0x4, offset = 0x4, fixed_abs, tag = 'smem constant byte address 0x4 - core index']
  #allocation1 [shape = 'u32[144,128]{1,0:T(1,128)}', space=vmem, size = 0x12000, scoped, tag = 'internal scratch']
  #allocation2 [shape = 'f32[192,128]{1,0:T(8,128)}', space=vmem, size = 0x18000, scoped, tag = 'scratch operand']
  %s0 = inlined_call_operand.vmem [shape: bf16[192,640], index: 0, kind: input, shape index: {}]
  %s1 = inlined_call_operand.vmem [shape: bf16[640,128], index: 1, kind: input, shape index: {}]
  %s2 = inlined_call_operand.vmem [shape: f32[1,128], index: 2, kind: input, shape index: {}]
  %s3 = inlined_call_operand.vmem [shape: f32[192,128], index: 3, kind: output, shape index: {}]
  %s4 = sld [smem:[#allocation0]]
  $region94: #{motion_vqvae_forward.30} parent=0
    _
  %s6 = ssub.s32 1, %s4
  %s7 = scalar_select 0, %s6, %s4
  $region1: #{motion_vqvae_forward.30} parent=0
    #allocation3 [shape = 'u8[98304]{0}', space=vmem, size = 0x18000, scoped, tag = 'input window, operand 0']
    loop: start=0, step=1, limit=7
    $region2: #{motion_vqvae_forward.30} parent=1 // loop_pre_header
      _
    $region3: #{motion_vqvae_forward.30} parent=1 // loop_header
      %s9 = sphi 0, %s13
      %p10 = scmp.ge.s32.totalorder %s9, 7
      %s16 = sphi 0, %s35
      %s17 = sphi 0, %s31
      %s18 = sphi 0, %s27
      %s19 = sphi 0, %s16
      %s20 = sphi 0, %s17
      %s21 = sphi 0, %s18
      %s22 = sphi 0, %s19
      %s23 = sphi 0, %s20
      %s24 = sphi 0, %s21
      %s40 = sphi 0, %s42
      %s43 = sphi 0, %s40
      %s44 = sphi 0, %s43
      %s60 = sphi 0, %s44
      %s68 = sphi 0, %s70
      %s71 = sphi 0, %s68
      %s72 = sphi 0, %s71
      %s88 = sphi 0, %s72
      %s94 = sphi 0, %s96
      %s97 = sphi 0, %s94
      %s98 = sphi 0, %s97
      %s114 = sphi 0, %s98
      %s122 = sphi 0, %s124
      %s125 = sphi 0, %s122
      %s126 = sphi 0, %s125
      %s142 = sphi 0, %s126
    $region4: #{motion_vqvae_forward.30} parent=1 // loop_header_branch
      %12 = sbr.rel (%p10) target = $region8
    $region5: #{motion_vqvae_forward.30} parent=1 // loop_body
      %s14 = ssub.s32 %s9, 1
      %s15 = ssub.s32 %s9, 2
      %s25 = sadd.s32 1, %s18
      %p26 = scmp.ge.s32.totalorder %s25, 5
      %s27 = scalar_select %p26, 0, %s25
      %s28 = sadd.s32 1, %s17
      %s29 = scalar_select %p26, %s28, %s17
      %p30 = scmp.ge.s32.totalorder %s29, 1
      %s31 = scalar_select %p30, 0, %s29
      %s32 = sadd.s32 1, %s16
      %s33 = scalar_select %p30, %s32, %s16
      %p34 = scmp.ge.s32.totalorder %s33, 1
      %s35 = scalar_select %p34, 0, %s33
      %s36 = ssub.s32 %s16, %s35
      %s37 = ssub.s32 %s18, %s27
      %s38 = sor.u32 %s36, %s37
      %p39 = scmp.eq.s32.totalorder %s38, 0
      %s41 = sadd.s32 %s40, 1
      %s42 = scalar_select %p39, %s40, %s41
      %p45 = pneg %p39
      %p46 = scmp.eq.s32.totalorder %s9, 4
      %p47 = por %p45, %p46
      %p48 = scmp.ne.s32.totalorder %s40, %s43
      %p49 = scmp.eq.s32.totalorder %s9, 0
      %p50 = por %p48, %p49
      %p51 = scmp.ne.s32.totalorder %s40, %s43
      %p52 = scmp.eq.s32.totalorder %s14, 4
      %p53 = por %p51, %p52
      %p54 = scmp.ne.s32.totalorder %s43, %s44
      %p55 = scmp.eq.s32.totalorder %s14, 0
      %p56 = por %p54, %p55
      %p57 = scmp.ne.s32.totalorder %s43, %s44
      %p58 = scmp.eq.s32.totalorder %s15, 4
      %p59 = por %p57, %p58
      %p61 = scmp.ne.s32.totalorder %s44, %s60
      %p62 = scmp.eq.s32.totalorder %s15, 0
      %p63 = por %p61, %p62
      %s64 = ssub.s32 %s18, %s27
      %s65 = ssub.s32 %s17, %s31
      %s66 = sor.u32 %s64, %s65
      %p67 = scmp.eq.s32.totalorder %s66, 0
      %s69 = sadd.s32 %s68, 1
      %s70 = scalar_select %p67, %s68, %s69
      %p73 = pneg %p67
      %p74 = scmp.eq.s32.totalorder %s9, 4
      %p75 = por %p73, %p74
      %p76 = scmp.ne.s32.totalorder %s68, %s71
      %p77 = scmp.eq.s32.totalorder %s9, 0
      %p78 = por %p76, %p77
      %p79 = scmp.ne.s32.totalorder %s68, %s71
      %p80 = scmp.eq.s32.totalorder %s14, 4
      %p81 = por %p79, %p80
      %p82 = scmp.ne.s32.totalorder %s71, %s72
      %p83 = scmp.eq.s32.totalorder %s14, 0
      %p84 = por %p82, %p83
      %p85 = scmp.ne.s32.totalorder %s71, %s72
      %p86 = scmp.eq.s32.totalorder %s15, 4
      %p87 = por %p85, %p86
      %p89 = scmp.ne.s32.totalorder %s72, %s88
      %p90 = scmp.eq.s32.totalorder %s15, 0
      %p91 = por %p89, %p90
      %s92 = ssub.s32 %s17, %s31
      %p93 = scmp.eq.s32.totalorder %s92, 0
      %s95 = sadd.s32 %s94, 1
      %s96 = scalar_select %p93, %s94, %s95
      %p99 = pneg %p93
      %p100 = scmp.eq.s32.totalorder %s9, 4
      %p101 = por %p99, %p100
      %p102 = scmp.ne.s32.totalorder %s94, %s97
      %p103 = scmp.eq.s32.totalorder %s9, 0
      %p104 = por %p102, %p103
      %p105 = scmp.ne.s32.totalorder %s94, %s97
      %p106 = scmp.eq.s32.totalorder %s14, 4
      %p107 = por %p105, %p106
      %p108 = scmp.ne.s32.totalorder %s97, %s98
      %p109 = scmp.eq.s32.totalorder %s14, 0
      %p110 = por %p108, %p109
      %p111 = scmp.ne.s32.totalorder %s97, %s98
      %p112 = scmp.eq.s32.totalorder %s15, 4
      %p113 = por %p111, %p112
      %p115 = scmp.ne.s32.totalorder %s98, %s114
      %p116 = scmp.eq.s32.totalorder %s15, 0
      %p117 = por %p115, %p116
      %s118 = ssub.s32 %s16, %s35
      %s119 = ssub.s32 %s17, %s31
      %s120 = sor.u32 %s118, %s119
      %p121 = scmp.eq.s32.totalorder %s120, 0
      %s123 = sadd.s32 %s122, 1
      %s124 = scalar_select %p121, %s122, %s123
      %p127 = pneg %p121
      %p128 = scmp.eq.s32.totalorder %s9, 4
      %p129 = por %p127, %p128
      %p130 = scmp.ne.s32.totalorder %s122, %s125
      %p131 = scmp.eq.s32.totalorder %s9, 0
      %p132 = por %p130, %p131
      %p133 = scmp.ne.s32.totalorder %s122, %s125
      %p134 = scmp.eq.s32.totalorder %s14, 4
      %p135 = por %p133, %p134
      %p136 = scmp.ne.s32.totalorder %s125, %s126
      %p137 = scmp.eq.s32.totalorder %s14, 0
      %p138 = por %p136, %p137
      %p139 = scmp.ne.s32.totalorder %s125, %s126
      %p140 = scmp.eq.s32.totalorder %s15, 4
      %p141 = por %p139, %p140
      %p143 = scmp.ne.s32.totalorder %s126, %s142
      %p144 = scmp.eq.s32.totalorder %s15, 0
      %p145 = por %p143, %p144
      %p146 = scmp.le.s32.totalorder 1, %s9
      %p147 = scmp.lt.s32.totalorder %s9, 6
      %p148 = pnand %p146, %p147
      %p149 = pneg %p148
      // Predicated region
      $region9: #{motion_vqvae_forward.30} parent=5 // pred_check
        _
      $region10: #{motion_vqvae_forward.30} parent=5 // pred_check_branch
        %151 = sbr.rel (%p148) target = $region12
      $region11: #{motion_vqvae_forward.30} parent=5 // pred_region
        %s152 = ssub.s32 %s9, 1
        // Predicated region
        $region13: #{motion_vqvae_forward.30} parent=11 // pred_check
          %p153 = pneg %p110
        $region14: #{motion_vqvae_forward.30} parent=11 // pred_check_branch
          %155 = sbr.rel (%p153) target = $region16
        $region15: #{motion_vqvae_forward.30} parent=11 // pred_region
          %p156 = scmp.lt.s32.totalorder %s20, 0
          %s157 = scalar_select %p156, %s20, 0
          %s158 = scalar_lea.vmem %s2, %s157
        $region16: #{motion_vqvae_forward.30} parent=11 // pred_fallthru
          _
      $region12: #{motion_vqvae_forward.30} parent=5 // pred_fallthru
        _
      %p159 = scmp.lt.s32.totalorder %s9, 5
      // Predicated region
      $region17: #{motion_vqvae_forward.30} parent=5 // pred_check
        %p160 = pneg %p159
      $region18: #{motion_vqvae_forward.30} parent=5 // pred_check_branch
        %162 = sbr.rel (%p160) target = $region20
      $region19: #{motion_vqvae_forward.30} parent=5 // pred_region
        // Predicated region
        $region21: #{motion_vqvae_forward.30} parent=19 // pred_check
          %p163 = pneg %p50
        $region22: #{motion_vqvae_forward.30} parent=19 // pred_check_branch
          %165 = sbr.rel (%p163) target = $region24
        $region23: #{motion_vqvae_forward.30} parent=19 // pred_region
          %s166 = sand.u32 %s40, 1
          %s167 = sand.u32 %s40, 1
          %s168 = smul.addr %s167, 96
          %s169 = scalar_lea.vmem [#allocation3], %s168
          %s170 = smul.u32 24, %s16
          %s171 = smul.addr %s170, 5
          %s172 = sadd.s32 %s18, %s171
          %s173 = smul.addr %s172, 4
          %s174 = scalar_lea.vmem %s0, %s173
          // Predicated region
          $region25: #{motion_vqvae_forward.30} parent=23 // pred_check
            _
          $region26: #{motion_vqvae_forward.30} parent=23 // pred_check_branch
            %176 = sbr.rel (0) target = $region28
          $region27: #{motion_vqvae_forward.30} parent=23 // pred_region
            // Predicated region
            $region29: #{motion_vqvae_forward.30} parent=27 // pred_check
              _
            $region30: #{motion_vqvae_forward.30} parent=27 // pred_check_branch
              %178 = sbr.rel target = $region32
            $region31: #{motion_vqvae_forward.30} parent=27 // pred_region
              // Predicated region
              $region44: #{motion_vqvae_forward.30} parent=31 // pred_check
                _
              $region45: #{motion_vqvae_forward.30} parent=31 // pred_check_branch
                %239 = sbr.rel (0) target = $region47
              $region46: #{motion_vqvae_forward.30} parent=31 // pred_region
                loop: start=0, step=1, limit=1
                $region48: #{motion_vqvae_forward.30} parent=46 // loop_pre_header
                  _
                $region49: #{motion_vqvae_forward.30} parent=46 // loop_header
                  %s241 = sphi 0, %s245
                  %p242 = scmp.ge.s32.totalorder %s241, 1
                  %s246 = sphi %s174, %s174
                  %s247 = sphi %s169, %s169
                $region50: #{motion_vqvae_forward.30} parent=46 // loop_header_branch
                  %244 = sbr.rel (%p242) target = $region54
                $region51: #{motion_vqvae_forward.30} parent=46 // loop_body
                  _
                $region52: #{motion_vqvae_forward.30} parent=46 // loop_footer
                  %s245 = sadd.s32 1, %s241
                $region53: #{motion_vqvae_forward.30} parent=46 // loop_footer_branch
                  %240 = sbr.rel target = $region49
                $region54: #{motion_vqvae_forward.30} parent=46 // loop_exit
                  _
                loop: start=0, step=1, limit=1
                $region55: #{motion_vqvae_forward.30} parent=46 // loop_pre_header
                  _
                $region56: #{motion_vqvae_forward.30} parent=46 // loop_header
                  %s250 = sphi 0, %s254
                  %p251 = scmp.ge.s32.totalorder %s250, 1
                  %s255 = sphi %s174, %s174
                  %s256 = sphi %s169, %s169
                $region57: #{motion_vqvae_forward.30} parent=46 // loop_header_branch
                  %253 = sbr.rel (%p251) target = $region61
                $region58: #{motion_vqvae_forward.30} parent=46 // loop_body
                  %v257 = vld [vmem:[%s255] sm:$0xf]
                  %258 = vst [vmem:[%s256] sm:$0xf] %v257
                  %v259 = vld [vmem:[%s255 + $0x14] sm:$0xf]
                  %260 = vst [vmem:[%s256 + $0x4] sm:$0xf] %v259
                  %v261 = vld [vmem:[%s255 + $0x28] sm:$0xf]
                  %262 = vst [vmem:[%s256 + $0x8] sm:$0xf] %v261
                  %v263 = vld [vmem:[%s255 + $0x3c] sm:$0xf]
                  %264 = vst [vmem:[%s256 + $0xc] sm:$0xf] %v263
                  %v265 = vld [vmem:[%s255 + $0x50] sm:$0xf]
                  %266 = vst [vmem:[%s256 + $0x10] sm:$0xf] %v265
                  %v267 = vld [vmem:[%s255 + $0x64] sm:$0xf]
                  %268 = vst [vmem:[%s256 + $0x14] sm:$0xf] %v267
                  %v269 = vld [vmem:[%s255 + $0x78] sm:$0xf]
                  %270 = vst [vmem:[%s256 + $0x18] sm:$0xf] %v269
                  %v271 = vld [vmem:[%s255 + $0x8c] sm:$0xf]
                  %272 = vst [vmem:[%s256 + $0x1c] sm:$0xf] %v271
                  %v273 = vld [vmem:[%s255 + $0xa0] sm:$0xf]
                  %274 = vst [vmem:[%s256 + $0x20] sm:$0xf] %v273
                  %v275 = vld [vmem:[%s255 + $0xb4] sm:$0xf]
                  %276 = vst [vmem:[%s256 + $0x24] sm:$0xf] %v275
                  %v277 = vld [vmem:[%s255 + $0xc8] sm:$0xf]
                  %278 = vst [vmem:[%s256 + $0x28] sm:$0xf] %v277
                  %v279 = vld [vmem:[%s255 + $0xdc] sm:$0xf]
                  %280 = vst [vmem:[%s256 + $0x2c] sm:$0xf] %v279
                  %v281 = vld [vmem:[%s255 + $0xf0] sm:$0xf]
                  %282 = vst [vmem:[%s256 + $0x30] sm:$0xf] %v281
                  %v283 = vld [vmem:[%s255 + $0x104] sm:$0xf]
                  %284 = vst [vmem:[%s256 + $0x34] sm:$0xf] %v283
                  %v285 = vld [vmem:[%s255 + $0x118] sm:$0xf]
                  %286 = vst [vmem:[%s256 + $0x38] sm:$0xf] %v285
                  %v287 = vld [vmem:[%s255 + $0x12c] sm:$0xf]
                  %288 = vst [vmem:[%s256 + $0x3c] sm:$0xf] %v287
                  %v289 = vld [vmem:[%s255 + $0x140] sm:$0xf]
                  %290 = vst [vmem:[%s256 + $0x40] sm:$0xf] %v289
                  %v291 = vld [vmem:[%s255 + $0x154] sm:$0xf]
                  %292 = vst [vmem:[%s256 + $0x44] sm:$0xf] %v291
                  %v293 = vld [vmem:[%s255 + $0x168] sm:$0xf]
                  %294 = vst [vmem:[%s256 + $0x48] sm:$0xf] %v293
                  %v295 = vld [vmem:[%s255 + $0x17c] sm:$0xf]
                  %296 = vst [vmem:[%s256 + $0x4c] sm:$0xf] %v295
                  %v297 = vld [vmem:[%s255 + $0x190] sm:$0xf]
                  %298 = vst [vmem:[%s256 + $0x50] sm:$0xf] %v297
                  %v299 = vld [vmem:[%s255 + $0x1a4] sm:$0xf]
                  %300 = vst [vmem:[%s256 + $0x54] sm:$0xf] %v299
                  %v301 = vld [vmem:[%s255 + $0x1b8] sm:$0xf]
                  %302 = vst [vmem:[%s256 + $0x58] sm:$0xf] %v301
                  %v303 = vld [vmem:[%s255 + $0x1cc] sm:$0xf]
                  %304 = vst [vmem:[%s256 + $0x5c] sm:$0xf] %v303
                $region59: #{motion_vqvae_forward.30} parent=46 // loop_footer
                  %s254 = sadd.s32 1, %s250
                $region60: #{motion_vqvae_forward.30} parent=46 // loop_footer_branch
                  %249 = sbr.rel target = $region56
                $region61: #{motion_vqvae_forward.30} parent=46 // loop_exit
                  _
              $region47: #{motion_vqvae_forward.30} parent=31 // pred_fallthru
                _
            $region32: #{motion_vqvae_forward.30} parent=27 // pred_fallthru
              _
            // Predicated region
            $region33: #{motion_vqvae_forward.30} parent=27 // pred_check
              _
            $region34: #{motion_vqvae_forward.30} parent=27 // pred_check_branch
              %180 = sbr.rel (0) target = $region36
            $region35: #{motion_vqvae_forward.30} parent=27 // pred_region
              loop: start=0, step=1, limit=1
              $region37: #{motion_vqvae_forward.30} parent=35 // loop_pre_header
                _
              $region38: #{motion_vqvae_forward.30} parent=35 // loop_header
                %s183 = sphi 0, %s187
                %p184 = scmp.ge.s32.totalorder %s183, 1
                %s188 = sphi %s174, %s174
                %s189 = sphi %s169, %s169
              $region39: #{motion_vqvae_forward.30} parent=35 // loop_header_branch
                %186 = sbr.rel (%p184) target = $region43
              $region40: #{motion_vqvae_forward.30} parent=35 // loop_body
                %v190 = vld [vmem:[%s188] sm:$0xf]
                %191 = vst [vmem:[%s189] sm:$0xf] %v190
                %v192 = vld [vmem:[%s188 + $0x14] sm:$0xf]
                %193 = vst [vmem:[%s189 + $0x4] sm:$0xf] %v192
                %v194 = vld [vmem:[%s188 + $0x28] sm:$0xf]
                %195 = vst [vmem:[%s189 + $0x8] sm:$0xf] %v194
                %v196 = vld [vmem:[%s188 + $0x3c] sm:$0xf]
                %197 = vst [vmem:[%s189 + $0xc] sm:$0xf] %v196
                %v198 = vld [vmem:[%s188 + $0x50] sm:$0xf]
                %199 = vst [vmem:[%s189 + $0x10] sm:$0xf] %v198
                %v200 = vld [vmem:[%s188 + $0x64] sm:$0xf]
                %201 = vst [vmem:[%s189 + $0x14] sm:$0xf] %v200
                %v202 = vld [vmem:[%s188 + $0x78] sm:$0xf]
                %203 = vst [vmem:[%s189 + $0x18] sm:$0xf] %v202
                %v204 = vld [vmem:[%s188 + $0x8c] sm:$0xf]
                %205 = vst [vmem:[%s189 + $0x1c] sm:$0xf] %v204
                %v206 = vld [vmem:[%s188 + $0xa0] sm:$0xf]
                %207 = vst [vmem:[%s189 + $0x20] sm:$0xf] %v206
                %v208 = vld [vmem:[%s188 + $0xb4] sm:$0xf]
                %209 = vst [vmem:[%s189 + $0x24] sm:$0xf] %v208
                %v210 = vld [vmem:[%s188 + $0xc8] sm:$0xf]
                %211 = vst [vmem:[%s189 + $0x28] sm:$0xf] %v210
                %v212 = vld [vmem:[%s188 + $0xdc] sm:$0xf]
                %213 = vst [vmem:[%s189 + $0x2c] sm:$0xf] %v212
                %v214 = vld [vmem:[%s188 + $0xf0] sm:$0xf]
                %215 = vst [vmem:[%s189 + $0x30] sm:$0xf] %v214
                %v216 = vld [vmem:[%s188 + $0x104] sm:$0xf]
                %217 = vst [vmem:[%s189 + $0x34] sm:$0xf] %v216
                %v218 = vld [vmem:[%s188 + $0x118] sm:$0xf]
                %219 = vst [vmem:[%s189 + $0x38] sm:$0xf] %v218
                %v220 = vld [vmem:[%s188 + $0x12c] sm:$0xf]
                %221 = vst [vmem:[%s189 + $0x3c] sm:$0xf] %v220
                %v222 = vld [vmem:[%s188 + $0x140] sm:$0xf]
                %223 = vst [vmem:[%s189 + $0x40] sm:$0xf] %v222
                %v224 = vld [vmem:[%s188 + $0x154] sm:$0xf]
                %225 = vst [vmem:[%s189 + $0x44] sm:$0xf] %v224
                %v226 = vld [vmem:[%s188 + $0x168] sm:$0xf]
                %227 = vst [vmem:[%s189 + $0x48] sm:$0xf] %v226
                %v228 = vld [vmem:[%s188 + $0x17c] sm:$0xf]
                %229 = vst [vmem:[%s189 + $0x4c] sm:$0xf] %v228
                %v230 = vld [vmem:[%s188 + $0x190] sm:$0xf]
                %231 = vst [vmem:[%s189 + $0x50] sm:$0xf] %v230
                %v232 = vld [vmem:[%s188 + $0x1a4] sm:$0xf]
                %233 = vst [vmem:[%s189 + $0x54] sm:$0xf] %v232
                %v234 = vld [vmem:[%s188 + $0x1b8] sm:$0xf]
                %235 = vst [vmem:[%s189 + $0x58] sm:$0xf] %v234
                %v236 = vld [vmem:[%s188 + $0x1cc] sm:$0xf]
                %237 = vst [vmem:[%s189 + $0x5c] sm:$0xf] %v236
              $region41: #{motion_vqvae_forward.30} parent=35 // loop_footer
                %s187 = sadd.s32 1, %s183
              $region42: #{motion_vqvae_forward.30} parent=35 // loop_footer_branch
                %182 = sbr.rel target = $region38
              $region43: #{motion_vqvae_forward.30} parent=35 // loop_exit
                _
            $region36: #{motion_vqvae_forward.30} parent=27 // pred_fallthru
              _
          $region28: #{motion_vqvae_forward.30} parent=23 // pred_fallthru
            _
          %305 = vnop
        $region24: #{motion_vqvae_forward.30} parent=19 // pred_fallthru
          _
        // Predicated region
        $region62: #{motion_vqvae_forward.30} parent=19 // pred_check
          %p306 = pneg %p78
        $region63: #{motion_vqvae_forward.30} parent=19 // pred_check_branch
          %308 = sbr.rel (%p306) target = $region65
        $region64: #{motion_vqvae_forward.30} parent=19 // pred_region
          %s309 = smul.u32 16, %s18
          %p310 = scmp.lt.s32.totalorder %s309, 79
          %s311 = scalar_select %p310, %s309, 79
          %p312 = scmp.lt.s32.totalorder %s17, 0
          %s313 = scalar_select %p312, %s17, 0
          %s314 = sadd.s32 %s313, %s311
          %s315 = smul.addr %s314, 4
          %s316 = scalar_lea.vmem %s1, %s315
          %s317 = smul.u32 16, %s18
        $region65: #{motion_vqvae_forward.30} parent=19 // pred_fallthru
          _
      $region20: #{motion_vqvae_forward.30} parent=5 // pred_fallthru
        _
      %p318 = scmp.le.s32.totalorder 1, %s9
      %p319 = scmp.lt.s32.totalorder %s9, 6
      %p320 = pnand %p318, %p319
      %p321 = pneg %p320
      // Predicated region
      $region66: #{motion_vqvae_forward.30} parent=5 // pred_check
        _
      $region67: #{motion_vqvae_forward.30} parent=5 // pred_check_branch
        %323 = sbr.rel (%p320) target = $region69
      $region68: #{motion_vqvae_forward.30} parent=5 // pred_region
        %s324 = ssub.s32 %s9, 1
        %s325 = sand.u32 %s43, 1
        %s326 = sand.u32 %s43, 1
        %s327 = smul.addr %s326, 96
        %s328 = scalar_lea.vmem [#allocation3], %s327
        // Predicated region
        $region70: #{motion_vqvae_forward.30} parent=68 // pred_check
          %p329 = pneg %p56
        $region71: #{motion_vqvae_forward.30} parent=68 // pred_check_branch
          %331 = sbr.rel (%p329) target = $region73
        $region72: #{motion_vqvae_forward.30} parent=68 // pred_region
          _
        $region73: #{motion_vqvae_forward.30} parent=68 // pred_fallthru
          _
        %s332 = sand.u32 %s43, 1
        %s333 = sand.u32 %s43, 1
        %s334 = smul.addr %s333, 96
        %s335 = scalar_lea.vmem [#allocation3], %s334
        %p336 = pneg %p56
        %p337 = pneg %p53
        %s338 = smul.u32 16, %s21
        %p339 = scmp.lt.s32.totalorder %s338, 79
        %s340 = scalar_select %p339, %s338, 79
        %p341 = scmp.lt.s32.totalorder %s20, 0
        %s342 = scalar_select %p341, %s20, 0
        %s343 = sadd.s32 %s342, %s340
        %s344 = smul.addr %s343, 4
        %s345 = scalar_lea.vmem %s1, %s344
        %p346 = pneg %p84
        %p347 = pneg %p81
        %p348 = scmp.lt.s32.totalorder %s20, 0
        %s349 = scalar_select %p348, %s20, 0
        %s350 = scalar_lea.vmem %s2, %s349
        %p351 = pneg %p110
        %p352 = pneg %p107
        %p353 = pneg %p138
        %p354 = pneg %p135
        %s355 = smul.u32 24, %s19
        %p356 = scmp.lt.s32.totalorder %s355, 23
        %s357 = scalar_select %p356, %s355, 23
        %p358 = scmp.lt.s32.totalorder %s20, 0
        %s359 = scalar_select %p358, %s20, 0
        %s360 = sadd.s32 %s359, %s357
        %s361 = smul.addr %s360, 8
        %s362 = scalar_lea.vmem %s3, %s361
        %s363 = smul.u32 24, %s19
        %s364 = smul.u32 16, %s21
        %p365 = scmp.lt.s32.totalorder %s364, 79
        %s366 = scalar_select %p365, %s364, 79
        %p367 = scmp.lt.s32.totalorder %s20, 0
        %s368 = scalar_select %p367, %s20, 0
        %s369 = sadd.s32 %s368, %s366
        %s370 = smul.addr %s369, 4
        %s371 = scalar_lea.vmem %s1, %s370
        %s372 = smul.u32 16, %s21
        %p373 = scmp.lt.s32.totalorder %s20, 0
        %s374 = scalar_select %p373, %s20, 0
        %s375 = scalar_lea.vmem %s2, %s374
        %s376 = smul.u32 24, %s19
        %p377 = scmp.lt.s32.totalorder %s376, 23
        %s378 = scalar_select %p377, %s376, 23
        %p379 = scmp.lt.s32.totalorder %s20, 0
        %s380 = scalar_select %p379, %s20, 0
        %s381 = sadd.s32 %s380, %s378
        %s382 = smul.addr %s381, 8
        %s383 = scalar_lea.vmem %s3, %s382
        %s384 = smul.u32 24, %s19
        %p386 = scmp.eq.s32.totalorder %s21, 0
        // Predicated region
        $region74: #{motion_vqvae_forward.30} parent=68 // pred_check
          %p387 = pneg %p386
        $region75: #{motion_vqvae_forward.30} parent=68 // pred_check_branch
          %389 = sbr.rel (%p387) target = $region77
        $region76: #{motion_vqvae_forward.30} parent=68 // pred_region
          %390 = vst [vmem:[#allocation2] sm:$0xff] 0.0
          %391 = vst [vmem:[#allocation2 + $0x8] sm:$0xff] 0.0
          %392 = vst [vmem:[#allocation2 + $0x10] sm:$0xff] 0.0
          %393 = vst [vmem:[#allocation2 + $0x18] sm:$0xff] 0.0
          %394 = vst [vmem:[#allocation2 + $0x20] sm:$0xff] 0.0
          %395 = vst [vmem:[#allocation2 + $0x28] sm:$0xff] 0.0
          %396 = vst [vmem:[#allocation2 + $0x30] sm:$0xff] 0.0
          %397 = vst [vmem:[#allocation2 + $0x38] sm:$0xff] 0.0
          %398 = vst [vmem:[#allocation2 + $0x40] sm:$0xff] 0.0
          %399 = vst [vmem:[#allocation2 + $0x48] sm:$0xff] 0.0
          %400 = vst [vmem:[#allocation2 + $0x50] sm:$0xff] 0.0
          %401 = vst [vmem:[#allocation2 + $0x58] sm:$0xff] 0.0
          %402 = vst [vmem:[#allocation2 + $0x60] sm:$0xff] 0.0
          %403 = vst [vmem:[#allocation2 + $0x68] sm:$0xff] 0.0
          %404 = vst [vmem:[#allocation2 + $0x70] sm:$0xff] 0.0
          %405 = vst [vmem:[#allocation2 + $0x78] sm:$0xff] 0.0
          %406 = vst [vmem:[#allocation2 + $0x80] sm:$0xff] 0.0
          %407 = vst [vmem:[#allocation2 + $0x88] sm:$0xff] 0.0
          %408 = vst [vmem:[#allocation2 + $0x90] sm:$0xff] 0.0
          %409 = vst [vmem:[#allocation2 + $0x98] sm:$0xff] 0.0
          %410 = vst [vmem:[#allocation2 + $0xa0] sm:$0xff] 0.0
          %411 = vst [vmem:[#allocation2 + $0xa8] sm:$0xff] 0.0
          %412 = vst [vmem:[#allocation2 + $0xb0] sm:$0xff] 0.0
          %413 = vst [vmem:[#allocation2 + $0xb8] sm:$0xff] 0.0
        $region77: #{motion_vqvae_forward.30} parent=68 // pred_fallthru
          _
        %v414 = vld [vmem:[#allocation2] sm:$0xff]
        %v415 = vld [vmem:[#allocation2 + $0x8] sm:$0xff]
        %v416 = vld [vmem:[#allocation2 + $0x10] sm:$0xff]
        %v417 = vld [vmem:[#allocation2 + $0x18] sm:$0xff]
        %v418 = vld [vmem:[#allocation2 + $0x20] sm:$0xff]
        %v419 = vld [vmem:[#allocation2 + $0x28] sm:$0xff]
        %v420 = vld [vmem:[#allocation2 + $0x30] sm:$0xff]
        %v421 = vld [vmem:[#allocation2 + $0x38] sm:$0xff]
        %v422 = vld [vmem:[#allocation2 + $0x40] sm:$0xff]
        %v423 = vld [vmem:[#allocation2 + $0x48] sm:$0xff]
        %v424 = vld [vmem:[#allocation2 + $0x50] sm:$0xff]
        %v425 = vld [vmem:[#allocation2 + $0x58] sm:$0xff]
        %v426 = vld [vmem:[#allocation2 + $0x60] sm:$0xff]
        %v427 = vld [vmem:[#allocation2 + $0x68] sm:$0xff]
        %v428 = vld [vmem:[#allocation2 + $0x70] sm:$0xff]
        %v429 = vld [vmem:[#allocation2 + $0x78] sm:$0xff]
        %v430 = vld [vmem:[#allocation2 + $0x80] sm:$0xff]
        %v431 = vld [vmem:[#allocation2 + $0x88] sm:$0xff]
        %v432 = vld [vmem:[#allocation2 + $0x90] sm:$0xff]
        %v433 = vld [vmem:[#allocation2 + $0x98] sm:$0xff]
        %v434 = vld [vmem:[#allocation2 + $0xa0] sm:$0xff]
        %v435 = vld [vmem:[#allocation2 + $0xa8] sm:$0xff]
        %v436 = vld [vmem:[#allocation2 + $0xb0] sm:$0xff]
        %v437 = vld [vmem:[#allocation2 + $0xb8] sm:$0xff]
        %v438 = vld [vmem:[%s328] sm:$0xf]
        %v439 = vld [vmem:[%s328 + $0x4] sm:$0xf]
        %v440 = vld [vmem:[%s328 + $0x8] sm:$0xf]
        %v441 = vld [vmem:[%s328 + $0xc] sm:$0xf]
        %v442 = vld [vmem:[%s328 + $0x10] sm:$0xf]
        %v443 = vld [vmem:[%s328 + $0x14] sm:$0xf]
        %v444 = vld [vmem:[%s328 + $0x18] sm:$0xf]
        %v445 = vld [vmem:[%s328 + $0x1c] sm:$0xf]
        %v446 = vld [vmem:[%s328 + $0x20] sm:$0xf]
        %v447 = vld [vmem:[%s328 + $0x24] sm:$0xf]
        %v448 = vld [vmem:[%s328 + $0x28] sm:$0xf]
        %v449 = vld [vmem:[%s328 + $0x2c] sm:$0xf]
        %v450 = vld [vmem:[%s328 + $0x30] sm:$0xf]
        %v451 = vld [vmem:[%s328 + $0x34] sm:$0xf]
        %v452 = vld [vmem:[%s328 + $0x38] sm:$0xf]
        %v453 = vld [vmem:[%s328 + $0x3c] sm:$0xf]
        %v454 = vld [vmem:[%s328 + $0x40] sm:$0xf]
        %v455 = vld [vmem:[%s328 + $0x44] sm:$0xf]
        %v456 = vld [vmem:[%s328 + $0x48] sm:$0xf]
        %v457 = vld [vmem:[%s328 + $0x4c] sm:$0xf]
        %v458 = vld [vmem:[%s328 + $0x50] sm:$0xf]
        %v459 = vld [vmem:[%s328 + $0x54] sm:$0xf]
        %v460 = vld [vmem:[%s328 + $0x58] sm:$0xf]
        %v461 = vld [vmem:[%s328 + $0x5c] sm:$0xf]
        %v462 = vld [vmem:[%s371] sm:$0xf]
        %v463 = vld [vmem:[%s371 + $0x4] sm:$0xf]
        %v464 = vld [vmem:[%s371 + $0x8] sm:$0xf]
        %v465 = vld [vmem:[%s371 + $0xc] sm:$0xf]
        %v466 = vld [vmem:[%s371 + $0x10] sm:$0xf]
        %v467 = vld [vmem:[%s371 + $0x14] sm:$0xf]
        %v468 = vld [vmem:[%s371 + $0x18] sm:$0xf]
        %v469 = vld [vmem:[%s371 + $0x1c] sm:$0xf]
        %v470 = vld [vmem:[%s371 + $0x20] sm:$0xf]
        %v471 = vld [vmem:[%s371 + $0x24] sm:$0xf]
        %v472 = vld [vmem:[%s371 + $0x28] sm:$0xf]
        %v473 = vld [vmem:[%s371 + $0x2c] sm:$0xf]
        %v474 = vld [vmem:[%s371 + $0x30] sm:$0xf]
        %v475 = vld [vmem:[%s371 + $0x34] sm:$0xf]
        %v476 = vld [vmem:[%s371 + $0x38] sm:$0xf]
        %v477 = vld [vmem:[%s371 + $0x3c] sm:$0xf]
        %v502 = vunpack.c.l.b16 %v438
        %v503 = vunpack.c.l.b16 %v439
        %v504 = vunpack.c.l.b16 %v440
        %v505 = vunpack.c.l.b16 %v441
        %v506 = vunpack.c.l.b16 %v442
        %v507 = vunpack.c.l.b16 %v443
        %v508 = vunpack.c.l.b16 %v444
        %v509 = vunpack.c.l.b16 %v445
        %v510 = vunpack.c.l.b16 %v446
        %v511 = vunpack.c.l.b16 %v447
        %v512 = vunpack.c.l.b16 %v448
        %v513 = vunpack.c.l.b16 %v449
        %v514 = vunpack.c.l.b16 %v450
        %v515 = vunpack.c.l.b16 %v451
        %v516 = vunpack.c.l.b16 %v452
        %v517 = vunpack.c.l.b16 %v453
        %v518 = vunpack.c.l.b16 %v454
        %v519 = vunpack.c.l.b16 %v455
        %v520 = vunpack.c.l.b16 %v456
        %v521 = vunpack.c.l.b16 %v457
        %v522 = vunpack.c.l.b16 %v458
        %v523 = vunpack.c.l.b16 %v459
        %v524 = vunpack.c.l.b16 %v460
        %v525 = vunpack.c.l.b16 %v461
        %v526 = vpack.c.b16 %v503, %v502
        %v527 = vpack.c.b16 %v505, %v504
        %v528 = vpack.c.b16 %v507, %v506
        %v529 = vpack.c.b16 %v509, %v508
        %v530 = vpack.c.b16 %v511, %v510
        %v531 = vpack.c.b16 %v513, %v512
        %v532 = vpack.c.b16 %v515, %v514
        %v533 = vpack.c.b16 %v517, %v516
        %v534 = vpack.c.b16 %v519, %v518
        %v535 = vpack.c.b16 %v521, %v520
        %v536 = vpack.c.b16 %v523, %v522
        %v537 = vpack.c.b16 %v525, %v524
        %v566 = vunpack.c.l.b16 %v462
        %v567 = vunpack.c.l.b16 %v463
        %v568 = vunpack.c.l.b16 %v464
        %v569 = vunpack.c.l.b16 %v465
        %v570 = vunpack.c.l.b16 %v466
        %v571 = vunpack.c.l.b16 %v467
        %v572 = vunpack.c.l.b16 %v468
        %v573 = vunpack.c.l.b16 %v469
        %v574 = vunpack.c.l.b16 %v470
        %v575 = vunpack.c.l.b16 %v471
        %v576 = vunpack.c.l.b16 %v472
        %v577 = vunpack.c.l.b16 %v473
        %v578 = vunpack.c.l.b16 %v474
        %v579 = vunpack.c.l.b16 %v475
        %v580 = vunpack.c.l.b16 %v476
        %v581 = vunpack.c.l.b16 %v477
        %v582 = vpack.c.b16 %v567, %v566
        %v583 = vpack.c.b16 %v569, %v568
        %v584 = vpack.c.b16 %v571, %v570
        %v585 = vpack.c.b16 %v573, %v572
        %v586 = vpack.c.b16 %v575, %v574
        %v587 = vpack.c.b16 %v577, %v576
        %v588 = vpack.c.b16 %v579, %v578
        %v589 = vpack.c.b16 %v581, %v580
        %598 = vmatprep.subr.bf16.mxu0 0
        %599 = vmatpush1.bf16.msra.mxu0 %v582
        %600 = vmatprep.subr.bf16.mxu0 0
        %601 = vmatpush1.bf16.msra.mxu0 %v583
        %602 = vmatprep.subr.bf16.mxu0 0
        %603 = vmatpush1.bf16.msra.mxu0 %v584
        %604 = vmatprep.subr.bf16.mxu0 0
        %605 = vmatpush1.bf16.msra.mxu0 %v585
        %606 = vmatprep.subr.bf16.mxu0 0
        %607 = vmatpush1.bf16.msra.mxu0 %v586
        %608 = vmatprep.subr.bf16.mxu0 0
        %609 = vmatpush1.bf16.msra.mxu0 %v587
        %610 = vmatprep.subr.bf16.mxu0 0
        %611 = vmatpush1.bf16.msra.mxu0 %v588
        %612 = vmatprep.subr.bf16.mxu0 0
        %613 = vmatpush1.bf16.msra.mxu0 %v589
        %614 = vmatprep.subr.bf16.mxu0 0
        %615 = vmatpush1.bf16.msra.mxu0 0
        %616 = vmatprep.subr.bf16.mxu0 0
        %617 = vmatpush1.bf16.msra.mxu0 0
        %618 = vmatprep.subr.bf16.mxu0 0
        %619 = vmatpush1.bf16.msra.mxu0 0
        %620 = vmatprep.subr.bf16.mxu0 0
        %621 = vmatpush1.bf16.msra.mxu0 0
        %622 = vmatprep.subr.bf16.mxu0 0
        %623 = vmatpush1.bf16.msra.mxu0 0
        %624 = vmatprep.subr.bf16.mxu0 0
        %625 = vmatpush1.bf16.msra.mxu0 0
        %626 = vmatprep.subr.bf16.mxu0 0
        %627 = vmatpush1.bf16.msra.mxu0 0
        %628 = vmatprep.subr.bf16.mxu0 0
        %629 = vmatpush1.bf16.msra.mxu0 0
        %630 = vmatprep.mubr.bf16.mxu0 0
        %631 = vmatmul.mubr.bf16.gmra.mrb[0].mxu0 %v526
        %v632 = vpop.f32.mrb[0].mxu0
        %v633 = vadd.f32 0.0, %v632
        %v634 = vpop.f32.mrb[0].mxu0
        %v635 = vpop.f32.mrb[0].mxu0
        %v636 = vadd.f32 0.0, %v635
        %v637 = vpop.f32.mrb[0].mxu0
        %638 = vmatprep.mubr.bf16.mxu0 0
        %639 = vmatmul.mubr.bf16.gmra.mrb[0].mxu0 %v527
        %v640 = vpop.f32.mrb[0].mxu0
        %v641 = vadd.f32 0.0, %v640
        %v642 = vpop.f32.mrb[0].mxu0
        %v643 = vpop.f32.mrb[0].mxu0
        %v644 = vadd.f32 0.0, %v643
        %v645 = vpop.f32.mrb[0].mxu0
        %646 = vmatprep.mubr.bf16.mxu0 0
        %647 = vmatmul.mubr.bf16.gmra.mrb[0].mxu0 %v528
        %v648 = vpop.f32.mrb[0].mxu0
        %v649 = vadd.f32 0.0, %v648
        %v650 = vpop.f32.mrb[0].mxu0
        %v651 = vpop.f32.mrb[0].mxu0
        %v652 = vadd.f32 0.0, %v651
        %v653 = vpop.f32.mrb[0].mxu0
        %654 = vmatprep.mubr.bf16.mxu0 0
        %655 = vmatmul.mubr.bf16.gmra.mrb[0].mxu0 %v529
        %v656 = vpop.f32.mrb[0].mxu0
        %v657 = vadd.f32 0.0, %v656
        %v658 = vpop.f32.mrb[0].mxu0
        %v659 = vpop.f32.mrb[0].mxu0
        %v660 = vadd.f32 0.0, %v659
        %v661 = vpop.f32.mrb[0].mxu0
        %662 = vmatprep.mubr.bf16.mxu0 0
        %663 = vmatmul.mubr.bf16.gmra.mrb[0].mxu0 %v530
        %v664 = vpop.f32.mrb[0].mxu0
        %v665 = vadd.f32 0.0, %v664
        %v666 = vpop.f32.mrb[0].mxu0
        %v667 = vpop.f32.mrb[0].mxu0
        %v668 = vadd.f32 0.0, %v667
        %v669 = vpop.f32.mrb[0].mxu0
        %670 = vmatprep.mubr.bf16.mxu0 0
        %671 = vmatmul.mubr.bf16.gmra.mrb[0].mxu0 %v531
        %v672 = vpop.f32.mrb[0].mxu0
        %v673 = vadd.f32 0.0, %v672
        %v674 = vpop.f32.mrb[0].mxu0
        %v675 = vpop.f32.mrb[0].mxu0
        %v676 = vadd.f32 0.0, %v675
        %v677 = vpop.f32.mrb[0].mxu0
        %678 = vmatprep.mubr.bf16.mxu0 0
        %679 = vmatmul.mubr.bf16.gmra.mrb[0].mxu0 %v532
        %v680 = vpop.f32.mrb[0].mxu0
        %v681 = vadd.f32 0.0, %v680
        %v682 = vpop.f32.mrb[0].mxu0
        %v683 = vpop.f32.mrb[0].mxu0
        %v684 = vadd.f32 0.0, %v683
        %v685 = vpop.f32.mrb[0].mxu0
        %686 = vmatprep.mubr.bf16.mxu0 0
        %687 = vmatmul.mubr.bf16.gmra.mrb[0].mxu0 %v533
        %v688 = vpop.f32.mrb[0].mxu0
        %v689 = vadd.f32 0.0, %v688
        %v690 = vpop.f32.mrb[0].mxu0
        %v691 = vpop.f32.mrb[0].mxu0
        %v692 = vadd.f32 0.0, %v691
        %v693 = vpop.f32.mrb[0].mxu0
        %694 = vmatprep.mubr.bf16.mxu0 0
        %695 = vmatmul.mubr.bf16.gmra.mrb[0].mxu0 %v534
        %v696 = vpop.f32.mrb[0].mxu0
        %v697 = vadd.f32 0.0, %v696
        %v698 = vpop.f32.mrb[0].mxu0
        %v699 = vpop.f32.mrb[0].mxu0
        %v700 = vadd.f32 0.0, %v699
        %v701 = vpop.f32.mrb[0].mxu0
        %702 = vmatprep.mubr.bf16.mxu0 0
        %703 = vmatmul.mubr.bf16.gmra.mrb[0].mxu0 %v535
        %v704 = vpop.f32.mrb[0].mxu0
        %v705 = vadd.f32 0.0, %v704
        %v706 = vpop.f32.mrb[0].mxu0
        %v707 = vpop.f32.mrb[0].mxu0
        %v708 = vadd.f32 0.0, %v707
        %v709 = vpop.f32.mrb[0].mxu0
        %710 = vmatprep.mubr.bf16.mxu0 0
        %711 = vmatmul.mubr.bf16.gmra.mrb[0].mxu0 %v536
        %v712 = vpop.f32.mrb[0].mxu0
        %v713 = vadd.f32 0.0, %v712
        %v714 = vpop.f32.mrb[0].mxu0
        %v715 = vpop.f32.mrb[0].mxu0
        %v716 = vadd.f32 0.0, %v715
        %v717 = vpop.f32.mrb[0].mxu0
        %718 = vmatprep.mubr.bf16.mxu0 0
        %719 = vmatmul.mubr.bf16.gmra.mrb[0].mxu0 %v537
        %v720 = vpop.f32.mrb[0].mxu0
        %v721 = vadd.f32 0.0, %v720
        %v722 = vpop.f32.mrb[0].mxu0
        %v723 = vpop.f32.mrb[0].mxu0
        %v724 = vadd.f32 0.0, %v723
        %v725 = vpop.f32.mrb[0].mxu0
        %726 = vdwg.mxu0
        %v727 = vadd.f32 %v414, %v633
        %v728 = vadd.f32 %v415, %v636
        %v729 = vadd.f32 %v416, %v641
        %v730 = vadd.f32 %v417, %v644
        %v731 = vadd.f32 %v418, %v649
        %v732 = vadd.f32 %v419, %v652
        %v733 = vadd.f32 %v420, %v657
        %v734 = vadd.f32 %v421, %v660
        %v735 = vadd.f32 %v422, %v665
        %v736 = vadd.f32 %v423, %v668
        %v737 = vadd.f32 %v424, %v673
        %v738 = vadd.f32 %v425, %v676
        %v739 = vadd.f32 %v426, %v681
        %v740 = vadd.f32 %v427, %v684
        %v741 = vadd.f32 %v428, %v689
        %v742 = vadd.f32 %v429, %v692
        %v743 = vadd.f32 %v430, %v697
        %v744 = vadd.f32 %v431, %v700
        %v745 = vadd.f32 %v432, %v705
        %v746 = vadd.f32 %v433, %v708
        %v747 = vadd.f32 %v434, %v713
        %v748 = vadd.f32 %v435, %v716
        %v749 = vadd.f32 %v436, %v721
        %v750 = vadd.f32 %v437, %v724
        %751 = vst [vmem:[#allocation2] sm:$0xff] %v727
        %752 = vst [vmem:[#allocation2 + $0x8] sm:$0xff] %v728
        %753 = vst [vmem:[#allocation2 + $0x10] sm:$0xff] %v729
        %754 = vst [vmem:[#allocation2 + $0x18] sm:$0xff] %v730
        %755 = vst [vmem:[#allocation2 + $0x20] sm:$0xff] %v731
        %756 = vst [vmem:[#allocation2 + $0x28] sm:$0xff] %v732
        %757 = vst [vmem:[#allocation2 + $0x30] sm:$0xff] %v733
        %758 = vst [vmem:[#allocation2 + $0x38] sm:$0xff] %v734
        %759 = vst [vmem:[#allocation2 + $0x40] sm:$0xff] %v735
        %760 = vst [vmem:[#allocation2 + $0x48] sm:$0xff] %v736
        %761 = vst [vmem:[#allocation2 + $0x50] sm:$0xff] %v737
        %762 = vst [vmem:[#allocation2 + $0x58] sm:$0xff] %v738
        %763 = vst [vmem:[#allocation2 + $0x60] sm:$0xff] %v739
        %764 = vst [vmem:[#allocation2 + $0x68] sm:$0xff] %v740
        %765 = vst [vmem:[#allocation2 + $0x70] sm:$0xff] %v741
        %766 = vst [vmem:[#allocation2 + $0x78] sm:$0xff] %v742
        %767 = vst [vmem:[#allocation2 + $0x80] sm:$0xff] %v743
        %768 = vst [vmem:[#allocation2 + $0x88] sm:$0xff] %v744
        %769 = vst [vmem:[#allocation2 + $0x90] sm:$0xff] %v745
        %770 = vst [vmem:[#allocation2 + $0x98] sm:$0xff] %v746
        %771 = vst [vmem:[#allocation2 + $0xa0] sm:$0xff] %v747
        %772 = vst [vmem:[#allocation2 + $0xa8] sm:$0xff] %v748
        %773 = vst [vmem:[#allocation2 + $0xb0] sm:$0xff] %v749
        %774 = vst [vmem:[#allocation2 + $0xb8] sm:$0xff] %v750
        %p775 = scmp.eq.s32.totalorder %s21, 4
        // Predicated region
        $region78: #{motion_vqvae_forward.30} parent=68 // pred_check
          %p776 = pneg %p775
        $region79: #{motion_vqvae_forward.30} parent=68 // pred_check_branch
          %778 = sbr.rel (%p776) target = $region81
        $region80: #{motion_vqvae_forward.30} parent=68 // pred_region
          %v779 = vld [vmem:[#allocation2] sm:$0xff]
          %v780 = vld [vmem:[#allocation2 + $0x8] sm:$0xff]
          %v781 = vld [vmem:[#allocation2 + $0x10] sm:$0xff]
          %v782 = vld [vmem:[#allocation2 + $0x18] sm:$0xff]
          %v783 = vld [vmem:[#allocation2 + $0x20] sm:$0xff]
          %v784 = vld [vmem:[#allocation2 + $0x28] sm:$0xff]
          %v785 = vld [vmem:[#allocation2 + $0x30] sm:$0xff]
          %v786 = vld [vmem:[#allocation2 + $0x38] sm:$0xff]
          %v787 = vld [vmem:[#allocation2 + $0x40] sm:$0xff]
          %v788 = vld [vmem:[#allocation2 + $0x48] sm:$0xff]
          %v789 = vld [vmem:[#allocation2 + $0x50] sm:$0xff]
          %v790 = vld [vmem:[#allocation2 + $0x58] sm:$0xff]
          %v791 = vld [vmem:[#allocation2 + $0x60] sm:$0xff]
          %v792 = vld [vmem:[#allocation2 + $0x68] sm:$0xff]
          %v793 = vld [vmem:[#allocation2 + $0x70] sm:$0xff]
          %v794 = vld [vmem:[#allocation2 + $0x78] sm:$0xff]
          %v795 = vld [vmem:[#allocation2 + $0x80] sm:$0xff]
          %v796 = vld [vmem:[#allocation2 + $0x88] sm:$0xff]
          %v797 = vld [vmem:[#allocation2 + $0x90] sm:$0xff]
          %v798 = vld [vmem:[#allocation2 + $0x98] sm:$0xff]
          %v799 = vld [vmem:[#allocation2 + $0xa0] sm:$0xff]
          %v800 = vld [vmem:[#allocation2 + $0xa8] sm:$0xff]
          %v801 = vld [vmem:[#allocation2 + $0xb0] sm:$0xff]
          %v802 = vld [vmem:[#allocation2 + $0xb8] sm:$0xff]
          %v803 = vld [vmem:[%s375] sm:$0x1]
          %v805 = vlaneseq
          %v806 = vshrl.u32 %v805, 7
          %v807 = vsub.s32 0, %v806
          %v808 = vrot.slane %v803, %v807
          %v810 = vadd.f32 %v779, %v808
          %v811 = vadd.f32 %v780, %v808
          %v812 = vadd.f32 %v781, %v808
          %v813 = vadd.f32 %v782, %v808
          %v814 = vadd.f32 %v783, %v808
          %v815 = vadd.f32 %v784, %v808
          %v816 = vadd.f32 %v785, %v808
          %v817 = vadd.f32 %v786, %v808
          %v818 = vadd.f32 %v787, %v808
          %v819 = vadd.f32 %v788, %v808
          %v820 = vadd.f32 %v789, %v808
          %v821 = vadd.f32 %v790, %v808
          %v822 = vadd.f32 %v791, %v808
          %v823 = vadd.f32 %v792, %v808
          %v824 = vadd.f32 %v793, %v808
          %v825 = vadd.f32 %v794, %v808
          %v826 = vadd.f32 %v795, %v808
          %v827 = vadd.f32 %v796, %v808
          %v828 = vadd.f32 %v797, %v808
          %v829 = vadd.f32 %v798, %v808
          %v830 = vadd.f32 %v799, %v808
          %v831 = vadd.f32 %v800, %v808
          %v832 = vadd.f32 %v801, %v808
          %v833 = vadd.f32 %v802, %v808
          %834 = vst [vmem:[%s383] sm:$0xff] %v810
          %835 = vst [vmem:[%s383 + $0x8] sm:$0xff] %v811
          %836 = vst [vmem:[%s383 + $0x10] sm:$0xff] %v812
          %837 = vst [vmem:[%s383 + $0x18] sm:$0xff] %v813
          %838 = vst [vmem:[%s383 + $0x20] sm:$0xff] %v814
          %839 = vst [vmem:[%s383 + $0x28] sm:$0xff] %v815
          %840 = vst [vmem:[%s383 + $0x30] sm:$0xff] %v816
          %841 = vst [vmem:[%s383 + $0x38] sm:$0xff] %v817
          %842 = vst [vmem:[%s383 + $0x40] sm:$0xff] %v818
          %843 = vst [vmem:[%s383 + $0x48] sm:$0xff] %v819
          %844 = vst [vmem:[%s383 + $0x50] sm:$0xff] %v820
          %845 = vst [vmem:[%s383 + $0x58] sm:$0xff] %v821
          %846 = vst [vmem:[%s383 + $0x60] sm:$0xff] %v822
          %847 = vst [vmem:[%s383 + $0x68] sm:$0xff] %v823
          %848 = vst [vmem:[%s383 + $0x70] sm:$0xff] %v824
          %849 = vst [vmem:[%s383 + $0x78] sm:$0xff] %v825
          %850 = vst [vmem:[%s383 + $0x80] sm:$0xff] %v826
          %851 = vst [vmem:[%s383 + $0x88] sm:$0xff] %v827
          %852 = vst [vmem:[%s383 + $0x90] sm:$0xff] %v828
          %853 = vst [vmem:[%s383 + $0x98] sm:$0xff] %v829
          %854 = vst [vmem:[%s383 + $0xa0] sm:$0xff] %v830
          %855 = vst [vmem:[%s383 + $0xa8] sm:$0xff] %v831
          %856 = vst [vmem:[%s383 + $0xb0] sm:$0xff] %v832
          %857 = vst [vmem:[%s383 + $0xb8] sm:$0xff] %v833
        $region81: #{motion_vqvae_forward.30} parent=68 // pred_fallthru
          _
        %s858 = smul.u32 24, %s19
        %p859 = scmp.lt.s32.totalorder %s858, 23
        %s860 = scalar_select %p859, %s858, 23
        %p861 = scmp.lt.s32.totalorder %s20, 0
        %s862 = scalar_select %p861, %s20, 0
        %s863 = sadd.s32 %s862, %s860
        %s864 = smul.addr %s863, 8
        %s865 = scalar_lea.vmem %s3, %s864
        // Predicated region
        $region82: #{motion_vqvae_forward.30} parent=68 // pred_check
          %p866 = pneg %p135
        $region83: #{motion_vqvae_forward.30} parent=68 // pred_check_branch
          %868 = sbr.rel (%p866) target = $region85
        $region84: #{motion_vqvae_forward.30} parent=68 // pred_region
          %s869 = smul.u32 24, %s19
        $region85: #{motion_vqvae_forward.30} parent=68 // pred_fallthru
          _
        // Predicated region
        $region86: #{motion_vqvae_forward.30} parent=68 // pred_check
          %p870 = pneg %p135
        $region87: #{motion_vqvae_forward.30} parent=68 // pred_check_branch
          %872 = sbr.rel (%p870) target = $region89
        $region88: #{motion_vqvae_forward.30} parent=68 // pred_region
          %s873 = smul.u32 24, %s19
          %p874 = scmp.lt.s32.totalorder %s873, 23
          %s875 = scalar_select %p874, %s873, 23
          %p876 = scmp.lt.s32.totalorder %s20, 0
          %s877 = scalar_select %p876, %s20, 0
          %s878 = sadd.s32 %s877, %s875
          %s879 = smul.addr %s878, 8
          %s880 = scalar_lea.vmem %s3, %s879
        $region89: #{motion_vqvae_forward.30} parent=68 // pred_fallthru
          _
      $region69: #{motion_vqvae_forward.30} parent=5 // pred_fallthru
        _
      %p881 = scmp.le.s32.totalorder 2, %s9
      // Predicated region
      $region90: #{motion_vqvae_forward.30} parent=5 // pred_check
        %p882 = pneg %p881
      $region91: #{motion_vqvae_forward.30} parent=5 // pred_check_branch
        %884 = sbr.rel (%p882) target = $region93
      $region92: #{motion_vqvae_forward.30} parent=5 // pred_region
        %s885 = ssub.s32 %s9, 2
      $region93: #{motion_vqvae_forward.30} parent=5 // pred_fallthru
        _
    $region6: #{motion_vqvae_forward.30} parent=1 // loop_footer
      %s13 = sadd.s32 1, %s9
    $region7: #{motion_vqvae_forward.30} parent=1 // loop_footer_branch
      %8 = sbr.rel target = $region3
    $region8: #{motion_vqvae_forward.30} parent=1 // loop_exit
      _

// kernel: motion_vqvae_forward.31
$region0: #{motion_vqvae_forward.31}
  #allocation0 [shape = 'u32[]', space=smem, size = 0x4, offset = 0x4, fixed_abs, tag = 'smem constant byte address 0x4 - core index']
  #allocation1 [shape = 'u32[144,128]{1,0:T(1,128)}', space=vmem, size = 0x12000, scoped, tag = 'internal scratch']
  #allocation2 [shape = 'f32[256,128]{1,0:T(8,128)}', space=vmem, size = 0x20000, scoped, tag = 'scratch operand']
  %s0 = inlined_call_operand.vmem [shape: bf16[768,384], index: 0, kind: input, shape index: {}]
  %s1 = inlined_call_operand.vmem [shape: bf16[384,128], index: 1, kind: input, shape index: {}]
  %s2 = inlined_call_operand.vmem [shape: f32[1,128], index: 2, kind: input, shape index: {}]
  %s3 = inlined_call_operand.vmem [shape: f32[768,128], index: 3, kind: output, shape index: {}]
  %s4 = sld [smem:[#allocation0]]
  $region53: #{motion_vqvae_forward.31} parent=0
    _
  %s6 = ssub.s32 1, %s4
  %s7 = scalar_select 0, %s6, %s4
  loop: start=0, step=1, limit=5
  $region2: #{motion_vqvae_forward.31} parent=0 // loop_pre_header
    _
  $region3: #{motion_vqvae_forward.31} parent=0 // loop_header
    %s9 = sphi 0, %s13
    %p10 = scmp.ge.s32.totalorder %s9, 5
    %s16 = sphi 0, %s35
    %s17 = sphi 0, %s31
    %s18 = sphi 0, %s27
    %s19 = sphi 0, %s16
    %s20 = sphi 0, %s17
    %s21 = sphi 0, %s18
    %s22 = sphi 0, %s19
    %s23 = sphi 0, %s20
    %s24 = sphi 0, %s21
    %s40 = sphi 0, %s42
    %s43 = sphi 0, %s40
    %s44 = sphi 0, %s43
    %s60 = sphi 0, %s44
    %s68 = sphi 0, %s70
    %s71 = sphi 0, %s68
    %s72 = sphi 0, %s71
    %s88 = sphi 0, %s72
    %s94 = sphi 0, %s96
    %s97 = sphi 0, %s94
    %s98 = sphi 0, %s97
    %s114 = sphi 0, %s98
    %s122 = sphi 0, %s124
    %s125 = sphi 0, %s122
    %s126 = sphi 0, %s125
    %s142 = sphi 0, %s126
  $region4: #{motion_vqvae_forward.31} parent=0 // loop_header_branch
    %12 = sbr.rel (%p10) target = $region8
  $region5: #{motion_vqvae_forward.31} parent=0 // loop_body
    %s14 = ssub.s32 %s9, 1
    %s15 = ssub.s32 %s9, 2
    %s25 = sadd.s32 1, %s18
    %p26 = scmp.ge.s32.totalorder %s25, 1
    %s27 = scalar_select %p26, 0, %s25
    %s28 = sadd.s32 1, %s17
    %s29 = scalar_select %p26, %s28, %s17
    %p30 = scmp.ge.s32.totalorder %s29, 1
    %s31 = scalar_select %p30, 0, %s29
    %s32 = sadd.s32 1, %s16
    %s33 = scalar_select %p30, %s32, %s16
    %p34 = scmp.ge.s32.totalorder %s33, 3
    %s35 = scalar_select %p34, 0, %s33
    %s36 = ssub.s32 %s16, %s35
    %s37 = ssub.s32 %s18, %s27
    %s38 = sor.u32 %s36, %s37
    %p39 = scmp.eq.s32.totalorder %s38, 0
    %s41 = sadd.s32 %s40, 1
    %s42 = scalar_select %p39, %s40, %s41
    %p45 = pneg %p39
    %p46 = scmp.eq.s32.totalorder %s9, 2
    %p47 = por %p45, %p46
    %p48 = scmp.ne.s32.totalorder %s40, %s43
    %p49 = scmp.eq.s32.totalorder %s9, 0
    %p50 = por %p48, %p49
    %p51 = scmp.ne.s32.totalorder %s40, %s43
    %p52 = scmp.eq.s32.totalorder %s14, 2
    %p53 = por %p51, %p52
    %p54 = scmp.ne.s32.totalorder %s43, %s44
    %p55 = scmp.eq.s32.totalorder %s14, 0
    %p56 = por %p54, %p55
    %p57 = scmp.ne.s32.totalorder %s43, %s44
    %p58 = scmp.eq.s32.totalorder %s15, 2
    %p59 = por %p57, %p58
    %p61 = scmp.ne.s32.totalorder %s44, %s60
    %p62 = scmp.eq.s32.totalorder %s15, 0
    %p63 = por %p61, %p62
    %s64 = ssub.s32 %s18, %s27
    %s65 = ssub.s32 %s17, %s31
    %s66 = sor.u32 %s64, %s65
    %p67 = scmp.eq.s32.totalorder %s66, 0
    %s69 = sadd.s32 %s68, 1
    %s70 = scalar_select %p67, %s68, %s69
    %p73 = pneg %p67
    %p74 = scmp.eq.s32.totalorder %s9, 2
    %p75 = por %p73, %p74
    %p76 = scmp.ne.s32.totalorder %s68, %s71
    %p77 = scmp.eq.s32.totalorder %s9, 0
    %p78 = por %p76, %p77
    %p79 = scmp.ne.s32.totalorder %s68, %s71
    %p80 = scmp.eq.s32.totalorder %s14, 2
    %p81 = por %p79, %p80
    %p82 = scmp.ne.s32.totalorder %s71, %s72
    %p83 = scmp.eq.s32.totalorder %s14, 0
    %p84 = por %p82, %p83
    %p85 = scmp.ne.s32.totalorder %s71, %s72
    %p86 = scmp.eq.s32.totalorder %s15, 2
    %p87 = por %p85, %p86
    %p89 = scmp.ne.s32.totalorder %s72, %s88
    %p90 = scmp.eq.s32.totalorder %s15, 0
    %p91 = por %p89, %p90
    %s92 = ssub.s32 %s17, %s31
    %p93 = scmp.eq.s32.totalorder %s92, 0
    %s95 = sadd.s32 %s94, 1
    %s96 = scalar_select %p93, %s94, %s95
    %p99 = pneg %p93
    %p100 = scmp.eq.s32.totalorder %s9, 2
    %p101 = por %p99, %p100
    %p102 = scmp.ne.s32.totalorder %s94, %s97
    %p103 = scmp.eq.s32.totalorder %s9, 0
    %p104 = por %p102, %p103
    %p105 = scmp.ne.s32.totalorder %s94, %s97
    %p106 = scmp.eq.s32.totalorder %s14, 2
    %p107 = por %p105, %p106
    %p108 = scmp.ne.s32.totalorder %s97, %s98
    %p109 = scmp.eq.s32.totalorder %s14, 0
    %p110 = por %p108, %p109
    %p111 = scmp.ne.s32.totalorder %s97, %s98
    %p112 = scmp.eq.s32.totalorder %s15, 2
    %p113 = por %p111, %p112
    %p115 = scmp.ne.s32.totalorder %s98, %s114
    %p116 = scmp.eq.s32.totalorder %s15, 0
    %p117 = por %p115, %p116
    %s118 = ssub.s32 %s16, %s35
    %s119 = ssub.s32 %s17, %s31
    %s120 = sor.u32 %s118, %s119
    %p121 = scmp.eq.s32.totalorder %s120, 0
    %s123 = sadd.s32 %s122, 1
    %s124 = scalar_select %p121, %s122, %s123
    %p127 = pneg %p121
    %p128 = scmp.eq.s32.totalorder %s9, 2
    %p129 = por %p127, %p128
    %p130 = scmp.ne.s32.totalorder %s122, %s125
    %p131 = scmp.eq.s32.totalorder %s9, 0
    %p132 = por %p130, %p131
    %p133 = scmp.ne.s32.totalorder %s122, %s125
    %p134 = scmp.eq.s32.totalorder %s14, 2
    %p135 = por %p133, %p134
    %p136 = scmp.ne.s32.totalorder %s125, %s126
    %p137 = scmp.eq.s32.totalorder %s14, 0
    %p138 = por %p136, %p137
    %p139 = scmp.ne.s32.totalorder %s125, %s126
    %p140 = scmp.eq.s32.totalorder %s15, 2
    %p141 = por %p139, %p140
    %p143 = scmp.ne.s32.totalorder %s126, %s142
    %p144 = scmp.eq.s32.totalorder %s15, 0
    %p145 = por %p143, %p144
    %p146 = scmp.le.s32.totalorder 1, %s9
    %p147 = scmp.lt.s32.totalorder %s9, 4
    %p148 = pnand %p146, %p147
    %p149 = pneg %p148
    // Predicated region
    $region9: #{motion_vqvae_forward.31} parent=5 // pred_check
      _
    $region10: #{motion_vqvae_forward.31} parent=5 // pred_check_branch
      %151 = sbr.rel (%p148) target = $region12
    $region11: #{motion_vqvae_forward.31} parent=5 // pred_region
      %s152 = ssub.s32 %s9, 1
      // Predicated region
      $region13: #{motion_vqvae_forward.31} parent=11 // pred_check
        %p153 = pneg %p84
      $region14: #{motion_vqvae_forward.31} parent=11 // pred_check_branch
        %155 = sbr.rel (%p153) target = $region16
      $region15: #{motion_vqvae_forward.31} parent=11 // pred_region
        %s156 = smul.u32 48, %s21
        %p157 = scmp.lt.s32.totalorder %s156, 47
        %s158 = scalar_select %p157, %s156, 47
        %p159 = scmp.lt.s32.totalorder %s20, 0
        %s160 = scalar_select %p159, %s20, 0
        %s161 = sadd.s32 %s160, %s158
        %s162 = smul.addr %s161, 4
        %s163 = scalar_lea.vmem %s1, %s162
        %s164 = smul.u32 48, %s21
      $region16: #{motion_vqvae_forward.31} parent=11 // pred_fallthru
        _
      // Predicated region
      $region17: #{motion_vqvae_forward.31} parent=11 // pred_check
        %p165 = pneg %p110
      $region18: #{motion_vqvae_forward.31} parent=11 // pred_check_branch
        %167 = sbr.rel (%p165) target = $region20
      $region19: #{motion_vqvae_forward.31} parent=11 // pred_region
        %p168 = scmp.lt.s32.totalorder %s20, 0
        %s169 = scalar_select %p168, %s20, 0
        %s170 = scalar_lea.vmem %s2, %s169
      $region20: #{motion_vqvae_forward.31} parent=11 // pred_fallthru
        _
    $region12: #{motion_vqvae_forward.31} parent=5 // pred_fallthru
      _
    %p171 = scmp.lt.s32.totalorder %s9, 3
    // Predicated region
    $region21: #{motion_vqvae_forward.31} parent=5 // pred_check
      %p172 = pneg %p171
    $region22: #{motion_vqvae_forward.31} parent=5 // pred_check_branch
      %174 = sbr.rel (%p172) target = $region24
    $region23: #{motion_vqvae_forward.31} parent=5 // pred_region
      // Predicated region
      $region25: #{motion_vqvae_forward.31} parent=23 // pred_check
        %p175 = pneg %p50
      $region26: #{motion_vqvae_forward.31} parent=23 // pred_check_branch
        %177 = sbr.rel (%p175) target = $region28
      $region27: #{motion_vqvae_forward.31} parent=23 // pred_region
        %s178 = smul.u32 32, %s16
        %s179 = smul.u32 3, %s18
        %p180 = scmp.lt.s32.totalorder %s178, 95
        %s181 = scalar_select %p180, %s178, 95
        %p182 = scmp.lt.s32.totalorder %s179, 2
        %s183 = scalar_select %p182, %s179, 2
        %s184 = smul.addr %s181, 3
        %s185 = sadd.s32 %s183, %s184
        %s186 = smul.addr %s185, 4
        %s187 = scalar_lea.vmem %s0, %s186
        %s188 = smul.u32 32, %s16
        %s189 = smul.u32 3, %s18
      $region28: #{motion_vqvae_forward.31} parent=23 // pred_fallthru
        _
    $region24: #{motion_vqvae_forward.31} parent=5 // pred_fallthru
      _
    %p190 = scmp.le.s32.totalorder 1, %s9
    %p191 = scmp.lt.s32.totalorder %s9, 4
    %p192 = pnand %p190, %p191
    %p193 = pneg %p192
    // Predicated region
    $region29: #{motion_vqvae_forward.31} parent=5 // pred_check
      _
    $region30: #{motion_vqvae_forward.31} parent=5 // pred_check_branch
      %195 = sbr.rel (%p192) target = $region32
    $region31: #{motion_vqvae_forward.31} parent=5 // pred_region
      %s196 = ssub.s32 %s9, 1
      %s197 = smul.u32 32, %s19
      %s198 = smul.u32 3, %s21
      %p199 = scmp.lt.s32.totalorder %s197, 95
      %s200 = scalar_select %p199, %s197, 95
      %p201 = scmp.lt.s32.totalorder %s198, 2
      %s202 = scalar_select %p201, %s198, 2
      %s203 = smul.addr %s200, 3
      %s204 = sadd.s32 %s202, %s203
      %s205 = smul.addr %s204, 4
      %s206 = scalar_lea.vmem %s0, %s205
      %p207 = pneg %p56
      %p208 = pneg %p53
      %s209 = smul.u32 48, %s21
      %p210 = scmp.lt.s32.totalorder %s209, 47
      %s211 = scalar_select %p210, %s209, 47
      %p212 = scmp.lt.s32.totalorder %s20, 0
      %s213 = scalar_select %p212, %s20, 0
      %s214 = sadd.s32 %s213, %s211
      %s215 = smul.addr %s214, 4
      %s216 = scalar_lea.vmem %s1, %s215
      %p217 = pneg %p84
      %p218 = pneg %p81
      %p219 = scmp.lt.s32.totalorder %s20, 0
      %s220 = scalar_select %p219, %s20, 0
      %s221 = scalar_lea.vmem %s2, %s220
      %p222 = pneg %p110
      %p223 = pneg %p107
      %p224 = pneg %p138
      %p225 = pneg %p135
      %s226 = smul.u32 32, %s19
      %p227 = scmp.lt.s32.totalorder %s226, 95
      %s228 = scalar_select %p227, %s226, 95
      %p229 = scmp.lt.s32.totalorder %s20, 0
      %s230 = scalar_select %p229, %s20, 0
      %s231 = sadd.s32 %s230, %s228
      %s232 = smul.addr %s231, 8
      %s233 = scalar_lea.vmem %s3, %s232
      %s234 = smul.u32 32, %s19
      %s235 = smul.u32 3, %s21
      %p236 = scmp.lt.s32.totalorder %s234, 95
      %s237 = scalar_select %p236, %s234, 95
      %p238 = scmp.lt.s32.totalorder %s235, 2
      %s239 = scalar_select %p238, %s235, 2
      %s240 = smul.addr %s237, 3
      %s241 = sadd.s32 %s239, %s240
      %s242 = smul.addr %s241, 4
      %s243 = scalar_lea.vmem %s0, %s242
      %s244 = smul.u32 32, %s19
      %s245 = smul.u32 3, %s21
      %s246 = smul.u32 48, %s21
      %p247 = scmp.lt.s32.totalorder %s246, 47
      %s248 = scalar_select %p247, %s246, 47
      %p249 = scmp.lt.s32.totalorder %s20, 0
      %s250 = scalar_select %p249, %s20, 0
      %s251 = sadd.s32 %s250, %s248
      %s252 = smul.addr %s251, 4
      %s253 = scalar_lea.vmem %s1, %s252
      %s254 = smul.u32 48, %s21
      %p255 = scmp.lt.s32.totalorder %s20, 0
      %s256 = scalar_select %p255, %s20, 0
      %s257 = scalar_lea.vmem %s2, %s256
      %s258 = smul.u32 32, %s19
      %p259 = scmp.lt.s32.totalorder %s258, 95
      %s260 = scalar_select %p259, %s258, 95
      %p261 = scmp.lt.s32.totalorder %s20, 0
      %s262 = scalar_select %p261, %s20, 0
      %s263 = sadd.s32 %s262, %s260
      %s264 = smul.addr %s263, 8
      %s265 = scalar_lea.vmem %s3, %s264
      %s266 = smul.u32 32, %s19
      %p268 = scmp.eq.s32.totalorder %s21, 0
      // Predicated region
      $region33: #{motion_vqvae_forward.31} parent=31 // pred_check
        %p269 = pneg %p268
      $region34: #{motion_vqvae_forward.31} parent=31 // pred_check_branch
        %271 = sbr.rel (%p269) target = $region36
      $region35: #{motion_vqvae_forward.31} parent=31 // pred_region
        %272 = vst [vmem:[#allocation2] sm:$0xff] 0.0
        %273 = vst [vmem:[#allocation2 + $0x8] sm:$0xff] 0.0
        %274 = vst [vmem:[#allocation2 + $0x10] sm:$0xff] 0.0
        %275 = vst [vmem:[#allocation2 + $0x18] sm:$0xff] 0.0
        %276 = vst [vmem:[#allocation2 + $0x20] sm:$0xff] 0.0
        %277 = vst [vmem:[#allocation2 + $0x28] sm:$0xff] 0.0
        %278 = vst [vmem:[#allocation2 + $0x30] sm:$0xff] 0.0
        %279 = vst [vmem:[#allocation2 + $0x38] sm:$0xff] 0.0
        %280 = vst [vmem:[#allocation2 + $0x40] sm:$0xff] 0.0
        %281 = vst [vmem:[#allocation2 + $0x48] sm:$0xff] 0.0
        %282 = vst [vmem:[#allocation2 + $0x50] sm:$0xff] 0.0
        %283 = vst [vmem:[#allocation2 + $0x58] sm:$0xff] 0.0
        %284 = vst [vmem:[#allocation2 + $0x60] sm:$0xff] 0.0
        %285 = vst [vmem:[#allocation2 + $0x68] sm:$0xff] 0.0
        %286 = vst [vmem:[#allocation2 + $0x70] sm:$0xff] 0.0
        %287 = vst [vmem:[#allocation2 + $0x78] sm:$0xff] 0.0
        %288 = vst [vmem:[#allocation2 + $0x80] sm:$0xff] 0.0
        %289 = vst [vmem:[#allocation2 + $0x88] sm:$0xff] 0.0
        %290 = vst [vmem:[#allocation2 + $0x90] sm:$0xff] 0.0
        %291 = vst [vmem:[#allocation2 + $0x98] sm:$0xff] 0.0
        %292 = vst [vmem:[#allocation2 + $0xa0] sm:$0xff] 0.0
        %293 = vst [vmem:[#allocation2 + $0xa8] sm:$0xff] 0.0
        %294 = vst [vmem:[#allocation2 + $0xb0] sm:$0xff] 0.0
        %295 = vst [vmem:[#allocation2 + $0xb8] sm:$0xff] 0.0
        %296 = vst [vmem:[#allocation2 + $0xc0] sm:$0xff] 0.0
        %297 = vst [vmem:[#allocation2 + $0xc8] sm:$0xff] 0.0
        %298 = vst [vmem:[#allocation2 + $0xd0] sm:$0xff] 0.0
        %299 = vst [vmem:[#allocation2 + $0xd8] sm:$0xff] 0.0
        %300 = vst [vmem:[#allocation2 + $0xe0] sm:$0xff] 0.0
        %301 = vst [vmem:[#allocation2 + $0xe8] sm:$0xff] 0.0
        %302 = vst [vmem:[#allocation2 + $0xf0] sm:$0xff] 0.0
        %303 = vst [vmem:[#allocation2 + $0xf8] sm:$0xff] 0.0
      $region36: #{motion_vqvae_forward.31} parent=31 // pred_fallthru
        _
      %v304 = vld [vmem:[#allocation2] sm:$0xff]
      %v305 = vld [vmem:[#allocation2 + $0x8] sm:$0xff]
      %v306 = vld [vmem:[#allocation2 + $0x10] sm:$0xff]
      %v307 = vld [vmem:[#allocation2 + $0x18] sm:$0xff]
      %v308 = vld [vmem:[#allocation2 + $0x20] sm:$0xff]
      %v309 = vld [vmem:[#allocation2 + $0x28] sm:$0xff]
      %v310 = vld [vmem:[#allocation2 + $0x30] sm:$0xff]
      %v311 = vld [vmem:[#allocation2 + $0x38] sm:$0xff]
      %v312 = vld [vmem:[#allocation2 + $0x40] sm:$0xff]
      %v313 = vld [vmem:[#allocation2 + $0x48] sm:$0xff]
      %v314 = vld [vmem:[#allocation2 + $0x50] sm:$0xff]
      %v315 = vld [vmem:[#allocation2 + $0x58] sm:$0xff]
      %v316 = vld [vmem:[#allocation2 + $0x60] sm:$0xff]
      %v317 = vld [vmem:[#allocation2 + $0x68] sm:$0xff]
      %v318 = vld [vmem:[#allocation2 + $0x70] sm:$0xff]
      %v319 = vld [vmem:[#allocation2 + $0x78] sm:$0xff]
      %v320 = vld [vmem:[#allocation2 + $0x80] sm:$0xff]
      %v321 = vld [vmem:[#allocation2 + $0x88] sm:$0xff]
      %v322 = vld [vmem:[#allocation2 + $0x90] sm:$0xff]
      %v323 = vld [vmem:[#allocation2 + $0x98] sm:$0xff]
      %v324 = vld [vmem:[#allocation2 + $0xa0] sm:$0xff]
      %v325 = vld [vmem:[#allocation2 + $0xa8] sm:$0xff]
      %v326 = vld [vmem:[#allocation2 + $0xb0] sm:$0xff]
      %v327 = vld [vmem:[#allocation2 + $0xb8] sm:$0xff]
      %v328 = vld [vmem:[#allocation2 + $0xc0] sm:$0xff]
      %v329 = vld [vmem:[#allocation2 + $0xc8] sm:$0xff]
      %v330 = vld [vmem:[#allocation2 + $0xd0] sm:$0xff]
      %v331 = vld [vmem:[#allocation2 + $0xd8] sm:$0xff]
      %v332 = vld [vmem:[#allocation2 + $0xe0] sm:$0xff]
      %v333 = vld [vmem:[#allocation2 + $0xe8] sm:$0xff]
      %v334 = vld [vmem:[#allocation2 + $0xf0] sm:$0xff]
      %v335 = vld [vmem:[#allocation2 + $0xf8] sm:$0xff]
      %v336 = vld [vmem:[%s243] sm:$0xff]
      %v337 = vld [vmem:[%s243 + $0x8] sm:$0xf]
      %v338 = vld [vmem:[%s243 + $0xc] sm:$0xff]
      %v339 = vld [vmem:[%s243 + $0x14] sm:$0xf]
      %v340 = vld [vmem:[%s243 + $0x18] sm:$0xff]
      %v341 = vld [vmem:[%s243 + $0x20] sm:$0xf]
      %v342 = vld [vmem:[%s243 + $0x24] sm:$0xff]
      %v343 = vld [vmem:[%s243 + $0x2c] sm:$0xf]
      %v344 = vld [vmem:[%s243 + $0x30] sm:$0xff]
      %v345 = vld [vmem:[%s243 + $0x38] sm:$0xf]
      %v346 = vld [vmem:[%s243 + $0x3c] sm:$0xff]
      %v347 = vld [vmem:[%s243 + $0x44] sm:$0xf]
      %v348 = vld [vmem:[%s243 + $0x48] sm:$0xff]
      %v349 = vld [vmem:[%s243 + $0x50] sm:$0xf]
      %v350 = vld [vmem:[%s243 + $0x54] sm:$0xff]
      %v351 = vld [vmem:[%s243 + $0x5c] sm:$0xf]
      %v352 = vld [vmem:[%s243 + $0x60] sm:$0xff]
      %v353 = vld [vmem:[%s243 + $0x68] sm:$0xf]
      %v354 = vld [vmem:[%s243 + $0x6c] sm:$0xff]
      %v355 = vld [vmem:[%s243 + $0x74] sm:$0xf]
      %v356 = vld [vmem:[%s243 + $0x78] sm:$0xff]
      %v357 = vld [vmem:[%s243 + $0x80] sm:$0xf]
      %v358 = vld [vmem:[%s243 + $0x84] sm:$0xff]
      %v359 = vld [vmem:[%s243 + $0x8c] sm:$0xf]
      %v360 = vld [vmem:[%s243 + $0x90] sm:$0xff]
      %v361 = vld [vmem:[%s243 + $0x98] sm:$0xf]
      %v362 = vld [vmem:[%s243 + $0x9c] sm:$0xff]
      %v363 = vld [vmem:[%s243 + $0xa4] sm:$0xf]
      %v364 = vld [vmem:[%s243 + $0xa8] sm:$0xff]
      %v365 = vld [vmem:[%s243 + $0xb0] sm:$0xf]
      %v366 = vld [vmem:[%s243 + $0xb4] sm:$0xff]
      %v367 = vld [vmem:[%s243 + $0xbc] sm:$0xf]
      %v368 = vld [vmem:[%s243 + $0xc0] sm:$0xff]
      %v369 = vld [vmem:[%s243 + $0xc8] sm:$0xf]
      %v370 = vld [vmem:[%s243 + $0xcc] sm:$0xff]
      %v371 = vld [vmem:[%s243 + $0xd4] sm:$0xf]
      %v372 = vld [vmem:[%s243 + $0xd8] sm:$0xff]
      %v373 = vld [vmem:[%s243 + $0xe0] sm:$0xf]
      %v374 = vld [vmem:[%s243 + $0xe4] sm:$0xff]
      %v375 = vld [vmem:[%s243 + $0xec] sm:$0xf]
      %v376 = vld [vmem:[%s243 + $0xf0] sm:$0xff]
      %v377 = vld [vmem:[%s243 + $0xf8] sm:$0xf]
      %v378 = vld [vmem:[%s243 + $0xfc] sm:$0xff]
      %v379 = vld [vmem:[%s243 + $0x104] sm:$0xf]
      %v380 = vld [vmem:[%s243 + $0x108] sm:$0xff]
      %v381 = vld [vmem:[%s243 + $0x110] sm:$0xf]
      %v382 = vld [vmem:[%s243 + $0x114] sm:$0xff]
      %v383 = vld [vmem:[%s243 + $0x11c] sm:$0xf]
      %v384 = vld [vmem:[%s243 + $0x120] sm:$0xff]
      %v385 = vld [vmem:[%s243 + $0x128] sm:$0xf]
      %v386 = vld [vmem:[%s243 + $0x12c] sm:$0xff]
      %v387 = vld [vmem:[%s243 + $0x134] sm:$0xf]
      %v388 = vld [vmem:[%s243 + $0x138] sm:$0xff]
      %v389 = vld [vmem:[%s243 + $0x140] sm:$0xf]
      %v390 = vld [vmem:[%s243 + $0x144] sm:$0xff]
      %v391 = vld [vmem:[%s243 + $0x14c] sm:$0xf]
      %v392 = vld [vmem:[%s243 + $0x150] sm:$0xff]
      %v393 = vld [vmem:[%s243 + $0x158] sm:$0xf]
      %v394 = vld [vmem:[%s243 + $0x15c] sm:$0xff]
      %v395 = vld [vmem:[%s243 + $0x164] sm:$0xf]
      %v396 = vld [vmem:[%s243 + $0x168] sm:$0xff]
      %v397 = vld [vmem:[%s243 + $0x170] sm:$0xf]
      %v398 = vld [vmem:[%s243 + $0x174] sm:$0xff]
      %v399 = vld [vmem:[%s243 + $0x17c] sm:$0xf]
      %v400 = vld [vmem:[%s253] sm:$0xf]
      %v401 = vld [vmem:[%s253 + $0x4] sm:$0xf]
      %v402 = vld [vmem:[%s253 + $0x8] sm:$0xf]
      %v403 = vld [vmem:[%s253 + $0xc] sm:$0xf]
      %v404 = vld [vmem:[%s253 + $0x10] sm:$0xf]
      %v405 = vld [vmem:[%s253 + $0x14] sm:$0xf]
      %v406 = vld [vmem:[%s253 + $0x18] sm:$0xf]
      %v407 = vld [vmem:[%s253 + $0x1c] sm:$0xf]
      %v408 = vld [vmem:[%s253 + $0x20] sm:$0xf]
      %v409 = vld [vmem:[%s253 + $0x24] sm:$0xf]
      %v410 = vld [vmem:[%s253 + $0x28] sm:$0xf]
      %v411 = vld [vmem:[%s253 + $0x2c] sm:$0xf]
      %v412 = vld [vmem:[%s253 + $0x30] sm:$0xf]
      %v413 = vld [vmem:[%s253 + $0x34] sm:$0xf]
      %v414 = vld [vmem:[%s253 + $0x38] sm:$0xf]
      %v415 = vld [vmem:[%s253 + $0x3c] sm:$0xf]
      %v416 = vld [vmem:[%s253 + $0x40] sm:$0xf]
      %v417 = vld [vmem:[%s253 + $0x44] sm:$0xf]
      %v418 = vld [vmem:[%s253 + $0x48] sm:$0xf]
      %v419 = vld [vmem:[%s253 + $0x4c] sm:$0xf]
      %v420 = vld [vmem:[%s253 + $0x50] sm:$0xf]
      %v421 = vld [vmem:[%s253 + $0x54] sm:$0xf]
      %v422 = vld [vmem:[%s253 + $0x58] sm:$0xf]
      %v423 = vld [vmem:[%s253 + $0x5c] sm:$0xf]
      %v424 = vld [vmem:[%s253 + $0x60] sm:$0xf]
      %v425 = vld [vmem:[%s253 + $0x64] sm:$0xf]
      %v426 = vld [vmem:[%s253 + $0x68] sm:$0xf]
      %v427 = vld [vmem:[%s253 + $0x6c] sm:$0xf]
      %v428 = vld [vmem:[%s253 + $0x70] sm:$0xf]
      %v429 = vld [vmem:[%s253 + $0x74] sm:$0xf]
      %v430 = vld [vmem:[%s253 + $0x78] sm:$0xf]
      %v431 = vld [vmem:[%s253 + $0x7c] sm:$0xf]
      %v432 = vld [vmem:[%s253 + $0x80] sm:$0xf]
      %v433 = vld [vmem:[%s253 + $0x84] sm:$0xf]
      %v434 = vld [vmem:[%s253 + $0x88] sm:$0xf]
      %v435 = vld [vmem:[%s253 + $0x8c] sm:$0xf]
      %v436 = vld [vmem:[%s253 + $0x90] sm:$0xf]
      %v437 = vld [vmem:[%s253 + $0x94] sm:$0xf]
      %v438 = vld [vmem:[%s253 + $0x98] sm:$0xf]
      %v439 = vld [vmem:[%s253 + $0x9c] sm:$0xf]
      %v440 = vld [vmem:[%s253 + $0xa0] sm:$0xf]
      %v441 = vld [vmem:[%s253 + $0xa4] sm:$0xf]
      %v442 = vld [vmem:[%s253 + $0xa8] sm:$0xf]
      %v443 = vld [vmem:[%s253 + $0xac] sm:$0xf]
      %v444 = vld [vmem:[%s253 + $0xb0] sm:$0xf]
      %v445 = vld [vmem:[%s253 + $0xb4] sm:$0xf]
      %v446 = vld [vmem:[%s253 + $0xb8] sm:$0xf]
      %v447 = vld [vmem:[%s253 + $0xbc] sm:$0xf]
      %v512 = vunpack.c.l.b16 %v336
      %v513 = vunpack.c.h.b16 %v336
      %v514 = vunpack.c.l.b16 %v337
      %v515 = vunpack.c.l.b16 %v338
      %v516 = vunpack.c.h.b16 %v338
      %v517 = vunpack.c.l.b16 %v339
      %v518 = vunpack.c.l.b16 %v340
      %v519 = vunpack.c.h.b16 %v340
      %v520 = vunpack.c.l.b16 %v341
      %v521 = vunpack.c.l.b16 %v342
      %v522 = vunpack.c.h.b16 %v342
      %v523 = vunpack.c.l.b16 %v343
      %v524 = vunpack.c.l.b16 %v344
      %v525 = vunpack.c.h.b16 %v344
      %v526 = vunpack.c.l.b16 %v345
      %v527 = vunpack.c.l.b16 %v346
      %v528 = vunpack.c.h.b16 %v346
      %v529 = vunpack.c.l.b16 %v347
      %v530 = vunpack.c.l.b16 %v348
      %v531 = vunpack.c.h.b16 %v348
      %v532 = vunpack.c.l.b16 %v349
      %v533 = vunpack.c.l.b16 %v350
      %v534 = vunpack.c.h.b16 %v350
      %v535 = vunpack.c.l.b16 %v351
      %v536 = vunpack.c.l.b16 %v352
      %v537 = vunpack.c.h.b16 %v352
      %v538 = vunpack.c.l.b16 %v353
      %v539 = vunpack.c.l.b16 %v354
      %v540 = vunpack.c.h.b16 %v354
      %v541 = vunpack.c.l.b16 %v355
      %v542 = vunpack.c.l.b16 %v356
      %v543 = vunpack.c.h.b16 %v356
      %v544 = vunpack.c.l.b16 %v357
      %v545 = vunpack.c.l.b16 %v358
      %v546 = vunpack.c.h.b16 %v358
      %v547 = vunpack.c.l.b16 %v359
      %v548 = vunpack.c.l.b16 %v360
      %v549 = vunpack.c.h.b16 %v360
      %v550 = vunpack.c.l.b16 %v361
      %v551 = vunpack.c.l.b16 %v362
      %v552 = vunpack.c.h.b16 %v362
      %v553 = vunpack.c.l.b16 %v363
      %v554 = vunpack.c.l.b16 %v364
      %v555 = vunpack.c.h.b16 %v364
      %v556 = vunpack.c.l.b16 %v365
      %v557 = vunpack.c.l.b16 %v366
      %v558 = vunpack.c.h.b16 %v366
      %v559 = vunpack.c.l.b16 %v367
      %v560 = vunpack.c.l.b16 %v368
      %v561 = vunpack.c.h.b16 %v368
      %v562 = vunpack.c.l.b16 %v369
      %v563 = vunpack.c.l.b16 %v370
      %v564 = vunpack.c.h.b16 %v370
      %v565 = vunpack.c.l.b16 %v371
      %v566 = vunpack.c.l.b16 %v372
      %v567 = vunpack.c.h.b16 %v372
      %v568 = vunpack.c.l.b16 %v373
      %v569 = vunpack.c.l.b16 %v374
      %v570 = vunpack.c.h.b16 %v374
      %v571 = vunpack.c.l.b16 %v375
      %v572 = vunpack.c.l.b16 %v376
      %v573 = vunpack.c.h.b16 %v376
      %v574 = vunpack.c.l.b16 %v377
      %v575 = vunpack.c.l.b16 %v378
      %v576 = vunpack.c.h.b16 %v378
      %v577 = vunpack.c.l.b16 %v379
      %v578 = vunpack.c.l.b16 %v380
      %v579 = vunpack.c.h.b16 %v380
      %v580 = vunpack.c.l.b16 %v381
      %v581 = vunpack.c.l.b16 %v382
      %v582 = vunpack.c.h.b16 %v382
      %v583 = vunpack.c.l.b16 %v383
      %v584 = vunpack.c.l.b16 %v384
      %v585 = vunpack.c.h.b16 %v384
      %v586 = vunpack.c.l.b16 %v385
      %v587 = vunpack.c.l.b16 %v386
      %v588 = vunpack.c.h.b16 %v386
      %v589 = vunpack.c.l.b16 %v387
      %v590 = vunpack.c.l.b16 %v388
      %v591 = vunpack.c.h.b16 %v388
      %v592 = vunpack.c.l.b16 %v389
      %v593 = vunpack.c.l.b16 %v390
      %v594 = vunpack.c.h.b16 %v390
      %v595 = vunpack.c.l.b16 %v391
      %v596 = vunpack.c.l.b16 %v392
      %v597 = vunpack.c.h.b16 %v392
      %v598 = vunpack.c.l.b16 %v393
      %v599 = vunpack.c.l.b16 %v394
      %v600 = vunpack.c.h.b16 %v394
      %v601 = vunpack.c.l.b16 %v395
      %v602 = vunpack.c.l.b16 %v396
      %v603 = vunpack.c.h.b16 %v396
      %v604 = vunpack.c.l.b16 %v397
      %v605 = vunpack.c.l.b16 %v398
      %v606 = vunpack.c.h.b16 %v398
      %v607 = vunpack.c.l.b16 %v399
      %v608 = vpack.c.b16 %v515, %v512
      %v609 = vpack.c.b16 %v516, %v513
      %v610 = vpack.c.b16 %v517, %v514
      %v611 = vpack.c.b16 %v521, %v518
      %v612 = vpack.c.b16 %v522, %v519
      %v613 = vpack.c.b16 %v523, %v520
      %v614 = vpack.c.b16 %v527, %v524
      %v615 = vpack.c.b16 %v528, %v525
      %v616 = vpack.c.b16 %v529, %v526
      %v617 = vpack.c.b16 %v533, %v530
      %v618 = vpack.c.b16 %v534, %v531
      %v619 = vpack.c.b16 %v535, %v532
      %v620 = vpack.c.b16 %v539, %v536
      %v621 = vpack.c.b16 %v540, %v537
      %v622 = vpack.c.b16 %v541, %v538
      %v623 = vpack.c.b16 %v545, %v542
      %v624 = vpack.c.b16 %v546, %v543
      %v625 = vpack.c.b16 %v547, %v544
      %v626 = vpack.c.b16 %v551, %v548
      %v627 = vpack.c.b16 %v552, %v549
      %v628 = vpack.c.b16 %v553, %v550
      %v629 = vpack.c.b16 %v557, %v554
      %v630 = vpack.c.b16 %v558, %v555
      %v631 = vpack.c.b16 %v559, %v556
      %v632 = vpack.c.b16 %v563, %v560
      %v633 = vpack.c.b16 %v564, %v561
      %v634 = vpack.c.b16 %v565, %v562
      %v635 = vpack.c.b16 %v569, %v566
      %v636 = vpack.c.b16 %v570, %v567
      %v637 = vpack.c.b16 %v571, %v568
      %v638 = vpack.c.b16 %v575, %v572
      %v639 = vpack.c.b16 %v576, %v573
      %v640 = vpack.c.b16 %v577, %v574
      %v641 = vpack.c.b16 %v581, %v578
      %v642 = vpack.c.b16 %v582, %v579
      %v643 = vpack.c.b16 %v583, %v580
      %v644 = vpack.c.b16 %v587, %v584
      %v645 = vpack.c.b16 %v588, %v585
      %v646 = vpack.c.b16 %v589, %v586
      %v647 = vpack.c.b16 %v593, %v590
      %v648 = vpack.c.b16 %v594, %v591
      %v649 = vpack.c.b16 %v595, %v592
      %v650 = vpack.c.b16 %v599, %v596
      %v651 = vpack.c.b16 %v600, %v597
      %v652 = vpack.c.b16 %v601, %v598
      %v653 = vpack.c.b16 %v605, %v602
      %v654 = vpack.c.b16 %v606, %v603
      %v655 = vpack.c.b16 %v607, %v604
      %v752 = vunpack.c.l.b16 %v400
      %v753 = vunpack.c.l.b16 %v401
      %v754 = vunpack.c.l.b16 %v402
      %v755 = vunpack.c.l.b16 %v403
      %v756 = vunpack.c.l.b16 %v404
      %v757 = vunpack.c.l.b16 %v405
      %v758 = vunpack.c.l.b16 %v406
      %v759 = vunpack.c.l.b16 %v407
      %v760 = vunpack.c.l.b16 %v408
      %v761 = vunpack.c.l.b16 %v409
      %v762 = vunpack.c.l.b16 %v410
      %v763 = vunpack.c.l.b16 %v411
      %v764 = vunpack.c.l.b16 %v412
      %v765 = vunpack.c.l.b16 %v413
      %v766 = vunpack.c.l.b16 %v414
      %v767 = vunpack.c.l.b16 %v415
      %v768 = vunpack.c.l.b16 %v416
      %v769 = vunpack.c.l.b16 %v417
      %v770 = vunpack.c.l.b16 %v418
      %v771 = vunpack.c.l.b16 %v419
      %v772 = vunpack.c.l.b16 %v420
      %v773 = vunpack.c.l.b16 %v421
      %v774 = vunpack.c.l.b16 %v422
      %v775 = vunpack.c.l.b16 %v423
      %v776 = vunpack.c.l.b16 %v424
      %v777 = vunpack.c.l.b16 %v425
      %v778 = vunpack.c.l.b16 %v426
      %v779 = vunpack.c.l.b16 %v427
      %v780 = vunpack.c.l.b16 %v428
      %v781 = vunpack.c.l.b16 %v429
      %v782 = vunpack.c.l.b16 %v430
      %v783 = vunpack.c.l.b16 %v431
      %v784 = vunpack.c.l.b16 %v432
      %v785 = vunpack.c.l.b16 %v433
      %v786 = vunpack.c.l.b16 %v434
      %v787 = vunpack.c.l.b16 %v435
      %v788 = vunpack.c.l.b16 %v436
      %v789 = vunpack.c.l.b16 %v437
      %v790 = vunpack.c.l.b16 %v438
      %v791 = vunpack.c.l.b16 %v439
      %v792 = vunpack.c.l.b16 %v440
      %v793 = vunpack.c.l.b16 %v441
      %v794 = vunpack.c.l.b16 %v442
      %v795 = vunpack.c.l.b16 %v443
      %v796 = vunpack.c.l.b16 %v444
      %v797 = vunpack.c.l.b16 %v445
      %v798 = vunpack.c.l.b16 %v446
      %v799 = vunpack.c.l.b16 %v447
      %v800 = vpack.c.b16 %v753, %v752
      %v801 = vpack.c.b16 %v755, %v754
      %v802 = vpack.c.b16 %v757, %v756
      %v803 = vpack.c.b16 %v759, %v758
      %v804 = vpack.c.b16 %v761, %v760
      %v805 = vpack.c.b16 %v763, %v762
      %v806 = vpack.c.b16 %v765, %v764
      %v807 = vpack.c.b16 %v767, %v766
      %v808 = vpack.c.b16 %v769, %v768
      %v809 = vpack.c.b16 %v771, %v770
      %v810 = vpack.c.b16 %v773, %v772
      %v811 = vpack.c.b16 %v775, %v774
      %v812 = vpack.c.b16 %v777, %v776
      %v813 = vpack.c.b16 %v779, %v778
      %v814 = vpack.c.b16 %v781, %v780
      %v815 = vpack.c.b16 %v783, %v782
      %v816 = vpack.c.b16 %v785, %v784
      %v817 = vpack.c.b16 %v787, %v786
      %v818 = vpack.c.b16 %v789, %v788
      %v819 = vpack.c.b16 %v791, %v790
      %v820 = vpack.c.b16 %v793, %v792
      %v821 = vpack.c.b16 %v795, %v794
      %v822 = vpack.c.b16 %v797, %v796
      %v823 = vpack.c.b16 %v799, %v798
      %848 = vmatprep.subr.bf16.mxu0 0
      %849 = vmatpush1.bf16.msra.mxu0 %v800
      %850 = vmatprep.subr.bf16.mxu0 0
      %851 = vmatpush1.bf16.msra.mxu0 %v801
      %852 = vmatprep.subr.bf16.mxu0 0
      %853 = vmatpush1.bf16.msra.mxu0 %v802
      %854 = vmatprep.subr.bf16.mxu0 0
      %855 = vmatpush1.bf16.msra.mxu0 %v803
      %856 = vmatprep.subr.bf16.mxu0 0
      %857 = vmatpush1.bf16.msra.mxu0 %v804
      %858 = vmatprep.subr.bf16.mxu0 0
      %859 = vmatpush1.bf16.msra.mxu0 %v805
      %860 = vmatprep.subr.bf16.mxu0 0
      %861 = vmatpush1.bf16.msra.mxu0 %v806
      %862 = vmatprep.subr.bf16.mxu0 0
      %863 = vmatpush1.bf16.msra.mxu0 %v807
      %864 = vmatprep.subr.bf16.mxu0 0
      %865 = vmatpush1.bf16.msra.mxu0 %v808
      %866 = vmatprep.subr.bf16.mxu0 0
      %867 = vmatpush1.bf16.msra.mxu0 %v809
      %868 = vmatprep.subr.bf16.mxu0 0
      %869 = vmatpush1.bf16.msra.mxu0 %v810
      %870 = vmatprep.subr.bf16.mxu0 0
      %871 = vmatpush1.bf16.msra.mxu0 %v811
      %872 = vmatprep.subr.bf16.mxu0 0
      %873 = vmatpush1.bf16.msra.mxu0 %v812
      %874 = vmatprep.subr.bf16.mxu0 0
      %875 = vmatpush1.bf16.msra.mxu0 %v813
      %876 = vmatprep.subr.bf16.mxu0 0
      %877 = vmatpush1.bf16.msra.mxu0 %v814
      %878 = vmatprep.subr.bf16.mxu0 0
      %879 = vmatpush1.bf16.msra.mxu0 %v815
      %880 = vmatprep.mubr.bf16.mxu0 %v609
      %881 = vmatmul.mubr.bf16.gmra.mrb[0].mxu0 %v608
      %v882 = vpop.f32.mrb[0].mxu0
      %v883 = vadd.f32 0.0, %v882
      %v884 = vpop.f32.mrb[0].mxu0
      %v885 = vpop.f32.mrb[0].mxu0
      %v886 = vadd.f32 0.0, %v885
      %v887 = vpop.f32.mrb[0].mxu0
      %888 = vmatprep.mubr.bf16.mxu0 %v612
      %889 = vmatmul.mubr.bf16.gmra.mrb[0].mxu0 %v611
      %v890 = vpop.f32.mrb[0].mxu0
      %v891 = vadd.f32 0.0, %v890
      %v892 = vpop.f32.mrb[0].mxu0
      %v893 = vpop.f32.mrb[0].mxu0
      %v894 = vadd.f32 0.0, %v893
      %v895 = vpop.f32.mrb[0].mxu0
      %896 = vmatprep.mubr.bf16.mxu0 %v615
      %897 = vmatmul.mubr.bf16.gmra.mrb[0].mxu0 %v614
      %v898 = vpop.f32.mrb[0].mxu0
      %v899 = vadd.f32 0.0, %v898
      %v900 = vpop.f32.mrb[0].mxu0
      %v901 = vpop.f32.mrb[0].mxu0
      %v902 = vadd.f32 0.0, %v901
      %v903 = vpop.f32.mrb[0].mxu0
      %904 = vmatprep.mubr.bf16.mxu0 %v618
      %905 = vmatmul.mubr.bf16.gmra.mrb[0].mxu0 %v617
      %v906 = vpop.f32.mrb[0].mxu0
      %v907 = vadd.f32 0.0, %v906
      %v908 = vpop.f32.mrb[0].mxu0
      %v909 = vpop.f32.mrb[0].mxu0
      %v910 = vadd.f32 0.0, %v909
      %v911 = vpop.f32.mrb[0].mxu0
      %912 = vmatprep.mubr.bf16.mxu0 %v621
      %913 = vmatmul.mubr.bf16.gmra.mrb[0].mxu0 %v620
      %v914 = vpop.f32.mrb[0].mxu0
      %v915 = vadd.f32 0.0, %v914
      %v916 = vpop.f32.mrb[0].mxu0
      %v917 = vpop.f32.mrb[0].mxu0
      %v918 = vadd.f32 0.0, %v917
      %v919 = vpop.f32.mrb[0].mxu0
      %920 = vmatprep.mubr.bf16.mxu0 %v624
      %921 = vmatmul.mubr.bf16.gmra.mrb[0].mxu0 %v623
      %v922 = vpop.f32.mrb[0].mxu0
      %v923 = vadd.f32 0.0, %v922
      %v924 = vpop.f32.mrb[0].mxu0
      %v925 = vpop.f32.mrb[0].mxu0
      %v926 = vadd.f32 0.0, %v925
      %v927 = vpop.f32.mrb[0].mxu0
      %928 = vmatprep.mubr.bf16.mxu0 %v627
      %929 = vmatmul.mubr.bf16.gmra.mrb[0].mxu0 %v626
      %v930 = vpop.f32.mrb[0].mxu0
      %v931 = vadd.f32 0.0, %v930
      %v932 = vpop.f32.mrb[0].mxu0
      %v933 = vpop.f32.mrb[0].mxu0
      %v934 = vadd.f32 0.0, %v933
      %v935 = vpop.f32.mrb[0].mxu0
      %936 = vmatprep.mubr.bf16.mxu0 %v630
      %937 = vmatmul.mubr.bf16.gmra.mrb[0].mxu0 %v629
      %v938 = vpop.f32.mrb[0].mxu0
      %v939 = vadd.f32 0.0, %v938
      %v940 = vpop.f32.mrb[0].mxu0
      %v941 = vpop.f32.mrb[0].mxu0
      %v942 = vadd.f32 0.0, %v941
      %v943 = vpop.f32.mrb[0].mxu0
      %944 = vmatprep.mubr.bf16.mxu0 %v633
      %945 = vmatmul.mubr.bf16.gmra.mrb[0].mxu0 %v632
      %v946 = vpop.f32.mrb[0].mxu0
      %v947 = vadd.f32 0.0, %v946
      %v948 = vpop.f32.mrb[0].mxu0
      %v949 = vpop.f32.mrb[0].mxu0
      %v950 = vadd.f32 0.0, %v949
      %v951 = vpop.f32.mrb[0].mxu0
      %952 = vmatprep.mubr.bf16.mxu0 %v636
      %953 = vmatmul.mubr.bf16.gmra.mrb[0].mxu0 %v635
      %v954 = vpop.f32.mrb[0].mxu0
      %v955 = vadd.f32 0.0, %v954
      %v956 = vpop.f32.mrb[0].mxu0
      %v957 = vpop.f32.mrb[0].mxu0
      %v958 = vadd.f32 0.0, %v957
      %v959 = vpop.f32.mrb[0].mxu0
      %960 = vmatprep.mubr.bf16.mxu0 %v639
      %961 = vmatmul.mubr.bf16.gmra.mrb[0].mxu0 %v638
      %v962 = vpop.f32.mrb[0].mxu0
      %v963 = vadd.f32 0.0, %v962
      %v964 = vpop.f32.mrb[0].mxu0
      %v965 = vpop.f32.mrb[0].mxu0
      %v966 = vadd.f32 0.0, %v965
      %v967 = vpop.f32.mrb[0].mxu0
      %968 = vmatprep.mubr.bf16.mxu0 %v642
      %969 = vmatmul.mubr.bf16.gmra.mrb[0].mxu0 %v641
      %v970 = vpop.f32.mrb[0].mxu0
      %v971 = vadd.f32 0.0, %v970
      %v972 = vpop.f32.mrb[0].mxu0
      %v973 = vpop.f32.mrb[0].mxu0
      %v974 = vadd.f32 0.0, %v973
      %v975 = vpop.f32.mrb[0].mxu0
      %976 = vmatprep.mubr.bf16.mxu0 %v645
      %977 = vmatmul.mubr.bf16.gmra.mrb[0].mxu0 %v644
      %v978 = vpop.f32.mrb[0].mxu0
      %v979 = vadd.f32 0.0, %v978
      %v980 = vpop.f32.mrb[0].mxu0
      %v981 = vpop.f32.mrb[0].mxu0
      %v982 = vadd.f32 0.0, %v981
      %v983 = vpop.f32.mrb[0].mxu0
      %984 = vmatprep.mubr.bf16.mxu0 %v648
      %985 = vmatmul.mubr.bf16.gmra.mrb[0].mxu0 %v647
      %v986 = vpop.f32.mrb[0].mxu0
      %v987 = vadd.f32 0.0, %v986
      %v988 = vpop.f32.mrb[0].mxu0
      %v989 = vpop.f32.mrb[0].mxu0
      %v990 = vadd.f32 0.0, %v989
      %v991 = vpop.f32.mrb[0].mxu0
      %992 = vmatprep.mubr.bf16.mxu0 %v651
      %993 = vmatmul.mubr.bf16.gmra.mrb[0].mxu0 %v650
      %v994 = vpop.f32.mrb[0].mxu0
      %v995 = vadd.f32 0.0, %v994
      %v996 = vpop.f32.mrb[0].mxu0
      %v997 = vpop.f32.mrb[0].mxu0
      %v998 = vadd.f32 0.0, %v997
      %v999 = vpop.f32.mrb[0].mxu0
      %1000 = vmatprep.mubr.bf16.mxu0 %v654
      %1001 = vmatmul.mubr.bf16.gmra.mrb[0].mxu0 %v653
      %v1002 = vpop.f32.mrb[0].mxu0
      %v1003 = vadd.f32 0.0, %v1002
      %v1004 = vpop.f32.mrb[0].mxu0
      %v1005 = vpop.f32.mrb[0].mxu0
      %v1006 = vadd.f32 0.0, %v1005
      %v1007 = vpop.f32.mrb[0].mxu0
      %1008 = vdwg.mxu0
      %1009 = vmatprep.subr.bf16.mxu0 0
      %1010 = vmatpush1.bf16.msra.mxu0 %v816
      %1011 = vmatprep.subr.bf16.mxu0 0
      %1012 = vmatpush1.bf16.msra.mxu0 %v817
      %1013 = vmatprep.subr.bf16.mxu0 0
      %1014 = vmatpush1.bf16.msra.mxu0 %v818
      %1015 = vmatprep.subr.bf16.mxu0 0
      %1016 = vmatpush1.bf16.msra.mxu0 %v819
      %1017 = vmatprep.subr.bf16.mxu0 0
      %1018 = vmatpush1.bf16.msra.mxu0 %v820
      %1019 = vmatprep.subr.bf16.mxu0 0
      %1020 = vmatpush1.bf16.msra.mxu0 %v821
      %1021 = vmatprep.subr.bf16.mxu0 0
      %1022 = vmatpush1.bf16.msra.mxu0 %v822
      %1023 = vmatprep.subr.bf16.mxu0 0
      %1024 = vmatpush1.bf16.msra.mxu0 %v823
      %1025 = vmatprep.subr.bf16.mxu0 0
      %1026 = vmatpush1.bf16.msra.mxu0 0
      %1027 = vmatprep.subr.bf16.mxu0 0
      %1028 = vmatpush1.bf16.msra.mxu0 0
      %1029 = vmatprep.subr.bf16.mxu0 0
      %1030 = vmatpush1.bf16.msra.mxu0 0
      %1031 = vmatprep.subr.bf16.mxu0 0
      %1032 = vmatpush1.bf16.msra.mxu0 0
      %1033 = vmatprep.subr.bf16.mxu0 0
      %1034 = vmatpush1.bf16.msra.mxu0 0
      %1035 = vmatprep.subr.bf16.mxu0 0
      %1036 = vmatpush1.bf16.msra.mxu0 0
      %1037 = vmatprep.subr.bf16.mxu0 0
      %1038 = vmatpush1.bf16.msra.mxu0 0
      %1039 = vmatprep.subr.bf16.mxu0 0
      %1040 = vmatpush1.bf16.msra.mxu0 0
      %1041 = vmatprep.mubr.bf16.mxu0 0
      %1042 = vmatmul.mubr.bf16.gmra.mrb[0].mxu0 %v610
      %v1043 = vpop.f32.mrb[0].mxu0
      %v1044 = vadd.f32 %v883, %v1043
      %v1045 = vpop.f32.mrb[0].mxu0
      %v1046 = vpop.f32.mrb[0].mxu0
      %v1047 = vadd.f32 %v886, %v1046
      %v1048 = vpop.f32.mrb[0].mxu0
      %1049 = vmatprep.mubr.bf16.mxu0 0
      %1050 = vmatmul.mubr.bf16.gmra.mrb[0].mxu0 %v613
      %v1051 = vpop.f32.mrb[0].mxu0
      %v1052 = vadd.f32 %v891, %v1051
      %v1053 = vpop.f32.mrb[0].mxu0
      %v1054 = vpop.f32.mrb[0].mxu0
      %v1055 = vadd.f32 %v894, %v1054
      %v1056 = vpop.f32.mrb[0].mxu0
      %1057 = vmatprep.mubr.bf16.mxu0 0
      %1058 = vmatmul.mubr.bf16.gmra.mrb[0].mxu0 %v616
      %v1059 = vpop.f32.mrb[0].mxu0
      %v1060 = vadd.f32 %v899, %v1059
      %v1061 = vpop.f32.mrb[0].mxu0
      %v1062 = vpop.f32.mrb[0].mxu0
      %v1063 = vadd.f32 %v902, %v1062
      %v1064 = vpop.f32.mrb[0].mxu0
      %1065 = vmatprep.mubr.bf16.mxu0 0
      %1066 = vmatmul.mubr.bf16.gmra.mrb[0].mxu0 %v619
      %v1067 = vpop.f32.mrb[0].mxu0
      %v1068 = vadd.f32 %v907, %v1067
      %v1069 = vpop.f32.mrb[0].mxu0
      %v1070 = vpop.f32.mrb[0].mxu0
      %v1071 = vadd.f32 %v910, %v1070
      %v1072 = vpop.f32.mrb[0].mxu0
      %1073 = vmatprep.mubr.bf16.mxu0 0
      %1074 = vmatmul.mubr.bf16.gmra.mrb[0].mxu0 %v622
      %v1075 = vpop.f32.mrb[0].mxu0
      %v1076 = vadd.f32 %v915, %v1075
      %v1077 = vpop.f32.mrb[0].mxu0
      %v1078 = vpop.f32.mrb[0].mxu0
      %v1079 = vadd.f32 %v918, %v1078
      %v1080 = vpop.f32.mrb[0].mxu0
      %1081 = vmatprep.mubr.bf16.mxu0 0
      %1082 = vmatmul.mubr.bf16.gmra.mrb[0].mxu0 %v625
      %v1083 = vpop.f32.mrb[0].mxu0
      %v1084 = vadd.f32 %v923, %v1083
      %v1085 = vpop.f32.mrb[0].mxu0
      %v1086 = vpop.f32.mrb[0].mxu0
      %v1087 = vadd.f32 %v926, %v1086
      %v1088 = vpop.f32.mrb[0].mxu0
      %1089 = vmatprep.mubr.bf16.mxu0 0
      %1090 = vmatmul.mubr.bf16.gmra.mrb[0].mxu0 %v628
      %v1091 = vpop.f32.mrb[0].mxu0
      %v1092 = vadd.f32 %v931, %v1091
      %v1093 = vpop.f32.mrb[0].mxu0
      %v1094 = vpop.f32.mrb[0].mxu0
      %v1095 = vadd.f32 %v934, %v1094
      %v1096 = vpop.f32.mrb[0].mxu0
      %1097 = vmatprep.mubr.bf16.mxu0 0
      %1098 = vmatmul.mubr.bf16.gmra.mrb[0].mxu0 %v631
      %v1099 = vpop.f32.mrb[0].mxu0
      %v1100 = vadd.f32 %v939, %v1099
      %v1101 = vpop.f32.mrb[0].mxu0
      %v1102 = vpop.f32.mrb[0].mxu0
      %v1103 = vadd.f32 %v942, %v1102
      %v1104 = vpop.f32.mrb[0].mxu0
      %1105 = vmatprep.mubr.bf16.mxu0 0
      %1106 = vmatmul.mubr.bf16.gmra.mrb[0].mxu0 %v634
      %v1107 = vpop.f32.mrb[0].mxu0
      %v1108 = vadd.f32 %v947, %v1107
      %v1109 = vpop.f32.mrb[0].mxu0
      %v1110 = vpop.f32.mrb[0].mxu0
      %v1111 = vadd.f32 %v950, %v1110
      %v1112 = vpop.f32.mrb[0].mxu0
      %1113 = vmatprep.mubr.bf16.mxu0 0
      %1114 = vmatmul.mubr.bf16.gmra.mrb[0].mxu0 %v637
      %v1115 = vpop.f32.mrb[0].mxu0
      %v1116 = vadd.f32 %v955, %v1115
      %v1117 = vpop.f32.mrb[0].mxu0
      %v1118 = vpop.f32.mrb[0].mxu0
      %v1119 = vadd.f32 %v958, %v1118
      %v1120 = vpop.f32.mrb[0].mxu0
      %1121 = vmatprep.mubr.bf16.mxu0 0
      %1122 = vmatmul.mubr.bf16.gmra.mrb[0].mxu0 %v640
      %v1123 = vpop.f32.mrb[0].mxu0
      %v1124 = vadd.f32 %v963, %v1123
      %v1125 = vpop.f32.mrb[0].mxu0
      %v1126 = vpop.f32.mrb[0].mxu0
      %v1127 = vadd.f32 %v966, %v1126
      %v1128 = vpop.f32.mrb[0].mxu0
      %1129 = vmatprep.mubr.bf16.mxu0 0
      %1130 = vmatmul.mubr.bf16.gmra.mrb[0].mxu0 %v643
      %v1131 = vpop.f32.mrb[0].mxu0
      %v1132 = vadd.f32 %v971, %v1131
      %v1133 = vpop.f32.mrb[0].mxu0
      %v1134 = vpop.f32.mrb[0].mxu0
      %v1135 = vadd.f32 %v974, %v1134
      %v1136 = vpop.f32.mrb[0].mxu0
      %1137 = vmatprep.mubr.bf16.mxu0 0
      %1138 = vmatmul.mubr.bf16.gmra.mrb[0].mxu0 %v646
      %v1139 = vpop.f32.mrb[0].mxu0
      %v1140 = vadd.f32 %v979, %v1139
      %v1141 = vpop.f32.mrb[0].mxu0
      %v1142 = vpop.f32.mrb[0].mxu0
      %v1143 = vadd.f32 %v982, %v1142
      %v1144 = vpop.f32.mrb[0].mxu0
      %1145 = vmatprep.mubr.bf16.mxu0 0
      %1146 = vmatmul.mubr.bf16.gmra.mrb[0].mxu0 %v649
      %v1147 = vpop.f32.mrb[0].mxu0
      %v1148 = vadd.f32 %v987, %v1147
      %v1149 = vpop.f32.mrb[0].mxu0
      %v1150 = vpop.f32.mrb[0].mxu0
      %v1151 = vadd.f32 %v990, %v1150
      %v1152 = vpop.f32.mrb[0].mxu0
      %1153 = vmatprep.mubr.bf16.mxu0 0
      %1154 = vmatmul.mubr.bf16.gmra.mrb[0].mxu0 %v652
      %v1155 = vpop.f32.mrb[0].mxu0
      %v1156 = vadd.f32 %v995, %v1155
      %v1157 = vpop.f32.mrb[0].mxu0
      %v1158 = vpop.f32.mrb[0].mxu0
      %v1159 = vadd.f32 %v998, %v1158
      %v1160 = vpop.f32.mrb[0].mxu0
      %1161 = vmatprep.mubr.bf16.mxu0 0
      %1162 = vmatmul.mubr.bf16.gmra.mrb[0].mxu0 %v655
      %v1163 = vpop.f32.mrb[0].mxu0
      %v1164 = vadd.f32 %v1003, %v1163
      %v1165 = vpop.f32.mrb[0].mxu0
      %v1166 = vpop.f32.mrb[0].mxu0
      %v1167 = vadd.f32 %v1006, %v1166
      %v1168 = vpop.f32.mrb[0].mxu0
      %1169 = vdwg.mxu0
      %v1170 = vadd.f32 %v304, %v1044
      %v1171 = vadd.f32 %v305, %v1047
      %v1172 = vadd.f32 %v306, %v1052
      %v1173 = vadd.f32 %v307, %v1055
      %v1174 = vadd.f32 %v308, %v1060
      %v1175 = vadd.f32 %v309, %v1063
      %v1176 = vadd.f32 %v310, %v1068
      %v1177 = vadd.f32 %v311, %v1071
      %v1178 = vadd.f32 %v312, %v1076
      %v1179 = vadd.f32 %v313, %v1079
      %v1180 = vadd.f32 %v314, %v1084
      %v1181 = vadd.f32 %v315, %v1087
      %v1182 = vadd.f32 %v316, %v1092
      %v1183 = vadd.f32 %v317, %v1095
      %v1184 = vadd.f32 %v318, %v1100
      %v1185 = vadd.f32 %v319, %v1103
      %v1186 = vadd.f32 %v320, %v1108
      %v1187 = vadd.f32 %v321, %v1111
      %v1188 = vadd.f32 %v322, %v1116
      %v1189 = vadd.f32 %v323, %v1119
      %v1190 = vadd.f32 %v324, %v1124
      %v1191 = vadd.f32 %v325, %v1127
      %v1192 = vadd.f32 %v326, %v1132
      %v1193 = vadd.f32 %v327, %v1135
      %v1194 = vadd.f32 %v328, %v1140
      %v1195 = vadd.f32 %v329, %v1143
      %v1196 = vadd.f32 %v330, %v1148
      %v1197 = vadd.f32 %v331, %v1151
      %v1198 = vadd.f32 %v332, %v1156
      %v1199 = vadd.f32 %v333, %v1159
      %v1200 = vadd.f32 %v334, %v1164
      %v1201 = vadd.f32 %v335, %v1167
      %1202 = vst [vmem:[#allocation2] sm:$0xff] %v1170
      %1203 = vst [vmem:[#allocation2 + $0x8] sm:$0xff] %v1171
      %1204 = vst [vmem:[#allocation2 + $0x10] sm:$0xff] %v1172
      %1205 = vst [vmem:[#allocation2 + $0x18] sm:$0xff] %v1173
      %1206 = vst [vmem:[#allocation2 + $0x20] sm:$0xff] %v1174
      %1207 = vst [vmem:[#allocation2 + $0x28] sm:$0xff] %v1175
      %1208 = vst [vmem:[#allocation2 + $0x30] sm:$0xff] %v1176
      %1209 = vst [vmem:[#allocation2 + $0x38] sm:$0xff] %v1177
      %1210 = vst [vmem:[#allocation2 + $0x40] sm:$0xff] %v1178
      %1211 = vst [vmem:[#allocation2 + $0x48] sm:$0xff] %v1179
      %1212 = vst [vmem:[#allocation2 + $0x50] sm:$0xff] %v1180
      %1213 = vst [vmem:[#allocation2 + $0x58] sm:$0xff] %v1181
      %1214 = vst [vmem:[#allocation2 + $0x60] sm:$0xff] %v1182
      %1215 = vst [vmem:[#allocation2 + $0x68] sm:$0xff] %v1183
      %1216 = vst [vmem:[#allocation2 + $0x70] sm:$0xff] %v1184
      %1217 = vst [vmem:[#allocation2 + $0x78] sm:$0xff] %v1185
      %1218 = vst [vmem:[#allocation2 + $0x80] sm:$0xff] %v1186
      %1219 = vst [vmem:[#allocation2 + $0x88] sm:$0xff] %v1187
      %1220 = vst [vmem:[#allocation2 + $0x90] sm:$0xff] %v1188
      %1221 = vst [vmem:[#allocation2 + $0x98] sm:$0xff] %v1189
      %1222 = vst [vmem:[#allocation2 + $0xa0] sm:$0xff] %v1190
      %1223 = vst [vmem:[#allocation2 + $0xa8] sm:$0xff] %v1191
      %1224 = vst [vmem:[#allocation2 + $0xb0] sm:$0xff] %v1192
      %1225 = vst [vmem:[#allocation2 + $0xb8] sm:$0xff] %v1193
      %1226 = vst [vmem:[#allocation2 + $0xc0] sm:$0xff] %v1194
      %1227 = vst [vmem:[#allocation2 + $0xc8] sm:$0xff] %v1195
      %1228 = vst [vmem:[#allocation2 + $0xd0] sm:$0xff] %v1196
      %1229 = vst [vmem:[#allocation2 + $0xd8] sm:$0xff] %v1197
      %1230 = vst [vmem:[#allocation2 + $0xe0] sm:$0xff] %v1198
      %1231 = vst [vmem:[#allocation2 + $0xe8] sm:$0xff] %v1199
      %1232 = vst [vmem:[#allocation2 + $0xf0] sm:$0xff] %v1200
      %1233 = vst [vmem:[#allocation2 + $0xf8] sm:$0xff] %v1201
      // Predicated region
      $region37: #{motion_vqvae_forward.31} parent=31 // pred_check
        %p1234 = pneg %p268
      $region38: #{motion_vqvae_forward.31} parent=31 // pred_check_branch
        %1236 = sbr.rel (%p1234) target = $region40
      $region39: #{motion_vqvae_forward.31} parent=31 // pred_region
        %v1237 = vld [vmem:[#allocation2] sm:$0xff]
        %v1238 = vld [vmem:[#allocation2 + $0x8] sm:$0xff]
        %v1239 = vld [vmem:[#allocation2 + $0x10] sm:$0xff]
        %v1240 = vld [vmem:[#allocation2 + $0x18] sm:$0xff]
        %v1241 = vld [vmem:[#allocation2 + $0x20] sm:$0xff]
        %v1242 = vld [vmem:[#allocation2 + $0x28] sm:$0xff]
        %v1243 = vld [vmem:[#allocation2 + $0x30] sm:$0xff]
        %v1244 = vld [vmem:[#allocation2 + $0x38] sm:$0xff]
        %v1245 = vld [vmem:[#allocation2 + $0x40] sm:$0xff]
        %v1246 = vld [vmem:[#allocation2 + $0x48] sm:$0xff]
        %v1247 = vld [vmem:[#allocation2 + $0x50] sm:$0xff]
        %v1248 = vld [vmem:[#allocation2 + $0x58] sm:$0xff]
        %v1249 = vld [vmem:[#allocation2 + $0x60] sm:$0xff]
        %v1250 = vld [vmem:[#allocation2 + $0x68] sm:$0xff]
        %v1251 = vld [vmem:[#allocation2 + $0x70] sm:$0xff]
        %v1252 = vld [vmem:[#allocation2 + $0x78] sm:$0xff]
        %v1253 = vld [vmem:[#allocation2 + $0x80] sm:$0xff]
        %v1254 = vld [vmem:[#allocation2 + $0x88] sm:$0xff]
        %v1255 = vld [vmem:[#allocation2 + $0x90] sm:$0xff]
        %v1256 = vld [vmem:[#allocation2 + $0x98] sm:$0xff]
        %v1257 = vld [vmem:[#allocation2 + $0xa0] sm:$0xff]
        %v1258 = vld [vmem:[#allocation2 + $0xa8] sm:$0xff]
        %v1259 = vld [vmem:[#allocation2 + $0xb0] sm:$0xff]
        %v1260 = vld [vmem:[#allocation2 + $0xb8] sm:$0xff]
        %v1261 = vld [vmem:[#allocation2 + $0xc0] sm:$0xff]
        %v1262 = vld [vmem:[#allocation2 + $0xc8] sm:$0xff]
        %v1263 = vld [vmem:[#allocation2 + $0xd0] sm:$0xff]
        %v1264 = vld [vmem:[#allocation2 + $0xd8] sm:$0xff]
        %v1265 = vld [vmem:[#allocation2 + $0xe0] sm:$0xff]
        %v1266 = vld [vmem:[#allocation2 + $0xe8] sm:$0xff]
        %v1267 = vld [vmem:[#allocation2 + $0xf0] sm:$0xff]
        %v1268 = vld [vmem:[#allocation2 + $0xf8] sm:$0xff]
        %v1269 = vld [vmem:[%s257] sm:$0x1]
        %v1271 = vlaneseq
        %v1272 = vshrl.u32 %v1271, 7
        %v1273 = vsub.s32 0, %v1272
        %v1274 = vrot.slane %v1269, %v1273
        %v1276 = vadd.f32 %v1237, %v1274
        %v1277 = vadd.f32 %v1238, %v1274
        %v1278 = vadd.f32 %v1239, %v1274
        %v1279 = vadd.f32 %v1240, %v1274
        %v1280 = vadd.f32 %v1241, %v1274
        %v1281 = vadd.f32 %v1242, %v1274
        %v1282 = vadd.f32 %v1243, %v1274
        %v1283 = vadd.f32 %v1244, %v1274
        %v1284 = vadd.f32 %v1245, %v1274
        %v1285 = vadd.f32 %v1246, %v1274
        %v1286 = vadd.f32 %v1247, %v1274
        %v1287 = vadd.f32 %v1248, %v1274
        %v1288 = vadd.f32 %v1249, %v1274
        %v1289 = vadd.f32 %v1250, %v1274
        %v1290 = vadd.f32 %v1251, %v1274
        %v1291 = vadd.f32 %v1252, %v1274
        %v1292 = vadd.f32 %v1253, %v1274
        %v1293 = vadd.f32 %v1254, %v1274
        %v1294 = vadd.f32 %v1255, %v1274
        %v1295 = vadd.f32 %v1256, %v1274
        %v1296 = vadd.f32 %v1257, %v1274
        %v1297 = vadd.f32 %v1258, %v1274
        %v1298 = vadd.f32 %v1259, %v1274
        %v1299 = vadd.f32 %v1260, %v1274
        %v1300 = vadd.f32 %v1261, %v1274
        %v1301 = vadd.f32 %v1262, %v1274
        %v1302 = vadd.f32 %v1263, %v1274
        %v1303 = vadd.f32 %v1264, %v1274
        %v1304 = vadd.f32 %v1265, %v1274
        %v1305 = vadd.f32 %v1266, %v1274
        %v1306 = vadd.f32 %v1267, %v1274
        %v1307 = vadd.f32 %v1268, %v1274
        %v1308 = vtanh.pop %v1276
        %v1309 = vtanh.pop %v1277
        %v1310 = vtanh.pop %v1278
        %v1311 = vtanh.pop %v1279
        %v1312 = vtanh.pop %v1280
        %v1313 = vtanh.pop %v1281
        %v1314 = vtanh.pop %v1282
        %v1315 = vtanh.pop %v1283
        %v1316 = vtanh.pop %v1284
        %v1317 = vtanh.pop %v1285
        %v1318 = vtanh.pop %v1286
        %v1319 = vtanh.pop %v1287
        %v1320 = vtanh.pop %v1288
        %v1321 = vtanh.pop %v1289
        %v1322 = vtanh.pop %v1290
        %v1323 = vtanh.pop %v1291
        %v1324 = vtanh.pop %v1292
        %v1325 = vtanh.pop %v1293
        %v1326 = vtanh.pop %v1294
        %v1327 = vtanh.pop %v1295
        %v1328 = vtanh.pop %v1296
        %v1329 = vtanh.pop %v1297
        %v1330 = vtanh.pop %v1298
        %v1331 = vtanh.pop %v1299
        %v1332 = vtanh.pop %v1300
        %v1333 = vtanh.pop %v1301
        %v1334 = vtanh.pop %v1302
        %v1335 = vtanh.pop %v1303
        %v1336 = vtanh.pop %v1304
        %v1337 = vtanh.pop %v1305
        %v1338 = vtanh.pop %v1306
        %v1339 = vtanh.pop %v1307
        %1340 = vst [vmem:[%s265] sm:$0xff] %v1308
        %1341 = vst [vmem:[%s265 + $0x8] sm:$0xff] %v1309
        %1342 = vst [vmem:[%s265 + $0x10] sm:$0xff] %v1310
        %1343 = vst [vmem:[%s265 + $0x18] sm:$0xff] %v1311
        %1344 = vst [vmem:[%s265 + $0x20] sm:$0xff] %v1312
        %1345 = vst [vmem:[%s265 + $0x28] sm:$0xff] %v1313
        %1346 = vst [vmem:[%s265 + $0x30] sm:$0xff] %v1314
        %1347 = vst [vmem:[%s265 + $0x38] sm:$0xff] %v1315
        %1348 = vst [vmem:[%s265 + $0x40] sm:$0xff] %v1316
        %1349 = vst [vmem:[%s265 + $0x48] sm:$0xff] %v1317
        %1350 = vst [vmem:[%s265 + $0x50] sm:$0xff] %v1318
        %1351 = vst [vmem:[%s265 + $0x58] sm:$0xff] %v1319
        %1352 = vst [vmem:[%s265 + $0x60] sm:$0xff] %v1320
        %1353 = vst [vmem:[%s265 + $0x68] sm:$0xff] %v1321
        %1354 = vst [vmem:[%s265 + $0x70] sm:$0xff] %v1322
        %1355 = vst [vmem:[%s265 + $0x78] sm:$0xff] %v1323
        %1356 = vst [vmem:[%s265 + $0x80] sm:$0xff] %v1324
        %1357 = vst [vmem:[%s265 + $0x88] sm:$0xff] %v1325
        %1358 = vst [vmem:[%s265 + $0x90] sm:$0xff] %v1326
        %1359 = vst [vmem:[%s265 + $0x98] sm:$0xff] %v1327
        %1360 = vst [vmem:[%s265 + $0xa0] sm:$0xff] %v1328
        %1361 = vst [vmem:[%s265 + $0xa8] sm:$0xff] %v1329
        %1362 = vst [vmem:[%s265 + $0xb0] sm:$0xff] %v1330
        %1363 = vst [vmem:[%s265 + $0xb8] sm:$0xff] %v1331
        %1364 = vst [vmem:[%s265 + $0xc0] sm:$0xff] %v1332
        %1365 = vst [vmem:[%s265 + $0xc8] sm:$0xff] %v1333
        %1366 = vst [vmem:[%s265 + $0xd0] sm:$0xff] %v1334
        %1367 = vst [vmem:[%s265 + $0xd8] sm:$0xff] %v1335
        %1368 = vst [vmem:[%s265 + $0xe0] sm:$0xff] %v1336
        %1369 = vst [vmem:[%s265 + $0xe8] sm:$0xff] %v1337
        %1370 = vst [vmem:[%s265 + $0xf0] sm:$0xff] %v1338
        %1371 = vst [vmem:[%s265 + $0xf8] sm:$0xff] %v1339
      $region40: #{motion_vqvae_forward.31} parent=31 // pred_fallthru
        _
      %s1372 = smul.u32 32, %s19
      %p1373 = scmp.lt.s32.totalorder %s1372, 95
      %s1374 = scalar_select %p1373, %s1372, 95
      %p1375 = scmp.lt.s32.totalorder %s20, 0
      %s1376 = scalar_select %p1375, %s20, 0
      %s1377 = sadd.s32 %s1376, %s1374
      %s1378 = smul.addr %s1377, 8
      %s1379 = scalar_lea.vmem %s3, %s1378
      // Predicated region
      $region41: #{motion_vqvae_forward.31} parent=31 // pred_check
        %p1380 = pneg %p135
      $region42: #{motion_vqvae_forward.31} parent=31 // pred_check_branch
        %1382 = sbr.rel (%p1380) target = $region44
      $region43: #{motion_vqvae_forward.31} parent=31 // pred_region
        %s1383 = smul.u32 32, %s19
      $region44: #{motion_vqvae_forward.31} parent=31 // pred_fallthru
        _
    $region32: #{motion_vqvae_forward.31} parent=5 // pred_fallthru
      _
    %p1384 = scmp.le.s32.totalorder 2, %s9
    // Predicated region
    $region45: #{motion_vqvae_forward.31} parent=5 // pred_check
      %p1385 = pneg %p1384
    $region46: #{motion_vqvae_forward.31} parent=5 // pred_check_branch
      %1387 = sbr.rel (%p1385) target = $region48
    $region47: #{motion_vqvae_forward.31} parent=5 // pred_region
      %s1388 = ssub.s32 %s9, 2
      // Predicated region
      $region49: #{motion_vqvae_forward.31} parent=47 // pred_check
        %p1389 = pneg %p141
      $region50: #{motion_vqvae_forward.31} parent=47 // pred_check_branch
        %1391 = sbr.rel (%p1389) target = $region52
      $region51: #{motion_vqvae_forward.31} parent=47 // pred_region
        %s1392 = smul.u32 32, %s22
        %p1393 = scmp.lt.s32.totalorder %s1392, 95
        %s1394 = scalar_select %p1393, %s1392, 95
        %p1395 = scmp.lt.s32.totalorder %s23, 0
        %s1396 = scalar_select %p1395, %s23, 0
        %s1397 = sadd.s32 %s1396, %s1394
        %s1398 = smul.addr %s1397, 8
        %s1399 = scalar_lea.vmem %s3, %s1398
      $region52: #{motion_vqvae_forward.31} parent=47 // pred_fallthru
        _
    $region48: #{motion_vqvae_forward.31} parent=5 // pred_fallthru
      _
  $region6: #{motion_vqvae_forward.31} parent=0 // loop_footer
    %s13 = sadd.s32 1, %s9
  $region7: #{motion_vqvae_forward.31} parent=0 // loop_footer_branch
    %8 = sbr.rel target = $region3
  $region8: #{motion_vqvae_forward.31} parent=0 // loop_exit
    _

</llo_original>
